<compile_context>
chip_gen: v7x
topology: tpu7x:2x2x1
jax: 0.10.0
libtpu: 0.0.40
codegen_flags: <defaults>
</compile_context>

<pallas_src>
import math

import jax
import jax.numpy as jnp
from jax import lax
from jax.experimental import pallas as pl
from jax.experimental.pallas import tpu as pltpu


# Static network configuration (64x64 input so the fc sees 256*4*4 features).
CHANS = (3, 32, 64, 128, 256)
NUM_LAYERS = 4
SEL_ROWS, SEL_COLS = 34, 64      # big enough for the largest layer (Wp+2=34, Win=64)


# ----------------------------------------------------------------------------
# Fused conv trunk kernel: one grid step == one image, everything in VMEM.
# ----------------------------------------------------------------------------
def _fused_cnn_kernel(x_ref, se_ref, so_ref,
                      w1, s1, b1, w2, s2, b2, w3, s3, b3, w4, s4, b4,
                      feat_ref, pad2, pad3, pad4):
    f32 = jnp.float32

    # Zero the top/bottom halo rows of the padded scratch activations once per
    # grid step.  Left/right halo columns come out as zeros from the selection
    # matmuls on every row, so they never need separate initialization.
    pad2[0, :, :] = jnp.zeros((34, 32), pad2.dtype)
    pad2[33, :, :] = jnp.zeros((34, 32), pad2.dtype)
    pad3[0, :, :] = jnp.zeros((18, 64), pad3.dtype)
    pad3[17, :, :] = jnp.zeros((18, 64), pad3.dtype)
    pad4[0, :, :] = jnp.zeros((10, 128), pad4.dtype)
    pad4[9, :, :] = jnp.zeros((10, 128), pad4.dtype)

    def run_layer(in_ref, w_ref, s_ref, b_ref, Win, Cin, Cout, sel_e, sel_o, write_fn):
        # in_ref : (Win+2, Win+2, Cin) zero-padded activation (VMEM)
        # w_ref  : (9, Cin, Cout) bf16 conv taps; s/b: (1, Cout) folded BN scale/bias
        # sel_e/sel_o : (R, Win) f32 constants picking even/odd columns (R rows
        #               include the zero halo rows for layers feeding another conv)
        scale = s_ref[...]
        bias = b_ref[...]

        def body(ph, carry):
            # conv rows 2*ph, 2*ph+1  ->  one pooled output row ph
            acc = jnp.zeros((2 * Win, Cout), f32)
            for k in range(9):                              # static 3x3 tap unroll
                dy, dx = k // 3, k % 3
                patch = in_ref[pl.ds(2 * ph + dy, 2), dx:dx + Win, :]
                lhs = patch.reshape(2 * Win, Cin).astype(jnp.bfloat16)
                acc = acc + jnp.dot(lhs, w_ref[k], preferred_element_type=f32)
            y = jnp.maximum(acc * scale + bias, 0.0)         # folded BN + ReLU
            row_max = jnp.maximum(y[:Win, :], y[Win:, :])    # vertical 2-pool
            # horizontal 2-pool + compaction (+ zero halo cols) on the MXU
            row_out = jnp.maximum(
                jnp.dot(sel_e, row_max, preferred_element_type=f32),
                jnp.dot(sel_o, row_max, preferred_element_type=f32))
            write_fn(ph, row_out)
            return carry

        lax.fori_loop(0, Win // 2, body, 0)

    def write_pad(pad):
        def w(ph, row):
            pad[ph + 1, :, :] = row.astype(pad.dtype)
        return w

    def write_feat(ph, row):
        feat_ref[ph, :, :] = row.astype(feat_ref.dtype)

    # Layer 1: 64x64x3   -> 32x32x32   (into pad2 interior)
    run_layer(x_ref, w1, s1, b1, 64, 3, 32,
              se_ref[0:34, 0:64], so_ref[0:34, 0:64], write_pad(pad2))
    # Layer 2: 32x32x32  -> 16x16x64   (into pad3 interior)
    run_layer(pad2, w2, s2, b2, 32, 32, 64,
              se_ref[0:18, 0:32], so_ref[0:18, 0:32], write_pad(pad3))
    # Layer 3: 16x16x64  -> 8x8x128    (into pad4 interior)
    run_layer(pad3, w3, s3, b3, 16, 64, 128,
              se_ref[0:10, 0:16], so_ref[0:10, 0:16], write_pad(pad4))
    # Layer 4: 8x8x128   -> 4x4x256    (straight to the HBM output, no halo)
    run_layer(pad4, w4, s4, b4, 8, 128, 256,
              se_ref[1:5, 0:8], so_ref[1:5, 0:8], write_feat)


def fused_convnet(xp, params):
    """xp: (B, 66, 66, 3) f32 zero-padded NHWC input -> (B, 4, 4, 256) f32 features."""
    B = xp.shape[0]
    args = [xp, params["sel_even"], params["sel_odd"]]
    in_specs = [
        pl.BlockSpec((None, 66, 66, 3), lambda b: (b, 0, 0, 0)),
        pl.BlockSpec((SEL_ROWS, SEL_COLS), lambda b: (0, 0)),
        pl.BlockSpec((SEL_ROWS, SEL_COLS), lambda b: (0, 0)),
    ]
    for lyr in params["layers"]:
        args.extend([lyr["w"], lyr["scale"], lyr["bias"]])
        in_specs.extend([
            pl.BlockSpec(lyr["w"].shape, lambda b: (0, 0, 0)),
            pl.BlockSpec(lyr["scale"].shape, lambda b: (0, 0)),
            pl.BlockSpec(lyr["bias"].shape, lambda b: (0, 0)),
        ])
    return pl.pallas_call(
        _fused_cnn_kernel,
        out_shape=jax.ShapeDtypeStruct((B, 4, 4, 256), jnp.float32),
        grid=(B,),
        in_specs=in_specs,
        out_specs=pl.BlockSpec((None, 4, 4, 256), lambda b: (b, 0, 0, 0)),
        scratch_shapes=[
            pltpu.VMEM((34, 34, 32), jnp.float32),    # padded layer-2 input
            pltpu.VMEM((18, 18, 64), jnp.float32),    # padded layer-3 input
            pltpu.VMEM((10, 10, 128), jnp.float32),   # padded layer-4 input
        ],
        compiler_params=pltpu.CompilerParams(dimension_semantics=("parallel",)),
    )(*args)


# ----------------------------------------------------------------------------
# Fully-connected layer: single-block MXU matmul + bias.
# ----------------------------------------------------------------------------
def _fc_kernel(x_ref, w_ref, b_ref, o_ref):
    o_ref[...] = (jnp.dot(x_ref[...], w_ref[...],
                          preferred_element_type=jnp.float32) + b_ref[...])


def linear(x, w, b):
    B, D = x.shape
    NC = w.shape[1]
    return pl.pallas_call(
        _fc_kernel,
        out_shape=jax.ShapeDtypeStruct((B, NC), jnp.float32),
        grid=(1,),
        in_specs=[pl.BlockSpec((B, D), lambda i: (0, 0)),
                  pl.BlockSpec((D, NC), lambda i: (0, 0)),
                  pl.BlockSpec((1, NC), lambda i: (0, 0))],
        out_specs=pl.BlockSpec((B, NC), lambda i: (0, 0)),
    )(x, w, b)


# ----------------------------------------------------------------------------
# Parameters (deterministic synthetic init, shapes per CNN_ABC.__init__).
# Conv bias + eval-mode BatchNorm are folded into per-channel scale/bias.
# ----------------------------------------------------------------------------
def init_params(key, num_classes=10):
    eps = 1e-5
    layers = []
    for i in range(NUM_LAYERS):
        cin, cout = CHANS[i], CHANS[i + 1]
        key, kw, kb, kg, kbt, km, kv = jax.random.split(key, 7)
        w = jax.random.normal(kw, (3, 3, cin, cout), jnp.float32) / math.sqrt(9 * cin)
        conv_b = 0.01 * jax.random.normal(kb, (cout,), jnp.float32)
        gamma = 1.0 + 0.1 * jax.random.normal(kg, (cout,), jnp.float32)
        beta = 0.1 * jax.random.normal(kbt, (cout,), jnp.float32)
        running_mean = 0.1 * jax.random.normal(km, (cout,), jnp.float32)
        running_var = 1.0 + 0.1 * jnp.abs(jax.random.normal(kv, (cout,), jnp.float32))
        scale = gamma / jnp.sqrt(running_var + eps)
        bias = (conv_b - running_mean) * scale + beta
        layers.append(dict(
            w=w.reshape(9, cin, cout).astype(jnp.bfloat16),   # bf16 MXU operand
            scale=scale.reshape(1, cout),
            bias=bias.reshape(1, cout)))

    key, kfw, kfb = jax.random.split(key, 3)
    d = 256 * 4 * 4
    # Torch-layout (C,H,W flatten order) FC weight, permuted ONCE at init to the
    # NHWC flatten order produced by the fused kernel (removes runtime transpose).
    fc_w_t = jax.random.normal(kfw, (d, num_classes), jnp.float32) / math.sqrt(d)
    fc_w = (fc_w_t.reshape(256, 4, 4, num_classes)
            .transpose(1, 2, 0, 3).reshape(d, num_classes))
    fc_b = 0.01 * jax.random.normal(kfb, (1, num_classes), jnp.float32)

    # Constant even/odd column-selection matrices used for the fused 2x2 maxpool
    # (row 0 / out-of-range rows are all-zero -> they generate the zero halo).
    r = jnp.arange(SEL_ROWS)[:, None]
    c = jnp.arange(SEL_COLS)[None, :]
    sel_even = ((r >= 1) & (c == 2 * (r - 1))).astype(jnp.float32)
    sel_odd = ((r >= 1) & (c == 2 * (r - 1) + 1)).astype(jnp.float32)

    return dict(layers=layers, fc_w=fc_w, fc_b=fc_b,
                sel_even=sel_even, sel_odd=sel_odd)


# ----------------------------------------------------------------------------
# Forward pass (matches CNN_ABC.forward, eval mode).
# ----------------------------------------------------------------------------
def cnn_abc_forward(x_nchw, params):
    x = jnp.transpose(x_nchw, (0, 2, 3, 1)).astype(jnp.float32)   # NCHW -> NHWC (tiny)
    xp = jnp.pad(x, ((0, 0), (1, 1), (1, 1), (0, 0)))             # single small pad
    feat = fused_convnet(xp, params)                              # (B, 4, 4, 256)
    feat = feat.reshape(feat.shape[0], -1)                        # NHWC flatten (free)
    # Dropout(p=0.7): identity in eval mode.
    return linear(feat, params["fc_w"], params["fc_b"])


if __name__ == "__main__":
    num_classes = 10
    key = jax.random.PRNGKey(0)
    kx, kp = jax.random.split(key)
    # 64x64 input so that 4 rounds of MaxPool2d(2) yield the 256*4*4 fc input.
    x = jax.random.normal(kx, (2, 3, 64, 64), jnp.float32)
    params = init_params(kp, num_classes=num_classes)

    fwd = jax.jit(lambda inp: cnn_abc_forward(inp, params))
    out = jax.block_until_ready(fwd(x))

    assert out.shape == (2, num_classes), out.shape
    assert jnp.all(jnp.isfinite(out))
    print("KERNEL_OK")
</pallas_src>

<mosaic_0001>
module attributes {stable_mosaic.version = 11 : i64} {
  func.func @_fused_cnn_kernel(%arg0: i32, %arg1: memref<1x66x66x3xf32, #tpu.memory_space<vmem>>, %arg2: memref<34x64xf32, #tpu.memory_space<vmem>>, %arg3: memref<34x64xf32, #tpu.memory_space<vmem>>, %arg4: memref<9x3x32xbf16, #tpu.memory_space<vmem>>, %arg5: memref<1x32xf32, #tpu.memory_space<vmem>>, %arg6: memref<1x32xf32, #tpu.memory_space<vmem>>, %arg7: memref<9x32x64xbf16, #tpu.memory_space<vmem>>, %arg8: memref<1x64xf32, #tpu.memory_space<vmem>>, %arg9: memref<1x64xf32, #tpu.memory_space<vmem>>, %arg10: memref<9x64x128xbf16, #tpu.memory_space<vmem>>, %arg11: memref<1x128xf32, #tpu.memory_space<vmem>>, %arg12: memref<1x128xf32, #tpu.memory_space<vmem>>, %arg13: memref<9x128x256xbf16, #tpu.memory_space<vmem>>, %arg14: memref<1x256xf32, #tpu.memory_space<vmem>>, %arg15: memref<1x256xf32, #tpu.memory_space<vmem>>, %arg16: memref<1x4x4x256xf32, #tpu.memory_space<vmem>>, %arg17: memref<34x34x32xf32, #tpu.memory_space<vmem>>, %arg18: memref<18x18x64xf32, #tpu.memory_space<vmem>>, %arg19: memref<10x10x128xf32, #tpu.memory_space<vmem>>) attributes {dimension_semantics = [#tpu.dimension_semantics<parallel>], iteration_bounds = array<i64: 2>, scalar_prefetch = 0 : i64, scratch_operands = 3 : i64, tpu.core_type = #tpu.core_type<tc>, window_params = [{transform_indices = @transform_0, window_bounds = array<i64: 1, 66, 66, 3>}, {pipeline_mode = #tpu.pipeline_mode<synchronous>, transform_indices = @transform_1, window_bounds = array<i64: 34, 64>}, {pipeline_mode = #tpu.pipeline_mode<synchronous>, transform_indices = @transform_2, window_bounds = array<i64: 34, 64>}, {pipeline_mode = #tpu.pipeline_mode<synchronous>, transform_indices = @transform_3, window_bounds = array<i64: 9, 3, 32>}, {pipeline_mode = #tpu.pipeline_mode<synchronous>, transform_indices = @transform_4, window_bounds = array<i64: 1, 32>}, {pipeline_mode = #tpu.pipeline_mode<synchronous>, transform_indices = @transform_5, window_bounds = array<i64: 1, 32>}, {pipeline_mode = #tpu.pipeline_mode<synchronous>, transform_indices = @transform_6, window_bounds = array<i64: 9, 32, 64>}, {pipeline_mode = #tpu.pipeline_mode<synchronous>, transform_indices = @transform_7, window_bounds = array<i64: 1, 64>}, {pipeline_mode = #tpu.pipeline_mode<synchronous>, transform_indices = @transform_8, window_bounds = array<i64: 1, 64>}, {pipeline_mode = #tpu.pipeline_mode<synchronous>, transform_indices = @transform_9, window_bounds = array<i64: 9, 64, 128>}, {pipeline_mode = #tpu.pipeline_mode<synchronous>, transform_indices = @transform_10, window_bounds = array<i64: 1, 128>}, {pipeline_mode = #tpu.pipeline_mode<synchronous>, transform_indices = @transform_11, window_bounds = array<i64: 1, 128>}, {pipeline_mode = #tpu.pipeline_mode<synchronous>, transform_indices = @transform_12, window_bounds = array<i64: 9, 128, 256>}, {pipeline_mode = #tpu.pipeline_mode<synchronous>, transform_indices = @transform_13, window_bounds = array<i64: 1, 256>}, {pipeline_mode = #tpu.pipeline_mode<synchronous>, transform_indices = @transform_14, window_bounds = array<i64: 1, 256>}, {transform_indices = @transform_15, window_bounds = array<i64: 1, 4, 4, 256>}]} {
    %cst = arith.constant 0.000000e+00 : f32
    %0 = vector.broadcast %cst : f32 to vector<34x32xf32>
    %c0 = arith.constant 0 : index
    %c0_0 = arith.constant 0 : index
    %c0_1 = arith.constant 0 : index
    %1 = vector.load %arg17[%c0, %c0_0, %c0_1] : memref<34x34x32xf32, #tpu.memory_space<vmem>>, vector<1x34x32xf32>
    %2 = vector.shape_cast %1 : vector<1x34x32xf32> to vector<34x32xf32>
    %3 = vector.shape_cast %0 : vector<34x32xf32> to vector<1x34x32xf32>
    tpu.vector_store %arg17[%c0, %c0_0, %c0_1], %3 {strides = array<i32>} : memref<34x34x32xf32, #tpu.memory_space<vmem>>, vector<1x34x32xf32>,
    %cst_2 = arith.constant 0.000000e+00 : f32
    %4 = vector.broadcast %cst_2 : f32 to vector<34x32xf32>
    %c33 = arith.constant 33 : index
    %c0_3 = arith.constant 0 : index
    %c0_4 = arith.constant 0 : index
    %5 = vector.load %arg17[%c33, %c0_3, %c0_4] : memref<34x34x32xf32, #tpu.memory_space<vmem>>, vector<1x34x32xf32>
    %6 = vector.shape_cast %5 : vector<1x34x32xf32> to vector<34x32xf32>
    %7 = vector.shape_cast %4 : vector<34x32xf32> to vector<1x34x32xf32>
    tpu.vector_store %arg17[%c33, %c0_3, %c0_4], %7 {strides = array<i32>} : memref<34x34x32xf32, #tpu.memory_space<vmem>>, vector<1x34x32xf32>,
    %cst_5 = arith.constant 0.000000e+00 : f32
    %8 = vector.broadcast %cst_5 : f32 to vector<18x64xf32>
    %c0_6 = arith.constant 0 : index
    %c0_7 = arith.constant 0 : index
    %c0_8 = arith.constant 0 : index
    %9 = vector.load %arg18[%c0_6, %c0_7, %c0_8] : memref<18x18x64xf32, #tpu.memory_space<vmem>>, vector<1x18x64xf32>
    %10 = vector.shape_cast %9 : vector<1x18x64xf32> to vector<18x64xf32>
    %11 = vector.shape_cast %8 : vector<18x64xf32> to vector<1x18x64xf32>
    tpu.vector_store %arg18[%c0_6, %c0_7, %c0_8], %11 {strides = array<i32>} : memref<18x18x64xf32, #tpu.memory_space<vmem>>, vector<1x18x64xf32>,
    %cst_9 = arith.constant 0.000000e+00 : f32
    %12 = vector.broadcast %cst_9 : f32 to vector<18x64xf32>
    %c17 = arith.constant 17 : index
    %c0_10 = arith.constant 0 : index
    %c0_11 = arith.constant 0 : index
    %13 = vector.load %arg18[%c17, %c0_10, %c0_11] : memref<18x18x64xf32, #tpu.memory_space<vmem>>, vector<1x18x64xf32>
    %14 = vector.shape_cast %13 : vector<1x18x64xf32> to vector<18x64xf32>
    %15 = vector.shape_cast %12 : vector<18x64xf32> to vector<1x18x64xf32>
    tpu.vector_store %arg18[%c17, %c0_10, %c0_11], %15 {strides = array<i32>} : memref<18x18x64xf32, #tpu.memory_space<vmem>>, vector<1x18x64xf32>,
    %cst_12 = arith.constant 0.000000e+00 : f32
    %16 = vector.broadcast %cst_12 : f32 to vector<10x128xf32>
    %c0_13 = arith.constant 0 : index
    %c0_14 = arith.constant 0 : index
    %c0_15 = arith.constant 0 : index
    %17 = vector.load %arg19[%c0_13, %c0_14, %c0_15] : memref<10x10x128xf32, #tpu.memory_space<vmem>>, vector<1x10x128xf32>
    %18 = vector.shape_cast %17 : vector<1x10x128xf32> to vector<10x128xf32>
    %19 = vector.shape_cast %16 : vector<10x128xf32> to vector<1x10x128xf32>
    tpu.vector_store %arg19[%c0_13, %c0_14, %c0_15], %19 {strides = array<i32>} : memref<10x10x128xf32, #tpu.memory_space<vmem>>, vector<1x10x128xf32>,
    %cst_16 = arith.constant 0.000000e+00 : f32
    %20 = vector.broadcast %cst_16 : f32 to vector<10x128xf32>
    %c9 = arith.constant 9 : index
    %c0_17 = arith.constant 0 : index
    %c0_18 = arith.constant 0 : index
    %21 = vector.load %arg19[%c9, %c0_17, %c0_18] : memref<10x10x128xf32, #tpu.memory_space<vmem>>, vector<1x10x128xf32>
    %22 = vector.shape_cast %21 : vector<1x10x128xf32> to vector<10x128xf32>
    %23 = vector.shape_cast %20 : vector<10x128xf32> to vector<1x10x128xf32>
    tpu.vector_store %arg19[%c9, %c0_17, %c0_18], %23 {strides = array<i32>} : memref<10x10x128xf32, #tpu.memory_space<vmem>>, vector<1x10x128xf32>,
    %c0_19 = arith.constant 0 : index
    %c0_20 = arith.constant 0 : index
    %24 = vector.load %arg2[%c0_19, %c0_20] : memref<34x64xf32, #tpu.memory_space<vmem>>, vector<34x64xf32>
    %c0_21 = arith.constant 0 : index
    %c0_22 = arith.constant 0 : index
    %25 = vector.load %arg3[%c0_21, %c0_22] : memref<34x64xf32, #tpu.memory_space<vmem>>, vector<34x64xf32>
    %c0_23 = arith.constant 0 : index
    %c0_24 = arith.constant 0 : index
    %26 = vector.load %arg5[%c0_23, %c0_24] : memref<1x32xf32, #tpu.memory_space<vmem>>, vector<1x32xf32>
    %c0_25 = arith.constant 0 : index
    %c0_26 = arith.constant 0 : index
    %27 = vector.load %arg6[%c0_25, %c0_26] : memref<1x32xf32, #tpu.memory_space<vmem>>, vector<1x32xf32>
    %c0_i32 = arith.constant 0 : i32
    %c32_i32 = arith.constant 32 : i32
    %28 = arith.addi %c0_i32, %c32_i32 : i32
    %c1_i32 = arith.constant 1 : i32
    scf.for %arg20 = %c0_i32 to %28 step %c1_i32  : i32 {
      %cst_60 = arith.constant 0.000000e+00 : f32
      %44 = vector.broadcast %cst_60 : f32 to vector<128x32xf32>
      %c2_i32 = arith.constant 2 : i32
      %45 = arith.muli %c2_i32, %arg20 : i32
      %c0_i32_61 = arith.constant 0 : i32
      %46 = arith.addi %45, %c0_i32_61 : i32
      %c0_62 = arith.constant 0 : index
      %47 = arith.index_cast %46 : i32 to index
      %c0_63 = arith.constant 0 : index
      %c0_64 = arith.constant 0 : index
      %48 = vector.load %arg1[%c0_62, %47, %c0_63, %c0_64] : memref<1x66x66x3xf32, #tpu.memory_space<vmem>>, vector<1x2x64x3xf32>
      %49 = vector.shape_cast %48 : vector<1x2x64x3xf32> to vector<2x64x3xf32>
      %50 = vector.shape_cast %49 : vector<2x64x3xf32> to vector<128x3xf32>
      %51 = arith.truncf %50 : vector<128x3xf32> to vector<128x3xbf16>
      %c0_65 = arith.constant 0 : index
      %c0_66 = arith.constant 0 : index
      %c0_67 = arith.constant 0 : index
      %52 = vector.load %arg4[%c0_65, %c0_66, %c0_67] : memref<9x3x32xbf16, #tpu.memory_space<vmem>>, vector<1x3x32xbf16>
      %53 = vector.shape_cast %52 : vector<1x3x32xbf16> to vector<3x32xbf16>
      %cst_68 = arith.constant dense<0.000000e+00> : vector<128x32xf32>
      %54 = tpu.matmul %51, %53, %cst_68 {dimension_numbers = #tpu.dot_dimension_numbers<[1], [0], [0], [1], [0, 0, 1, 1], [], []>} : vector<128x3xbf16>, vector<3x32xbf16>, vector<128x32xf32> -> vector<128x32xf32>
      %55 = arith.addf %44, %54 : vector<128x32xf32>
      %c2_i32_69 = arith.constant 2 : i32
      %56 = arith.muli %c2_i32_69, %arg20 : i32
      %c0_i32_70 = arith.constant 0 : i32
      %57 = arith.addi %56, %c0_i32_70 : i32
      %c0_71 = arith.constant 0 : index
      %58 = arith.index_cast %57 : i32 to index
      %c1_72 = arith.constant 1 : index
      %c0_73 = arith.constant 0 : index
      %59 = vector.load %arg1[%c0_71, %58, %c1_72, %c0_73] : memref<1x66x66x3xf32, #tpu.memory_space<vmem>>, vector<1x2x64x3xf32>
      %60 = vector.shape_cast %59 : vector<1x2x64x3xf32> to vector<2x64x3xf32>
      %61 = vector.shape_cast %60 : vector<2x64x3xf32> to vector<128x3xf32>
      %62 = arith.truncf %61 : vector<128x3xf32> to vector<128x3xbf16>
      %c1_74 = arith.constant 1 : index
      %c0_75 = arith.constant 0 : index
      %c0_76 = arith.constant 0 : index
      %63 = vector.load %arg4[%c1_74, %c0_75, %c0_76] : memref<9x3x32xbf16, #tpu.memory_space<vmem>>, vector<1x3x32xbf16>
      %64 = vector.shape_cast %63 : vector<1x3x32xbf16> to vector<3x32xbf16>
      %cst_77 = arith.constant dense<0.000000e+00> : vector<128x32xf32>
      %65 = tpu.matmul %62, %64, %cst_77 {dimension_numbers = #tpu.dot_dimension_numbers<[1], [0], [0], [1], [0, 0, 1, 1], [], []>} : vector<128x3xbf16>, vector<3x32xbf16>, vector<128x32xf32> -> vector<128x32xf32>
      %66 = arith.addf %55, %65 : vector<128x32xf32>
      %c2_i32_78 = arith.constant 2 : i32
      %67 = arith.muli %c2_i32_78, %arg20 : i32
      %c0_i32_79 = arith.constant 0 : i32
      %68 = arith.addi %67, %c0_i32_79 : i32
      %c0_80 = arith.constant 0 : index
      %69 = arith.index_cast %68 : i32 to index
      %c2 = arith.constant 2 : index
      %c0_81 = arith.constant 0 : index
      %70 = vector.load %arg1[%c0_80, %69, %c2, %c0_81] : memref<1x66x66x3xf32, #tpu.memory_space<vmem>>, vector<1x2x64x3xf32>
      %71 = vector.shape_cast %70 : vector<1x2x64x3xf32> to vector<2x64x3xf32>
      %72 = vector.shape_cast %71 : vector<2x64x3xf32> to vector<128x3xf32>
      %73 = arith.truncf %72 : vector<128x3xf32> to vector<128x3xbf16>
      %c2_82 = arith.constant 2 : index
      %c0_83 = arith.constant 0 : index
      %c0_84 = arith.constant 0 : index
      %74 = vector.load %arg4[%c2_82, %c0_83, %c0_84] : memref<9x3x32xbf16, #tpu.memory_space<vmem>>, vector<1x3x32xbf16>
      %75 = vector.shape_cast %74 : vector<1x3x32xbf16> to vector<3x32xbf16>
      %cst_85 = arith.constant dense<0.000000e+00> : vector<128x32xf32>
      %76 = tpu.matmul %73, %75, %cst_85 {dimension_numbers = #tpu.dot_dimension_numbers<[1], [0], [0], [1], [0, 0, 1, 1], [], []>} : vector<128x3xbf16>, vector<3x32xbf16>, vector<128x32xf32> -> vector<128x32xf32>
      %77 = arith.addf %66, %76 : vector<128x32xf32>
      %c2_i32_86 = arith.constant 2 : i32
      %78 = arith.muli %c2_i32_86, %arg20 : i32
      %c1_i32_87 = arith.constant 1 : i32
      %79 = arith.addi %78, %c1_i32_87 : i32
      %c0_88 = arith.constant 0 : index
      %80 = arith.index_cast %79 : i32 to index
      %c0_89 = arith.constant 0 : index
      %c0_90 = arith.constant 0 : index
      %81 = vector.load %arg1[%c0_88, %80, %c0_89, %c0_90] : memref<1x66x66x3xf32, #tpu.memory_space<vmem>>, vector<1x2x64x3xf32>
      %82 = vector.shape_cast %81 : vector<1x2x64x3xf32> to vector<2x64x3xf32>
      %83 = vector.shape_cast %82 : vector<2x64x3xf32> to vector<128x3xf32>
      %84 = arith.truncf %83 : vector<128x3xf32> to vector<128x3xbf16>
      %c3 = arith.constant 3 : index
      %c0_91 = arith.constant 0 : index
      %c0_92 = arith.constant 0 : index
      %85 = vector.load %arg4[%c3, %c0_91, %c0_92] : memref<9x3x32xbf16, #tpu.memory_space<vmem>>, vector<1x3x32xbf16>
      %86 = vector.shape_cast %85 : vector<1x3x32xbf16> to vector<3x32xbf16>
      %cst_93 = arith.constant dense<0.000000e+00> : vector<128x32xf32>
      %87 = tpu.matmul %84, %86, %cst_93 {dimension_numbers = #tpu.dot_dimension_numbers<[1], [0], [0], [1], [0, 0, 1, 1], [], []>} : vector<128x3xbf16>, vector<3x32xbf16>, vector<128x32xf32> -> vector<128x32xf32>
      %88 = arith.addf %77, %87 : vector<128x32xf32>
      %c2_i32_94 = arith.constant 2 : i32
      %89 = arith.muli %c2_i32_94, %arg20 : i32
      %c1_i32_95 = arith.constant 1 : i32
      %90 = arith.addi %89, %c1_i32_95 : i32
      %c0_96 = arith.constant 0 : index
      %91 = arith.index_cast %90 : i32 to index
      %c1_97 = arith.constant 1 : index
      %c0_98 = arith.constant 0 : index
      %92 = vector.load %arg1[%c0_96, %91, %c1_97, %c0_98] : memref<1x66x66x3xf32, #tpu.memory_space<vmem>>, vector<1x2x64x3xf32>
      %93 = vector.shape_cast %92 : vector<1x2x64x3xf32> to vector<2x64x3xf32>
      %94 = vector.shape_cast %93 : vector<2x64x3xf32> to vector<128x3xf32>
      %95 = arith.truncf %94 : vector<128x3xf32> to vector<128x3xbf16>
      %c4 = arith.constant 4 : index
      %c0_99 = arith.constant 0 : index
      %c0_100 = arith.constant 0 : index
      %96 = vector.load %arg4[%c4, %c0_99, %c0_100] : memref<9x3x32xbf16, #tpu.memory_space<vmem>>, vector<1x3x32xbf16>
      %97 = vector.shape_cast %96 : vector<1x3x32xbf16> to vector<3x32xbf16>
      %cst_101 = arith.constant dense<0.000000e+00> : vector<128x32xf32>
      %98 = tpu.matmul %95, %97, %cst_101 {dimension_numbers = #tpu.dot_dimension_numbers<[1], [0], [0], [1], [0, 0, 1, 1], [], []>} : vector<128x3xbf16>, vector<3x32xbf16>, vector<128x32xf32> -> vector<128x32xf32>
      %99 = arith.addf %88, %98 : vector<128x32xf32>
      %c2_i32_102 = arith.constant 2 : i32
      %100 = arith.muli %c2_i32_102, %arg20 : i32
      %c1_i32_103 = arith.constant 1 : i32
      %101 = arith.addi %100, %c1_i32_103 : i32
      %c0_104 = arith.constant 0 : index
      %102 = arith.index_cast %101 : i32 to index
      %c2_105 = arith.constant 2 : index
      %c0_106 = arith.constant 0 : index
      %103 = vector.load %arg1[%c0_104, %102, %c2_105, %c0_106] : memref<1x66x66x3xf32, #tpu.memory_space<vmem>>, vector<1x2x64x3xf32>
      %104 = vector.shape_cast %103 : vector<1x2x64x3xf32> to vector<2x64x3xf32>
      %105 = vector.shape_cast %104 : vector<2x64x3xf32> to vector<128x3xf32>
      %106 = arith.truncf %105 : vector<128x3xf32> to vector<128x3xbf16>
      %c5 = arith.constant 5 : index
      %c0_107 = arith.constant 0 : index
      %c0_108 = arith.constant 0 : index
      %107 = vector.load %arg4[%c5, %c0_107, %c0_108] : memref<9x3x32xbf16, #tpu.memory_space<vmem>>, vector<1x3x32xbf16>
      %108 = vector.shape_cast %107 : vector<1x3x32xbf16> to vector<3x32xbf16>
      %cst_109 = arith.constant dense<0.000000e+00> : vector<128x32xf32>
      %109 = tpu.matmul %106, %108, %cst_109 {dimension_numbers = #tpu.dot_dimension_numbers<[1], [0], [0], [1], [0, 0, 1, 1], [], []>} : vector<128x3xbf16>, vector<3x32xbf16>, vector<128x32xf32> -> vector<128x32xf32>
      %110 = arith.addf %99, %109 : vector<128x32xf32>
      %c2_i32_110 = arith.constant 2 : i32
      %111 = arith.muli %c2_i32_110, %arg20 : i32
      %c2_i32_111 = arith.constant 2 : i32
      %112 = arith.addi %111, %c2_i32_111 : i32
      %c0_112 = arith.constant 0 : index
      %113 = arith.index_cast %112 : i32 to index
      %c0_113 = arith.constant 0 : index
      %c0_114 = arith.constant 0 : index
      %114 = vector.load %arg1[%c0_112, %113, %c0_113, %c0_114] : memref<1x66x66x3xf32, #tpu.memory_space<vmem>>, vector<1x2x64x3xf32>
      %115 = vector.shape_cast %114 : vector<1x2x64x3xf32> to vector<2x64x3xf32>
      %116 = vector.shape_cast %115 : vector<2x64x3xf32> to vector<128x3xf32>
      %117 = arith.truncf %116 : vector<128x3xf32> to vector<128x3xbf16>
      %c6 = arith.constant 6 : index
      %c0_115 = arith.constant 0 : index
      %c0_116 = arith.constant 0 : index
      %118 = vector.load %arg4[%c6, %c0_115, %c0_116] : memref<9x3x32xbf16, #tpu.memory_space<vmem>>, vector<1x3x32xbf16>
      %119 = vector.shape_cast %118 : vector<1x3x32xbf16> to vector<3x32xbf16>
      %cst_117 = arith.constant dense<0.000000e+00> : vector<128x32xf32>
      %120 = tpu.matmul %117, %119, %cst_117 {dimension_numbers = #tpu.dot_dimension_numbers<[1], [0], [0], [1], [0, 0, 1, 1], [], []>} : vector<128x3xbf16>, vector<3x32xbf16>, vector<128x32xf32> -> vector<128x32xf32>
      %121 = arith.addf %110, %120 : vector<128x32xf32>
      %c2_i32_118 = arith.constant 2 : i32
      %122 = arith.muli %c2_i32_118, %arg20 : i32
      %c2_i32_119 = arith.constant 2 : i32
      %123 = arith.addi %122, %c2_i32_119 : i32
      %c0_120 = arith.constant 0 : index
      %124 = arith.index_cast %123 : i32 to index
      %c1_121 = arith.constant 1 : index
      %c0_122 = arith.constant 0 : index
      %125 = vector.load %arg1[%c0_120, %124, %c1_121, %c0_122] : memref<1x66x66x3xf32, #tpu.memory_space<vmem>>, vector<1x2x64x3xf32>
      %126 = vector.shape_cast %125 : vector<1x2x64x3xf32> to vector<2x64x3xf32>
      %127 = vector.shape_cast %126 : vector<2x64x3xf32> to vector<128x3xf32>
      %128 = arith.truncf %127 : vector<128x3xf32> to vector<128x3xbf16>
      %c7 = arith.constant 7 : index
      %c0_123 = arith.constant 0 : index
      %c0_124 = arith.constant 0 : index
      %129 = vector.load %arg4[%c7, %c0_123, %c0_124] : memref<9x3x32xbf16, #tpu.memory_space<vmem>>, vector<1x3x32xbf16>
      %130 = vector.shape_cast %129 : vector<1x3x32xbf16> to vector<3x32xbf16>
      %cst_125 = arith.constant dense<0.000000e+00> : vector<128x32xf32>
      %131 = tpu.matmul %128, %130, %cst_125 {dimension_numbers = #tpu.dot_dimension_numbers<[1], [0], [0], [1], [0, 0, 1, 1], [], []>} : vector<128x3xbf16>, vector<3x32xbf16>, vector<128x32xf32> -> vector<128x32xf32>
      %132 = arith.addf %121, %131 : vector<128x32xf32>
      %c2_i32_126 = arith.constant 2 : i32
      %133 = arith.muli %c2_i32_126, %arg20 : i32
      %c2_i32_127 = arith.constant 2 : i32
      %134 = arith.addi %133, %c2_i32_127 : i32
      %c0_128 = arith.constant 0 : index
      %135 = arith.index_cast %134 : i32 to index
      %c2_129 = arith.constant 2 : index
      %c0_130 = arith.constant 0 : index
      %136 = vector.load %arg1[%c0_128, %135, %c2_129, %c0_130] : memref<1x66x66x3xf32, #tpu.memory_space<vmem>>, vector<1x2x64x3xf32>
      %137 = vector.shape_cast %136 : vector<1x2x64x3xf32> to vector<2x64x3xf32>
      %138 = vector.shape_cast %137 : vector<2x64x3xf32> to vector<128x3xf32>
      %139 = arith.truncf %138 : vector<128x3xf32> to vector<128x3xbf16>
      %c8 = arith.constant 8 : index
      %c0_131 = arith.constant 0 : index
      %c0_132 = arith.constant 0 : index
      %140 = vector.load %arg4[%c8, %c0_131, %c0_132] : memref<9x3x32xbf16, #tpu.memory_space<vmem>>, vector<1x3x32xbf16>
      %141 = vector.shape_cast %140 : vector<1x3x32xbf16> to vector<3x32xbf16>
      %cst_133 = arith.constant dense<0.000000e+00> : vector<128x32xf32>
      %142 = tpu.matmul %139, %141, %cst_133 {dimension_numbers = #tpu.dot_dimension_numbers<[1], [0], [0], [1], [0, 0, 1, 1], [], []>} : vector<128x3xbf16>, vector<3x32xbf16>, vector<128x32xf32> -> vector<128x32xf32>
      %143 = arith.addf %132, %142 : vector<128x32xf32>
      %144 = vector.broadcast %26 : vector<1x32xf32> to vector<128x32xf32>
      %145 = arith.mulf %143, %144 : vector<128x32xf32>
      %146 = vector.broadcast %27 : vector<1x32xf32> to vector<128x32xf32>
      %147 = arith.addf %145, %146 : vector<128x32xf32>
      %cst_134 = arith.constant 0.000000e+00 : f32
      %148 = vector.broadcast %cst_134 : f32 to vector<128x32xf32>
      %149 = arith.maximumf %147, %148 : vector<128x32xf32>
      %150 = vector.extract_strided_slice %149 {offsets = [0, 0], sizes = [64, 32], strides = [1, 1]} : vector<128x32xf32> to vector<64x32xf32>
      %151 = vector.extract_strided_slice %149 {offsets = [64, 0], sizes = [64, 32], strides = [1, 1]} : vector<128x32xf32> to vector<64x32xf32>
      %152 = arith.maximumf %150, %151 : vector<64x32xf32>
      %cst_135 = arith.constant dense<0.000000e+00> : vector<34x32xf32>
      %153 = tpu.matmul %24, %152, %cst_135 {dimension_numbers = #tpu.dot_dimension_numbers<[1], [0], [0], [1], [0, 0, 1, 1], [], []>} : vector<34x64xf32>, vector<64x32xf32>, vector<34x32xf32> -> vector<34x32xf32>
      %cst_136 = arith.constant dense<0.000000e+00> : vector<34x32xf32>
      %154 = tpu.matmul %25, %152, %cst_136 {dimension_numbers = #tpu.dot_dimension_numbers<[1], [0], [0], [1], [0, 0, 1, 1], [], []>} : vector<34x64xf32>, vector<64x32xf32>, vector<34x32xf32> -> vector<34x32xf32>
      %155 = arith.maximumf %153, %154 : vector<34x32xf32>
      %c1_i32_137 = arith.constant 1 : i32
      %156 = arith.addi %arg20, %c1_i32_137 : i32
      %157 = arith.index_cast %156 : i32 to index
      %c0_138 = arith.constant 0 : index
      %c0_139 = arith.constant 0 : index
      %158 = vector.load %arg17[%157, %c0_138, %c0_139] : memref<34x34x32xf32, #tpu.memory_space<vmem>>, vector<1x34x32xf32>
      %159 = vector.shape_cast %158 : vector<1x34x32xf32> to vector<34x32xf32>
      %160 = vector.shape_cast %155 : vector<34x32xf32> to vector<1x34x32xf32>
      tpu.vector_store %arg17[%157, %c0_138, %c0_139], %160 {strides = array<i32>} : memref<34x34x32xf32, #tpu.memory_space<vmem>>, vector<1x34x32xf32>,
    }
    %c32_i32_27 = arith.constant 32 : i32
    %c0_28 = arith.constant 0 : index
    %c0_29 = arith.constant 0 : index
    %29 = vector.load %arg2[%c0_28, %c0_29] : memref<34x64xf32, #tpu.memory_space<vmem>>, vector<18x32xf32>
    %c0_30 = arith.constant 0 : index
    %c0_31 = arith.constant 0 : index
    %30 = vector.load %arg3[%c0_30, %c0_31] : memref<34x64xf32, #tpu.memory_space<vmem>>, vector<18x32xf32>
    %c0_32 = arith.constant 0 : index
    %c0_33 = arith.constant 0 : index
    %31 = vector.load %arg8[%c0_32, %c0_33] : memref<1x64xf32, #tpu.memory_space<vmem>>, vector<1x64xf32>
    %c0_34 = arith.constant 0 : index
    %c0_35 = arith.constant 0 : index
    %32 = vector.load %arg9[%c0_34, %c0_35] : memref<1x64xf32, #tpu.memory_space<vmem>>, vector<1x64xf32>
    %c0_i32_36 = arith.constant 0 : i32
    %c16_i32 = arith.constant 16 : i32
    %33 = arith.addi %c0_i32_36, %c16_i32 : i32
    %c1_i32_37 = arith.constant 1 : i32
    scf.for %arg20 = %c0_i32_36 to %33 step %c1_i32_37  : i32 {
      %cst_60 = arith.constant 0.000000e+00 : f32
      %44 = vector.broadcast %cst_60 : f32 to vector<64x64xf32>
      %c2_i32 = arith.constant 2 : i32
      %45 = arith.muli %c2_i32, %arg20 : i32
      %c0_i32_61 = arith.constant 0 : i32
      %46 = arith.addi %45, %c0_i32_61 : i32
      %47 = arith.index_cast %46 : i32 to index
      %c0_62 = arith.constant 0 : index
      %c0_63 = arith.constant 0 : index
      %48 = vector.load %arg17[%47, %c0_62, %c0_63] : memref<34x34x32xf32, #tpu.memory_space<vmem>>, vector<2x32x32xf32>
      %49 = vector.shape_cast %48 : vector<2x32x32xf32> to vector<64x32xf32>
      %50 = arith.truncf %49 : vector<64x32xf32> to vector<64x32xbf16>
      %c0_64 = arith.constant 0 : index
      %c0_65 = arith.constant 0 : index
      %c0_66 = arith.constant 0 : index
      %51 = vector.load %arg7[%c0_64, %c0_65, %c0_66] : memref<9x32x64xbf16, #tpu.memory_space<vmem>>, vector<1x32x64xbf16>
      %52 = vector.shape_cast %51 : vector<1x32x64xbf16> to vector<32x64xbf16>
      %cst_67 = arith.constant dense<0.000000e+00> : vector<64x64xf32>
      %53 = tpu.matmul %50, %52, %cst_67 {dimension_numbers = #tpu.dot_dimension_numbers<[1], [0], [0], [1], [0, 0, 1, 1], [], []>} : vector<64x32xbf16>, vector<32x64xbf16>, vector<64x64xf32> -> vector<64x64xf32>
      %54 = arith.addf %44, %53 : vector<64x64xf32>
      %c2_i32_68 = arith.constant 2 : i32
      %55 = arith.muli %c2_i32_68, %arg20 : i32
      %c0_i32_69 = arith.constant 0 : i32
      %56 = arith.addi %55, %c0_i32_69 : i32
      %57 = arith.index_cast %56 : i32 to index
      %c1_70 = arith.constant 1 : index
      %c0_71 = arith.constant 0 : index
      %58 = vector.load %arg17[%57, %c1_70, %c0_71] : memref<34x34x32xf32, #tpu.memory_space<vmem>>, vector<2x32x32xf32>
      %59 = vector.shape_cast %58 : vector<2x32x32xf32> to vector<64x32xf32>
      %60 = arith.truncf %59 : vector<64x32xf32> to vector<64x32xbf16>
      %c1_72 = arith.constant 1 : index
      %c0_73 = arith.constant 0 : index
      %c0_74 = arith.constant 0 : index
      %61 = vector.load %arg7[%c1_72, %c0_73, %c0_74] : memref<9x32x64xbf16, #tpu.memory_space<vmem>>, vector<1x32x64xbf16>
      %62 = vector.shape_cast %61 : vector<1x32x64xbf16> to vector<32x64xbf16>
      %cst_75 = arith.constant dense<0.000000e+00> : vector<64x64xf32>
      %63 = tpu.matmul %60, %62, %cst_75 {dimension_numbers = #tpu.dot_dimension_numbers<[1], [0], [0], [1], [0, 0, 1, 1], [], []>} : vector<64x32xbf16>, vector<32x64xbf16>, vector<64x64xf32> -> vector<64x64xf32>
      %64 = arith.addf %54, %63 : vector<64x64xf32>
      %c2_i32_76 = arith.constant 2 : i32
      %65 = arith.muli %c2_i32_76, %arg20 : i32
      %c0_i32_77 = arith.constant 0 : i32
      %66 = arith.addi %65, %c0_i32_77 : i32
      %67 = arith.index_cast %66 : i32 to index
      %c2 = arith.constant 2 : index
      %c0_78 = arith.constant 0 : index
      %68 = vector.load %arg17[%67, %c2, %c0_78] : memref<34x34x32xf32, #tpu.memory_space<vmem>>, vector<2x32x32xf32>
      %69 = vector.shape_cast %68 : vector<2x32x32xf32> to vector<64x32xf32>
      %70 = arith.truncf %69 : vector<64x32xf32> to vector<64x32xbf16>
      %c2_79 = arith.constant 2 : index
      %c0_80 = arith.constant 0 : index
      %c0_81 = arith.constant 0 : index
      %71 = vector.load %arg7[%c2_79, %c0_80, %c0_81] : memref<9x32x64xbf16, #tpu.memory_space<vmem>>, vector<1x32x64xbf16>
      %72 = vector.shape_cast %71 : vector<1x32x64xbf16> to vector<32x64xbf16>
      %cst_82 = arith.constant dense<0.000000e+00> : vector<64x64xf32>
      %73 = tpu.matmul %70, %72, %cst_82 {dimension_numbers = #tpu.dot_dimension_numbers<[1], [0], [0], [1], [0, 0, 1, 1], [], []>} : vector<64x32xbf16>, vector<32x64xbf16>, vector<64x64xf32> -> vector<64x64xf32>
      %74 = arith.addf %64, %73 : vector<64x64xf32>
      %c2_i32_83 = arith.constant 2 : i32
      %75 = arith.muli %c2_i32_83, %arg20 : i32
      %c1_i32_84 = arith.constant 1 : i32
      %76 = arith.addi %75, %c1_i32_84 : i32
      %77 = arith.index_cast %76 : i32 to index
      %c0_85 = arith.constant 0 : index
      %c0_86 = arith.constant 0 : index
      %78 = vector.load %arg17[%77, %c0_85, %c0_86] : memref<34x34x32xf32, #tpu.memory_space<vmem>>, vector<2x32x32xf32>
      %79 = vector.shape_cast %78 : vector<2x32x32xf32> to vector<64x32xf32>
      %80 = arith.truncf %79 : vector<64x32xf32> to vector<64x32xbf16>
      %c3 = arith.constant 3 : index
      %c0_87 = arith.constant 0 : index
      %c0_88 = arith.constant 0 : index
      %81 = vector.load %arg7[%c3, %c0_87, %c0_88] : memref<9x32x64xbf16, #tpu.memory_space<vmem>>, vector<1x32x64xbf16>
      %82 = vector.shape_cast %81 : vector<1x32x64xbf16> to vector<32x64xbf16>
      %cst_89 = arith.constant dense<0.000000e+00> : vector<64x64xf32>
      %83 = tpu.matmul %80, %82, %cst_89 {dimension_numbers = #tpu.dot_dimension_numbers<[1], [0], [0], [1], [0, 0, 1, 1], [], []>} : vector<64x32xbf16>, vector<32x64xbf16>, vector<64x64xf32> -> vector<64x64xf32>
      %84 = arith.addf %74, %83 : vector<64x64xf32>
      %c2_i32_90 = arith.constant 2 : i32
      %85 = arith.muli %c2_i32_90, %arg20 : i32
      %c1_i32_91 = arith.constant 1 : i32
      %86 = arith.addi %85, %c1_i32_91 : i32
      %87 = arith.index_cast %86 : i32 to index
      %c1_92 = arith.constant 1 : index
      %c0_93 = arith.constant 0 : index
      %88 = vector.load %arg17[%87, %c1_92, %c0_93] : memref<34x34x32xf32, #tpu.memory_space<vmem>>, vector<2x32x32xf32>
      %89 = vector.shape_cast %88 : vector<2x32x32xf32> to vector<64x32xf32>
      %90 = arith.truncf %89 : vector<64x32xf32> to vector<64x32xbf16>
      %c4 = arith.constant 4 : index
      %c0_94 = arith.constant 0 : index
      %c0_95 = arith.constant 0 : index
      %91 = vector.load %arg7[%c4, %c0_94, %c0_95] : memref<9x32x64xbf16, #tpu.memory_space<vmem>>, vector<1x32x64xbf16>
      %92 = vector.shape_cast %91 : vector<1x32x64xbf16> to vector<32x64xbf16>
      %cst_96 = arith.constant dense<0.000000e+00> : vector<64x64xf32>
      %93 = tpu.matmul %90, %92, %cst_96 {dimension_numbers = #tpu.dot_dimension_numbers<[1], [0], [0], [1], [0, 0, 1, 1], [], []>} : vector<64x32xbf16>, vector<32x64xbf16>, vector<64x64xf32> -> vector<64x64xf32>
      %94 = arith.addf %84, %93 : vector<64x64xf32>
      %c2_i32_97 = arith.constant 2 : i32
      %95 = arith.muli %c2_i32_97, %arg20 : i32
      %c1_i32_98 = arith.constant 1 : i32
      %96 = arith.addi %95, %c1_i32_98 : i32
      %97 = arith.index_cast %96 : i32 to index
      %c2_99 = arith.constant 2 : index
      %c0_100 = arith.constant 0 : index
      %98 = vector.load %arg17[%97, %c2_99, %c0_100] : memref<34x34x32xf32, #tpu.memory_space<vmem>>, vector<2x32x32xf32>
      %99 = vector.shape_cast %98 : vector<2x32x32xf32> to vector<64x32xf32>
      %100 = arith.truncf %99 : vector<64x32xf32> to vector<64x32xbf16>
      %c5 = arith.constant 5 : index
      %c0_101 = arith.constant 0 : index
      %c0_102 = arith.constant 0 : index
      %101 = vector.load %arg7[%c5, %c0_101, %c0_102] : memref<9x32x64xbf16, #tpu.memory_space<vmem>>, vector<1x32x64xbf16>
      %102 = vector.shape_cast %101 : vector<1x32x64xbf16> to vector<32x64xbf16>
      %cst_103 = arith.constant dense<0.000000e+00> : vector<64x64xf32>
      %103 = tpu.matmul %100, %102, %cst_103 {dimension_numbers = #tpu.dot_dimension_numbers<[1], [0], [0], [1], [0, 0, 1, 1], [], []>} : vector<64x32xbf16>, vector<32x64xbf16>, vector<64x64xf32> -> vector<64x64xf32>
      %104 = arith.addf %94, %103 : vector<64x64xf32>
      %c2_i32_104 = arith.constant 2 : i32
      %105 = arith.muli %c2_i32_104, %arg20 : i32
      %c2_i32_105 = arith.constant 2 : i32
      %106 = arith.addi %105, %c2_i32_105 : i32
      %107 = arith.index_cast %106 : i32 to index
      %c0_106 = arith.constant 0 : index
      %c0_107 = arith.constant 0 : index
      %108 = vector.load %arg17[%107, %c0_106, %c0_107] : memref<34x34x32xf32, #tpu.memory_space<vmem>>, vector<2x32x32xf32>
      %109 = vector.shape_cast %108 : vector<2x32x32xf32> to vector<64x32xf32>
      %110 = arith.truncf %109 : vector<64x32xf32> to vector<64x32xbf16>
      %c6 = arith.constant 6 : index
      %c0_108 = arith.constant 0 : index
      %c0_109 = arith.constant 0 : index
      %111 = vector.load %arg7[%c6, %c0_108, %c0_109] : memref<9x32x64xbf16, #tpu.memory_space<vmem>>, vector<1x32x64xbf16>
      %112 = vector.shape_cast %111 : vector<1x32x64xbf16> to vector<32x64xbf16>
      %cst_110 = arith.constant dense<0.000000e+00> : vector<64x64xf32>
      %113 = tpu.matmul %110, %112, %cst_110 {dimension_numbers = #tpu.dot_dimension_numbers<[1], [0], [0], [1], [0, 0, 1, 1], [], []>} : vector<64x32xbf16>, vector<32x64xbf16>, vector<64x64xf32> -> vector<64x64xf32>
      %114 = arith.addf %104, %113 : vector<64x64xf32>
      %c2_i32_111 = arith.constant 2 : i32
      %115 = arith.muli %c2_i32_111, %arg20 : i32
      %c2_i32_112 = arith.constant 2 : i32
      %116 = arith.addi %115, %c2_i32_112 : i32
      %117 = arith.index_cast %116 : i32 to index
      %c1_113 = arith.constant 1 : index
      %c0_114 = arith.constant 0 : index
      %118 = vector.load %arg17[%117, %c1_113, %c0_114] : memref<34x34x32xf32, #tpu.memory_space<vmem>>, vector<2x32x32xf32>
      %119 = vector.shape_cast %118 : vector<2x32x32xf32> to vector<64x32xf32>
      %120 = arith.truncf %119 : vector<64x32xf32> to vector<64x32xbf16>
      %c7 = arith.constant 7 : index
      %c0_115 = arith.constant 0 : index
      %c0_116 = arith.constant 0 : index
      %121 = vector.load %arg7[%c7, %c0_115, %c0_116] : memref<9x32x64xbf16, #tpu.memory_space<vmem>>, vector<1x32x64xbf16>
      %122 = vector.shape_cast %121 : vector<1x32x64xbf16> to vector<32x64xbf16>
      %cst_117 = arith.constant dense<0.000000e+00> : vector<64x64xf32>
      %123 = tpu.matmul %120, %122, %cst_117 {dimension_numbers = #tpu.dot_dimension_numbers<[1], [0], [0], [1], [0, 0, 1, 1], [], []>} : vector<64x32xbf16>, vector<32x64xbf16>, vector<64x64xf32> -> vector<64x64xf32>
      %124 = arith.addf %114, %123 : vector<64x64xf32>
      %c2_i32_118 = arith.constant 2 : i32
      %125 = arith.muli %c2_i32_118, %arg20 : i32
      %c2_i32_119 = arith.constant 2 : i32
      %126 = arith.addi %125, %c2_i32_119 : i32
      %127 = arith.index_cast %126 : i32 to index
      %c2_120 = arith.constant 2 : index
      %c0_121 = arith.constant 0 : index
      %128 = vector.load %arg17[%127, %c2_120, %c0_121] : memref<34x34x32xf32, #tpu.memory_space<vmem>>, vector<2x32x32xf32>
      %129 = vector.shape_cast %128 : vector<2x32x32xf32> to vector<64x32xf32>
      %130 = arith.truncf %129 : vector<64x32xf32> to vector<64x32xbf16>
      %c8 = arith.constant 8 : index
      %c0_122 = arith.constant 0 : index
      %c0_123 = arith.constant 0 : index
      %131 = vector.load %arg7[%c8, %c0_122, %c0_123] : memref<9x32x64xbf16, #tpu.memory_space<vmem>>, vector<1x32x64xbf16>
      %132 = vector.shape_cast %131 : vector<1x32x64xbf16> to vector<32x64xbf16>
      %cst_124 = arith.constant dense<0.000000e+00> : vector<64x64xf32>
      %133 = tpu.matmul %130, %132, %cst_124 {dimension_numbers = #tpu.dot_dimension_numbers<[1], [0], [0], [1], [0, 0, 1, 1], [], []>} : vector<64x32xbf16>, vector<32x64xbf16>, vector<64x64xf32> -> vector<64x64xf32>
      %134 = arith.addf %124, %133 : vector<64x64xf32>
      %135 = vector.broadcast %31 : vector<1x64xf32> to vector<64x64xf32>
      %136 = arith.mulf %134, %135 : vector<64x64xf32>
      %137 = vector.broadcast %32 : vector<1x64xf32> to vector<64x64xf32>
      %138 = arith.addf %136, %137 : vector<64x64xf32>
      %cst_125 = arith.constant 0.000000e+00 : f32
      %139 = vector.broadcast %cst_125 : f32 to vector<64x64xf32>
      %140 = arith.maximumf %138, %139 : vector<64x64xf32>
      %141 = vector.extract_strided_slice %140 {offsets = [0, 0], sizes = [32, 64], strides = [1, 1]} : vector<64x64xf32> to vector<32x64xf32>
      %142 = vector.extract_strided_slice %140 {offsets = [32, 0], sizes = [32, 64], strides = [1, 1]} : vector<64x64xf32> to vector<32x64xf32>
      %143 = arith.maximumf %141, %142 : vector<32x64xf32>
      %cst_126 = arith.constant dense<0.000000e+00> : vector<18x64xf32>
      %144 = tpu.matmul %29, %143, %cst_126 {dimension_numbers = #tpu.dot_dimension_numbers<[1], [0], [0], [1], [0, 0, 1, 1], [], []>} : vector<18x32xf32>, vector<32x64xf32>, vector<18x64xf32> -> vector<18x64xf32>
      %cst_127 = arith.constant dense<0.000000e+00> : vector<18x64xf32>
      %145 = tpu.matmul %30, %143, %cst_127 {dimension_numbers = #tpu.dot_dimension_numbers<[1], [0], [0], [1], [0, 0, 1, 1], [], []>} : vector<18x32xf32>, vector<32x64xf32>, vector<18x64xf32> -> vector<18x64xf32>
      %146 = arith.maximumf %144, %145 : vector<18x64xf32>
      %c1_i32_128 = arith.constant 1 : i32
      %147 = arith.addi %arg20, %c1_i32_128 : i32
      %148 = arith.index_cast %147 : i32 to index
      %c0_129 = arith.constant 0 : index
      %c0_130 = arith.constant 0 : index
      %149 = vector.load %arg18[%148, %c0_129, %c0_130] : memref<18x18x64xf32, #tpu.memory_space<vmem>>, vector<1x18x64xf32>
      %150 = vector.shape_cast %149 : vector<1x18x64xf32> to vector<18x64xf32>
      %151 = vector.shape_cast %146 : vector<18x64xf32> to vector<1x18x64xf32>
      tpu.vector_store %arg18[%148, %c0_129, %c0_130], %151 {strides = array<i32>} : memref<18x18x64xf32, #tpu.memory_space<vmem>>, vector<1x18x64xf32>,
    }
    %c16_i32_38 = arith.constant 16 : i32
    %c0_39 = arith.constant 0 : index
    %c0_40 = arith.constant 0 : index
    %34 = vector.load %arg2[%c0_39, %c0_40] : memref<34x64xf32, #tpu.memory_space<vmem>>, vector<10x16xf32>
    %c0_41 = arith.constant 0 : index
    %c0_42 = arith.constant 0 : index
    %35 = vector.load %arg3[%c0_41, %c0_42] : memref<34x64xf32, #tpu.memory_space<vmem>>, vector<10x16xf32>
    %c0_43 = arith.constant 0 : index
    %c0_44 = arith.constant 0 : index
    %36 = vector.load %arg11[%c0_43, %c0_44] : memref<1x128xf32, #tpu.memory_space<vmem>>, vector<1x128xf32>
    %c0_45 = arith.constant 0 : index
    %c0_46 = arith.constant 0 : index
    %37 = vector.load %arg12[%c0_45, %c0_46] : memref<1x128xf32, #tpu.memory_space<vmem>>, vector<1x128xf32>
    %c0_i32_47 = arith.constant 0 : i32
    %c8_i32 = arith.constant 8 : i32
    %38 = arith.addi %c0_i32_47, %c8_i32 : i32
    %c1_i32_48 = arith.constant 1 : i32
    scf.for %arg20 = %c0_i32_47 to %38 step %c1_i32_48  : i32 {
      %cst_60 = arith.constant 0.000000e+00 : f32
      %44 = vector.broadcast %cst_60 : f32 to vector<32x128xf32>
      %c2_i32 = arith.constant 2 : i32
      %45 = arith.muli %c2_i32, %arg20 : i32
      %c0_i32_61 = arith.constant 0 : i32
      %46 = arith.addi %45, %c0_i32_61 : i32
      %47 = arith.index_cast %46 : i32 to index
      %c0_62 = arith.constant 0 : index
      %c0_63 = arith.constant 0 : index
      %48 = vector.load %arg18[%47, %c0_62, %c0_63] : memref<18x18x64xf32, #tpu.memory_space<vmem>>, vector<2x16x64xf32>
      %49 = vector.shape_cast %48 : vector<2x16x64xf32> to vector<32x64xf32>
      %50 = arith.truncf %49 : vector<32x64xf32> to vector<32x64xbf16>
      %c0_64 = arith.constant 0 : index
      %c0_65 = arith.constant 0 : index
      %c0_66 = arith.constant 0 : index
      %51 = vector.load %arg10[%c0_64, %c0_65, %c0_66] : memref<9x64x128xbf16, #tpu.memory_space<vmem>>, vector<1x64x128xbf16>
      %52 = vector.shape_cast %51 : vector<1x64x128xbf16> to vector<64x128xbf16>
      %cst_67 = arith.constant dense<0.000000e+00> : vector<32x128xf32>
      %53 = tpu.matmul %50, %52, %cst_67 {dimension_numbers = #tpu.dot_dimension_numbers<[1], [0], [0], [1], [0, 0, 1, 1], [], []>} : vector<32x64xbf16>, vector<64x128xbf16>, vector<32x128xf32> -> vector<32x128xf32>
      %54 = arith.addf %44, %53 : vector<32x128xf32>
      %c2_i32_68 = arith.constant 2 : i32
      %55 = arith.muli %c2_i32_68, %arg20 : i32
      %c0_i32_69 = arith.constant 0 : i32
      %56 = arith.addi %55, %c0_i32_69 : i32
      %57 = arith.index_cast %56 : i32 to index
      %c1_70 = arith.constant 1 : index
      %c0_71 = arith.constant 0 : index
      %58 = vector.load %arg18[%57, %c1_70, %c0_71] : memref<18x18x64xf32, #tpu.memory_space<vmem>>, vector<2x16x64xf32>
      %59 = vector.shape_cast %58 : vector<2x16x64xf32> to vector<32x64xf32>
      %60 = arith.truncf %59 : vector<32x64xf32> to vector<32x64xbf16>
      %c1_72 = arith.constant 1 : index
      %c0_73 = arith.constant 0 : index
      %c0_74 = arith.constant 0 : index
      %61 = vector.load %arg10[%c1_72, %c0_73, %c0_74] : memref<9x64x128xbf16, #tpu.memory_space<vmem>>, vector<1x64x128xbf16>
      %62 = vector.shape_cast %61 : vector<1x64x128xbf16> to vector<64x128xbf16>
      %cst_75 = arith.constant dense<0.000000e+00> : vector<32x128xf32>
      %63 = tpu.matmul %60, %62, %cst_75 {dimension_numbers = #tpu.dot_dimension_numbers<[1], [0], [0], [1], [0, 0, 1, 1], [], []>} : vector<32x64xbf16>, vector<64x128xbf16>, vector<32x128xf32> -> vector<32x128xf32>
      %64 = arith.addf %54, %63 : vector<32x128xf32>
      %c2_i32_76 = arith.constant 2 : i32
      %65 = arith.muli %c2_i32_76, %arg20 : i32
      %c0_i32_77 = arith.constant 0 : i32
      %66 = arith.addi %65, %c0_i32_77 : i32
      %67 = arith.index_cast %66 : i32 to index
      %c2 = arith.constant 2 : index
      %c0_78 = arith.constant 0 : index
      %68 = vector.load %arg18[%67, %c2, %c0_78] : memref<18x18x64xf32, #tpu.memory_space<vmem>>, vector<2x16x64xf32>
      %69 = vector.shape_cast %68 : vector<2x16x64xf32> to vector<32x64xf32>
      %70 = arith.truncf %69 : vector<32x64xf32> to vector<32x64xbf16>
      %c2_79 = arith.constant 2 : index
      %c0_80 = arith.constant 0 : index
      %c0_81 = arith.constant 0 : index
      %71 = vector.load %arg10[%c2_79, %c0_80, %c0_81] : memref<9x64x128xbf16, #tpu.memory_space<vmem>>, vector<1x64x128xbf16>
      %72 = vector.shape_cast %71 : vector<1x64x128xbf16> to vector<64x128xbf16>
      %cst_82 = arith.constant dense<0.000000e+00> : vector<32x128xf32>
      %73 = tpu.matmul %70, %72, %cst_82 {dimension_numbers = #tpu.dot_dimension_numbers<[1], [0], [0], [1], [0, 0, 1, 1], [], []>} : vector<32x64xbf16>, vector<64x128xbf16>, vector<32x128xf32> -> vector<32x128xf32>
      %74 = arith.addf %64, %73 : vector<32x128xf32>
      %c2_i32_83 = arith.constant 2 : i32
      %75 = arith.muli %c2_i32_83, %arg20 : i32
      %c1_i32_84 = arith.constant 1 : i32
      %76 = arith.addi %75, %c1_i32_84 : i32
      %77 = arith.index_cast %76 : i32 to index
      %c0_85 = arith.constant 0 : index
      %c0_86 = arith.constant 0 : index
      %78 = vector.load %arg18[%77, %c0_85, %c0_86] : memref<18x18x64xf32, #tpu.memory_space<vmem>>, vector<2x16x64xf32>
      %79 = vector.shape_cast %78 : vector<2x16x64xf32> to vector<32x64xf32>
      %80 = arith.truncf %79 : vector<32x64xf32> to vector<32x64xbf16>
      %c3 = arith.constant 3 : index
      %c0_87 = arith.constant 0 : index
      %c0_88 = arith.constant 0 : index
      %81 = vector.load %arg10[%c3, %c0_87, %c0_88] : memref<9x64x128xbf16, #tpu.memory_space<vmem>>, vector<1x64x128xbf16>
      %82 = vector.shape_cast %81 : vector<1x64x128xbf16> to vector<64x128xbf16>
      %cst_89 = arith.constant dense<0.000000e+00> : vector<32x128xf32>
      %83 = tpu.matmul %80, %82, %cst_89 {dimension_numbers = #tpu.dot_dimension_numbers<[1], [0], [0], [1], [0, 0, 1, 1], [], []>} : vector<32x64xbf16>, vector<64x128xbf16>, vector<32x128xf32> -> vector<32x128xf32>
      %84 = arith.addf %74, %83 : vector<32x128xf32>
      %c2_i32_90 = arith.constant 2 : i32
      %85 = arith.muli %c2_i32_90, %arg20 : i32
      %c1_i32_91 = arith.constant 1 : i32
      %86 = arith.addi %85, %c1_i32_91 : i32
      %87 = arith.index_cast %86 : i32 to index
      %c1_92 = arith.constant 1 : index
      %c0_93 = arith.constant 0 : index
      %88 = vector.load %arg18[%87, %c1_92, %c0_93] : memref<18x18x64xf32, #tpu.memory_space<vmem>>, vector<2x16x64xf32>
      %89 = vector.shape_cast %88 : vector<2x16x64xf32> to vector<32x64xf32>
      %90 = arith.truncf %89 : vector<32x64xf32> to vector<32x64xbf16>
      %c4 = arith.constant 4 : index
      %c0_94 = arith.constant 0 : index
      %c0_95 = arith.constant 0 : index
      %91 = vector.load %arg10[%c4, %c0_94, %c0_95] : memref<9x64x128xbf16, #tpu.memory_space<vmem>>, vector<1x64x128xbf16>
      %92 = vector.shape_cast %91 : vector<1x64x128xbf16> to vector<64x128xbf16>
      %cst_96 = arith.constant dense<0.000000e+00> : vector<32x128xf32>
      %93 = tpu.matmul %90, %92, %cst_96 {dimension_numbers = #tpu.dot_dimension_numbers<[1], [0], [0], [1], [0, 0, 1, 1], [], []>} : vector<32x64xbf16>, vector<64x128xbf16>, vector<32x128xf32> -> vector<32x128xf32>
      %94 = arith.addf %84, %93 : vector<32x128xf32>
      %c2_i32_97 = arith.constant 2 : i32
      %95 = arith.muli %c2_i32_97, %arg20 : i32
      %c1_i32_98 = arith.constant 1 : i32
      %96 = arith.addi %95, %c1_i32_98 : i32
      %97 = arith.index_cast %96 : i32 to index
      %c2_99 = arith.constant 2 : index
      %c0_100 = arith.constant 0 : index
      %98 = vector.load %arg18[%97, %c2_99, %c0_100] : memref<18x18x64xf32, #tpu.memory_space<vmem>>, vector<2x16x64xf32>
      %99 = vector.shape_cast %98 : vector<2x16x64xf32> to vector<32x64xf32>
      %100 = arith.truncf %99 : vector<32x64xf32> to vector<32x64xbf16>
      %c5 = arith.constant 5 : index
      %c0_101 = arith.constant 0 : index
      %c0_102 = arith.constant 0 : index
      %101 = vector.load %arg10[%c5, %c0_101, %c0_102] : memref<9x64x128xbf16, #tpu.memory_space<vmem>>, vector<1x64x128xbf16>
      %102 = vector.shape_cast %101 : vector<1x64x128xbf16> to vector<64x128xbf16>
      %cst_103 = arith.constant dense<0.000000e+00> : vector<32x128xf32>
      %103 = tpu.matmul %100, %102, %cst_103 {dimension_numbers = #tpu.dot_dimension_numbers<[1], [0], [0], [1], [0, 0, 1, 1], [], []>} : vector<32x64xbf16>, vector<64x128xbf16>, vector<32x128xf32> -> vector<32x128xf32>
      %104 = arith.addf %94, %103 : vector<32x128xf32>
      %c2_i32_104 = arith.constant 2 : i32
      %105 = arith.muli %c2_i32_104, %arg20 : i32
      %c2_i32_105 = arith.constant 2 : i32
      %106 = arith.addi %105, %c2_i32_105 : i32
      %107 = arith.index_cast %106 : i32 to index
      %c0_106 = arith.constant 0 : index
      %c0_107 = arith.constant 0 : index
      %108 = vector.load %arg18[%107, %c0_106, %c0_107] : memref<18x18x64xf32, #tpu.memory_space<vmem>>, vector<2x16x64xf32>
      %109 = vector.shape_cast %108 : vector<2x16x64xf32> to vector<32x64xf32>
      %110 = arith.truncf %109 : vector<32x64xf32> to vector<32x64xbf16>
      %c6 = arith.constant 6 : index
      %c0_108 = arith.constant 0 : index
      %c0_109 = arith.constant 0 : index
      %111 = vector.load %arg10[%c6, %c0_108, %c0_109] : memref<9x64x128xbf16, #tpu.memory_space<vmem>>, vector<1x64x128xbf16>
      %112 = vector.shape_cast %111 : vector<1x64x128xbf16> to vector<64x128xbf16>
      %cst_110 = arith.constant dense<0.000000e+00> : vector<32x128xf32>
      %113 = tpu.matmul %110, %112, %cst_110 {dimension_numbers = #tpu.dot_dimension_numbers<[1], [0], [0], [1], [0, 0, 1, 1], [], []>} : vector<32x64xbf16>, vector<64x128xbf16>, vector<32x128xf32> -> vector<32x128xf32>
      %114 = arith.addf %104, %113 : vector<32x128xf32>
      %c2_i32_111 = arith.constant 2 : i32
      %115 = arith.muli %c2_i32_111, %arg20 : i32
      %c2_i32_112 = arith.constant 2 : i32
      %116 = arith.addi %115, %c2_i32_112 : i32
      %117 = arith.index_cast %116 : i32 to index
      %c1_113 = arith.constant 1 : index
      %c0_114 = arith.constant 0 : index
      %118 = vector.load %arg18[%117, %c1_113, %c0_114] : memref<18x18x64xf32, #tpu.memory_space<vmem>>, vector<2x16x64xf32>
      %119 = vector.shape_cast %118 : vector<2x16x64xf32> to vector<32x64xf32>
      %120 = arith.truncf %119 : vector<32x64xf32> to vector<32x64xbf16>
      %c7 = arith.constant 7 : index
      %c0_115 = arith.constant 0 : index
      %c0_116 = arith.constant 0 : index
      %121 = vector.load %arg10[%c7, %c0_115, %c0_116] : memref<9x64x128xbf16, #tpu.memory_space<vmem>>, vector<1x64x128xbf16>
      %122 = vector.shape_cast %121 : vector<1x64x128xbf16> to vector<64x128xbf16>
      %cst_117 = arith.constant dense<0.000000e+00> : vector<32x128xf32>
      %123 = tpu.matmul %120, %122, %cst_117 {dimension_numbers = #tpu.dot_dimension_numbers<[1], [0], [0], [1], [0, 0, 1, 1], [], []>} : vector<32x64xbf16>, vector<64x128xbf16>, vector<32x128xf32> -> vector<32x128xf32>
      %124 = arith.addf %114, %123 : vector<32x128xf32>
      %c2_i32_118 = arith.constant 2 : i32
      %125 = arith.muli %c2_i32_118, %arg20 : i32
      %c2_i32_119 = arith.constant 2 : i32
      %126 = arith.addi %125, %c2_i32_119 : i32
      %127 = arith.index_cast %126 : i32 to index
      %c2_120 = arith.constant 2 : index
      %c0_121 = arith.constant 0 : index
      %128 = vector.load %arg18[%127, %c2_120, %c0_121] : memref<18x18x64xf32, #tpu.memory_space<vmem>>, vector<2x16x64xf32>
      %129 = vector.shape_cast %128 : vector<2x16x64xf32> to vector<32x64xf32>
      %130 = arith.truncf %129 : vector<32x64xf32> to vector<32x64xbf16>
      %c8 = arith.constant 8 : index
      %c0_122 = arith.constant 0 : index
      %c0_123 = arith.constant 0 : index
      %131 = vector.load %arg10[%c8, %c0_122, %c0_123] : memref<9x64x128xbf16, #tpu.memory_space<vmem>>, vector<1x64x128xbf16>
      %132 = vector.shape_cast %131 : vector<1x64x128xbf16> to vector<64x128xbf16>
      %cst_124 = arith.constant dense<0.000000e+00> : vector<32x128xf32>
      %133 = tpu.matmul %130, %132, %cst_124 {dimension_numbers = #tpu.dot_dimension_numbers<[1], [0], [0], [1], [0, 0, 1, 1], [], []>} : vector<32x64xbf16>, vector<64x128xbf16>, vector<32x128xf32> -> vector<32x128xf32>
      %134 = arith.addf %124, %133 : vector<32x128xf32>
      %135 = vector.broadcast %36 : vector<1x128xf32> to vector<32x128xf32>
      %136 = arith.mulf %134, %135 : vector<32x128xf32>
      %137 = vector.broadcast %37 : vector<1x128xf32> to vector<32x128xf32>
      %138 = arith.addf %136, %137 : vector<32x128xf32>
      %cst_125 = arith.constant 0.000000e+00 : f32
      %139 = vector.broadcast %cst_125 : f32 to vector<32x128xf32>
      %140 = arith.maximumf %138, %139 : vector<32x128xf32>
      %141 = vector.extract_strided_slice %140 {offsets = [0, 0], sizes = [16, 128], strides = [1, 1]} : vector<32x128xf32> to vector<16x128xf32>
      %142 = vector.extract_strided_slice %140 {offsets = [16, 0], sizes = [16, 128], strides = [1, 1]} : vector<32x128xf32> to vector<16x128xf32>
      %143 = arith.maximumf %141, %142 : vector<16x128xf32>
      %cst_126 = arith.constant dense<0.000000e+00> : vector<10x128xf32>
      %144 = tpu.matmul %34, %143, %cst_126 {dimension_numbers = #tpu.dot_dimension_numbers<[1], [0], [0], [1], [0, 0, 1, 1], [], []>} : vector<10x16xf32>, vector<16x128xf32>, vector<10x128xf32> -> vector<10x128xf32>
      %cst_127 = arith.constant dense<0.000000e+00> : vector<10x128xf32>
      %145 = tpu.matmul %35, %143, %cst_127 {dimension_numbers = #tpu.dot_dimension_numbers<[1], [0], [0], [1], [0, 0, 1, 1], [], []>} : vector<10x16xf32>, vector<16x128xf32>, vector<10x128xf32> -> vector<10x128xf32>
      %146 = arith.maximumf %144, %145 : vector<10x128xf32>
      %c1_i32_128 = arith.constant 1 : i32
      %147 = arith.addi %arg20, %c1_i32_128 : i32
      %148 = arith.index_cast %147 : i32 to index
      %c0_129 = arith.constant 0 : index
      %c0_130 = arith.constant 0 : index
      %149 = vector.load %arg19[%148, %c0_129, %c0_130] : memref<10x10x128xf32, #tpu.memory_space<vmem>>, vector<1x10x128xf32>
      %150 = vector.shape_cast %149 : vector<1x10x128xf32> to vector<10x128xf32>
      %151 = vector.shape_cast %146 : vector<10x128xf32> to vector<1x10x128xf32>
      tpu.vector_store %arg19[%148, %c0_129, %c0_130], %151 {strides = array<i32>} : memref<10x10x128xf32, #tpu.memory_space<vmem>>, vector<1x10x128xf32>,
    }
    %c8_i32_49 = arith.constant 8 : i32
    %c1 = arith.constant 1 : index
    %c0_50 = arith.constant 0 : index
    %39 = vector.load %arg2[%c1, %c0_50] : memref<34x64xf32, #tpu.memory_space<vmem>>, vector<4x8xf32>
    %c1_51 = arith.constant 1 : index
    %c0_52 = arith.constant 0 : index
    %40 = vector.load %arg3[%c1_51, %c0_52] : memref<34x64xf32, #tpu.memory_space<vmem>>, vector<4x8xf32>
    %c0_53 = arith.constant 0 : index
    %c0_54 = arith.constant 0 : index
    %41 = vector.load %arg14[%c0_53, %c0_54] : memref<1x256xf32, #tpu.memory_space<vmem>>, vector<1x256xf32>
    %c0_55 = arith.constant 0 : index
    %c0_56 = arith.constant 0 : index
    %42 = vector.load %arg15[%c0_55, %c0_56] : memref<1x256xf32, #tpu.memory_space<vmem>>, vector<1x256xf32>
    %c0_i32_57 = arith.constant 0 : i32
    %c4_i32 = arith.constant 4 : i32
    %43 = arith.addi %c0_i32_57, %c4_i32 : i32
    %c1_i32_58 = arith.constant 1 : i32
    scf.for %arg20 = %c0_i32_57 to %43 step %c1_i32_58  : i32 {
      %cst_60 = arith.constant 0.000000e+00 : f32
      %44 = vector.broadcast %cst_60 : f32 to vector<16x256xf32>
      %c2_i32 = arith.constant 2 : i32
      %45 = arith.muli %c2_i32, %arg20 : i32
      %c0_i32_61 = arith.constant 0 : i32
      %46 = arith.addi %45, %c0_i32_61 : i32
      %47 = arith.index_cast %46 : i32 to index
      %c0_62 = arith.constant 0 : index
      %c0_63 = arith.constant 0 : index
      %48 = vector.load %arg19[%47, %c0_62, %c0_63] : memref<10x10x128xf32, #tpu.memory_space<vmem>>, vector<2x8x128xf32>
      %49 = vector.shape_cast %48 : vector<2x8x128xf32> to vector<16x128xf32>
      %50 = arith.truncf %49 : vector<16x128xf32> to vector<16x128xbf16>
      %c0_64 = arith.constant 0 : index
      %c0_65 = arith.constant 0 : index
      %c0_66 = arith.constant 0 : index
      %51 = vector.load %arg13[%c0_64, %c0_65, %c0_66] : memref<9x128x256xbf16, #tpu.memory_space<vmem>>, vector<1x128x256xbf16>
      %52 = vector.shape_cast %51 : vector<1x128x256xbf16> to vector<128x256xbf16>
      %cst_67 = arith.constant dense<0.000000e+00> : vector<16x256xf32>
      %53 = tpu.matmul %50, %52, %cst_67 {dimension_numbers = #tpu.dot_dimension_numbers<[1], [0], [0], [1], [0, 0, 1, 1], [], []>} : vector<16x128xbf16>, vector<128x256xbf16>, vector<16x256xf32> -> vector<16x256xf32>
      %54 = arith.addf %44, %53 : vector<16x256xf32>
      %c2_i32_68 = arith.constant 2 : i32
      %55 = arith.muli %c2_i32_68, %arg20 : i32
      %c0_i32_69 = arith.constant 0 : i32
      %56 = arith.addi %55, %c0_i32_69 : i32
      %57 = arith.index_cast %56 : i32 to index
      %c1_70 = arith.constant 1 : index
      %c0_71 = arith.constant 0 : index
      %58 = vector.load %arg19[%57, %c1_70, %c0_71] : memref<10x10x128xf32, #tpu.memory_space<vmem>>, vector<2x8x128xf32>
      %59 = vector.shape_cast %58 : vector<2x8x128xf32> to vector<16x128xf32>
      %60 = arith.truncf %59 : vector<16x128xf32> to vector<16x128xbf16>
      %c1_72 = arith.constant 1 : index
      %c0_73 = arith.constant 0 : index
      %c0_74 = arith.constant 0 : index
      %61 = vector.load %arg13[%c1_72, %c0_73, %c0_74] : memref<9x128x256xbf16, #tpu.memory_space<vmem>>, vector<1x128x256xbf16>
      %62 = vector.shape_cast %61 : vector<1x128x256xbf16> to vector<128x256xbf16>
      %cst_75 = arith.constant dense<0.000000e+00> : vector<16x256xf32>
      %63 = tpu.matmul %60, %62, %cst_75 {dimension_numbers = #tpu.dot_dimension_numbers<[1], [0], [0], [1], [0, 0, 1, 1], [], []>} : vector<16x128xbf16>, vector<128x256xbf16>, vector<16x256xf32> -> vector<16x256xf32>
      %64 = arith.addf %54, %63 : vector<16x256xf32>
      %c2_i32_76 = arith.constant 2 : i32
      %65 = arith.muli %c2_i32_76, %arg20 : i32
      %c0_i32_77 = arith.constant 0 : i32
      %66 = arith.addi %65, %c0_i32_77 : i32
      %67 = arith.index_cast %66 : i32 to index
      %c2 = arith.constant 2 : index
      %c0_78 = arith.constant 0 : index
      %68 = vector.load %arg19[%67, %c2, %c0_78] : memref<10x10x128xf32, #tpu.memory_space<vmem>>, vector<2x8x128xf32>
      %69 = vector.shape_cast %68 : vector<2x8x128xf32> to vector<16x128xf32>
      %70 = arith.truncf %69 : vector<16x128xf32> to vector<16x128xbf16>
      %c2_79 = arith.constant 2 : index
      %c0_80 = arith.constant 0 : index
      %c0_81 = arith.constant 0 : index
      %71 = vector.load %arg13[%c2_79, %c0_80, %c0_81] : memref<9x128x256xbf16, #tpu.memory_space<vmem>>, vector<1x128x256xbf16>
      %72 = vector.shape_cast %71 : vector<1x128x256xbf16> to vector<128x256xbf16>
      %cst_82 = arith.constant dense<0.000000e+00> : vector<16x256xf32>
      %73 = tpu.matmul %70, %72, %cst_82 {dimension_numbers = #tpu.dot_dimension_numbers<[1], [0], [0], [1], [0, 0, 1, 1], [], []>} : vector<16x128xbf16>, vector<128x256xbf16>, vector<16x256xf32> -> vector<16x256xf32>
      %74 = arith.addf %64, %73 : vector<16x256xf32>
      %c2_i32_83 = arith.constant 2 : i32
      %75 = arith.muli %c2_i32_83, %arg20 : i32
      %c1_i32_84 = arith.constant 1 : i32
      %76 = arith.addi %75, %c1_i32_84 : i32
      %77 = arith.index_cast %76 : i32 to index
      %c0_85 = arith.constant 0 : index
      %c0_86 = arith.constant 0 : index
      %78 = vector.load %arg19[%77, %c0_85, %c0_86] : memref<10x10x128xf32, #tpu.memory_space<vmem>>, vector<2x8x128xf32>
      %79 = vector.shape_cast %78 : vector<2x8x128xf32> to vector<16x128xf32>
      %80 = arith.truncf %79 : vector<16x128xf32> to vector<16x128xbf16>
      %c3 = arith.constant 3 : index
      %c0_87 = arith.constant 0 : index
      %c0_88 = arith.constant 0 : index
      %81 = vector.load %arg13[%c3, %c0_87, %c0_88] : memref<9x128x256xbf16, #tpu.memory_space<vmem>>, vector<1x128x256xbf16>
      %82 = vector.shape_cast %81 : vector<1x128x256xbf16> to vector<128x256xbf16>
      %cst_89 = arith.constant dense<0.000000e+00> : vector<16x256xf32>
      %83 = tpu.matmul %80, %82, %cst_89 {dimension_numbers = #tpu.dot_dimension_numbers<[1], [0], [0], [1], [0, 0, 1, 1], [], []>} : vector<16x128xbf16>, vector<128x256xbf16>, vector<16x256xf32> -> vector<16x256xf32>
      %84 = arith.addf %74, %83 : vector<16x256xf32>
      %c2_i32_90 = arith.constant 2 : i32
      %85 = arith.muli %c2_i32_90, %arg20 : i32
      %c1_i32_91 = arith.constant 1 : i32
      %86 = arith.addi %85, %c1_i32_91 : i32
      %87 = arith.index_cast %86 : i32 to index
      %c1_92 = arith.constant 1 : index
      %c0_93 = arith.constant 0 : index
      %88 = vector.load %arg19[%87, %c1_92, %c0_93] : memref<10x10x128xf32, #tpu.memory_space<vmem>>, vector<2x8x128xf32>
      %89 = vector.shape_cast %88 : vector<2x8x128xf32> to vector<16x128xf32>
      %90 = arith.truncf %89 : vector<16x128xf32> to vector<16x128xbf16>
      %c4 = arith.constant 4 : index
      %c0_94 = arith.constant 0 : index
      %c0_95 = arith.constant 0 : index
      %91 = vector.load %arg13[%c4, %c0_94, %c0_95] : memref<9x128x256xbf16, #tpu.memory_space<vmem>>, vector<1x128x256xbf16>
      %92 = vector.shape_cast %91 : vector<1x128x256xbf16> to vector<128x256xbf16>
      %cst_96 = arith.constant dense<0.000000e+00> : vector<16x256xf32>
      %93 = tpu.matmul %90, %92, %cst_96 {dimension_numbers = #tpu.dot_dimension_numbers<[1], [0], [0], [1], [0, 0, 1, 1], [], []>} : vector<16x128xbf16>, vector<128x256xbf16>, vector<16x256xf32> -> vector<16x256xf32>
      %94 = arith.addf %84, %93 : vector<16x256xf32>
      %c2_i32_97 = arith.constant 2 : i32
      %95 = arith.muli %c2_i32_97, %arg20 : i32
      %c1_i32_98 = arith.constant 1 : i32
      %96 = arith.addi %95, %c1_i32_98 : i32
      %97 = arith.index_cast %96 : i32 to index
      %c2_99 = arith.constant 2 : index
      %c0_100 = arith.constant 0 : index
      %98 = vector.load %arg19[%97, %c2_99, %c0_100] : memref<10x10x128xf32, #tpu.memory_space<vmem>>, vector<2x8x128xf32>
      %99 = vector.shape_cast %98 : vector<2x8x128xf32> to vector<16x128xf32>
      %100 = arith.truncf %99 : vector<16x128xf32> to vector<16x128xbf16>
      %c5 = arith.constant 5 : index
      %c0_101 = arith.constant 0 : index
      %c0_102 = arith.constant 0 : index
      %101 = vector.load %arg13[%c5, %c0_101, %c0_102] : memref<9x128x256xbf16, #tpu.memory_space<vmem>>, vector<1x128x256xbf16>
      %102 = vector.shape_cast %101 : vector<1x128x256xbf16> to vector<128x256xbf16>
      %cst_103 = arith.constant dense<0.000000e+00> : vector<16x256xf32>
      %103 = tpu.matmul %100, %102, %cst_103 {dimension_numbers = #tpu.dot_dimension_numbers<[1], [0], [0], [1], [0, 0, 1, 1], [], []>} : vector<16x128xbf16>, vector<128x256xbf16>, vector<16x256xf32> -> vector<16x256xf32>
      %104 = arith.addf %94, %103 : vector<16x256xf32>
      %c2_i32_104 = arith.constant 2 : i32
      %105 = arith.muli %c2_i32_104, %arg20 : i32
      %c2_i32_105 = arith.constant 2 : i32
      %106 = arith.addi %105, %c2_i32_105 : i32
      %107 = arith.index_cast %106 : i32 to index
      %c0_106 = arith.constant 0 : index
      %c0_107 = arith.constant 0 : index
      %108 = vector.load %arg19[%107, %c0_106, %c0_107] : memref<10x10x128xf32, #tpu.memory_space<vmem>>, vector<2x8x128xf32>
      %109 = vector.shape_cast %108 : vector<2x8x128xf32> to vector<16x128xf32>
      %110 = arith.truncf %109 : vector<16x128xf32> to vector<16x128xbf16>
      %c6 = arith.constant 6 : index
      %c0_108 = arith.constant 0 : index
      %c0_109 = arith.constant 0 : index
      %111 = vector.load %arg13[%c6, %c0_108, %c0_109] : memref<9x128x256xbf16, #tpu.memory_space<vmem>>, vector<1x128x256xbf16>
      %112 = vector.shape_cast %111 : vector<1x128x256xbf16> to vector<128x256xbf16>
      %cst_110 = arith.constant dense<0.000000e+00> : vector<16x256xf32>
      %113 = tpu.matmul %110, %112, %cst_110 {dimension_numbers = #tpu.dot_dimension_numbers<[1], [0], [0], [1], [0, 0, 1, 1], [], []>} : vector<16x128xbf16>, vector<128x256xbf16>, vector<16x256xf32> -> vector<16x256xf32>
      %114 = arith.addf %104, %113 : vector<16x256xf32>
      %c2_i32_111 = arith.constant 2 : i32
      %115 = arith.muli %c2_i32_111, %arg20 : i32
      %c2_i32_112 = arith.constant 2 : i32
      %116 = arith.addi %115, %c2_i32_112 : i32
      %117 = arith.index_cast %116 : i32 to index
      %c1_113 = arith.constant 1 : index
      %c0_114 = arith.constant 0 : index
      %118 = vector.load %arg19[%117, %c1_113, %c0_114] : memref<10x10x128xf32, #tpu.memory_space<vmem>>, vector<2x8x128xf32>
      %119 = vector.shape_cast %118 : vector<2x8x128xf32> to vector<16x128xf32>
      %120 = arith.truncf %119 : vector<16x128xf32> to vector<16x128xbf16>
      %c7 = arith.constant 7 : index
      %c0_115 = arith.constant 0 : index
      %c0_116 = arith.constant 0 : index
      %121 = vector.load %arg13[%c7, %c0_115, %c0_116] : memref<9x128x256xbf16, #tpu.memory_space<vmem>>, vector<1x128x256xbf16>
      %122 = vector.shape_cast %121 : vector<1x128x256xbf16> to vector<128x256xbf16>
      %cst_117 = arith.constant dense<0.000000e+00> : vector<16x256xf32>
      %123 = tpu.matmul %120, %122, %cst_117 {dimension_numbers = #tpu.dot_dimension_numbers<[1], [0], [0], [1], [0, 0, 1, 1], [], []>} : vector<16x128xbf16>, vector<128x256xbf16>, vector<16x256xf32> -> vector<16x256xf32>
      %124 = arith.addf %114, %123 : vector<16x256xf32>
      %c2_i32_118 = arith.constant 2 : i32
      %125 = arith.muli %c2_i32_118, %arg20 : i32
      %c2_i32_119 = arith.constant 2 : i32
      %126 = arith.addi %125, %c2_i32_119 : i32
      %127 = arith.index_cast %126 : i32 to index
      %c2_120 = arith.constant 2 : index
      %c0_121 = arith.constant 0 : index
      %128 = vector.load %arg19[%127, %c2_120, %c0_121] : memref<10x10x128xf32, #tpu.memory_space<vmem>>, vector<2x8x128xf32>
      %129 = vector.shape_cast %128 : vector<2x8x128xf32> to vector<16x128xf32>
      %130 = arith.truncf %129 : vector<16x128xf32> to vector<16x128xbf16>
      %c8 = arith.constant 8 : index
      %c0_122 = arith.constant 0 : index
      %c0_123 = arith.constant 0 : index
      %131 = vector.load %arg13[%c8, %c0_122, %c0_123] : memref<9x128x256xbf16, #tpu.memory_space<vmem>>, vector<1x128x256xbf16>
      %132 = vector.shape_cast %131 : vector<1x128x256xbf16> to vector<128x256xbf16>
      %cst_124 = arith.constant dense<0.000000e+00> : vector<16x256xf32>
      %133 = tpu.matmul %130, %132, %cst_124 {dimension_numbers = #tpu.dot_dimension_numbers<[1], [0], [0], [1], [0, 0, 1, 1], [], []>} : vector<16x128xbf16>, vector<128x256xbf16>, vector<16x256xf32> -> vector<16x256xf32>
      %134 = arith.addf %124, %133 : vector<16x256xf32>
      %135 = vector.broadcast %41 : vector<1x256xf32> to vector<16x256xf32>
      %136 = arith.mulf %134, %135 : vector<16x256xf32>
      %137 = vector.broadcast %42 : vector<1x256xf32> to vector<16x256xf32>
      %138 = arith.addf %136, %137 : vector<16x256xf32>
      %cst_125 = arith.constant 0.000000e+00 : f32
      %139 = vector.broadcast %cst_125 : f32 to vector<16x256xf32>
      %140 = arith.maximumf %138, %139 : vector<16x256xf32>
      %141 = vector.extract_strided_slice %140 {offsets = [0, 0], sizes = [8, 256], strides = [1, 1]} : vector<16x256xf32> to vector<8x256xf32>
      %142 = vector.extract_strided_slice %140 {offsets = [8, 0], sizes = [8, 256], strides = [1, 1]} : vector<16x256xf32> to vector<8x256xf32>
      %143 = arith.maximumf %141, %142 : vector<8x256xf32>
      %cst_126 = arith.constant dense<0.000000e+00> : vector<4x256xf32>
      %144 = tpu.matmul %39, %143, %cst_126 {dimension_numbers = #tpu.dot_dimension_numbers<[1], [0], [0], [1], [0, 0, 1, 1], [], []>} : vector<4x8xf32>, vector<8x256xf32>, vector<4x256xf32> -> vector<4x256xf32>
      %cst_127 = arith.constant dense<0.000000e+00> : vector<4x256xf32>
      %145 = tpu.matmul %40, %143, %cst_127 {dimension_numbers = #tpu.dot_dimension_numbers<[1], [0], [0], [1], [0, 0, 1, 1], [], []>} : vector<4x8xf32>, vector<8x256xf32>, vector<4x256xf32> -> vector<4x256xf32>
      %146 = arith.maximumf %144, %145 : vector<4x256xf32>
      %c0_128 = arith.constant 0 : index
      %147 = arith.index_cast %arg20 : i32 to index
      %c0_129 = arith.constant 0 : index
      %c0_130 = arith.constant 0 : index
      %148 = vector.load %arg16[%c0_128, %147, %c0_129, %c0_130] : memref<1x4x4x256xf32, #tpu.memory_space<vmem>>, vector<1x1x4x256xf32>
      %149 = vector.shape_cast %148 : vector<1x1x4x256xf32> to vector<4x256xf32>
      %150 = vector.shape_cast %146 : vector<4x256xf32> to vector<1x1x4x256xf32>
      tpu.vector_store %arg16[%c0_128, %147, %c0_129, %c0_130], %150 {strides = array<i32>} : memref<1x4x4x256xf32, #tpu.memory_space<vmem>>, vector<1x1x4x256xf32>,
    }
    %c4_i32_59 = arith.constant 4 : i32
    return
  }
  func.func @transform_0(%arg0: i32) -> (i32, i32, i32, i32) {
    %c0_i32 = arith.constant 0 : i32
    %c0_i32_0 = arith.constant 0 : i32
    %c0_i32_1 = arith.constant 0 : i32
    %c0_i32_2 = arith.constant 0 : i32
    return %arg0, %c0_i32, %c0_i32_0, %c0_i32_1 : i32, i32, i32, i32
  }
  func.func @transform_1(%arg0: i32) -> (i32, i32) {
    %c0_i32 = arith.constant 0 : i32
    %c0_i32_0 = arith.constant 0 : i32
    %c0_i32_1 = arith.constant 0 : i32
    return %c0_i32, %c0_i32_0 : i32, i32
  }
  func.func @transform_2(%arg0: i32) -> (i32, i32) {
    %c0_i32 = arith.constant 0 : i32
    %c0_i32_0 = arith.constant 0 : i32
    %c0_i32_1 = arith.constant 0 : i32
    return %c0_i32, %c0_i32_0 : i32, i32
  }
  func.func @transform_3(%arg0: i32) -> (i32, i32, i32) {
    %c0_i32 = arith.constant 0 : i32
    %c0_i32_0 = arith.constant 0 : i32
    %c0_i32_1 = arith.constant 0 : i32
    %c0_i32_2 = arith.constant 0 : i32
    return %c0_i32, %c0_i32_0, %c0_i32_1 : i32, i32, i32
  }
  func.func @transform_4(%arg0: i32) -> (i32, i32) {
    %c0_i32 = arith.constant 0 : i32
    %c0_i32_0 = arith.constant 0 : i32
    %c0_i32_1 = arith.constant 0 : i32
    return %c0_i32, %c0_i32_0 : i32, i32
  }
  func.func @transform_5(%arg0: i32) -> (i32, i32) {
    %c0_i32 = arith.constant 0 : i32
    %c0_i32_0 = arith.constant 0 : i32
    %c0_i32_1 = arith.constant 0 : i32
    return %c0_i32, %c0_i32_0 : i32, i32
  }
  func.func @transform_6(%arg0: i32) -> (i32, i32, i32) {
    %c0_i32 = arith.constant 0 : i32
    %c0_i32_0 = arith.constant 0 : i32
    %c0_i32_1 = arith.constant 0 : i32
    %c0_i32_2 = arith.constant 0 : i32
    return %c0_i32, %c0_i32_0, %c0_i32_1 : i32, i32, i32
  }
  func.func @transform_7(%arg0: i32) -> (i32, i32) {
    %c0_i32 = arith.constant 0 : i32
    %c0_i32_0 = arith.constant 0 : i32
    %c0_i32_1 = arith.constant 0 : i32
    return %c0_i32, %c0_i32_0 : i32, i32
  }
  func.func @transform_8(%arg0: i32) -> (i32, i32) {
    %c0_i32 = arith.constant 0 : i32
    %c0_i32_0 = arith.constant 0 : i32
    %c0_i32_1 = arith.constant 0 : i32
    return %c0_i32, %c0_i32_0 : i32, i32
  }
  func.func @transform_9(%arg0: i32) -> (i32, i32, i32) {
    %c0_i32 = arith.constant 0 : i32
    %c0_i32_0 = arith.constant 0 : i32
    %c0_i32_1 = arith.constant 0 : i32
    %c0_i32_2 = arith.constant 0 : i32
    return %c0_i32, %c0_i32_0, %c0_i32_1 : i32, i32, i32
  }
  func.func @transform_10(%arg0: i32) -> (i32, i32) {
    %c0_i32 = arith.constant 0 : i32
    %c0_i32_0 = arith.constant 0 : i32
    %c0_i32_1 = arith.constant 0 : i32
    return %c0_i32, %c0_i32_0 : i32, i32
  }
  func.func @transform_11(%arg0: i32) -> (i32, i32) {
    %c0_i32 = arith.constant 0 : i32
    %c0_i32_0 = arith.constant 0 : i32
    %c0_i32_1 = arith.constant 0 : i32
    return %c0_i32, %c0_i32_0 : i32, i32
  }
  func.func @transform_12(%arg0: i32) -> (i32, i32, i32) {
    %c0_i32 = arith.constant 0 : i32
    %c0_i32_0 = arith.constant 0 : i32
    %c0_i32_1 = arith.constant 0 : i32
    %c0_i32_2 = arith.constant 0 : i32
    return %c0_i32, %c0_i32_0, %c0_i32_1 : i32, i32, i32
  }
  func.func @transform_13(%arg0: i32) -> (i32, i32) {
    %c0_i32 = arith.constant 0 : i32
    %c0_i32_0 = arith.constant 0 : i32
    %c0_i32_1 = arith.constant 0 : i32
    return %c0_i32, %c0_i32_0 : i32, i32
  }
  func.func @transform_14(%arg0: i32) -> (i32, i32) {
    %c0_i32 = arith.constant 0 : i32
    %c0_i32_0 = arith.constant 0 : i32
    %c0_i32_1 = arith.constant 0 : i32
    return %c0_i32, %c0_i32_0 : i32, i32
  }
  func.func @transform_15(%arg0: i32) -> (i32, i32, i32, i32) {
    %c0_i32 = arith.constant 0 : i32
    %c0_i32_0 = arith.constant 0 : i32
    %c0_i32_1 = arith.constant 0 : i32
    %c0_i32_2 = arith.constant 0 : i32
    return %arg0, %c0_i32, %c0_i32_0, %c0_i32_1 : i32, i32, i32, i32
  }
}

module attributes {stable_mosaic.version = 11 : i64} {
  func.func @_fc_kernel(%arg0: i32, %arg1: memref<2x4096xf32, #tpu.memory_space<vmem>>, %arg2: memref<4096x10xf32, #tpu.memory_space<vmem>>, %arg3: memref<1x10xf32, #tpu.memory_space<vmem>>, %arg4: memref<2x10xf32, #tpu.memory_space<vmem>>) attributes {dimension_semantics = [#tpu.dimension_semantics<arbitrary>], iteration_bounds = array<i64: 1>, scalar_prefetch = 0 : i64, scratch_operands = 0 : i64, tpu.core_type = #tpu.core_type<tc>, window_params = [{pipeline_mode = #tpu.pipeline_mode<synchronous>, transform_indices = @transform_0, window_bounds = array<i64: 2, 4096>}, {pipeline_mode = #tpu.pipeline_mode<synchronous>, transform_indices = @transform_1, window_bounds = array<i64: 4096, 10>}, {pipeline_mode = #tpu.pipeline_mode<synchronous>, transform_indices = @transform_2, window_bounds = array<i64: 1, 10>}, {pipeline_mode = #tpu.pipeline_mode<synchronous>, transform_indices = @transform_3, window_bounds = array<i64: 2, 10>}]} {
    %c0 = arith.constant 0 : index
    %c0_0 = arith.constant 0 : index
    %0 = vector.load %arg1[%c0, %c0_0] : memref<2x4096xf32, #tpu.memory_space<vmem>>, vector<2x4096xf32>
    %c0_1 = arith.constant 0 : index
    %c0_2 = arith.constant 0 : index
    %1 = vector.load %arg2[%c0_1, %c0_2] : memref<4096x10xf32, #tpu.memory_space<vmem>>, vector<4096x10xf32>
    %cst = arith.constant dense<0.000000e+00> : vector<2x10xf32>
    %2 = tpu.matmul %0, %1, %cst {dimension_numbers = #tpu.dot_dimension_numbers<[1], [0], [0], [1], [0, 0, 1, 1], [], []>} : vector<2x4096xf32>, vector<4096x10xf32>, vector<2x10xf32> -> vector<2x10xf32>
    %c0_3 = arith.constant 0 : index
    %c0_4 = arith.constant 0 : index
    %3 = vector.load %arg3[%c0_3, %c0_4] : memref<1x10xf32, #tpu.memory_space<vmem>>, vector<1x10xf32>
    %4 = vector.broadcast %3 : vector<1x10xf32> to vector<2x10xf32>
    %5 = arith.addf %2, %4 : vector<2x10xf32>
    %c0_5 = arith.constant 0 : index
    %c0_6 = arith.constant 0 : index
    %6 = vector.load %arg4[%c0_5, %c0_6] : memref<2x10xf32, #tpu.memory_space<vmem>>, vector<2x10xf32>
    tpu.vector_store %arg4[%c0_5, %c0_6], %5 {strides = array<i32>} : memref<2x10xf32, #tpu.memory_space<vmem>>, vector<2x10xf32>,
    return
  }
  func.func @transform_0(%arg0: i32) -> (i32, i32) {
    %c0_i32 = arith.constant 0 : i32
    %c0_i32_0 = arith.constant 0 : i32
    %c0_i32_1 = arith.constant 0 : i32
    return %c0_i32, %c0_i32_0 : i32, i32
  }
  func.func @transform_1(%arg0: i32) -> (i32, i32) {
    %c0_i32 = arith.constant 0 : i32
    %c0_i32_0 = arith.constant 0 : i32
    %c0_i32_1 = arith.constant 0 : i32
    return %c0_i32, %c0_i32_0 : i32, i32
  }
  func.func @transform_2(%arg0: i32) -> (i32, i32) {
    %c0_i32 = arith.constant 0 : i32
    %c0_i32_0 = arith.constant 0 : i32
    %c0_i32_1 = arith.constant 0 : i32
    return %c0_i32, %c0_i32_0 : i32, i32
  }
  func.func @transform_3(%arg0: i32) -> (i32, i32) {
    %c0_i32 = arith.constant 0 : i32
    %c0_i32_0 = arith.constant 0 : i32
    %c0_i32_1 = arith.constant 0 : i32
    return %c0_i32, %c0_i32_0 : i32, i32
  }
}

</mosaic_0001>

<llo_original>
// kernel: _lambda_.3
$region0: #{_lambda_.3}
  #allocation0 [shape = 'u32[]', space=smem, size = 0x4, offset = 0x4, fixed_abs, tag = 'smem constant byte address 0x4 - core index']
  #allocation1 [shape = 'u32[144,128]{1,0:T(1,128)}', space=vmem, size = 0x12000, scoped, tag = 'internal scratch']
  %s0 = inlined_call_operand.vmem [shape: f32[2,4096], index: 0, kind: input, shape index: {}]
  %s1 = inlined_call_operand.vmem [shape: f32[4096,10], index: 1, kind: input, shape index: {}]
  %s2 = inlined_call_operand.vmem [shape: f32[1,10], index: 2, kind: input, shape index: {}]
  %s3 = inlined_call_operand.hbm [shape: f32[2,10], index: 3, kind: output, shape index: {}]
  %s4 = sld [smem:[#allocation0]]
  $region22: #{_lambda_.3} parent=0
    _
  %s6 = ssub.s32 1, %s4
  %s7 = scalar_select 0, %s6, %s4
  $region1: #{_lambda_.3} parent=0
    #allocation2 [shape = 'u8[1024]{0}', space=vmem, size = 0x400, scoped, tag = 'output window, operand 0, single buffered']
    #allocation3 [shape = 's32[1]{0}', space=sflag, size = 0x4, scoped, tag = 'scoped memory for _lambda_.3']
    %8 = vsyncpa [#allocation3], 0
    // Predicated region
    $region2: #{_lambda_.3} parent=1 // pred_check
      _
    $region3: #{_lambda_.3} parent=1 // pred_check_branch
      %10 = sbr.rel (0) target = $region5
    $region4: #{_lambda_.3} parent=1 // pred_region
      _
    $region5: #{_lambda_.3} parent=1 // pred_fallthru
      _
    // Predicated region
    $region6: #{_lambda_.3} parent=1 // pred_check
      _
    $region7: #{_lambda_.3} parent=1 // pred_check_branch
      %12 = sbr.rel (0) target = $region9
    $region8: #{_lambda_.3} parent=1 // pred_region
      _
    $region9: #{_lambda_.3} parent=1 // pred_fallthru
      _
    // Predicated region
    $region10: #{_lambda_.3} parent=1 // pred_check
      _
    $region11: #{_lambda_.3} parent=1 // pred_check_branch
      %14 = sbr.rel (0) target = $region13
    $region12: #{_lambda_.3} parent=1 // pred_region
      _
    $region13: #{_lambda_.3} parent=1 // pred_fallthru
      _
    %v15 = vld [vmem:[%s0] sm:$0xff]
    %v16 = vld [vmem:[%s0 + $0x8] sm:$0xff]
    %v17 = vld [vmem:[%s0 + $0x10] sm:$0xff]
    %v18 = vld [vmem:[%s0 + $0x18] sm:$0xff]
    %v19 = vld [vmem:[%s0 + $0x20] sm:$0xff]
    %v20 = vld [vmem:[%s0 + $0x28] sm:$0xff]
    %v21 = vld [vmem:[%s0 + $0x30] sm:$0xff]
    %v22 = vld [vmem:[%s0 + $0x38] sm:$0xff]
    %v23 = vld [vmem:[%s1] sm:$0xff]
    %v24 = vld [vmem:[%s1 + $0x8] sm:$0xff]
    %v25 = vld [vmem:[%s1 + $0x10] sm:$0xff]
    %v26 = vld [vmem:[%s1 + $0x18] sm:$0xff]
    %v27 = vld [vmem:[%s1 + $0x20] sm:$0xff]
    %v28 = vld [vmem:[%s1 + $0x28] sm:$0xff]
    %v29 = vld [vmem:[%s1 + $0x30] sm:$0xff]
    %v30 = vld [vmem:[%s1 + $0x38] sm:$0xff]
    %v31 = vld [vmem:[%s1 + $0x40] sm:$0xff]
    %v32 = vld [vmem:[%s1 + $0x48] sm:$0xff]
    %v33 = vld [vmem:[%s1 + $0x50] sm:$0xff]
    %v34 = vld [vmem:[%s1 + $0x58] sm:$0xff]
    %v35 = vld [vmem:[%s1 + $0x60] sm:$0xff]
    %v36 = vld [vmem:[%s1 + $0x68] sm:$0xff]
    %v37 = vld [vmem:[%s1 + $0x70] sm:$0xff]
    %v38 = vld [vmem:[%s1 + $0x78] sm:$0xff]
    %v39 = vld [vmem:[%s1 + $0x80] sm:$0xff]
    %v40 = vld [vmem:[%s1 + $0x88] sm:$0xff]
    %v41 = vld [vmem:[%s1 + $0x90] sm:$0xff]
    %v42 = vld [vmem:[%s1 + $0x98] sm:$0xff]
    %v43 = vld [vmem:[%s1 + $0xa0] sm:$0xff]
    %v44 = vld [vmem:[%s1 + $0xa8] sm:$0xff]
    %v45 = vld [vmem:[%s1 + $0xb0] sm:$0xff]
    %v46 = vld [vmem:[%s1 + $0xb8] sm:$0xff]
    %v47 = vld [vmem:[%s1 + $0xc0] sm:$0xff]
    %v48 = vld [vmem:[%s1 + $0xc8] sm:$0xff]
    %v49 = vld [vmem:[%s1 + $0xd0] sm:$0xff]
    %v50 = vld [vmem:[%s1 + $0xd8] sm:$0xff]
    %v51 = vld [vmem:[%s1 + $0xe0] sm:$0xff]
    %v52 = vld [vmem:[%s1 + $0xe8] sm:$0xff]
    %v53 = vld [vmem:[%s1 + $0xf0] sm:$0xff]
    %v54 = vld [vmem:[%s1 + $0xf8] sm:$0xff]
    %v55 = vld [vmem:[%s1 + $0x100] sm:$0xff]
    %v56 = vld [vmem:[%s1 + $0x108] sm:$0xff]
    %v57 = vld [vmem:[%s1 + $0x110] sm:$0xff]
    %v58 = vld [vmem:[%s1 + $0x118] sm:$0xff]
    %v59 = vld [vmem:[%s1 + $0x120] sm:$0xff]
    %v60 = vld [vmem:[%s1 + $0x128] sm:$0xff]
    %v61 = vld [vmem:[%s1 + $0x130] sm:$0xff]
    %v62 = vld [vmem:[%s1 + $0x138] sm:$0xff]
    %v63 = vld [vmem:[%s1 + $0x140] sm:$0xff]
    %v64 = vld [vmem:[%s1 + $0x148] sm:$0xff]
    %v65 = vld [vmem:[%s1 + $0x150] sm:$0xff]
    %v66 = vld [vmem:[%s1 + $0x158] sm:$0xff]
    %v67 = vld [vmem:[%s1 + $0x160] sm:$0xff]
    %v68 = vld [vmem:[%s1 + $0x168] sm:$0xff]
    %v69 = vld [vmem:[%s1 + $0x170] sm:$0xff]
    %v70 = vld [vmem:[%s1 + $0x178] sm:$0xff]
    %v71 = vld [vmem:[%s1 + $0x180] sm:$0xff]
    %v72 = vld [vmem:[%s1 + $0x188] sm:$0xff]
    %v73 = vld [vmem:[%s1 + $0x190] sm:$0xff]
    %v74 = vld [vmem:[%s1 + $0x198] sm:$0xff]
    %v75 = vld [vmem:[%s1 + $0x1a0] sm:$0xff]
    %v76 = vld [vmem:[%s1 + $0x1a8] sm:$0xff]
    %v77 = vld [vmem:[%s1 + $0x1b0] sm:$0xff]
    %v78 = vld [vmem:[%s1 + $0x1b8] sm:$0xff]
    %v79 = vld [vmem:[%s1 + $0x1c0] sm:$0xff]
    %v80 = vld [vmem:[%s1 + $0x1c8] sm:$0xff]
    %v81 = vld [vmem:[%s1 + $0x1d0] sm:$0xff]
    %v82 = vld [vmem:[%s1 + $0x1d8] sm:$0xff]
    %v83 = vld [vmem:[%s1 + $0x1e0] sm:$0xff]
    %v84 = vld [vmem:[%s1 + $0x1e8] sm:$0xff]
    %v85 = vld [vmem:[%s1 + $0x1f0] sm:$0xff]
    %v86 = vld [vmem:[%s1 + $0x1f8] sm:$0xff]
    %v87 = vld [vmem:[%s1 + $0x200] sm:$0xff]
    %v88 = vld [vmem:[%s1 + $0x208] sm:$0xff]
    %v89 = vld [vmem:[%s1 + $0x210] sm:$0xff]
    %v90 = vld [vmem:[%s1 + $0x218] sm:$0xff]
    %v91 = vld [vmem:[%s1 + $0x220] sm:$0xff]
    %v92 = vld [vmem:[%s1 + $0x228] sm:$0xff]
    %v93 = vld [vmem:[%s1 + $0x230] sm:$0xff]
    %v94 = vld [vmem:[%s1 + $0x238] sm:$0xff]
    %v95 = vld [vmem:[%s1 + $0x240] sm:$0xff]
    %v96 = vld [vmem:[%s1 + $0x248] sm:$0xff]
    %v97 = vld [vmem:[%s1 + $0x250] sm:$0xff]
    %v98 = vld [vmem:[%s1 + $0x258] sm:$0xff]
    %v99 = vld [vmem:[%s1 + $0x260] sm:$0xff]
    %v100 = vld [vmem:[%s1 + $0x268] sm:$0xff]
    %v101 = vld [vmem:[%s1 + $0x270] sm:$0xff]
    %v102 = vld [vmem:[%s1 + $0x278] sm:$0xff]
    %v103 = vld [vmem:[%s1 + $0x280] sm:$0xff]
    %v104 = vld [vmem:[%s1 + $0x288] sm:$0xff]
    %v105 = vld [vmem:[%s1 + $0x290] sm:$0xff]
    %v106 = vld [vmem:[%s1 + $0x298] sm:$0xff]
    %v107 = vld [vmem:[%s1 + $0x2a0] sm:$0xff]
    %v108 = vld [vmem:[%s1 + $0x2a8] sm:$0xff]
    %v109 = vld [vmem:[%s1 + $0x2b0] sm:$0xff]
    %v110 = vld [vmem:[%s1 + $0x2b8] sm:$0xff]
    %v111 = vld [vmem:[%s1 + $0x2c0] sm:$0xff]
    %v112 = vld [vmem:[%s1 + $0x2c8] sm:$0xff]
    %v113 = vld [vmem:[%s1 + $0x2d0] sm:$0xff]
    %v114 = vld [vmem:[%s1 + $0x2d8] sm:$0xff]
    %v115 = vld [vmem:[%s1 + $0x2e0] sm:$0xff]
    %v116 = vld [vmem:[%s1 + $0x2e8] sm:$0xff]
    %v117 = vld [vmem:[%s1 + $0x2f0] sm:$0xff]
    %v118 = vld [vmem:[%s1 + $0x2f8] sm:$0xff]
    %v119 = vld [vmem:[%s1 + $0x300] sm:$0xff]
    %v120 = vld [vmem:[%s1 + $0x308] sm:$0xff]
    %v121 = vld [vmem:[%s1 + $0x310] sm:$0xff]
    %v122 = vld [vmem:[%s1 + $0x318] sm:$0xff]
    %v123 = vld [vmem:[%s1 + $0x320] sm:$0xff]
    %v124 = vld [vmem:[%s1 + $0x328] sm:$0xff]
    %v125 = vld [vmem:[%s1 + $0x330] sm:$0xff]
    %v126 = vld [vmem:[%s1 + $0x338] sm:$0xff]
    %v127 = vld [vmem:[%s1 + $0x340] sm:$0xff]
    %v128 = vld [vmem:[%s1 + $0x348] sm:$0xff]
    %v129 = vld [vmem:[%s1 + $0x350] sm:$0xff]
    %v130 = vld [vmem:[%s1 + $0x358] sm:$0xff]
    %v131 = vld [vmem:[%s1 + $0x360] sm:$0xff]
    %v132 = vld [vmem:[%s1 + $0x368] sm:$0xff]
    %v133 = vld [vmem:[%s1 + $0x370] sm:$0xff]
    %v134 = vld [vmem:[%s1 + $0x378] sm:$0xff]
    %v135 = vld [vmem:[%s1 + $0x380] sm:$0xff]
    %v136 = vld [vmem:[%s1 + $0x388] sm:$0xff]
    %v137 = vld [vmem:[%s1 + $0x390] sm:$0xff]
    %v138 = vld [vmem:[%s1 + $0x398] sm:$0xff]
    %v139 = vld [vmem:[%s1 + $0x3a0] sm:$0xff]
    %v140 = vld [vmem:[%s1 + $0x3a8] sm:$0xff]
    %v141 = vld [vmem:[%s1 + $0x3b0] sm:$0xff]
    %v142 = vld [vmem:[%s1 + $0x3b8] sm:$0xff]
    %v143 = vld [vmem:[%s1 + $0x3c0] sm:$0xff]
    %v144 = vld [vmem:[%s1 + $0x3c8] sm:$0xff]
    %v145 = vld [vmem:[%s1 + $0x3d0] sm:$0xff]
    %v146 = vld [vmem:[%s1 + $0x3d8] sm:$0xff]
    %v147 = vld [vmem:[%s1 + $0x3e0] sm:$0xff]
    %v148 = vld [vmem:[%s1 + $0x3e8] sm:$0xff]
    %v149 = vld [vmem:[%s1 + $0x3f0] sm:$0xff]
    %v150 = vld [vmem:[%s1 + $0x3f8] sm:$0xff]
    %v151 = vld [vmem:[%s1 + $0x400] sm:$0xff]
    %v152 = vld [vmem:[%s1 + $0x408] sm:$0xff]
    %v153 = vld [vmem:[%s1 + $0x410] sm:$0xff]
    %v154 = vld [vmem:[%s1 + $0x418] sm:$0xff]
    %v155 = vld [vmem:[%s1 + $0x420] sm:$0xff]
    %v156 = vld [vmem:[%s1 + $0x428] sm:$0xff]
    %v157 = vld [vmem:[%s1 + $0x430] sm:$0xff]
    %v158 = vld [vmem:[%s1 + $0x438] sm:$0xff]
    %v159 = vld [vmem:[%s1 + $0x440] sm:$0xff]
    %v160 = vld [vmem:[%s1 + $0x448] sm:$0xff]
    %v161 = vld [vmem:[%s1 + $0x450] sm:$0xff]
    %v162 = vld [vmem:[%s1 + $0x458] sm:$0xff]
    %v163 = vld [vmem:[%s1 + $0x460] sm:$0xff]
    %v164 = vld [vmem:[%s1 + $0x468] sm:$0xff]
    %v165 = vld [vmem:[%s1 + $0x470] sm:$0xff]
    %v166 = vld [vmem:[%s1 + $0x478] sm:$0xff]
    %v167 = vld [vmem:[%s1 + $0x480] sm:$0xff]
    %v168 = vld [vmem:[%s1 + $0x488] sm:$0xff]
    %v169 = vld [vmem:[%s1 + $0x490] sm:$0xff]
    %v170 = vld [vmem:[%s1 + $0x498] sm:$0xff]
    %v171 = vld [vmem:[%s1 + $0x4a0] sm:$0xff]
    %v172 = vld [vmem:[%s1 + $0x4a8] sm:$0xff]
    %v173 = vld [vmem:[%s1 + $0x4b0] sm:$0xff]
    %v174 = vld [vmem:[%s1 + $0x4b8] sm:$0xff]
    %v175 = vld [vmem:[%s1 + $0x4c0] sm:$0xff]
    %v176 = vld [vmem:[%s1 + $0x4c8] sm:$0xff]
    %v177 = vld [vmem:[%s1 + $0x4d0] sm:$0xff]
    %v178 = vld [vmem:[%s1 + $0x4d8] sm:$0xff]
    %v179 = vld [vmem:[%s1 + $0x4e0] sm:$0xff]
    %v180 = vld [vmem:[%s1 + $0x4e8] sm:$0xff]
    %v181 = vld [vmem:[%s1 + $0x4f0] sm:$0xff]
    %v182 = vld [vmem:[%s1 + $0x4f8] sm:$0xff]
    %v183 = vld [vmem:[%s1 + $0x500] sm:$0xff]
    %v184 = vld [vmem:[%s1 + $0x508] sm:$0xff]
    %v185 = vld [vmem:[%s1 + $0x510] sm:$0xff]
    %v186 = vld [vmem:[%s1 + $0x518] sm:$0xff]
    %v187 = vld [vmem:[%s1 + $0x520] sm:$0xff]
    %v188 = vld [vmem:[%s1 + $0x528] sm:$0xff]
    %v189 = vld [vmem:[%s1 + $0x530] sm:$0xff]
    %v190 = vld [vmem:[%s1 + $0x538] sm:$0xff]
    %v191 = vld [vmem:[%s1 + $0x540] sm:$0xff]
    %v192 = vld [vmem:[%s1 + $0x548] sm:$0xff]
    %v193 = vld [vmem:[%s1 + $0x550] sm:$0xff]
    %v194 = vld [vmem:[%s1 + $0x558] sm:$0xff]
    %v195 = vld [vmem:[%s1 + $0x560] sm:$0xff]
    %v196 = vld [vmem:[%s1 + $0x568] sm:$0xff]
    %v197 = vld [vmem:[%s1 + $0x570] sm:$0xff]
    %v198 = vld [vmem:[%s1 + $0x578] sm:$0xff]
    %v199 = vld [vmem:[%s1 + $0x580] sm:$0xff]
    %v200 = vld [vmem:[%s1 + $0x588] sm:$0xff]
    %v201 = vld [vmem:[%s1 + $0x590] sm:$0xff]
    %v202 = vld [vmem:[%s1 + $0x598] sm:$0xff]
    %v203 = vld [vmem:[%s1 + $0x5a0] sm:$0xff]
    %v204 = vld [vmem:[%s1 + $0x5a8] sm:$0xff]
    %v205 = vld [vmem:[%s1 + $0x5b0] sm:$0xff]
    %v206 = vld [vmem:[%s1 + $0x5b8] sm:$0xff]
    %v207 = vld [vmem:[%s1 + $0x5c0] sm:$0xff]
    %v208 = vld [vmem:[%s1 + $0x5c8] sm:$0xff]
    %v209 = vld [vmem:[%s1 + $0x5d0] sm:$0xff]
    %v210 = vld [vmem:[%s1 + $0x5d8] sm:$0xff]
    %v211 = vld [vmem:[%s1 + $0x5e0] sm:$0xff]
    %v212 = vld [vmem:[%s1 + $0x5e8] sm:$0xff]
    %v213 = vld [vmem:[%s1 + $0x5f0] sm:$0xff]
    %v214 = vld [vmem:[%s1 + $0x5f8] sm:$0xff]
    %v215 = vld [vmem:[%s1 + $0x600] sm:$0xff]
    %v216 = vld [vmem:[%s1 + $0x608] sm:$0xff]
    %v217 = vld [vmem:[%s1 + $0x610] sm:$0xff]
    %v218 = vld [vmem:[%s1 + $0x618] sm:$0xff]
    %v219 = vld [vmem:[%s1 + $0x620] sm:$0xff]
    %v220 = vld [vmem:[%s1 + $0x628] sm:$0xff]
    %v221 = vld [vmem:[%s1 + $0x630] sm:$0xff]
    %v222 = vld [vmem:[%s1 + $0x638] sm:$0xff]
    %v223 = vld [vmem:[%s1 + $0x640] sm:$0xff]
    %v224 = vld [vmem:[%s1 + $0x648] sm:$0xff]
    %v225 = vld [vmem:[%s1 + $0x650] sm:$0xff]
    %v226 = vld [vmem:[%s1 + $0x658] sm:$0xff]
    %v227 = vld [vmem:[%s1 + $0x660] sm:$0xff]
    %v228 = vld [vmem:[%s1 + $0x668] sm:$0xff]
    %v229 = vld [vmem:[%s1 + $0x670] sm:$0xff]
    %v230 = vld [vmem:[%s1 + $0x678] sm:$0xff]
    %v231 = vld [vmem:[%s1 + $0x680] sm:$0xff]
    %v232 = vld [vmem:[%s1 + $0x688] sm:$0xff]
    %v233 = vld [vmem:[%s1 + $0x690] sm:$0xff]
    %v234 = vld [vmem:[%s1 + $0x698] sm:$0xff]
    %v235 = vld [vmem:[%s1 + $0x6a0] sm:$0xff]
    %v236 = vld [vmem:[%s1 + $0x6a8] sm:$0xff]
    %v237 = vld [vmem:[%s1 + $0x6b0] sm:$0xff]
    %v238 = vld [vmem:[%s1 + $0x6b8] sm:$0xff]
    %v239 = vld [vmem:[%s1 + $0x6c0] sm:$0xff]
    %v240 = vld [vmem:[%s1 + $0x6c8] sm:$0xff]
    %v241 = vld [vmem:[%s1 + $0x6d0] sm:$0xff]
    %v242 = vld [vmem:[%s1 + $0x6d8] sm:$0xff]
    %v243 = vld [vmem:[%s1 + $0x6e0] sm:$0xff]
    %v244 = vld [vmem:[%s1 + $0x6e8] sm:$0xff]
    %v245 = vld [vmem:[%s1 + $0x6f0] sm:$0xff]
    %v246 = vld [vmem:[%s1 + $0x6f8] sm:$0xff]
    %v247 = vld [vmem:[%s1 + $0x700] sm:$0xff]
    %v248 = vld [vmem:[%s1 + $0x708] sm:$0xff]
    %v249 = vld [vmem:[%s1 + $0x710] sm:$0xff]
    %v250 = vld [vmem:[%s1 + $0x718] sm:$0xff]
    %v251 = vld [vmem:[%s1 + $0x720] sm:$0xff]
    %v252 = vld [vmem:[%s1 + $0x728] sm:$0xff]
    %v253 = vld [vmem:[%s1 + $0x730] sm:$0xff]
    %v254 = vld [vmem:[%s1 + $0x738] sm:$0xff]
    %v255 = vld [vmem:[%s1 + $0x740] sm:$0xff]
    %v256 = vld [vmem:[%s1 + $0x748] sm:$0xff]
    %v257 = vld [vmem:[%s1 + $0x750] sm:$0xff]
    %v258 = vld [vmem:[%s1 + $0x758] sm:$0xff]
    %v259 = vld [vmem:[%s1 + $0x760] sm:$0xff]
    %v260 = vld [vmem:[%s1 + $0x768] sm:$0xff]
    %v261 = vld [vmem:[%s1 + $0x770] sm:$0xff]
    %v262 = vld [vmem:[%s1 + $0x778] sm:$0xff]
    %v263 = vld [vmem:[%s1 + $0x780] sm:$0xff]
    %v264 = vld [vmem:[%s1 + $0x788] sm:$0xff]
    %v265 = vld [vmem:[%s1 + $0x790] sm:$0xff]
    %v266 = vld [vmem:[%s1 + $0x798] sm:$0xff]
    %v267 = vld [vmem:[%s1 + $0x7a0] sm:$0xff]
    %v268 = vld [vmem:[%s1 + $0x7a8] sm:$0xff]
    %v269 = vld [vmem:[%s1 + $0x7b0] sm:$0xff]
    %v270 = vld [vmem:[%s1 + $0x7b8] sm:$0xff]
    %v271 = vld [vmem:[%s1 + $0x7c0] sm:$0xff]
    %v272 = vld [vmem:[%s1 + $0x7c8] sm:$0xff]
    %v273 = vld [vmem:[%s1 + $0x7d0] sm:$0xff]
    %v274 = vld [vmem:[%s1 + $0x7d8] sm:$0xff]
    %v275 = vld [vmem:[%s1 + $0x7e0] sm:$0xff]
    %v276 = vld [vmem:[%s1 + $0x7e8] sm:$0xff]
    %v277 = vld [vmem:[%s1 + $0x7f0] sm:$0xff]
    %v278 = vld [vmem:[%s1 + $0x7f8] sm:$0xff]
    %v279 = vld [vmem:[%s1 + $0x800] sm:$0xff]
    %v280 = vld [vmem:[%s1 + $0x808] sm:$0xff]
    %v281 = vld [vmem:[%s1 + $0x810] sm:$0xff]
    %v282 = vld [vmem:[%s1 + $0x818] sm:$0xff]
    %v283 = vld [vmem:[%s1 + $0x820] sm:$0xff]
    %v284 = vld [vmem:[%s1 + $0x828] sm:$0xff]
    %v285 = vld [vmem:[%s1 + $0x830] sm:$0xff]
    %v286 = vld [vmem:[%s1 + $0x838] sm:$0xff]
    %v287 = vld [vmem:[%s1 + $0x840] sm:$0xff]
    %v288 = vld [vmem:[%s1 + $0x848] sm:$0xff]
    %v289 = vld [vmem:[%s1 + $0x850] sm:$0xff]
    %v290 = vld [vmem:[%s1 + $0x858] sm:$0xff]
    %v291 = vld [vmem:[%s1 + $0x860] sm:$0xff]
    %v292 = vld [vmem:[%s1 + $0x868] sm:$0xff]
    %v293 = vld [vmem:[%s1 + $0x870] sm:$0xff]
    %v294 = vld [vmem:[%s1 + $0x878] sm:$0xff]
    %v295 = vld [vmem:[%s1 + $0x880] sm:$0xff]
    %v296 = vld [vmem:[%s1 + $0x888] sm:$0xff]
    %v297 = vld [vmem:[%s1 + $0x890] sm:$0xff]
    %v298 = vld [vmem:[%s1 + $0x898] sm:$0xff]
    %v299 = vld [vmem:[%s1 + $0x8a0] sm:$0xff]
    %v300 = vld [vmem:[%s1 + $0x8a8] sm:$0xff]
    %v301 = vld [vmem:[%s1 + $0x8b0] sm:$0xff]
    %v302 = vld [vmem:[%s1 + $0x8b8] sm:$0xff]
    %v303 = vld [vmem:[%s1 + $0x8c0] sm:$0xff]
    %v304 = vld [vmem:[%s1 + $0x8c8] sm:$0xff]
    %v305 = vld [vmem:[%s1 + $0x8d0] sm:$0xff]
    %v306 = vld [vmem:[%s1 + $0x8d8] sm:$0xff]
    %v307 = vld [vmem:[%s1 + $0x8e0] sm:$0xff]
    %v308 = vld [vmem:[%s1 + $0x8e8] sm:$0xff]
    %v309 = vld [vmem:[%s1 + $0x8f0] sm:$0xff]
    %v310 = vld [vmem:[%s1 + $0x8f8] sm:$0xff]
    %v311 = vld [vmem:[%s1 + $0x900] sm:$0xff]
    %v312 = vld [vmem:[%s1 + $0x908] sm:$0xff]
    %v313 = vld [vmem:[%s1 + $0x910] sm:$0xff]
    %v314 = vld [vmem:[%s1 + $0x918] sm:$0xff]
    %v315 = vld [vmem:[%s1 + $0x920] sm:$0xff]
    %v316 = vld [vmem:[%s1 + $0x928] sm:$0xff]
    %v317 = vld [vmem:[%s1 + $0x930] sm:$0xff]
    %v318 = vld [vmem:[%s1 + $0x938] sm:$0xff]
    %v319 = vld [vmem:[%s1 + $0x940] sm:$0xff]
    %v320 = vld [vmem:[%s1 + $0x948] sm:$0xff]
    %v321 = vld [vmem:[%s1 + $0x950] sm:$0xff]
    %v322 = vld [vmem:[%s1 + $0x958] sm:$0xff]
    %v323 = vld [vmem:[%s1 + $0x960] sm:$0xff]
    %v324 = vld [vmem:[%s1 + $0x968] sm:$0xff]
    %v325 = vld [vmem:[%s1 + $0x970] sm:$0xff]
    %v326 = vld [vmem:[%s1 + $0x978] sm:$0xff]
    %v327 = vld [vmem:[%s1 + $0x980] sm:$0xff]
    %v328 = vld [vmem:[%s1 + $0x988] sm:$0xff]
    %v329 = vld [vmem:[%s1 + $0x990] sm:$0xff]
    %v330 = vld [vmem:[%s1 + $0x998] sm:$0xff]
    %v331 = vld [vmem:[%s1 + $0x9a0] sm:$0xff]
    %v332 = vld [vmem:[%s1 + $0x9a8] sm:$0xff]
    %v333 = vld [vmem:[%s1 + $0x9b0] sm:$0xff]
    %v334 = vld [vmem:[%s1 + $0x9b8] sm:$0xff]
    %v335 = vld [vmem:[%s1 + $0x9c0] sm:$0xff]
    %v336 = vld [vmem:[%s1 + $0x9c8] sm:$0xff]
    %v337 = vld [vmem:[%s1 + $0x9d0] sm:$0xff]
    %v338 = vld [vmem:[%s1 + $0x9d8] sm:$0xff]
    %v339 = vld [vmem:[%s1 + $0x9e0] sm:$0xff]
    %v340 = vld [vmem:[%s1 + $0x9e8] sm:$0xff]
    %v341 = vld [vmem:[%s1 + $0x9f0] sm:$0xff]
    %v342 = vld [vmem:[%s1 + $0x9f8] sm:$0xff]
    %v343 = vld [vmem:[%s1 + $0xa00] sm:$0xff]
    %v344 = vld [vmem:[%s1 + $0xa08] sm:$0xff]
    %v345 = vld [vmem:[%s1 + $0xa10] sm:$0xff]
    %v346 = vld [vmem:[%s1 + $0xa18] sm:$0xff]
    %v347 = vld [vmem:[%s1 + $0xa20] sm:$0xff]
    %v348 = vld [vmem:[%s1 + $0xa28] sm:$0xff]
    %v349 = vld [vmem:[%s1 + $0xa30] sm:$0xff]
    %v350 = vld [vmem:[%s1 + $0xa38] sm:$0xff]
    %v351 = vld [vmem:[%s1 + $0xa40] sm:$0xff]
    %v352 = vld [vmem:[%s1 + $0xa48] sm:$0xff]
    %v353 = vld [vmem:[%s1 + $0xa50] sm:$0xff]
    %v354 = vld [vmem:[%s1 + $0xa58] sm:$0xff]
    %v355 = vld [vmem:[%s1 + $0xa60] sm:$0xff]
    %v356 = vld [vmem:[%s1 + $0xa68] sm:$0xff]
    %v357 = vld [vmem:[%s1 + $0xa70] sm:$0xff]
    %v358 = vld [vmem:[%s1 + $0xa78] sm:$0xff]
    %v359 = vld [vmem:[%s1 + $0xa80] sm:$0xff]
    %v360 = vld [vmem:[%s1 + $0xa88] sm:$0xff]
    %v361 = vld [vmem:[%s1 + $0xa90] sm:$0xff]
    %v362 = vld [vmem:[%s1 + $0xa98] sm:$0xff]
    %v363 = vld [vmem:[%s1 + $0xaa0] sm:$0xff]
    %v364 = vld [vmem:[%s1 + $0xaa8] sm:$0xff]
    %v365 = vld [vmem:[%s1 + $0xab0] sm:$0xff]
    %v366 = vld [vmem:[%s1 + $0xab8] sm:$0xff]
    %v367 = vld [vmem:[%s1 + $0xac0] sm:$0xff]
    %v368 = vld [vmem:[%s1 + $0xac8] sm:$0xff]
    %v369 = vld [vmem:[%s1 + $0xad0] sm:$0xff]
    %v370 = vld [vmem:[%s1 + $0xad8] sm:$0xff]
    %v371 = vld [vmem:[%s1 + $0xae0] sm:$0xff]
    %v372 = vld [vmem:[%s1 + $0xae8] sm:$0xff]
    %v373 = vld [vmem:[%s1 + $0xaf0] sm:$0xff]
    %v374 = vld [vmem:[%s1 + $0xaf8] sm:$0xff]
    %v375 = vld [vmem:[%s1 + $0xb00] sm:$0xff]
    %v376 = vld [vmem:[%s1 + $0xb08] sm:$0xff]
    %v377 = vld [vmem:[%s1 + $0xb10] sm:$0xff]
    %v378 = vld [vmem:[%s1 + $0xb18] sm:$0xff]
    %v379 = vld [vmem:[%s1 + $0xb20] sm:$0xff]
    %v380 = vld [vmem:[%s1 + $0xb28] sm:$0xff]
    %v381 = vld [vmem:[%s1 + $0xb30] sm:$0xff]
    %v382 = vld [vmem:[%s1 + $0xb38] sm:$0xff]
    %v383 = vld [vmem:[%s1 + $0xb40] sm:$0xff]
    %v384 = vld [vmem:[%s1 + $0xb48] sm:$0xff]
    %v385 = vld [vmem:[%s1 + $0xb50] sm:$0xff]
    %v386 = vld [vmem:[%s1 + $0xb58] sm:$0xff]
    %v387 = vld [vmem:[%s1 + $0xb60] sm:$0xff]
    %v388 = vld [vmem:[%s1 + $0xb68] sm:$0xff]
    %v389 = vld [vmem:[%s1 + $0xb70] sm:$0xff]
    %v390 = vld [vmem:[%s1 + $0xb78] sm:$0xff]
    %v391 = vld [vmem:[%s1 + $0xb80] sm:$0xff]
    %v392 = vld [vmem:[%s1 + $0xb88] sm:$0xff]
    %v393 = vld [vmem:[%s1 + $0xb90] sm:$0xff]
    %v394 = vld [vmem:[%s1 + $0xb98] sm:$0xff]
    %v395 = vld [vmem:[%s1 + $0xba0] sm:$0xff]
    %v396 = vld [vmem:[%s1 + $0xba8] sm:$0xff]
    %v397 = vld [vmem:[%s1 + $0xbb0] sm:$0xff]
    %v398 = vld [vmem:[%s1 + $0xbb8] sm:$0xff]
    %v399 = vld [vmem:[%s1 + $0xbc0] sm:$0xff]
    %v400 = vld [vmem:[%s1 + $0xbc8] sm:$0xff]
    %v401 = vld [vmem:[%s1 + $0xbd0] sm:$0xff]
    %v402 = vld [vmem:[%s1 + $0xbd8] sm:$0xff]
    %v403 = vld [vmem:[%s1 + $0xbe0] sm:$0xff]
    %v404 = vld [vmem:[%s1 + $0xbe8] sm:$0xff]
    %v405 = vld [vmem:[%s1 + $0xbf0] sm:$0xff]
    %v406 = vld [vmem:[%s1 + $0xbf8] sm:$0xff]
    %v407 = vld [vmem:[%s1 + $0xc00] sm:$0xff]
    %v408 = vld [vmem:[%s1 + $0xc08] sm:$0xff]
    %v409 = vld [vmem:[%s1 + $0xc10] sm:$0xff]
    %v410 = vld [vmem:[%s1 + $0xc18] sm:$0xff]
    %v411 = vld [vmem:[%s1 + $0xc20] sm:$0xff]
    %v412 = vld [vmem:[%s1 + $0xc28] sm:$0xff]
    %v413 = vld [vmem:[%s1 + $0xc30] sm:$0xff]
    %v414 = vld [vmem:[%s1 + $0xc38] sm:$0xff]
    %v415 = vld [vmem:[%s1 + $0xc40] sm:$0xff]
    %v416 = vld [vmem:[%s1 + $0xc48] sm:$0xff]
    %v417 = vld [vmem:[%s1 + $0xc50] sm:$0xff]
    %v418 = vld [vmem:[%s1 + $0xc58] sm:$0xff]
    %v419 = vld [vmem:[%s1 + $0xc60] sm:$0xff]
    %v420 = vld [vmem:[%s1 + $0xc68] sm:$0xff]
    %v421 = vld [vmem:[%s1 + $0xc70] sm:$0xff]
    %v422 = vld [vmem:[%s1 + $0xc78] sm:$0xff]
    %v423 = vld [vmem:[%s1 + $0xc80] sm:$0xff]
    %v424 = vld [vmem:[%s1 + $0xc88] sm:$0xff]
    %v425 = vld [vmem:[%s1 + $0xc90] sm:$0xff]
    %v426 = vld [vmem:[%s1 + $0xc98] sm:$0xff]
    %v427 = vld [vmem:[%s1 + $0xca0] sm:$0xff]
    %v428 = vld [vmem:[%s1 + $0xca8] sm:$0xff]
    %v429 = vld [vmem:[%s1 + $0xcb0] sm:$0xff]
    %v430 = vld [vmem:[%s1 + $0xcb8] sm:$0xff]
    %v431 = vld [vmem:[%s1 + $0xcc0] sm:$0xff]
    %v432 = vld [vmem:[%s1 + $0xcc8] sm:$0xff]
    %v433 = vld [vmem:[%s1 + $0xcd0] sm:$0xff]
    %v434 = vld [vmem:[%s1 + $0xcd8] sm:$0xff]
    %v435 = vld [vmem:[%s1 + $0xce0] sm:$0xff]
    %v436 = vld [vmem:[%s1 + $0xce8] sm:$0xff]
    %v437 = vld [vmem:[%s1 + $0xcf0] sm:$0xff]
    %v438 = vld [vmem:[%s1 + $0xcf8] sm:$0xff]
    %v439 = vld [vmem:[%s1 + $0xd00] sm:$0xff]
    %v440 = vld [vmem:[%s1 + $0xd08] sm:$0xff]
    %v441 = vld [vmem:[%s1 + $0xd10] sm:$0xff]
    %v442 = vld [vmem:[%s1 + $0xd18] sm:$0xff]
    %v443 = vld [vmem:[%s1 + $0xd20] sm:$0xff]
    %v444 = vld [vmem:[%s1 + $0xd28] sm:$0xff]
    %v445 = vld [vmem:[%s1 + $0xd30] sm:$0xff]
    %v446 = vld [vmem:[%s1 + $0xd38] sm:$0xff]
    %v447 = vld [vmem:[%s1 + $0xd40] sm:$0xff]
    %v448 = vld [vmem:[%s1 + $0xd48] sm:$0xff]
    %v449 = vld [vmem:[%s1 + $0xd50] sm:$0xff]
    %v450 = vld [vmem:[%s1 + $0xd58] sm:$0xff]
    %v451 = vld [vmem:[%s1 + $0xd60] sm:$0xff]
    %v452 = vld [vmem:[%s1 + $0xd68] sm:$0xff]
    %v453 = vld [vmem:[%s1 + $0xd70] sm:$0xff]
    %v454 = vld [vmem:[%s1 + $0xd78] sm:$0xff]
    %v455 = vld [vmem:[%s1 + $0xd80] sm:$0xff]
    %v456 = vld [vmem:[%s1 + $0xd88] sm:$0xff]
    %v457 = vld [vmem:[%s1 + $0xd90] sm:$0xff]
    %v458 = vld [vmem:[%s1 + $0xd98] sm:$0xff]
    %v459 = vld [vmem:[%s1 + $0xda0] sm:$0xff]
    %v460 = vld [vmem:[%s1 + $0xda8] sm:$0xff]
    %v461 = vld [vmem:[%s1 + $0xdb0] sm:$0xff]
    %v462 = vld [vmem:[%s1 + $0xdb8] sm:$0xff]
    %v463 = vld [vmem:[%s1 + $0xdc0] sm:$0xff]
    %v464 = vld [vmem:[%s1 + $0xdc8] sm:$0xff]
    %v465 = vld [vmem:[%s1 + $0xdd0] sm:$0xff]
    %v466 = vld [vmem:[%s1 + $0xdd8] sm:$0xff]
    %v467 = vld [vmem:[%s1 + $0xde0] sm:$0xff]
    %v468 = vld [vmem:[%s1 + $0xde8] sm:$0xff]
    %v469 = vld [vmem:[%s1 + $0xdf0] sm:$0xff]
    %v470 = vld [vmem:[%s1 + $0xdf8] sm:$0xff]
    %v471 = vld [vmem:[%s1 + $0xe00] sm:$0xff]
    %v472 = vld [vmem:[%s1 + $0xe08] sm:$0xff]
    %v473 = vld [vmem:[%s1 + $0xe10] sm:$0xff]
    %v474 = vld [vmem:[%s1 + $0xe18] sm:$0xff]
    %v475 = vld [vmem:[%s1 + $0xe20] sm:$0xff]
    %v476 = vld [vmem:[%s1 + $0xe28] sm:$0xff]
    %v477 = vld [vmem:[%s1 + $0xe30] sm:$0xff]
    %v478 = vld [vmem:[%s1 + $0xe38] sm:$0xff]
    %v479 = vld [vmem:[%s1 + $0xe40] sm:$0xff]
    %v480 = vld [vmem:[%s1 + $0xe48] sm:$0xff]
    %v481 = vld [vmem:[%s1 + $0xe50] sm:$0xff]
    %v482 = vld [vmem:[%s1 + $0xe58] sm:$0xff]
    %v483 = vld [vmem:[%s1 + $0xe60] sm:$0xff]
    %v484 = vld [vmem:[%s1 + $0xe68] sm:$0xff]
    %v485 = vld [vmem:[%s1 + $0xe70] sm:$0xff]
    %v486 = vld [vmem:[%s1 + $0xe78] sm:$0xff]
    %v487 = vld [vmem:[%s1 + $0xe80] sm:$0xff]
    %v488 = vld [vmem:[%s1 + $0xe88] sm:$0xff]
    %v489 = vld [vmem:[%s1 + $0xe90] sm:$0xff]
    %v490 = vld [vmem:[%s1 + $0xe98] sm:$0xff]
    %v491 = vld [vmem:[%s1 + $0xea0] sm:$0xff]
    %v492 = vld [vmem:[%s1 + $0xea8] sm:$0xff]
    %v493 = vld [vmem:[%s1 + $0xeb0] sm:$0xff]
    %v494 = vld [vmem:[%s1 + $0xeb8] sm:$0xff]
    %v495 = vld [vmem:[%s1 + $0xec0] sm:$0xff]
    %v496 = vld [vmem:[%s1 + $0xec8] sm:$0xff]
    %v497 = vld [vmem:[%s1 + $0xed0] sm:$0xff]
    %v498 = vld [vmem:[%s1 + $0xed8] sm:$0xff]
    %v499 = vld [vmem:[%s1 + $0xee0] sm:$0xff]
    %v500 = vld [vmem:[%s1 + $0xee8] sm:$0xff]
    %v501 = vld [vmem:[%s1 + $0xef0] sm:$0xff]
    %v502 = vld [vmem:[%s1 + $0xef8] sm:$0xff]
    %v503 = vld [vmem:[%s1 + $0xf00] sm:$0xff]
    %v504 = vld [vmem:[%s1 + $0xf08] sm:$0xff]
    %v505 = vld [vmem:[%s1 + $0xf10] sm:$0xff]
    %v506 = vld [vmem:[%s1 + $0xf18] sm:$0xff]
    %v507 = vld [vmem:[%s1 + $0xf20] sm:$0xff]
    %v508 = vld [vmem:[%s1 + $0xf28] sm:$0xff]
    %v509 = vld [vmem:[%s1 + $0xf30] sm:$0xff]
    %v510 = vld [vmem:[%s1 + $0xf38] sm:$0xff]
    %v511 = vld [vmem:[%s1 + $0xf40] sm:$0xff]
    %v512 = vld [vmem:[%s1 + $0xf48] sm:$0xff]
    %v513 = vld [vmem:[%s1 + $0xf50] sm:$0xff]
    %v514 = vld [vmem:[%s1 + $0xf58] sm:$0xff]
    %v515 = vld [vmem:[%s1 + $0xf60] sm:$0xff]
    %v516 = vld [vmem:[%s1 + $0xf68] sm:$0xff]
    %v517 = vld [vmem:[%s1 + $0xf70] sm:$0xff]
    %v518 = vld [vmem:[%s1 + $0xf78] sm:$0xff]
    %v519 = vld [vmem:[%s1 + $0xf80] sm:$0xff]
    %v520 = vld [vmem:[%s1 + $0xf88] sm:$0xff]
    %v521 = vld [vmem:[%s1 + $0xf90] sm:$0xff]
    %v522 = vld [vmem:[%s1 + $0xf98] sm:$0xff]
    %v523 = vld [vmem:[%s1 + $0xfa0] sm:$0xff]
    %v524 = vld [vmem:[%s1 + $0xfa8] sm:$0xff]
    %v525 = vld [vmem:[%s1 + $0xfb0] sm:$0xff]
    %v526 = vld [vmem:[%s1 + $0xfb8] sm:$0xff]
    %v527 = vld [vmem:[%s1 + $0xfc0] sm:$0xff]
    %v528 = vld [vmem:[%s1 + $0xfc8] sm:$0xff]
    %v529 = vld [vmem:[%s1 + $0xfd0] sm:$0xff]
    %v530 = vld [vmem:[%s1 + $0xfd8] sm:$0xff]
    %v531 = vld [vmem:[%s1 + $0xfe0] sm:$0xff]
    %v532 = vld [vmem:[%s1 + $0xfe8] sm:$0xff]
    %v533 = vld [vmem:[%s1 + $0xff0] sm:$0xff]
    %v534 = vld [vmem:[%s1 + $0xff8] sm:$0xff]
    %v535 = vld [vmem:[%s2] sm:$0x1]
    %v537 = vlaneseq
    %v538 = vshrl.u32 %v537, 7
    %v539 = vsub.s32 0, %v538
    %v540 = vrot.slane %v535, %v539
    %v550 = vcombine.high %v15, %v15
    %v552 = vunpack.c.l.s4 1983009808
    %v553 = vunpack.c.0.s8 %v552
    %v554 = vlaneseq
    %v555 = vshrl.u32 %v554, 7
    %v556 = vsub.s32 %v553, %v555
    %v557 = vrot.slane %v15, %v556
    %v559 = vunpack.c.l.s4 1983009808
    %v560 = vunpack.c.0.s8 %v559
    %v561 = vlaneseq
    %v562 = vshrl.u32 %v561, 7
    %v563 = vsub.s32 %v560, %v562
    %v564 = vrot.slane %v550, %v563
    %v565 = vcombine.high %v557, %v557
    %v566 = vcombine.high %v564, %v564
    %v567 = vcombine.high %v16, %v16
    %v569 = vunpack.c.l.s4 1983009808
    %v570 = vunpack.c.0.s8 %v569
    %v571 = vlaneseq
    %v572 = vshrl.u32 %v571, 7
    %v573 = vsub.s32 %v570, %v572
    %v574 = vrot.slane %v16, %v573
    %v576 = vunpack.c.l.s4 1983009808
    %v577 = vunpack.c.0.s8 %v576
    %v578 = vlaneseq
    %v579 = vshrl.u32 %v578, 7
    %v580 = vsub.s32 %v577, %v579
    %v581 = vrot.slane %v567, %v580
    %v582 = vcombine.high %v574, %v574
    %v583 = vcombine.high %v581, %v581
    %v584 = vcombine.high %v17, %v17
    %v586 = vunpack.c.l.s4 1983009808
    %v587 = vunpack.c.0.s8 %v586
    %v588 = vlaneseq
    %v589 = vshrl.u32 %v588, 7
    %v590 = vsub.s32 %v587, %v589
    %v591 = vrot.slane %v17, %v590
    %v593 = vunpack.c.l.s4 1983009808
    %v594 = vunpack.c.0.s8 %v593
    %v595 = vlaneseq
    %v596 = vshrl.u32 %v595, 7
    %v597 = vsub.s32 %v594, %v596
    %v598 = vrot.slane %v584, %v597
    %v599 = vcombine.high %v591, %v591
    %v600 = vcombine.high %v598, %v598
    %v601 = vcombine.high %v18, %v18
    %v603 = vunpack.c.l.s4 1983009808
    %v604 = vunpack.c.0.s8 %v603
    %v605 = vlaneseq
    %v606 = vshrl.u32 %v605, 7
    %v607 = vsub.s32 %v604, %v606
    %v608 = vrot.slane %v18, %v607
    %v610 = vunpack.c.l.s4 1983009808
    %v611 = vunpack.c.0.s8 %v610
    %v612 = vlaneseq
    %v613 = vshrl.u32 %v612, 7
    %v614 = vsub.s32 %v611, %v613
    %v615 = vrot.slane %v601, %v614
    %v616 = vcombine.high %v608, %v608
    %v617 = vcombine.high %v615, %v615
    %v618 = vcombine.high %v19, %v19
    %v620 = vunpack.c.l.s4 1983009808
    %v621 = vunpack.c.0.s8 %v620
    %v622 = vlaneseq
    %v623 = vshrl.u32 %v622, 7
    %v624 = vsub.s32 %v621, %v623
    %v625 = vrot.slane %v19, %v624
    %v627 = vunpack.c.l.s4 1983009808
    %v628 = vunpack.c.0.s8 %v627
    %v629 = vlaneseq
    %v630 = vshrl.u32 %v629, 7
    %v631 = vsub.s32 %v628, %v630
    %v632 = vrot.slane %v618, %v631
    %v633 = vcombine.high %v625, %v625
    %v634 = vcombine.high %v632, %v632
    %v635 = vcombine.high %v20, %v20
    %v637 = vunpack.c.l.s4 1983009808
    %v638 = vunpack.c.0.s8 %v637
    %v639 = vlaneseq
    %v640 = vshrl.u32 %v639, 7
    %v641 = vsub.s32 %v638, %v640
    %v642 = vrot.slane %v20, %v641
    %v644 = vunpack.c.l.s4 1983009808
    %v645 = vunpack.c.0.s8 %v644
    %v646 = vlaneseq
    %v647 = vshrl.u32 %v646, 7
    %v648 = vsub.s32 %v645, %v647
    %v649 = vrot.slane %v635, %v648
    %v650 = vcombine.high %v642, %v642
    %v651 = vcombine.high %v649, %v649
    %v652 = vcombine.high %v21, %v21
    %v654 = vunpack.c.l.s4 1983009808
    %v655 = vunpack.c.0.s8 %v654
    %v656 = vlaneseq
    %v657 = vshrl.u32 %v656, 7
    %v658 = vsub.s32 %v655, %v657
    %v659 = vrot.slane %v21, %v658
    %v661 = vunpack.c.l.s4 1983009808
    %v662 = vunpack.c.0.s8 %v661
    %v663 = vlaneseq
    %v664 = vshrl.u32 %v663, 7
    %v665 = vsub.s32 %v662, %v664
    %v666 = vrot.slane %v652, %v665
    %v667 = vcombine.high %v659, %v659
    %v668 = vcombine.high %v666, %v666
    %v669 = vcombine.high %v22, %v22
    %v671 = vunpack.c.l.s4 1983009808
    %v672 = vunpack.c.0.s8 %v671
    %v673 = vlaneseq
    %v674 = vshrl.u32 %v673, 7
    %v675 = vsub.s32 %v672, %v674
    %v676 = vrot.slane %v22, %v675
    %v678 = vunpack.c.l.s4 1983009808
    %v679 = vunpack.c.0.s8 %v678
    %v680 = vlaneseq
    %v681 = vshrl.u32 %v680, 7
    %v682 = vsub.s32 %v679, %v681
    %v683 = vrot.slane %v669, %v682
    %v684 = vcombine.high %v676, %v676
    %v685 = vcombine.high %v683, %v683
    %718 = vmatprep.subr.mxu0 0.0
    %719 = vmatpush1.msra.mxu0 %v23
    %720 = vmatprep.subr.mxu0 0.0
    %721 = vmatpush1.msra.mxu0 %v24
    %722 = vmatprep.subr.mxu0 0.0
    %723 = vmatpush1.msra.mxu0 %v25
    %724 = vmatprep.subr.mxu0 0.0
    %725 = vmatpush1.msra.mxu0 %v26
    %726 = vmatprep.subr.mxu0 0.0
    %727 = vmatpush1.msra.mxu0 %v27
    %728 = vmatprep.subr.mxu0 0.0
    %729 = vmatpush1.msra.mxu0 %v28
    %730 = vmatprep.subr.mxu0 0.0
    %731 = vmatpush1.msra.mxu0 %v29
    %732 = vmatprep.subr.mxu0 0.0
    %733 = vmatpush1.msra.mxu0 %v30
    %734 = vmatprep.subr.mxu0 0.0
    %735 = vmatpush1.msra.mxu0 %v31
    %736 = vmatprep.subr.mxu0 0.0
    %737 = vmatpush1.msra.mxu0 %v32
    %738 = vmatprep.subr.mxu0 0.0
    %739 = vmatpush1.msra.mxu0 %v33
    %740 = vmatprep.subr.mxu0 0.0
    %741 = vmatpush1.msra.mxu0 %v34
    %742 = vmatprep.subr.mxu0 0.0
    %743 = vmatpush1.msra.mxu0 %v35
    %744 = vmatprep.subr.mxu0 0.0
    %745 = vmatpush1.msra.mxu0 %v36
    %746 = vmatprep.subr.mxu0 0.0
    %747 = vmatpush1.msra.mxu0 %v37
    %748 = vmatprep.subr.mxu0 0.0
    %749 = vmatpush1.msra.mxu0 %v38
    %750 = vmatprep.subr.mxu0 0.0
    %751 = vmatpush1.msra.mxu0 %v39
    %752 = vmatprep.subr.mxu0 0.0
    %753 = vmatpush1.msra.mxu0 %v40
    %754 = vmatprep.subr.mxu0 0.0
    %755 = vmatpush1.msra.mxu0 %v41
    %756 = vmatprep.subr.mxu0 0.0
    %757 = vmatpush1.msra.mxu0 %v42
    %758 = vmatprep.subr.mxu0 0.0
    %759 = vmatpush1.msra.mxu0 %v43
    %760 = vmatprep.subr.mxu0 0.0
    %761 = vmatpush1.msra.mxu0 %v44
    %762 = vmatprep.subr.mxu0 0.0
    %763 = vmatpush1.msra.mxu0 %v45
    %764 = vmatprep.subr.mxu0 0.0
    %765 = vmatpush1.msra.mxu0 %v46
    %766 = vmatprep.subr.mxu0 0.0
    %767 = vmatpush1.msra.mxu0 %v47
    %768 = vmatprep.subr.mxu0 0.0
    %769 = vmatpush1.msra.mxu0 %v48
    %770 = vmatprep.subr.mxu0 0.0
    %771 = vmatpush1.msra.mxu0 %v49
    %772 = vmatprep.subr.mxu0 0.0
    %773 = vmatpush1.msra.mxu0 %v50
    %774 = vmatprep.subr.mxu0 0.0
    %775 = vmatpush1.msra.mxu0 %v51
    %776 = vmatprep.subr.mxu0 0.0
    %777 = vmatpush1.msra.mxu0 %v52
    %778 = vmatprep.subr.mxu0 0.0
    %779 = vmatpush1.msra.mxu0 %v53
    %780 = vmatprep.subr.mxu0 0.0
    %781 = vmatpush1.msra.mxu0 %v54
    %782 = vmatprep.mubr.f32.mxu0 %v565
    %783 = vmatmul.mubr.f32.gmra.mrb[0].mxu0 %v557
    %v784 = vpop.f32.mrb[0].mxu0
    %v785 = vadd.f32 %v540, %v784
    %v786 = vpop.f32.mrb[0].mxu0
    %787 = vdwg.mxu0
    %788 = vmatprep.subr.mxu0 0.0
    %789 = vmatpush1.msra.mxu0 %v55
    %790 = vmatprep.subr.mxu0 0.0
    %791 = vmatpush1.msra.mxu0 %v56
    %792 = vmatprep.subr.mxu0 0.0
    %793 = vmatpush1.msra.mxu0 %v57
    %794 = vmatprep.subr.mxu0 0.0
    %795 = vmatpush1.msra.mxu0 %v58
    %796 = vmatprep.subr.mxu0 0.0
    %797 = vmatpush1.msra.mxu0 %v59
    %798 = vmatprep.subr.mxu0 0.0
    %799 = vmatpush1.msra.mxu0 %v60
    %800 = vmatprep.subr.mxu0 0.0
    %801 = vmatpush1.msra.mxu0 %v61
    %802 = vmatprep.subr.mxu0 0.0
    %803 = vmatpush1.msra.mxu0 %v62
    %804 = vmatprep.subr.mxu0 0.0
    %805 = vmatpush1.msra.mxu0 %v63
    %806 = vmatprep.subr.mxu0 0.0
    %807 = vmatpush1.msra.mxu0 %v64
    %808 = vmatprep.subr.mxu0 0.0
    %809 = vmatpush1.msra.mxu0 %v65
    %810 = vmatprep.subr.mxu0 0.0
    %811 = vmatpush1.msra.mxu0 %v66
    %812 = vmatprep.subr.mxu0 0.0
    %813 = vmatpush1.msra.mxu0 %v67
    %814 = vmatprep.subr.mxu0 0.0
    %815 = vmatpush1.msra.mxu0 %v68
    %816 = vmatprep.subr.mxu0 0.0
    %817 = vmatpush1.msra.mxu0 %v69
    %818 = vmatprep.subr.mxu0 0.0
    %819 = vmatpush1.msra.mxu0 %v70
    %820 = vmatprep.subr.mxu0 0.0
    %821 = vmatpush1.msra.mxu0 %v71
    %822 = vmatprep.subr.mxu0 0.0
    %823 = vmatpush1.msra.mxu0 %v72
    %824 = vmatprep.subr.mxu0 0.0
    %825 = vmatpush1.msra.mxu0 %v73
    %826 = vmatprep.subr.mxu0 0.0
    %827 = vmatpush1.msra.mxu0 %v74
    %828 = vmatprep.subr.mxu0 0.0
    %829 = vmatpush1.msra.mxu0 %v75
    %830 = vmatprep.subr.mxu0 0.0
    %831 = vmatpush1.msra.mxu0 %v76
    %832 = vmatprep.subr.mxu0 0.0
    %833 = vmatpush1.msra.mxu0 %v77
    %834 = vmatprep.subr.mxu0 0.0
    %835 = vmatpush1.msra.mxu0 %v78
    %836 = vmatprep.subr.mxu0 0.0
    %837 = vmatpush1.msra.mxu0 %v79
    %838 = vmatprep.subr.mxu0 0.0
    %839 = vmatpush1.msra.mxu0 %v80
    %840 = vmatprep.subr.mxu0 0.0
    %841 = vmatpush1.msra.mxu0 %v81
    %842 = vmatprep.subr.mxu0 0.0
    %843 = vmatpush1.msra.mxu0 %v82
    %844 = vmatprep.subr.mxu0 0.0
    %845 = vmatpush1.msra.mxu0 %v83
    %846 = vmatprep.subr.mxu0 0.0
    %847 = vmatpush1.msra.mxu0 %v84
    %848 = vmatprep.subr.mxu0 0.0
    %849 = vmatpush1.msra.mxu0 %v85
    %850 = vmatprep.subr.mxu0 0.0
    %851 = vmatpush1.msra.mxu0 %v86
    %852 = vmatprep.mubr.f32.mxu0 %v566
    %853 = vmatmul.mubr.f32.gmra.mrb[0].mxu0 %v564
    %v854 = vpop.f32.mrb[0].mxu0
    %v855 = vadd.f32 %v785, %v854
    %v856 = vpop.f32.mrb[0].mxu0
    %857 = vdwg.mxu0
    %858 = vmatprep.subr.mxu0 0.0
    %859 = vmatpush1.msra.mxu0 %v87
    %860 = vmatprep.subr.mxu0 0.0
    %861 = vmatpush1.msra.mxu0 %v88
    %862 = vmatprep.subr.mxu0 0.0
    %863 = vmatpush1.msra.mxu0 %v89
    %864 = vmatprep.subr.mxu0 0.0
    %865 = vmatpush1.msra.mxu0 %v90
    %866 = vmatprep.subr.mxu0 0.0
    %867 = vmatpush1.msra.mxu0 %v91
    %868 = vmatprep.subr.mxu0 0.0
    %869 = vmatpush1.msra.mxu0 %v92
    %870 = vmatprep.subr.mxu0 0.0
    %871 = vmatpush1.msra.mxu0 %v93
    %872 = vmatprep.subr.mxu0 0.0
    %873 = vmatpush1.msra.mxu0 %v94
    %874 = vmatprep.subr.mxu0 0.0
    %875 = vmatpush1.msra.mxu0 %v95
    %876 = vmatprep.subr.mxu0 0.0
    %877 = vmatpush1.msra.mxu0 %v96
    %878 = vmatprep.subr.mxu0 0.0
    %879 = vmatpush1.msra.mxu0 %v97
    %880 = vmatprep.subr.mxu0 0.0
    %881 = vmatpush1.msra.mxu0 %v98
    %882 = vmatprep.subr.mxu0 0.0
    %883 = vmatpush1.msra.mxu0 %v99
    %884 = vmatprep.subr.mxu0 0.0
    %885 = vmatpush1.msra.mxu0 %v100
    %886 = vmatprep.subr.mxu0 0.0
    %887 = vmatpush1.msra.mxu0 %v101
    %888 = vmatprep.subr.mxu0 0.0
    %889 = vmatpush1.msra.mxu0 %v102
    %890 = vmatprep.subr.mxu0 0.0
    %891 = vmatpush1.msra.mxu0 %v103
    %892 = vmatprep.subr.mxu0 0.0
    %893 = vmatpush1.msra.mxu0 %v104
    %894 = vmatprep.subr.mxu0 0.0
    %895 = vmatpush1.msra.mxu0 %v105
    %896 = vmatprep.subr.mxu0 0.0
    %897 = vmatpush1.msra.mxu0 %v106
    %898 = vmatprep.subr.mxu0 0.0
    %899 = vmatpush1.msra.mxu0 %v107
    %900 = vmatprep.subr.mxu0 0.0
    %901 = vmatpush1.msra.mxu0 %v108
    %902 = vmatprep.subr.mxu0 0.0
    %903 = vmatpush1.msra.mxu0 %v109
    %904 = vmatprep.subr.mxu0 0.0
    %905 = vmatpush1.msra.mxu0 %v110
    %906 = vmatprep.subr.mxu0 0.0
    %907 = vmatpush1.msra.mxu0 %v111
    %908 = vmatprep.subr.mxu0 0.0
    %909 = vmatpush1.msra.mxu0 %v112
    %910 = vmatprep.subr.mxu0 0.0
    %911 = vmatpush1.msra.mxu0 %v113
    %912 = vmatprep.subr.mxu0 0.0
    %913 = vmatpush1.msra.mxu0 %v114
    %914 = vmatprep.subr.mxu0 0.0
    %915 = vmatpush1.msra.mxu0 %v115
    %916 = vmatprep.subr.mxu0 0.0
    %917 = vmatpush1.msra.mxu0 %v116
    %918 = vmatprep.subr.mxu0 0.0
    %919 = vmatpush1.msra.mxu0 %v117
    %920 = vmatprep.subr.mxu0 0.0
    %921 = vmatpush1.msra.mxu0 %v118
    %922 = vmatprep.mubr.f32.mxu0 %v582
    %923 = vmatmul.mubr.f32.gmra.mrb[0].mxu0 %v574
    %v924 = vpop.f32.mrb[0].mxu0
    %v925 = vadd.f32 %v855, %v924
    %v926 = vpop.f32.mrb[0].mxu0
    %927 = vdwg.mxu0
    %928 = vmatprep.subr.mxu0 0.0
    %929 = vmatpush1.msra.mxu0 %v119
    %930 = vmatprep.subr.mxu0 0.0
    %931 = vmatpush1.msra.mxu0 %v120
    %932 = vmatprep.subr.mxu0 0.0
    %933 = vmatpush1.msra.mxu0 %v121
    %934 = vmatprep.subr.mxu0 0.0
    %935 = vmatpush1.msra.mxu0 %v122
    %936 = vmatprep.subr.mxu0 0.0
    %937 = vmatpush1.msra.mxu0 %v123
    %938 = vmatprep.subr.mxu0 0.0
    %939 = vmatpush1.msra.mxu0 %v124
    %940 = vmatprep.subr.mxu0 0.0
    %941 = vmatpush1.msra.mxu0 %v125
    %942 = vmatprep.subr.mxu0 0.0
    %943 = vmatpush1.msra.mxu0 %v126
    %944 = vmatprep.subr.mxu0 0.0
    %945 = vmatpush1.msra.mxu0 %v127
    %946 = vmatprep.subr.mxu0 0.0
    %947 = vmatpush1.msra.mxu0 %v128
    %948 = vmatprep.subr.mxu0 0.0
    %949 = vmatpush1.msra.mxu0 %v129
    %950 = vmatprep.subr.mxu0 0.0
    %951 = vmatpush1.msra.mxu0 %v130
    %952 = vmatprep.subr.mxu0 0.0
    %953 = vmatpush1.msra.mxu0 %v131
    %954 = vmatprep.subr.mxu0 0.0
    %955 = vmatpush1.msra.mxu0 %v132
    %956 = vmatprep.subr.mxu0 0.0
    %957 = vmatpush1.msra.mxu0 %v133
    %958 = vmatprep.subr.mxu0 0.0
    %959 = vmatpush1.msra.mxu0 %v134
    %960 = vmatprep.subr.mxu0 0.0
    %961 = vmatpush1.msra.mxu0 %v135
    %962 = vmatprep.subr.mxu0 0.0
    %963 = vmatpush1.msra.mxu0 %v136
    %964 = vmatprep.subr.mxu0 0.0
    %965 = vmatpush1.msra.mxu0 %v137
    %966 = vmatprep.subr.mxu0 0.0
    %967 = vmatpush1.msra.mxu0 %v138
    %968 = vmatprep.subr.mxu0 0.0
    %969 = vmatpush1.msra.mxu0 %v139
    %970 = vmatprep.subr.mxu0 0.0
    %971 = vmatpush1.msra.mxu0 %v140
    %972 = vmatprep.subr.mxu0 0.0
    %973 = vmatpush1.msra.mxu0 %v141
    %974 = vmatprep.subr.mxu0 0.0
    %975 = vmatpush1.msra.mxu0 %v142
    %976 = vmatprep.subr.mxu0 0.0
    %977 = vmatpush1.msra.mxu0 %v143
    %978 = vmatprep.subr.mxu0 0.0
    %979 = vmatpush1.msra.mxu0 %v144
    %980 = vmatprep.subr.mxu0 0.0
    %981 = vmatpush1.msra.mxu0 %v145
    %982 = vmatprep.subr.mxu0 0.0
    %983 = vmatpush1.msra.mxu0 %v146
    %984 = vmatprep.subr.mxu0 0.0
    %985 = vmatpush1.msra.mxu0 %v147
    %986 = vmatprep.subr.mxu0 0.0
    %987 = vmatpush1.msra.mxu0 %v148
    %988 = vmatprep.subr.mxu0 0.0
    %989 = vmatpush1.msra.mxu0 %v149
    %990 = vmatprep.subr.mxu0 0.0
    %991 = vmatpush1.msra.mxu0 %v150
    %992 = vmatprep.mubr.f32.mxu0 %v583
    %993 = vmatmul.mubr.f32.gmra.mrb[0].mxu0 %v581
    %v994 = vpop.f32.mrb[0].mxu0
    %v995 = vadd.f32 %v925, %v994
    %v996 = vpop.f32.mrb[0].mxu0
    %997 = vdwg.mxu0
    %998 = vmatprep.subr.mxu0 0.0
    %999 = vmatpush1.msra.mxu0 %v151
    %1000 = vmatprep.subr.mxu0 0.0
    %1001 = vmatpush1.msra.mxu0 %v152
    %1002 = vmatprep.subr.mxu0 0.0
    %1003 = vmatpush1.msra.mxu0 %v153
    %1004 = vmatprep.subr.mxu0 0.0
    %1005 = vmatpush1.msra.mxu0 %v154
    %1006 = vmatprep.subr.mxu0 0.0
    %1007 = vmatpush1.msra.mxu0 %v155
    %1008 = vmatprep.subr.mxu0 0.0
    %1009 = vmatpush1.msra.mxu0 %v156
    %1010 = vmatprep.subr.mxu0 0.0
    %1011 = vmatpush1.msra.mxu0 %v157
    %1012 = vmatprep.subr.mxu0 0.0
    %1013 = vmatpush1.msra.mxu0 %v158
    %1014 = vmatprep.subr.mxu0 0.0
    %1015 = vmatpush1.msra.mxu0 %v159
    %1016 = vmatprep.subr.mxu0 0.0
    %1017 = vmatpush1.msra.mxu0 %v160
    %1018 = vmatprep.subr.mxu0 0.0
    %1019 = vmatpush1.msra.mxu0 %v161
    %1020 = vmatprep.subr.mxu0 0.0
    %1021 = vmatpush1.msra.mxu0 %v162
    %1022 = vmatprep.subr.mxu0 0.0
    %1023 = vmatpush1.msra.mxu0 %v163
    %1024 = vmatprep.subr.mxu0 0.0
    %1025 = vmatpush1.msra.mxu0 %v164
    %1026 = vmatprep.subr.mxu0 0.0
    %1027 = vmatpush1.msra.mxu0 %v165
    %1028 = vmatprep.subr.mxu0 0.0
    %1029 = vmatpush1.msra.mxu0 %v166
    %1030 = vmatprep.subr.mxu0 0.0
    %1031 = vmatpush1.msra.mxu0 %v167
    %1032 = vmatprep.subr.mxu0 0.0
    %1033 = vmatpush1.msra.mxu0 %v168
    %1034 = vmatprep.subr.mxu0 0.0
    %1035 = vmatpush1.msra.mxu0 %v169
    %1036 = vmatprep.subr.mxu0 0.0
    %1037 = vmatpush1.msra.mxu0 %v170
    %1038 = vmatprep.subr.mxu0 0.0
    %1039 = vmatpush1.msra.mxu0 %v171
    %1040 = vmatprep.subr.mxu0 0.0
    %1041 = vmatpush1.msra.mxu0 %v172
    %1042 = vmatprep.subr.mxu0 0.0
    %1043 = vmatpush1.msra.mxu0 %v173
    %1044 = vmatprep.subr.mxu0 0.0
    %1045 = vmatpush1.msra.mxu0 %v174
    %1046 = vmatprep.subr.mxu0 0.0
    %1047 = vmatpush1.msra.mxu0 %v175
    %1048 = vmatprep.subr.mxu0 0.0
    %1049 = vmatpush1.msra.mxu0 %v176
    %1050 = vmatprep.subr.mxu0 0.0
    %1051 = vmatpush1.msra.mxu0 %v177
    %1052 = vmatprep.subr.mxu0 0.0
    %1053 = vmatpush1.msra.mxu0 %v178
    %1054 = vmatprep.subr.mxu0 0.0
    %1055 = vmatpush1.msra.mxu0 %v179
    %1056 = vmatprep.subr.mxu0 0.0
    %1057 = vmatpush1.msra.mxu0 %v180
    %1058 = vmatprep.subr.mxu0 0.0
    %1059 = vmatpush1.msra.mxu0 %v181
    %1060 = vmatprep.subr.mxu0 0.0
    %1061 = vmatpush1.msra.mxu0 %v182
    %1062 = vmatprep.mubr.f32.mxu0 %v599
    %1063 = vmatmul.mubr.f32.gmra.mrb[0].mxu0 %v591
    %v1064 = vpop.f32.mrb[0].mxu0
    %v1065 = vadd.f32 %v995, %v1064
    %v1066 = vpop.f32.mrb[0].mxu0
    %1067 = vdwg.mxu0
    %1068 = vmatprep.subr.mxu0 0.0
    %1069 = vmatpush1.msra.mxu0 %v183
    %1070 = vmatprep.subr.mxu0 0.0
    %1071 = vmatpush1.msra.mxu0 %v184
    %1072 = vmatprep.subr.mxu0 0.0
    %1073 = vmatpush1.msra.mxu0 %v185
    %1074 = vmatprep.subr.mxu0 0.0
    %1075 = vmatpush1.msra.mxu0 %v186
    %1076 = vmatprep.subr.mxu0 0.0
    %1077 = vmatpush1.msra.mxu0 %v187
    %1078 = vmatprep.subr.mxu0 0.0
    %1079 = vmatpush1.msra.mxu0 %v188
    %1080 = vmatprep.subr.mxu0 0.0
    %1081 = vmatpush1.msra.mxu0 %v189
    %1082 = vmatprep.subr.mxu0 0.0
    %1083 = vmatpush1.msra.mxu0 %v190
    %1084 = vmatprep.subr.mxu0 0.0
    %1085 = vmatpush1.msra.mxu0 %v191
    %1086 = vmatprep.subr.mxu0 0.0
    %1087 = vmatpush1.msra.mxu0 %v192
    %1088 = vmatprep.subr.mxu0 0.0
    %1089 = vmatpush1.msra.mxu0 %v193
    %1090 = vmatprep.subr.mxu0 0.0
    %1091 = vmatpush1.msra.mxu0 %v194
    %1092 = vmatprep.subr.mxu0 0.0
    %1093 = vmatpush1.msra.mxu0 %v195
    %1094 = vmatprep.subr.mxu0 0.0
    %1095 = vmatpush1.msra.mxu0 %v196
    %1096 = vmatprep.subr.mxu0 0.0
    %1097 = vmatpush1.msra.mxu0 %v197
    %1098 = vmatprep.subr.mxu0 0.0
    %1099 = vmatpush1.msra.mxu0 %v198
    %1100 = vmatprep.subr.mxu0 0.0
    %1101 = vmatpush1.msra.mxu0 %v199
    %1102 = vmatprep.subr.mxu0 0.0
    %1103 = vmatpush1.msra.mxu0 %v200
    %1104 = vmatprep.subr.mxu0 0.0
    %1105 = vmatpush1.msra.mxu0 %v201
    %1106 = vmatprep.subr.mxu0 0.0
    %1107 = vmatpush1.msra.mxu0 %v202
    %1108 = vmatprep.subr.mxu0 0.0
    %1109 = vmatpush1.msra.mxu0 %v203
    %1110 = vmatprep.subr.mxu0 0.0
    %1111 = vmatpush1.msra.mxu0 %v204
    %1112 = vmatprep.subr.mxu0 0.0
    %1113 = vmatpush1.msra.mxu0 %v205
    %1114 = vmatprep.subr.mxu0 0.0
    %1115 = vmatpush1.msra.mxu0 %v206
    %1116 = vmatprep.subr.mxu0 0.0
    %1117 = vmatpush1.msra.mxu0 %v207
    %1118 = vmatprep.subr.mxu0 0.0
    %1119 = vmatpush1.msra.mxu0 %v208
    %1120 = vmatprep.subr.mxu0 0.0
    %1121 = vmatpush1.msra.mxu0 %v209
    %1122 = vmatprep.subr.mxu0 0.0
    %1123 = vmatpush1.msra.mxu0 %v210
    %1124 = vmatprep.subr.mxu0 0.0
    %1125 = vmatpush1.msra.mxu0 %v211
    %1126 = vmatprep.subr.mxu0 0.0
    %1127 = vmatpush1.msra.mxu0 %v212
    %1128 = vmatprep.subr.mxu0 0.0
    %1129 = vmatpush1.msra.mxu0 %v213
    %1130 = vmatprep.subr.mxu0 0.0
    %1131 = vmatpush1.msra.mxu0 %v214
    %1132 = vmatprep.mubr.f32.mxu0 %v600
    %1133 = vmatmul.mubr.f32.gmra.mrb[0].mxu0 %v598
    %v1134 = vpop.f32.mrb[0].mxu0
    %v1135 = vadd.f32 %v1065, %v1134
    %v1136 = vpop.f32.mrb[0].mxu0
    %1137 = vdwg.mxu0
    %1138 = vmatprep.subr.mxu0 0.0
    %1139 = vmatpush1.msra.mxu0 %v215
    %1140 = vmatprep.subr.mxu0 0.0
    %1141 = vmatpush1.msra.mxu0 %v216
    %1142 = vmatprep.subr.mxu0 0.0
    %1143 = vmatpush1.msra.mxu0 %v217
    %1144 = vmatprep.subr.mxu0 0.0
    %1145 = vmatpush1.msra.mxu0 %v218
    %1146 = vmatprep.subr.mxu0 0.0
    %1147 = vmatpush1.msra.mxu0 %v219
    %1148 = vmatprep.subr.mxu0 0.0
    %1149 = vmatpush1.msra.mxu0 %v220
    %1150 = vmatprep.subr.mxu0 0.0
    %1151 = vmatpush1.msra.mxu0 %v221
    %1152 = vmatprep.subr.mxu0 0.0
    %1153 = vmatpush1.msra.mxu0 %v222
    %1154 = vmatprep.subr.mxu0 0.0
    %1155 = vmatpush1.msra.mxu0 %v223
    %1156 = vmatprep.subr.mxu0 0.0
    %1157 = vmatpush1.msra.mxu0 %v224
    %1158 = vmatprep.subr.mxu0 0.0
    %1159 = vmatpush1.msra.mxu0 %v225
    %1160 = vmatprep.subr.mxu0 0.0
    %1161 = vmatpush1.msra.mxu0 %v226
    %1162 = vmatprep.subr.mxu0 0.0
    %1163 = vmatpush1.msra.mxu0 %v227
    %1164 = vmatprep.subr.mxu0 0.0
    %1165 = vmatpush1.msra.mxu0 %v228
    %1166 = vmatprep.subr.mxu0 0.0
    %1167 = vmatpush1.msra.mxu0 %v229
    %1168 = vmatprep.subr.mxu0 0.0
    %1169 = vmatpush1.msra.mxu0 %v230
    %1170 = vmatprep.subr.mxu0 0.0
    %1171 = vmatpush1.msra.mxu0 %v231
    %1172 = vmatprep.subr.mxu0 0.0
    %1173 = vmatpush1.msra.mxu0 %v232
    %1174 = vmatprep.subr.mxu0 0.0
    %1175 = vmatpush1.msra.mxu0 %v233
    %1176 = vmatprep.subr.mxu0 0.0
    %1177 = vmatpush1.msra.mxu0 %v234
    %1178 = vmatprep.subr.mxu0 0.0
    %1179 = vmatpush1.msra.mxu0 %v235
    %1180 = vmatprep.subr.mxu0 0.0
    %1181 = vmatpush1.msra.mxu0 %v236
    %1182 = vmatprep.subr.mxu0 0.0
    %1183 = vmatpush1.msra.mxu0 %v237
    %1184 = vmatprep.subr.mxu0 0.0
    %1185 = vmatpush1.msra.mxu0 %v238
    %1186 = vmatprep.subr.mxu0 0.0
    %1187 = vmatpush1.msra.mxu0 %v239
    %1188 = vmatprep.subr.mxu0 0.0
    %1189 = vmatpush1.msra.mxu0 %v240
    %1190 = vmatprep.subr.mxu0 0.0
    %1191 = vmatpush1.msra.mxu0 %v241
    %1192 = vmatprep.subr.mxu0 0.0
    %1193 = vmatpush1.msra.mxu0 %v242
    %1194 = vmatprep.subr.mxu0 0.0
    %1195 = vmatpush1.msra.mxu0 %v243
    %1196 = vmatprep.subr.mxu0 0.0
    %1197 = vmatpush1.msra.mxu0 %v244
    %1198 = vmatprep.subr.mxu0 0.0
    %1199 = vmatpush1.msra.mxu0 %v245
    %1200 = vmatprep.subr.mxu0 0.0
    %1201 = vmatpush1.msra.mxu0 %v246
    %1202 = vmatprep.mubr.f32.mxu0 %v616
    %1203 = vmatmul.mubr.f32.gmra.mrb[0].mxu0 %v608
    %v1204 = vpop.f32.mrb[0].mxu0
    %v1205 = vadd.f32 %v1135, %v1204
    %v1206 = vpop.f32.mrb[0].mxu0
    %1207 = vdwg.mxu0
    %1208 = vmatprep.subr.mxu0 0.0
    %1209 = vmatpush1.msra.mxu0 %v247
    %1210 = vmatprep.subr.mxu0 0.0
    %1211 = vmatpush1.msra.mxu0 %v248
    %1212 = vmatprep.subr.mxu0 0.0
    %1213 = vmatpush1.msra.mxu0 %v249
    %1214 = vmatprep.subr.mxu0 0.0
    %1215 = vmatpush1.msra.mxu0 %v250
    %1216 = vmatprep.subr.mxu0 0.0
    %1217 = vmatpush1.msra.mxu0 %v251
    %1218 = vmatprep.subr.mxu0 0.0
    %1219 = vmatpush1.msra.mxu0 %v252
    %1220 = vmatprep.subr.mxu0 0.0
    %1221 = vmatpush1.msra.mxu0 %v253
    %1222 = vmatprep.subr.mxu0 0.0
    %1223 = vmatpush1.msra.mxu0 %v254
    %1224 = vmatprep.subr.mxu0 0.0
    %1225 = vmatpush1.msra.mxu0 %v255
    %1226 = vmatprep.subr.mxu0 0.0
    %1227 = vmatpush1.msra.mxu0 %v256
    %1228 = vmatprep.subr.mxu0 0.0
    %1229 = vmatpush1.msra.mxu0 %v257
    %1230 = vmatprep.subr.mxu0 0.0
    %1231 = vmatpush1.msra.mxu0 %v258
    %1232 = vmatprep.subr.mxu0 0.0
    %1233 = vmatpush1.msra.mxu0 %v259
    %1234 = vmatprep.subr.mxu0 0.0
    %1235 = vmatpush1.msra.mxu0 %v260
    %1236 = vmatprep.subr.mxu0 0.0
    %1237 = vmatpush1.msra.mxu0 %v261
    %1238 = vmatprep.subr.mxu0 0.0
    %1239 = vmatpush1.msra.mxu0 %v262
    %1240 = vmatprep.subr.mxu0 0.0
    %1241 = vmatpush1.msra.mxu0 %v263
    %1242 = vmatprep.subr.mxu0 0.0
    %1243 = vmatpush1.msra.mxu0 %v264
    %1244 = vmatprep.subr.mxu0 0.0
    %1245 = vmatpush1.msra.mxu0 %v265
    %1246 = vmatprep.subr.mxu0 0.0
    %1247 = vmatpush1.msra.mxu0 %v266
    %1248 = vmatprep.subr.mxu0 0.0
    %1249 = vmatpush1.msra.mxu0 %v267
    %1250 = vmatprep.subr.mxu0 0.0
    %1251 = vmatpush1.msra.mxu0 %v268
    %1252 = vmatprep.subr.mxu0 0.0
    %1253 = vmatpush1.msra.mxu0 %v269
    %1254 = vmatprep.subr.mxu0 0.0
    %1255 = vmatpush1.msra.mxu0 %v270
    %1256 = vmatprep.subr.mxu0 0.0
    %1257 = vmatpush1.msra.mxu0 %v271
    %1258 = vmatprep.subr.mxu0 0.0
    %1259 = vmatpush1.msra.mxu0 %v272
    %1260 = vmatprep.subr.mxu0 0.0
    %1261 = vmatpush1.msra.mxu0 %v273
    %1262 = vmatprep.subr.mxu0 0.0
    %1263 = vmatpush1.msra.mxu0 %v274
    %1264 = vmatprep.subr.mxu0 0.0
    %1265 = vmatpush1.msra.mxu0 %v275
    %1266 = vmatprep.subr.mxu0 0.0
    %1267 = vmatpush1.msra.mxu0 %v276
    %1268 = vmatprep.subr.mxu0 0.0
    %1269 = vmatpush1.msra.mxu0 %v277
    %1270 = vmatprep.subr.mxu0 0.0
    %1271 = vmatpush1.msra.mxu0 %v278
    %1272 = vmatprep.mubr.f32.mxu0 %v617
    %1273 = vmatmul.mubr.f32.gmra.mrb[0].mxu0 %v615
    %v1274 = vpop.f32.mrb[0].mxu0
    %v1275 = vadd.f32 %v1205, %v1274
    %v1276 = vpop.f32.mrb[0].mxu0
    %1277 = vdwg.mxu0
    %1278 = vmatprep.subr.mxu0 0.0
    %1279 = vmatpush1.msra.mxu0 %v279
    %1280 = vmatprep.subr.mxu0 0.0
    %1281 = vmatpush1.msra.mxu0 %v280
    %1282 = vmatprep.subr.mxu0 0.0
    %1283 = vmatpush1.msra.mxu0 %v281
    %1284 = vmatprep.subr.mxu0 0.0
    %1285 = vmatpush1.msra.mxu0 %v282
    %1286 = vmatprep.subr.mxu0 0.0
    %1287 = vmatpush1.msra.mxu0 %v283
    %1288 = vmatprep.subr.mxu0 0.0
    %1289 = vmatpush1.msra.mxu0 %v284
    %1290 = vmatprep.subr.mxu0 0.0
    %1291 = vmatpush1.msra.mxu0 %v285
    %1292 = vmatprep.subr.mxu0 0.0
    %1293 = vmatpush1.msra.mxu0 %v286
    %1294 = vmatprep.subr.mxu0 0.0
    %1295 = vmatpush1.msra.mxu0 %v287
    %1296 = vmatprep.subr.mxu0 0.0
    %1297 = vmatpush1.msra.mxu0 %v288
    %1298 = vmatprep.subr.mxu0 0.0
    %1299 = vmatpush1.msra.mxu0 %v289
    %1300 = vmatprep.subr.mxu0 0.0
    %1301 = vmatpush1.msra.mxu0 %v290
    %1302 = vmatprep.subr.mxu0 0.0
    %1303 = vmatpush1.msra.mxu0 %v291
    %1304 = vmatprep.subr.mxu0 0.0
    %1305 = vmatpush1.msra.mxu0 %v292
    %1306 = vmatprep.subr.mxu0 0.0
    %1307 = vmatpush1.msra.mxu0 %v293
    %1308 = vmatprep.subr.mxu0 0.0
    %1309 = vmatpush1.msra.mxu0 %v294
    %1310 = vmatprep.subr.mxu0 0.0
    %1311 = vmatpush1.msra.mxu0 %v295
    %1312 = vmatprep.subr.mxu0 0.0
    %1313 = vmatpush1.msra.mxu0 %v296
    %1314 = vmatprep.subr.mxu0 0.0
    %1315 = vmatpush1.msra.mxu0 %v297
    %1316 = vmatprep.subr.mxu0 0.0
    %1317 = vmatpush1.msra.mxu0 %v298
    %1318 = vmatprep.subr.mxu0 0.0
    %1319 = vmatpush1.msra.mxu0 %v299
    %1320 = vmatprep.subr.mxu0 0.0
    %1321 = vmatpush1.msra.mxu0 %v300
    %1322 = vmatprep.subr.mxu0 0.0
    %1323 = vmatpush1.msra.mxu0 %v301
    %1324 = vmatprep.subr.mxu0 0.0
    %1325 = vmatpush1.msra.mxu0 %v302
    %1326 = vmatprep.subr.mxu0 0.0
    %1327 = vmatpush1.msra.mxu0 %v303
    %1328 = vmatprep.subr.mxu0 0.0
    %1329 = vmatpush1.msra.mxu0 %v304
    %1330 = vmatprep.subr.mxu0 0.0
    %1331 = vmatpush1.msra.mxu0 %v305
    %1332 = vmatprep.subr.mxu0 0.0
    %1333 = vmatpush1.msra.mxu0 %v306
    %1334 = vmatprep.subr.mxu0 0.0
    %1335 = vmatpush1.msra.mxu0 %v307
    %1336 = vmatprep.subr.mxu0 0.0
    %1337 = vmatpush1.msra.mxu0 %v308
    %1338 = vmatprep.subr.mxu0 0.0
    %1339 = vmatpush1.msra.mxu0 %v309
    %1340 = vmatprep.subr.mxu0 0.0
    %1341 = vmatpush1.msra.mxu0 %v310
    %1342 = vmatprep.mubr.f32.mxu0 %v633
    %1343 = vmatmul.mubr.f32.gmra.mrb[0].mxu0 %v625
    %v1344 = vpop.f32.mrb[0].mxu0
    %v1345 = vadd.f32 %v1275, %v1344
    %v1346 = vpop.f32.mrb[0].mxu0
    %1347 = vdwg.mxu0
    %1348 = vmatprep.subr.mxu0 0.0
    %1349 = vmatpush1.msra.mxu0 %v311
    %1350 = vmatprep.subr.mxu0 0.0
    %1351 = vmatpush1.msra.mxu0 %v312
    %1352 = vmatprep.subr.mxu0 0.0
    %1353 = vmatpush1.msra.mxu0 %v313
    %1354 = vmatprep.subr.mxu0 0.0
    %1355 = vmatpush1.msra.mxu0 %v314
    %1356 = vmatprep.subr.mxu0 0.0
    %1357 = vmatpush1.msra.mxu0 %v315
    %1358 = vmatprep.subr.mxu0 0.0
    %1359 = vmatpush1.msra.mxu0 %v316
    %1360 = vmatprep.subr.mxu0 0.0
    %1361 = vmatpush1.msra.mxu0 %v317
    %1362 = vmatprep.subr.mxu0 0.0
    %1363 = vmatpush1.msra.mxu0 %v318
    %1364 = vmatprep.subr.mxu0 0.0
    %1365 = vmatpush1.msra.mxu0 %v319
    %1366 = vmatprep.subr.mxu0 0.0
    %1367 = vmatpush1.msra.mxu0 %v320
    %1368 = vmatprep.subr.mxu0 0.0
    %1369 = vmatpush1.msra.mxu0 %v321
    %1370 = vmatprep.subr.mxu0 0.0
    %1371 = vmatpush1.msra.mxu0 %v322
    %1372 = vmatprep.subr.mxu0 0.0
    %1373 = vmatpush1.msra.mxu0 %v323
    %1374 = vmatprep.subr.mxu0 0.0
    %1375 = vmatpush1.msra.mxu0 %v324
    %1376 = vmatprep.subr.mxu0 0.0
    %1377 = vmatpush1.msra.mxu0 %v325
    %1378 = vmatprep.subr.mxu0 0.0
    %1379 = vmatpush1.msra.mxu0 %v326
    %1380 = vmatprep.subr.mxu0 0.0
    %1381 = vmatpush1.msra.mxu0 %v327
    %1382 = vmatprep.subr.mxu0 0.0
    %1383 = vmatpush1.msra.mxu0 %v328
    %1384 = vmatprep.subr.mxu0 0.0
    %1385 = vmatpush1.msra.mxu0 %v329
    %1386 = vmatprep.subr.mxu0 0.0
    %1387 = vmatpush1.msra.mxu0 %v330
    %1388 = vmatprep.subr.mxu0 0.0
    %1389 = vmatpush1.msra.mxu0 %v331
    %1390 = vmatprep.subr.mxu0 0.0
    %1391 = vmatpush1.msra.mxu0 %v332
    %1392 = vmatprep.subr.mxu0 0.0
    %1393 = vmatpush1.msra.mxu0 %v333
    %1394 = vmatprep.subr.mxu0 0.0
    %1395 = vmatpush1.msra.mxu0 %v334
    %1396 = vmatprep.subr.mxu0 0.0
    %1397 = vmatpush1.msra.mxu0 %v335
    %1398 = vmatprep.subr.mxu0 0.0
    %1399 = vmatpush1.msra.mxu0 %v336
    %1400 = vmatprep.subr.mxu0 0.0
    %1401 = vmatpush1.msra.mxu0 %v337
    %1402 = vmatprep.subr.mxu0 0.0
    %1403 = vmatpush1.msra.mxu0 %v338
    %1404 = vmatprep.subr.mxu0 0.0
    %1405 = vmatpush1.msra.mxu0 %v339
    %1406 = vmatprep.subr.mxu0 0.0
    %1407 = vmatpush1.msra.mxu0 %v340
    %1408 = vmatprep.subr.mxu0 0.0
    %1409 = vmatpush1.msra.mxu0 %v341
    %1410 = vmatprep.subr.mxu0 0.0
    %1411 = vmatpush1.msra.mxu0 %v342
    %1412 = vmatprep.mubr.f32.mxu0 %v634
    %1413 = vmatmul.mubr.f32.gmra.mrb[0].mxu0 %v632
    %v1414 = vpop.f32.mrb[0].mxu0
    %v1415 = vadd.f32 %v1345, %v1414
    %v1416 = vpop.f32.mrb[0].mxu0
    %1417 = vdwg.mxu0
    %1418 = vmatprep.subr.mxu0 0.0
    %1419 = vmatpush1.msra.mxu0 %v343
    %1420 = vmatprep.subr.mxu0 0.0
    %1421 = vmatpush1.msra.mxu0 %v344
    %1422 = vmatprep.subr.mxu0 0.0
    %1423 = vmatpush1.msra.mxu0 %v345
    %1424 = vmatprep.subr.mxu0 0.0
    %1425 = vmatpush1.msra.mxu0 %v346
    %1426 = vmatprep.subr.mxu0 0.0
    %1427 = vmatpush1.msra.mxu0 %v347
    %1428 = vmatprep.subr.mxu0 0.0
    %1429 = vmatpush1.msra.mxu0 %v348
    %1430 = vmatprep.subr.mxu0 0.0
    %1431 = vmatpush1.msra.mxu0 %v349
    %1432 = vmatprep.subr.mxu0 0.0
    %1433 = vmatpush1.msra.mxu0 %v350
    %1434 = vmatprep.subr.mxu0 0.0
    %1435 = vmatpush1.msra.mxu0 %v351
    %1436 = vmatprep.subr.mxu0 0.0
    %1437 = vmatpush1.msra.mxu0 %v352
    %1438 = vmatprep.subr.mxu0 0.0
    %1439 = vmatpush1.msra.mxu0 %v353
    %1440 = vmatprep.subr.mxu0 0.0
    %1441 = vmatpush1.msra.mxu0 %v354
    %1442 = vmatprep.subr.mxu0 0.0
    %1443 = vmatpush1.msra.mxu0 %v355
    %1444 = vmatprep.subr.mxu0 0.0
    %1445 = vmatpush1.msra.mxu0 %v356
    %1446 = vmatprep.subr.mxu0 0.0
    %1447 = vmatpush1.msra.mxu0 %v357
    %1448 = vmatprep.subr.mxu0 0.0
    %1449 = vmatpush1.msra.mxu0 %v358
    %1450 = vmatprep.subr.mxu0 0.0
    %1451 = vmatpush1.msra.mxu0 %v359
    %1452 = vmatprep.subr.mxu0 0.0
    %1453 = vmatpush1.msra.mxu0 %v360
    %1454 = vmatprep.subr.mxu0 0.0
    %1455 = vmatpush1.msra.mxu0 %v361
    %1456 = vmatprep.subr.mxu0 0.0
    %1457 = vmatpush1.msra.mxu0 %v362
    %1458 = vmatprep.subr.mxu0 0.0
    %1459 = vmatpush1.msra.mxu0 %v363
    %1460 = vmatprep.subr.mxu0 0.0
    %1461 = vmatpush1.msra.mxu0 %v364
    %1462 = vmatprep.subr.mxu0 0.0
    %1463 = vmatpush1.msra.mxu0 %v365
    %1464 = vmatprep.subr.mxu0 0.0
    %1465 = vmatpush1.msra.mxu0 %v366
    %1466 = vmatprep.subr.mxu0 0.0
    %1467 = vmatpush1.msra.mxu0 %v367
    %1468 = vmatprep.subr.mxu0 0.0
    %1469 = vmatpush1.msra.mxu0 %v368
    %1470 = vmatprep.subr.mxu0 0.0
    %1471 = vmatpush1.msra.mxu0 %v369
    %1472 = vmatprep.subr.mxu0 0.0
    %1473 = vmatpush1.msra.mxu0 %v370
    %1474 = vmatprep.subr.mxu0 0.0
    %1475 = vmatpush1.msra.mxu0 %v371
    %1476 = vmatprep.subr.mxu0 0.0
    %1477 = vmatpush1.msra.mxu0 %v372
    %1478 = vmatprep.subr.mxu0 0.0
    %1479 = vmatpush1.msra.mxu0 %v373
    %1480 = vmatprep.subr.mxu0 0.0
    %1481 = vmatpush1.msra.mxu0 %v374
    %1482 = vmatprep.mubr.f32.mxu0 %v650
    %1483 = vmatmul.mubr.f32.gmra.mrb[0].mxu0 %v642
    %v1484 = vpop.f32.mrb[0].mxu0
    %v1485 = vadd.f32 %v1415, %v1484
    %v1486 = vpop.f32.mrb[0].mxu0
    %1487 = vdwg.mxu0
    %1488 = vmatprep.subr.mxu0 0.0
    %1489 = vmatpush1.msra.mxu0 %v375
    %1490 = vmatprep.subr.mxu0 0.0
    %1491 = vmatpush1.msra.mxu0 %v376
    %1492 = vmatprep.subr.mxu0 0.0
    %1493 = vmatpush1.msra.mxu0 %v377
    %1494 = vmatprep.subr.mxu0 0.0
    %1495 = vmatpush1.msra.mxu0 %v378
    %1496 = vmatprep.subr.mxu0 0.0
    %1497 = vmatpush1.msra.mxu0 %v379
    %1498 = vmatprep.subr.mxu0 0.0
    %1499 = vmatpush1.msra.mxu0 %v380
    %1500 = vmatprep.subr.mxu0 0.0
    %1501 = vmatpush1.msra.mxu0 %v381
    %1502 = vmatprep.subr.mxu0 0.0
    %1503 = vmatpush1.msra.mxu0 %v382
    %1504 = vmatprep.subr.mxu0 0.0
    %1505 = vmatpush1.msra.mxu0 %v383
    %1506 = vmatprep.subr.mxu0 0.0
    %1507 = vmatpush1.msra.mxu0 %v384
    %1508 = vmatprep.subr.mxu0 0.0
    %1509 = vmatpush1.msra.mxu0 %v385
    %1510 = vmatprep.subr.mxu0 0.0
    %1511 = vmatpush1.msra.mxu0 %v386
    %1512 = vmatprep.subr.mxu0 0.0
    %1513 = vmatpush1.msra.mxu0 %v387
    %1514 = vmatprep.subr.mxu0 0.0
    %1515 = vmatpush1.msra.mxu0 %v388
    %1516 = vmatprep.subr.mxu0 0.0
    %1517 = vmatpush1.msra.mxu0 %v389
    %1518 = vmatprep.subr.mxu0 0.0
    %1519 = vmatpush1.msra.mxu0 %v390
    %1520 = vmatprep.subr.mxu0 0.0
    %1521 = vmatpush1.msra.mxu0 %v391
    %1522 = vmatprep.subr.mxu0 0.0
    %1523 = vmatpush1.msra.mxu0 %v392
    %1524 = vmatprep.subr.mxu0 0.0
    %1525 = vmatpush1.msra.mxu0 %v393
    %1526 = vmatprep.subr.mxu0 0.0
    %1527 = vmatpush1.msra.mxu0 %v394
    %1528 = vmatprep.subr.mxu0 0.0
    %1529 = vmatpush1.msra.mxu0 %v395
    %1530 = vmatprep.subr.mxu0 0.0
    %1531 = vmatpush1.msra.mxu0 %v396
    %1532 = vmatprep.subr.mxu0 0.0
    %1533 = vmatpush1.msra.mxu0 %v397
    %1534 = vmatprep.subr.mxu0 0.0
    %1535 = vmatpush1.msra.mxu0 %v398
    %1536 = vmatprep.subr.mxu0 0.0
    %1537 = vmatpush1.msra.mxu0 %v399
    %1538 = vmatprep.subr.mxu0 0.0
    %1539 = vmatpush1.msra.mxu0 %v400
    %1540 = vmatprep.subr.mxu0 0.0
    %1541 = vmatpush1.msra.mxu0 %v401
    %1542 = vmatprep.subr.mxu0 0.0
    %1543 = vmatpush1.msra.mxu0 %v402
    %1544 = vmatprep.subr.mxu0 0.0
    %1545 = vmatpush1.msra.mxu0 %v403
    %1546 = vmatprep.subr.mxu0 0.0
    %1547 = vmatpush1.msra.mxu0 %v404
    %1548 = vmatprep.subr.mxu0 0.0
    %1549 = vmatpush1.msra.mxu0 %v405
    %1550 = vmatprep.subr.mxu0 0.0
    %1551 = vmatpush1.msra.mxu0 %v406
    %1552 = vmatprep.mubr.f32.mxu0 %v651
    %1553 = vmatmul.mubr.f32.gmra.mrb[0].mxu0 %v649
    %v1554 = vpop.f32.mrb[0].mxu0
    %v1555 = vadd.f32 %v1485, %v1554
    %v1556 = vpop.f32.mrb[0].mxu0
    %1557 = vdwg.mxu0
    %1558 = vmatprep.subr.mxu0 0.0
    %1559 = vmatpush1.msra.mxu0 %v407
    %1560 = vmatprep.subr.mxu0 0.0
    %1561 = vmatpush1.msra.mxu0 %v408
    %1562 = vmatprep.subr.mxu0 0.0
    %1563 = vmatpush1.msra.mxu0 %v409
    %1564 = vmatprep.subr.mxu0 0.0
    %1565 = vmatpush1.msra.mxu0 %v410
    %1566 = vmatprep.subr.mxu0 0.0
    %1567 = vmatpush1.msra.mxu0 %v411
    %1568 = vmatprep.subr.mxu0 0.0
    %1569 = vmatpush1.msra.mxu0 %v412
    %1570 = vmatprep.subr.mxu0 0.0
    %1571 = vmatpush1.msra.mxu0 %v413
    %1572 = vmatprep.subr.mxu0 0.0
    %1573 = vmatpush1.msra.mxu0 %v414
    %1574 = vmatprep.subr.mxu0 0.0
    %1575 = vmatpush1.msra.mxu0 %v415
    %1576 = vmatprep.subr.mxu0 0.0
    %1577 = vmatpush1.msra.mxu0 %v416
    %1578 = vmatprep.subr.mxu0 0.0
    %1579 = vmatpush1.msra.mxu0 %v417
    %1580 = vmatprep.subr.mxu0 0.0
    %1581 = vmatpush1.msra.mxu0 %v418
    %1582 = vmatprep.subr.mxu0 0.0
    %1583 = vmatpush1.msra.mxu0 %v419
    %1584 = vmatprep.subr.mxu0 0.0
    %1585 = vmatpush1.msra.mxu0 %v420
    %1586 = vmatprep.subr.mxu0 0.0
    %1587 = vmatpush1.msra.mxu0 %v421
    %1588 = vmatprep.subr.mxu0 0.0
    %1589 = vmatpush1.msra.mxu0 %v422
    %1590 = vmatprep.subr.mxu0 0.0
    %1591 = vmatpush1.msra.mxu0 %v423
    %1592 = vmatprep.subr.mxu0 0.0
    %1593 = vmatpush1.msra.mxu0 %v424
    %1594 = vmatprep.subr.mxu0 0.0
    %1595 = vmatpush1.msra.mxu0 %v425
    %1596 = vmatprep.subr.mxu0 0.0
    %1597 = vmatpush1.msra.mxu0 %v426
    %1598 = vmatprep.subr.mxu0 0.0
    %1599 = vmatpush1.msra.mxu0 %v427
    %1600 = vmatprep.subr.mxu0 0.0
    %1601 = vmatpush1.msra.mxu0 %v428
    %1602 = vmatprep.subr.mxu0 0.0
    %1603 = vmatpush1.msra.mxu0 %v429
    %1604 = vmatprep.subr.mxu0 0.0
    %1605 = vmatpush1.msra.mxu0 %v430
    %1606 = vmatprep.subr.mxu0 0.0
    %1607 = vmatpush1.msra.mxu0 %v431
    %1608 = vmatprep.subr.mxu0 0.0
    %1609 = vmatpush1.msra.mxu0 %v432
    %1610 = vmatprep.subr.mxu0 0.0
    %1611 = vmatpush1.msra.mxu0 %v433
    %1612 = vmatprep.subr.mxu0 0.0
    %1613 = vmatpush1.msra.mxu0 %v434
    %1614 = vmatprep.subr.mxu0 0.0
    %1615 = vmatpush1.msra.mxu0 %v435
    %1616 = vmatprep.subr.mxu0 0.0
    %1617 = vmatpush1.msra.mxu0 %v436
    %1618 = vmatprep.subr.mxu0 0.0
    %1619 = vmatpush1.msra.mxu0 %v437
    %1620 = vmatprep.subr.mxu0 0.0
    %1621 = vmatpush1.msra.mxu0 %v438
    %1622 = vmatprep.mubr.f32.mxu0 %v667
    %1623 = vmatmul.mubr.f32.gmra.mrb[0].mxu0 %v659
    %v1624 = vpop.f32.mrb[0].mxu0
    %v1625 = vadd.f32 %v1555, %v1624
    %v1626 = vpop.f32.mrb[0].mxu0
    %1627 = vdwg.mxu0
    %1628 = vmatprep.subr.mxu0 0.0
    %1629 = vmatpush1.msra.mxu0 %v439
    %1630 = vmatprep.subr.mxu0 0.0
    %1631 = vmatpush1.msra.mxu0 %v440
    %1632 = vmatprep.subr.mxu0 0.0
    %1633 = vmatpush1.msra.mxu0 %v441
    %1634 = vmatprep.subr.mxu0 0.0
    %1635 = vmatpush1.msra.mxu0 %v442
    %1636 = vmatprep.subr.mxu0 0.0
    %1637 = vmatpush1.msra.mxu0 %v443
    %1638 = vmatprep.subr.mxu0 0.0
    %1639 = vmatpush1.msra.mxu0 %v444
    %1640 = vmatprep.subr.mxu0 0.0
    %1641 = vmatpush1.msra.mxu0 %v445
    %1642 = vmatprep.subr.mxu0 0.0
    %1643 = vmatpush1.msra.mxu0 %v446
    %1644 = vmatprep.subr.mxu0 0.0
    %1645 = vmatpush1.msra.mxu0 %v447
    %1646 = vmatprep.subr.mxu0 0.0
    %1647 = vmatpush1.msra.mxu0 %v448
    %1648 = vmatprep.subr.mxu0 0.0
    %1649 = vmatpush1.msra.mxu0 %v449
    %1650 = vmatprep.subr.mxu0 0.0
    %1651 = vmatpush1.msra.mxu0 %v450
    %1652 = vmatprep.subr.mxu0 0.0
    %1653 = vmatpush1.msra.mxu0 %v451
    %1654 = vmatprep.subr.mxu0 0.0
    %1655 = vmatpush1.msra.mxu0 %v452
    %1656 = vmatprep.subr.mxu0 0.0
    %1657 = vmatpush1.msra.mxu0 %v453
    %1658 = vmatprep.subr.mxu0 0.0
    %1659 = vmatpush1.msra.mxu0 %v454
    %1660 = vmatprep.subr.mxu0 0.0
    %1661 = vmatpush1.msra.mxu0 %v455
    %1662 = vmatprep.subr.mxu0 0.0
    %1663 = vmatpush1.msra.mxu0 %v456
    %1664 = vmatprep.subr.mxu0 0.0
    %1665 = vmatpush1.msra.mxu0 %v457
    %1666 = vmatprep.subr.mxu0 0.0
    %1667 = vmatpush1.msra.mxu0 %v458
    %1668 = vmatprep.subr.mxu0 0.0
    %1669 = vmatpush1.msra.mxu0 %v459
    %1670 = vmatprep.subr.mxu0 0.0
    %1671 = vmatpush1.msra.mxu0 %v460
    %1672 = vmatprep.subr.mxu0 0.0
    %1673 = vmatpush1.msra.mxu0 %v461
    %1674 = vmatprep.subr.mxu0 0.0
    %1675 = vmatpush1.msra.mxu0 %v462
    %1676 = vmatprep.subr.mxu0 0.0
    %1677 = vmatpush1.msra.mxu0 %v463
    %1678 = vmatprep.subr.mxu0 0.0
    %1679 = vmatpush1.msra.mxu0 %v464
    %1680 = vmatprep.subr.mxu0 0.0
    %1681 = vmatpush1.msra.mxu0 %v465
    %1682 = vmatprep.subr.mxu0 0.0
    %1683 = vmatpush1.msra.mxu0 %v466
    %1684 = vmatprep.subr.mxu0 0.0
    %1685 = vmatpush1.msra.mxu0 %v467
    %1686 = vmatprep.subr.mxu0 0.0
    %1687 = vmatpush1.msra.mxu0 %v468
    %1688 = vmatprep.subr.mxu0 0.0
    %1689 = vmatpush1.msra.mxu0 %v469
    %1690 = vmatprep.subr.mxu0 0.0
    %1691 = vmatpush1.msra.mxu0 %v470
    %1692 = vmatprep.mubr.f32.mxu0 %v668
    %1693 = vmatmul.mubr.f32.gmra.mrb[0].mxu0 %v666
    %v1694 = vpop.f32.mrb[0].mxu0
    %v1695 = vadd.f32 %v1625, %v1694
    %v1696 = vpop.f32.mrb[0].mxu0
    %1697 = vdwg.mxu0
    %1698 = vmatprep.subr.mxu0 0.0
    %1699 = vmatpush1.msra.mxu0 %v471
    %1700 = vmatprep.subr.mxu0 0.0
    %1701 = vmatpush1.msra.mxu0 %v472
    %1702 = vmatprep.subr.mxu0 0.0
    %1703 = vmatpush1.msra.mxu0 %v473
    %1704 = vmatprep.subr.mxu0 0.0
    %1705 = vmatpush1.msra.mxu0 %v474
    %1706 = vmatprep.subr.mxu0 0.0
    %1707 = vmatpush1.msra.mxu0 %v475
    %1708 = vmatprep.subr.mxu0 0.0
    %1709 = vmatpush1.msra.mxu0 %v476
    %1710 = vmatprep.subr.mxu0 0.0
    %1711 = vmatpush1.msra.mxu0 %v477
    %1712 = vmatprep.subr.mxu0 0.0
    %1713 = vmatpush1.msra.mxu0 %v478
    %1714 = vmatprep.subr.mxu0 0.0
    %1715 = vmatpush1.msra.mxu0 %v479
    %1716 = vmatprep.subr.mxu0 0.0
    %1717 = vmatpush1.msra.mxu0 %v480
    %1718 = vmatprep.subr.mxu0 0.0
    %1719 = vmatpush1.msra.mxu0 %v481
    %1720 = vmatprep.subr.mxu0 0.0
    %1721 = vmatpush1.msra.mxu0 %v482
    %1722 = vmatprep.subr.mxu0 0.0
    %1723 = vmatpush1.msra.mxu0 %v483
    %1724 = vmatprep.subr.mxu0 0.0
    %1725 = vmatpush1.msra.mxu0 %v484
    %1726 = vmatprep.subr.mxu0 0.0
    %1727 = vmatpush1.msra.mxu0 %v485
    %1728 = vmatprep.subr.mxu0 0.0
    %1729 = vmatpush1.msra.mxu0 %v486
    %1730 = vmatprep.subr.mxu0 0.0
    %1731 = vmatpush1.msra.mxu0 %v487
    %1732 = vmatprep.subr.mxu0 0.0
    %1733 = vmatpush1.msra.mxu0 %v488
    %1734 = vmatprep.subr.mxu0 0.0
    %1735 = vmatpush1.msra.mxu0 %v489
    %1736 = vmatprep.subr.mxu0 0.0
    %1737 = vmatpush1.msra.mxu0 %v490
    %1738 = vmatprep.subr.mxu0 0.0
    %1739 = vmatpush1.msra.mxu0 %v491
    %1740 = vmatprep.subr.mxu0 0.0
    %1741 = vmatpush1.msra.mxu0 %v492
    %1742 = vmatprep.subr.mxu0 0.0
    %1743 = vmatpush1.msra.mxu0 %v493
    %1744 = vmatprep.subr.mxu0 0.0
    %1745 = vmatpush1.msra.mxu0 %v494
    %1746 = vmatprep.subr.mxu0 0.0
    %1747 = vmatpush1.msra.mxu0 %v495
    %1748 = vmatprep.subr.mxu0 0.0
    %1749 = vmatpush1.msra.mxu0 %v496
    %1750 = vmatprep.subr.mxu0 0.0
    %1751 = vmatpush1.msra.mxu0 %v497
    %1752 = vmatprep.subr.mxu0 0.0
    %1753 = vmatpush1.msra.mxu0 %v498
    %1754 = vmatprep.subr.mxu0 0.0
    %1755 = vmatpush1.msra.mxu0 %v499
    %1756 = vmatprep.subr.mxu0 0.0
    %1757 = vmatpush1.msra.mxu0 %v500
    %1758 = vmatprep.subr.mxu0 0.0
    %1759 = vmatpush1.msra.mxu0 %v501
    %1760 = vmatprep.subr.mxu0 0.0
    %1761 = vmatpush1.msra.mxu0 %v502
    %1762 = vmatprep.mubr.f32.mxu0 %v684
    %1763 = vmatmul.mubr.f32.gmra.mrb[0].mxu0 %v676
    %v1764 = vpop.f32.mrb[0].mxu0
    %v1765 = vadd.f32 %v1695, %v1764
    %v1766 = vpop.f32.mrb[0].mxu0
    %1767 = vdwg.mxu0
    %1768 = vmatprep.subr.mxu0 0.0
    %1769 = vmatpush1.msra.mxu0 %v503
    %1770 = vmatprep.subr.mxu0 0.0
    %1771 = vmatpush1.msra.mxu0 %v504
    %1772 = vmatprep.subr.mxu0 0.0
    %1773 = vmatpush1.msra.mxu0 %v505
    %1774 = vmatprep.subr.mxu0 0.0
    %1775 = vmatpush1.msra.mxu0 %v506
    %1776 = vmatprep.subr.mxu0 0.0
    %1777 = vmatpush1.msra.mxu0 %v507
    %1778 = vmatprep.subr.mxu0 0.0
    %1779 = vmatpush1.msra.mxu0 %v508
    %1780 = vmatprep.subr.mxu0 0.0
    %1781 = vmatpush1.msra.mxu0 %v509
    %1782 = vmatprep.subr.mxu0 0.0
    %1783 = vmatpush1.msra.mxu0 %v510
    %1784 = vmatprep.subr.mxu0 0.0
    %1785 = vmatpush1.msra.mxu0 %v511
    %1786 = vmatprep.subr.mxu0 0.0
    %1787 = vmatpush1.msra.mxu0 %v512
    %1788 = vmatprep.subr.mxu0 0.0
    %1789 = vmatpush1.msra.mxu0 %v513
    %1790 = vmatprep.subr.mxu0 0.0
    %1791 = vmatpush1.msra.mxu0 %v514
    %1792 = vmatprep.subr.mxu0 0.0
    %1793 = vmatpush1.msra.mxu0 %v515
    %1794 = vmatprep.subr.mxu0 0.0
    %1795 = vmatpush1.msra.mxu0 %v516
    %1796 = vmatprep.subr.mxu0 0.0
    %1797 = vmatpush1.msra.mxu0 %v517
    %1798 = vmatprep.subr.mxu0 0.0
    %1799 = vmatpush1.msra.mxu0 %v518
    %1800 = vmatprep.subr.mxu0 0.0
    %1801 = vmatpush1.msra.mxu0 %v519
    %1802 = vmatprep.subr.mxu0 0.0
    %1803 = vmatpush1.msra.mxu0 %v520
    %1804 = vmatprep.subr.mxu0 0.0
    %1805 = vmatpush1.msra.mxu0 %v521
    %1806 = vmatprep.subr.mxu0 0.0
    %1807 = vmatpush1.msra.mxu0 %v522
    %1808 = vmatprep.subr.mxu0 0.0
    %1809 = vmatpush1.msra.mxu0 %v523
    %1810 = vmatprep.subr.mxu0 0.0
    %1811 = vmatpush1.msra.mxu0 %v524
    %1812 = vmatprep.subr.mxu0 0.0
    %1813 = vmatpush1.msra.mxu0 %v525
    %1814 = vmatprep.subr.mxu0 0.0
    %1815 = vmatpush1.msra.mxu0 %v526
    %1816 = vmatprep.subr.mxu0 0.0
    %1817 = vmatpush1.msra.mxu0 %v527
    %1818 = vmatprep.subr.mxu0 0.0
    %1819 = vmatpush1.msra.mxu0 %v528
    %1820 = vmatprep.subr.mxu0 0.0
    %1821 = vmatpush1.msra.mxu0 %v529
    %1822 = vmatprep.subr.mxu0 0.0
    %1823 = vmatpush1.msra.mxu0 %v530
    %1824 = vmatprep.subr.mxu0 0.0
    %1825 = vmatpush1.msra.mxu0 %v531
    %1826 = vmatprep.subr.mxu0 0.0
    %1827 = vmatpush1.msra.mxu0 %v532
    %1828 = vmatprep.subr.mxu0 0.0
    %1829 = vmatpush1.msra.mxu0 %v533
    %1830 = vmatprep.subr.mxu0 0.0
    %1831 = vmatpush1.msra.mxu0 %v534
    %1832 = vmatprep.mubr.f32.mxu0 %v685
    %1833 = vmatmul.mubr.f32.gmra.mrb[0].mxu0 %v683
    %v1834 = vpop.f32.mrb[0].mxu0
    %v1835 = vadd.f32 %v1765, %v1834
    %v1836 = vpop.f32.mrb[0].mxu0
    %1837 = vdwg.mxu0
    %vm1838 = vcmask 74752
    %1839 = vst.msk [vmem:[#allocation2] sm:$0x3] %vm1838, %v1835
    // Predicated region
    $region14: #{_lambda_.3} parent=1 // pred_check
      _
    $region15: #{_lambda_.3} parent=1 // pred_check_branch
      %1841 = sbr.rel (0) target = $region17
    $region16: #{_lambda_.3} parent=1 // pred_region
      %s1843 = ssub.s32 32, 32
      %1844 = vsyncadd [#allocation3], %s1843
      %s1846 = sshll.u32 [#allocation2], 4
      %s1847 = int_to_ptr.vmem [resolvable:$true] %s1846
      %1849 = dma.vmem_to_hbm [thread:$0]  %s1847, 32, %s3, [#allocation3]
    $region17: #{_lambda_.3} parent=1 // pred_fallthru
      _
    // Predicated region
    $region18: #{_lambda_.3} parent=1 // pred_check
      _
    $region19: #{_lambda_.3} parent=1 // pred_check_branch
      %1851 = sbr.rel (0) target = $region21
    $region20: #{_lambda_.3} parent=1 // pred_region
      %1852 = dma.done [#allocation3], 32
    $region21: #{_lambda_.3} parent=1 // pred_fallthru
      _
    %1853 = vsyncpa [#allocation3], 1

// kernel: _lambda_.2
$region0: #{_lambda_.2}
  #allocation0 [shape = 'u32[]', space=smem, size = 0x4, offset = 0x4, fixed_abs, tag = 'smem constant byte address 0x4 - core index']
  #allocation1 [shape = 'u32[144,128]{1,0:T(1,128)}', space=vmem, size = 0x12000, scoped, tag = 'internal scratch']
  #allocation2 [shape = 'f32[34,34,32]{2,1,0:T(8,128)}', space=vmem, size = 0xaa000, scoped, tag = 'scratch operand']
  #allocation3 [shape = 'f32[18,18,64]{2,1,0:T(8,128)}', space=vmem, size = 0x36000, scoped, tag = 'scratch operand']
  #allocation4 [shape = 'f32[10,10,128]{2,1,0:T(8,128)}', space=vmem, size = 0x14000, scoped, tag = 'scratch operand']
  %s0 = inlined_call_operand.vmem [shape: f32[2,66,66,3], index: 0, kind: input, shape index: {}]
  %s1 = inlined_call_operand.vmem [shape: f32[34,64], index: 1, kind: input, shape index: {}]
  %s2 = inlined_call_operand.vmem [shape: f32[34,64], index: 2, kind: input, shape index: {}]
  %s3 = inlined_call_operand.vmem [shape: bf16[9,3,32], index: 3, kind: input, shape index: {}]
  %s4 = inlined_call_operand.vmem [shape: f32[1,32], index: 4, kind: input, shape index: {}]
  %s5 = inlined_call_operand.vmem [shape: f32[1,32], index: 5, kind: input, shape index: {}]
  %s6 = inlined_call_operand.vmem [shape: bf16[9,32,64], index: 6, kind: input, shape index: {}]
  %s7 = inlined_call_operand.vmem [shape: f32[1,64], index: 7, kind: input, shape index: {}]
  %s8 = inlined_call_operand.vmem [shape: f32[1,64], index: 8, kind: input, shape index: {}]
  %s9 = inlined_call_operand.vmem [shape: bf16[9,64,128], index: 9, kind: input, shape index: {}]
  %s10 = inlined_call_operand.vmem [shape: f32[1,128], index: 10, kind: input, shape index: {}]
  %s11 = inlined_call_operand.vmem [shape: f32[1,128], index: 11, kind: input, shape index: {}]
  %s12 = inlined_call_operand.vmem [shape: bf16[9,128,256], index: 12, kind: input, shape index: {}]
  %s13 = inlined_call_operand.vmem [shape: f32[1,256], index: 13, kind: input, shape index: {}]
  %s14 = inlined_call_operand.vmem [shape: f32[1,256], index: 14, kind: input, shape index: {}]
  %s15 = inlined_call_operand.vmem [shape: f32[2,4,4,256], index: 15, kind: output, shape index: {}]
  %s16 = sld [smem:[#allocation0]]
  $region121: #{_lambda_.2} parent=0
    _
  %s18 = ssub.s32 1, %s16
  %s19 = scalar_select 0, %s18, %s16
  loop: start=0, step=1, limit=4
  $region2: #{_lambda_.2} parent=0 // loop_pre_header
    _
  $region3: #{_lambda_.2} parent=0 // loop_header
    %s21 = sphi 0, %s25
    %p22 = scmp.ge.s32.totalorder %s21, 4
    %s31 = sphi 0, %s33
    %s34 = sphi 0, %s31
    %s35 = sphi 0, %s34
    %s51 = sphi 0, %s35
    %s55 = sphi 0, %s55
    %s57 = sphi 0, %s55
    %s58 = sphi 0, %s57
    %s72 = sphi 0, %s58
    %s76 = sphi 0, %s76
    %s78 = sphi 0, %s76
    %s79 = sphi 0, %s78
    %s93 = sphi 0, %s79
    %s97 = sphi 0, %s97
    %s99 = sphi 0, %s97
    %s100 = sphi 0, %s99
    %s114 = sphi 0, %s100
    %s118 = sphi 0, %s118
    %s120 = sphi 0, %s118
    %s121 = sphi 0, %s120
    %s135 = sphi 0, %s121
    %s139 = sphi 0, %s139
    %s141 = sphi 0, %s139
    %s142 = sphi 0, %s141
    %s156 = sphi 0, %s142
    %s160 = sphi 0, %s160
    %s162 = sphi 0, %s160
    %s163 = sphi 0, %s162
    %s177 = sphi 0, %s163
    %s181 = sphi 0, %s181
    %s183 = sphi 0, %s181
    %s184 = sphi 0, %s183
    %s198 = sphi 0, %s184
    %s202 = sphi 0, %s202
    %s204 = sphi 0, %s202
    %s205 = sphi 0, %s204
    %s219 = sphi 0, %s205
    %s223 = sphi 0, %s223
    %s225 = sphi 0, %s223
    %s226 = sphi 0, %s225
    %s240 = sphi 0, %s226
    %s244 = sphi 0, %s244
    %s246 = sphi 0, %s244
    %s247 = sphi 0, %s246
    %s261 = sphi 0, %s247
    %s265 = sphi 0, %s265
    %s267 = sphi 0, %s265
    %s268 = sphi 0, %s267
    %s282 = sphi 0, %s268
    %s286 = sphi 0, %s286
    %s288 = sphi 0, %s286
    %s289 = sphi 0, %s288
    %s303 = sphi 0, %s289
    %s307 = sphi 0, %s307
    %s309 = sphi 0, %s307
    %s310 = sphi 0, %s309
    %s324 = sphi 0, %s310
    %s328 = sphi 0, %s328
    %s330 = sphi 0, %s328
    %s331 = sphi 0, %s330
    %s345 = sphi 0, %s331
    %s351 = sphi 0, %s353
    %s354 = sphi 0, %s351
    %s355 = sphi 0, %s354
    %s371 = sphi 0, %s355
  $region4: #{_lambda_.2} parent=0 // loop_header_branch
    %24 = sbr.rel (%p22) target = $region8
  $region5: #{_lambda_.2} parent=0 // loop_body
    %s26 = ssub.s32 %s21, 1
    %s27 = ssub.s32 %s21, 2
    %s28 = sadd.s32 %s21, 1
    %s29 = ssub.s32 %s21, %s28
    %p30 = scmp.eq.s32.totalorder %s29, 0
    %s32 = sadd.s32 %s31, 1
    %s33 = scalar_select %p30, %s31, %s32
    %p36 = pneg %p30
    %p37 = scmp.eq.s32.totalorder %s21, 1
    %p38 = por %p36, %p37
    %p39 = scmp.ne.s32.totalorder %s31, %s34
    %p40 = scmp.eq.s32.totalorder %s21, 0
    %p41 = por %p39, %p40
    %p42 = scmp.ne.s32.totalorder %s31, %s34
    %p43 = scmp.eq.s32.totalorder %s26, 1
    %p44 = por %p42, %p43
    %p45 = scmp.ne.s32.totalorder %s34, %s35
    %p46 = scmp.eq.s32.totalorder %s26, 0
    %p47 = por %p45, %p46
    %p48 = scmp.ne.s32.totalorder %s34, %s35
    %p49 = scmp.eq.s32.totalorder %s27, 1
    %p50 = por %p48, %p49
    %p52 = scmp.ne.s32.totalorder %s35, %s51
    %p53 = scmp.eq.s32.totalorder %s27, 0
    %p54 = por %p52, %p53
    %s56 = sadd.s32 %s55, 1
    %p59 = scmp.eq.s32.totalorder %s21, 1
    %p60 = scmp.ne.s32.totalorder %s55, %s57
    %p61 = scmp.eq.s32.totalorder %s21, 0
    %p62 = por %p60, %p61
    %p63 = scmp.ne.s32.totalorder %s55, %s57
    %p64 = scmp.eq.s32.totalorder %s26, 1
    %p65 = por %p63, %p64
    %p66 = scmp.ne.s32.totalorder %s57, %s58
    %p67 = scmp.eq.s32.totalorder %s26, 0
    %p68 = por %p66, %p67
    %p69 = scmp.ne.s32.totalorder %s57, %s58
    %p70 = scmp.eq.s32.totalorder %s27, 1
    %p71 = por %p69, %p70
    %p73 = scmp.ne.s32.totalorder %s58, %s72
    %p74 = scmp.eq.s32.totalorder %s27, 0
    %p75 = por %p73, %p74
    %s77 = sadd.s32 %s76, 1
    %p80 = scmp.eq.s32.totalorder %s21, 1
    %p81 = scmp.ne.s32.totalorder %s76, %s78
    %p82 = scmp.eq.s32.totalorder %s21, 0
    %p83 = por %p81, %p82
    %p84 = scmp.ne.s32.totalorder %s76, %s78
    %p85 = scmp.eq.s32.totalorder %s26, 1
    %p86 = por %p84, %p85
    %p87 = scmp.ne.s32.totalorder %s78, %s79
    %p88 = scmp.eq.s32.totalorder %s26, 0
    %p89 = por %p87, %p88
    %p90 = scmp.ne.s32.totalorder %s78, %s79
    %p91 = scmp.eq.s32.totalorder %s27, 1
    %p92 = por %p90, %p91
    %p94 = scmp.ne.s32.totalorder %s79, %s93
    %p95 = scmp.eq.s32.totalorder %s27, 0
    %p96 = por %p94, %p95
    %s98 = sadd.s32 %s97, 1
    %p101 = scmp.eq.s32.totalorder %s21, 1
    %p102 = scmp.ne.s32.totalorder %s97, %s99
    %p103 = scmp.eq.s32.totalorder %s21, 0
    %p104 = por %p102, %p103
    %p105 = scmp.ne.s32.totalorder %s97, %s99
    %p106 = scmp.eq.s32.totalorder %s26, 1
    %p107 = por %p105, %p106
    %p108 = scmp.ne.s32.totalorder %s99, %s100
    %p109 = scmp.eq.s32.totalorder %s26, 0
    %p110 = por %p108, %p109
    %p111 = scmp.ne.s32.totalorder %s99, %s100
    %p112 = scmp.eq.s32.totalorder %s27, 1
    %p113 = por %p111, %p112
    %p115 = scmp.ne.s32.totalorder %s100, %s114
    %p116 = scmp.eq.s32.totalorder %s27, 0
    %p117 = por %p115, %p116
    %s119 = sadd.s32 %s118, 1
    %p122 = scmp.eq.s32.totalorder %s21, 1
    %p123 = scmp.ne.s32.totalorder %s118, %s120
    %p124 = scmp.eq.s32.totalorder %s21, 0
    %p125 = por %p123, %p124
    %p126 = scmp.ne.s32.totalorder %s118, %s120
    %p127 = scmp.eq.s32.totalorder %s26, 1
    %p128 = por %p126, %p127
    %p129 = scmp.ne.s32.totalorder %s120, %s121
    %p130 = scmp.eq.s32.totalorder %s26, 0
    %p131 = por %p129, %p130
    %p132 = scmp.ne.s32.totalorder %s120, %s121
    %p133 = scmp.eq.s32.totalorder %s27, 1
    %p134 = por %p132, %p133
    %p136 = scmp.ne.s32.totalorder %s121, %s135
    %p137 = scmp.eq.s32.totalorder %s27, 0
    %p138 = por %p136, %p137
    %s140 = sadd.s32 %s139, 1
    %p143 = scmp.eq.s32.totalorder %s21, 1
    %p144 = scmp.ne.s32.totalorder %s139, %s141
    %p145 = scmp.eq.s32.totalorder %s21, 0
    %p146 = por %p144, %p145
    %p147 = scmp.ne.s32.totalorder %s139, %s141
    %p148 = scmp.eq.s32.totalorder %s26, 1
    %p149 = por %p147, %p148
    %p150 = scmp.ne.s32.totalorder %s141, %s142
    %p151 = scmp.eq.s32.totalorder %s26, 0
    %p152 = por %p150, %p151
    %p153 = scmp.ne.s32.totalorder %s141, %s142
    %p154 = scmp.eq.s32.totalorder %s27, 1
    %p155 = por %p153, %p154
    %p157 = scmp.ne.s32.totalorder %s142, %s156
    %p158 = scmp.eq.s32.totalorder %s27, 0
    %p159 = por %p157, %p158
    %s161 = sadd.s32 %s160, 1
    %p164 = scmp.eq.s32.totalorder %s21, 1
    %p165 = scmp.ne.s32.totalorder %s160, %s162
    %p166 = scmp.eq.s32.totalorder %s21, 0
    %p167 = por %p165, %p166
    %p168 = scmp.ne.s32.totalorder %s160, %s162
    %p169 = scmp.eq.s32.totalorder %s26, 1
    %p170 = por %p168, %p169
    %p171 = scmp.ne.s32.totalorder %s162, %s163
    %p172 = scmp.eq.s32.totalorder %s26, 0
    %p173 = por %p171, %p172
    %p174 = scmp.ne.s32.totalorder %s162, %s163
    %p175 = scmp.eq.s32.totalorder %s27, 1
    %p176 = por %p174, %p175
    %p178 = scmp.ne.s32.totalorder %s163, %s177
    %p179 = scmp.eq.s32.totalorder %s27, 0
    %p180 = por %p178, %p179
    %s182 = sadd.s32 %s181, 1
    %p185 = scmp.eq.s32.totalorder %s21, 1
    %p186 = scmp.ne.s32.totalorder %s181, %s183
    %p187 = scmp.eq.s32.totalorder %s21, 0
    %p188 = por %p186, %p187
    %p189 = scmp.ne.s32.totalorder %s181, %s183
    %p190 = scmp.eq.s32.totalorder %s26, 1
    %p191 = por %p189, %p190
    %p192 = scmp.ne.s32.totalorder %s183, %s184
    %p193 = scmp.eq.s32.totalorder %s26, 0
    %p194 = por %p192, %p193
    %p195 = scmp.ne.s32.totalorder %s183, %s184
    %p196 = scmp.eq.s32.totalorder %s27, 1
    %p197 = por %p195, %p196
    %p199 = scmp.ne.s32.totalorder %s184, %s198
    %p200 = scmp.eq.s32.totalorder %s27, 0
    %p201 = por %p199, %p200
    %s203 = sadd.s32 %s202, 1
    %p206 = scmp.eq.s32.totalorder %s21, 1
    %p207 = scmp.ne.s32.totalorder %s202, %s204
    %p208 = scmp.eq.s32.totalorder %s21, 0
    %p209 = por %p207, %p208
    %p210 = scmp.ne.s32.totalorder %s202, %s204
    %p211 = scmp.eq.s32.totalorder %s26, 1
    %p212 = por %p210, %p211
    %p213 = scmp.ne.s32.totalorder %s204, %s205
    %p214 = scmp.eq.s32.totalorder %s26, 0
    %p215 = por %p213, %p214
    %p216 = scmp.ne.s32.totalorder %s204, %s205
    %p217 = scmp.eq.s32.totalorder %s27, 1
    %p218 = por %p216, %p217
    %p220 = scmp.ne.s32.totalorder %s205, %s219
    %p221 = scmp.eq.s32.totalorder %s27, 0
    %p222 = por %p220, %p221
    %s224 = sadd.s32 %s223, 1
    %p227 = scmp.eq.s32.totalorder %s21, 1
    %p228 = scmp.ne.s32.totalorder %s223, %s225
    %p229 = scmp.eq.s32.totalorder %s21, 0
    %p230 = por %p228, %p229
    %p231 = scmp.ne.s32.totalorder %s223, %s225
    %p232 = scmp.eq.s32.totalorder %s26, 1
    %p233 = por %p231, %p232
    %p234 = scmp.ne.s32.totalorder %s225, %s226
    %p235 = scmp.eq.s32.totalorder %s26, 0
    %p236 = por %p234, %p235
    %p237 = scmp.ne.s32.totalorder %s225, %s226
    %p238 = scmp.eq.s32.totalorder %s27, 1
    %p239 = por %p237, %p238
    %p241 = scmp.ne.s32.totalorder %s226, %s240
    %p242 = scmp.eq.s32.totalorder %s27, 0
    %p243 = por %p241, %p242
    %s245 = sadd.s32 %s244, 1
    %p248 = scmp.eq.s32.totalorder %s21, 1
    %p249 = scmp.ne.s32.totalorder %s244, %s246
    %p250 = scmp.eq.s32.totalorder %s21, 0
    %p251 = por %p249, %p250
    %p252 = scmp.ne.s32.totalorder %s244, %s246
    %p253 = scmp.eq.s32.totalorder %s26, 1
    %p254 = por %p252, %p253
    %p255 = scmp.ne.s32.totalorder %s246, %s247
    %p256 = scmp.eq.s32.totalorder %s26, 0
    %p257 = por %p255, %p256
    %p258 = scmp.ne.s32.totalorder %s246, %s247
    %p259 = scmp.eq.s32.totalorder %s27, 1
    %p260 = por %p258, %p259
    %p262 = scmp.ne.s32.totalorder %s247, %s261
    %p263 = scmp.eq.s32.totalorder %s27, 0
    %p264 = por %p262, %p263
    %s266 = sadd.s32 %s265, 1
    %p269 = scmp.eq.s32.totalorder %s21, 1
    %p270 = scmp.ne.s32.totalorder %s265, %s267
    %p271 = scmp.eq.s32.totalorder %s21, 0
    %p272 = por %p270, %p271
    %p273 = scmp.ne.s32.totalorder %s265, %s267
    %p274 = scmp.eq.s32.totalorder %s26, 1
    %p275 = por %p273, %p274
    %p276 = scmp.ne.s32.totalorder %s267, %s268
    %p277 = scmp.eq.s32.totalorder %s26, 0
    %p278 = por %p276, %p277
    %p279 = scmp.ne.s32.totalorder %s267, %s268
    %p280 = scmp.eq.s32.totalorder %s27, 1
    %p281 = por %p279, %p280
    %p283 = scmp.ne.s32.totalorder %s268, %s282
    %p284 = scmp.eq.s32.totalorder %s27, 0
    %p285 = por %p283, %p284
    %s287 = sadd.s32 %s286, 1
    %p290 = scmp.eq.s32.totalorder %s21, 1
    %p291 = scmp.ne.s32.totalorder %s286, %s288
    %p292 = scmp.eq.s32.totalorder %s21, 0
    %p293 = por %p291, %p292
    %p294 = scmp.ne.s32.totalorder %s286, %s288
    %p295 = scmp.eq.s32.totalorder %s26, 1
    %p296 = por %p294, %p295
    %p297 = scmp.ne.s32.totalorder %s288, %s289
    %p298 = scmp.eq.s32.totalorder %s26, 0
    %p299 = por %p297, %p298
    %p300 = scmp.ne.s32.totalorder %s288, %s289
    %p301 = scmp.eq.s32.totalorder %s27, 1
    %p302 = por %p300, %p301
    %p304 = scmp.ne.s32.totalorder %s289, %s303
    %p305 = scmp.eq.s32.totalorder %s27, 0
    %p306 = por %p304, %p305
    %s308 = sadd.s32 %s307, 1
    %p311 = scmp.eq.s32.totalorder %s21, 1
    %p312 = scmp.ne.s32.totalorder %s307, %s309
    %p313 = scmp.eq.s32.totalorder %s21, 0
    %p314 = por %p312, %p313
    %p315 = scmp.ne.s32.totalorder %s307, %s309
    %p316 = scmp.eq.s32.totalorder %s26, 1
    %p317 = por %p315, %p316
    %p318 = scmp.ne.s32.totalorder %s309, %s310
    %p319 = scmp.eq.s32.totalorder %s26, 0
    %p320 = por %p318, %p319
    %p321 = scmp.ne.s32.totalorder %s309, %s310
    %p322 = scmp.eq.s32.totalorder %s27, 1
    %p323 = por %p321, %p322
    %p325 = scmp.ne.s32.totalorder %s310, %s324
    %p326 = scmp.eq.s32.totalorder %s27, 0
    %p327 = por %p325, %p326
    %s329 = sadd.s32 %s328, 1
    %p332 = scmp.eq.s32.totalorder %s21, 1
    %p333 = scmp.ne.s32.totalorder %s328, %s330
    %p334 = scmp.eq.s32.totalorder %s21, 0
    %p335 = por %p333, %p334
    %p336 = scmp.ne.s32.totalorder %s328, %s330
    %p337 = scmp.eq.s32.totalorder %s26, 1
    %p338 = por %p336, %p337
    %p339 = scmp.ne.s32.totalorder %s330, %s331
    %p340 = scmp.eq.s32.totalorder %s26, 0
    %p341 = por %p339, %p340
    %p342 = scmp.ne.s32.totalorder %s330, %s331
    %p343 = scmp.eq.s32.totalorder %s27, 1
    %p344 = por %p342, %p343
    %p346 = scmp.ne.s32.totalorder %s331, %s345
    %p347 = scmp.eq.s32.totalorder %s27, 0
    %p348 = por %p346, %p347
    %s349 = ssub.s32 %s21, %s28
    %p350 = scmp.eq.s32.totalorder %s349, 0
    %s352 = sadd.s32 %s351, 1
    %s353 = scalar_select %p350, %s351, %s352
    %p356 = pneg %p350
    %p357 = scmp.eq.s32.totalorder %s21, 1
    %p358 = por %p356, %p357
    %p359 = scmp.ne.s32.totalorder %s351, %s354
    %p360 = scmp.eq.s32.totalorder %s21, 0
    %p361 = por %p359, %p360
    %p362 = scmp.ne.s32.totalorder %s351, %s354
    %p363 = scmp.eq.s32.totalorder %s26, 1
    %p364 = por %p362, %p363
    %p365 = scmp.ne.s32.totalorder %s354, %s355
    %p366 = scmp.eq.s32.totalorder %s26, 0
    %p367 = por %p365, %p366
    %p368 = scmp.ne.s32.totalorder %s354, %s355
    %p369 = scmp.eq.s32.totalorder %s27, 1
    %p370 = por %p368, %p369
    %p372 = scmp.ne.s32.totalorder %s355, %s371
    %p373 = scmp.eq.s32.totalorder %s27, 0
    %p374 = por %p372, %p373
    %p375 = scmp.le.s32.totalorder 1, %s21
    %p376 = scmp.lt.s32.totalorder %s21, 3
    %p377 = pnand %p375, %p376
    %p378 = pneg %p377
    // Predicated region
    $region9: #{_lambda_.2} parent=5 // pred_check
      _
    $region10: #{_lambda_.2} parent=5 // pred_check_branch
      %380 = sbr.rel (%p377) target = $region12
    $region11: #{_lambda_.2} parent=5 // pred_region
      %s381 = ssub.s32 %s21, 1
      // Predicated region
      $region13: #{_lambda_.2} parent=11 // pred_check
        %p382 = pneg %p68
      $region14: #{_lambda_.2} parent=11 // pred_check_branch
        %384 = sbr.rel (%p382) target = $region16
      $region15: #{_lambda_.2} parent=11 // pred_region
        _
      $region16: #{_lambda_.2} parent=11 // pred_fallthru
        _
      // Predicated region
      $region17: #{_lambda_.2} parent=11 // pred_check
        %p385 = pneg %p89
      $region18: #{_lambda_.2} parent=11 // pred_check_branch
        %387 = sbr.rel (%p385) target = $region20
      $region19: #{_lambda_.2} parent=11 // pred_region
        _
      $region20: #{_lambda_.2} parent=11 // pred_fallthru
        _
      // Predicated region
      $region21: #{_lambda_.2} parent=11 // pred_check
        %p388 = pneg %p110
      $region22: #{_lambda_.2} parent=11 // pred_check_branch
        %390 = sbr.rel (%p388) target = $region24
      $region23: #{_lambda_.2} parent=11 // pred_region
        _
      $region24: #{_lambda_.2} parent=11 // pred_fallthru
        _
      // Predicated region
      $region25: #{_lambda_.2} parent=11 // pred_check
        %p391 = pneg %p131
      $region26: #{_lambda_.2} parent=11 // pred_check_branch
        %393 = sbr.rel (%p391) target = $region28
      $region27: #{_lambda_.2} parent=11 // pred_region
        _
      $region28: #{_lambda_.2} parent=11 // pred_fallthru
        _
      // Predicated region
      $region29: #{_lambda_.2} parent=11 // pred_check
        %p394 = pneg %p152
      $region30: #{_lambda_.2} parent=11 // pred_check_branch
        %396 = sbr.rel (%p394) target = $region32
      $region31: #{_lambda_.2} parent=11 // pred_region
        _
      $region32: #{_lambda_.2} parent=11 // pred_fallthru
        _
      // Predicated region
      $region33: #{_lambda_.2} parent=11 // pred_check
        %p397 = pneg %p173
      $region34: #{_lambda_.2} parent=11 // pred_check_branch
        %399 = sbr.rel (%p397) target = $region36
      $region35: #{_lambda_.2} parent=11 // pred_region
        _
      $region36: #{_lambda_.2} parent=11 // pred_fallthru
        _
      // Predicated region
      $region37: #{_lambda_.2} parent=11 // pred_check
        %p400 = pneg %p194
      $region38: #{_lambda_.2} parent=11 // pred_check_branch
        %402 = sbr.rel (%p400) target = $region40
      $region39: #{_lambda_.2} parent=11 // pred_region
        _
      $region40: #{_lambda_.2} parent=11 // pred_fallthru
        _
      // Predicated region
      $region41: #{_lambda_.2} parent=11 // pred_check
        %p403 = pneg %p215
      $region42: #{_lambda_.2} parent=11 // pred_check_branch
        %405 = sbr.rel (%p403) target = $region44
      $region43: #{_lambda_.2} parent=11 // pred_region
        _
      $region44: #{_lambda_.2} parent=11 // pred_fallthru
        _
      // Predicated region
      $region45: #{_lambda_.2} parent=11 // pred_check
        %p406 = pneg %p236
      $region46: #{_lambda_.2} parent=11 // pred_check_branch
        %408 = sbr.rel (%p406) target = $region48
      $region47: #{_lambda_.2} parent=11 // pred_region
        _
      $region48: #{_lambda_.2} parent=11 // pred_fallthru
        _
      // Predicated region
      $region49: #{_lambda_.2} parent=11 // pred_check
        %p409 = pneg %p257
      $region50: #{_lambda_.2} parent=11 // pred_check_branch
        %411 = sbr.rel (%p409) target = $region52
      $region51: #{_lambda_.2} parent=11 // pred_region
        _
      $region52: #{_lambda_.2} parent=11 // pred_fallthru
        _
      // Predicated region
      $region53: #{_lambda_.2} parent=11 // pred_check
        %p412 = pneg %p278
      $region54: #{_lambda_.2} parent=11 // pred_check_branch
        %414 = sbr.rel (%p412) target = $region56
      $region55: #{_lambda_.2} parent=11 // pred_region
        _
      $region56: #{_lambda_.2} parent=11 // pred_fallthru
        _
      // Predicated region
      $region57: #{_lambda_.2} parent=11 // pred_check
        %p415 = pneg %p299
      $region58: #{_lambda_.2} parent=11 // pred_check_branch
        %417 = sbr.rel (%p415) target = $region60
      $region59: #{_lambda_.2} parent=11 // pred_region
        _
      $region60: #{_lambda_.2} parent=11 // pred_fallthru
        _
      // Predicated region
      $region61: #{_lambda_.2} parent=11 // pred_check
        %p418 = pneg %p320
      $region62: #{_lambda_.2} parent=11 // pred_check_branch
        %420 = sbr.rel (%p418) target = $region64
      $region63: #{_lambda_.2} parent=11 // pred_region
        _
      $region64: #{_lambda_.2} parent=11 // pred_fallthru
        _
      // Predicated region
      $region65: #{_lambda_.2} parent=11 // pred_check
        %p421 = pneg %p341
      $region66: #{_lambda_.2} parent=11 // pred_check_branch
        %423 = sbr.rel (%p421) target = $region68
      $region67: #{_lambda_.2} parent=11 // pred_region
        _
      $region68: #{_lambda_.2} parent=11 // pred_fallthru
        _
    $region12: #{_lambda_.2} parent=5 // pred_fallthru
      _
    %p424 = scmp.lt.s32.totalorder %s21, 2
    // Predicated region
    $region69: #{_lambda_.2} parent=5 // pred_check
      %p425 = pneg %p424
    $region70: #{_lambda_.2} parent=5 // pred_check_branch
      %427 = sbr.rel (%p425) target = $region72
    $region71: #{_lambda_.2} parent=5 // pred_region
      // Predicated region
      $region73: #{_lambda_.2} parent=71 // pred_check
        %p428 = pneg %p41
      $region74: #{_lambda_.2} parent=71 // pred_check_branch
        %430 = sbr.rel (%p428) target = $region76
      $region75: #{_lambda_.2} parent=71 // pred_region
        %p431 = scmp.lt.s32.totalorder %s21, 1
        %s432 = scalar_select %p431, %s21, 1
        %s433 = smul.addr %s432, 594
        %s434 = smul.addr %s433, 8
        %s435 = scalar_lea.vmem %s0, %s434
      $region76: #{_lambda_.2} parent=71 // pred_fallthru
        _
    $region72: #{_lambda_.2} parent=5 // pred_fallthru
      _
    %p436 = scmp.le.s32.totalorder 1, %s21
    %p437 = scmp.lt.s32.totalorder %s21, 3
    %p438 = pnand %p436, %p437
    %p439 = pneg %p438
    // Predicated region
    $region77: #{_lambda_.2} parent=5 // pred_check
      _
    $region78: #{_lambda_.2} parent=5 // pred_check_branch
      %441 = sbr.rel (%p438) target = $region80
    $region79: #{_lambda_.2} parent=5 // pred_region
      %s442 = ssub.s32 %s21, 1
      %p443 = scmp.lt.s32.totalorder %s26, 1
      %s444 = scalar_select %p443, %s26, 1
      %s445 = smul.addr %s444, 594
      %s446 = smul.addr %s445, 8
      %s447 = scalar_lea.vmem %s0, %s446
      %p448 = pneg %p47
      %p449 = pneg %p44
      %p450 = pneg %p68
      %p451 = pneg %p65
      %p452 = pneg %p89
      %p453 = pneg %p86
      %p454 = pneg %p110
      %p455 = pneg %p107
      %p456 = pneg %p131
      %p457 = pneg %p128
      %p458 = pneg %p152
      %p459 = pneg %p149
      %p460 = pneg %p173
      %p461 = pneg %p170
      %p462 = pneg %p194
      %p463 = pneg %p191
      %p464 = pneg %p215
      %p465 = pneg %p212
      %p466 = pneg %p236
      %p467 = pneg %p233
      %p468 = pneg %p257
      %p469 = pneg %p254
      %p470 = pneg %p278
      %p471 = pneg %p275
      %p472 = pneg %p299
      %p473 = pneg %p296
      %p474 = pneg %p320
      %p475 = pneg %p317
      %p476 = pneg %p341
      %p477 = pneg %p338
      %p478 = pneg %p367
      %p479 = pneg %p364
      %p480 = scmp.lt.s32.totalorder %s26, 1
      %s481 = scalar_select %p480, %s26, 1
      %s482 = smul.addr %s481, 8
      %s483 = smul.addr %s482, 4
      %s484 = scalar_lea.vmem %s15, %s483
      %p485 = scmp.lt.s32.totalorder %s26, 1
      %s486 = scalar_select %p485, %s26, 1
      %s487 = smul.addr %s486, 594
      %s488 = smul.addr %s487, 8
      %s489 = scalar_lea.vmem %s0, %s488
      %p490 = scmp.lt.s32.totalorder %s26, 1
      %s491 = scalar_select %p490, %s26, 1
      %s492 = smul.addr %s491, 8
      %s493 = smul.addr %s492, 4
      %s494 = scalar_lea.vmem %s15, %s493
      %vm496 = vcmask 261120
      %497 = vst.msk [vmem:[#allocation2] sm:$0xff] %vm496, 0.0
      %498 = vst.msk [vmem:[#allocation2 + $0x8] sm:$0xff] %vm496, 0.0
      %499 = vst.msk [vmem:[#allocation2 + $0x10] sm:$0xff] %vm496, 0.0
      %500 = vst.msk [vmem:[#allocation2 + $0x18] sm:$0xff] %vm496, 0.0
      %vm501 = vcmask 254976
      %502 = vst.msk [vmem:[#allocation2 + $0x20] sm:$0x3] %vm501, 0.0
      %s503 = scalar_lea.vmem [#allocation2], 1320
      %504 = vst.msk [vmem:[%s503] sm:$0xff] %vm496, 0.0
      %505 = vst.msk [vmem:[%s503 + $0x8] sm:$0xff] %vm496, 0.0
      %506 = vst.msk [vmem:[%s503 + $0x10] sm:$0xff] %vm496, 0.0
      %507 = vst.msk [vmem:[%s503 + $0x18] sm:$0xff] %vm496, 0.0
      %508 = vst.msk [vmem:[%s503 + $0x20] sm:$0x3] %vm501, 0.0
      %vm509 = vcmask 523264
      %510 = vst.msk [vmem:[#allocation3] sm:$0xff] %vm509, 0.0
      %511 = vst.msk [vmem:[#allocation3 + $0x8] sm:$0xff] %vm509, 0.0
      %vm512 = vcmask 517120
      %513 = vst.msk [vmem:[#allocation3 + $0x10] sm:$0x3] %vm512, 0.0
      %s514 = scalar_lea.vmem [#allocation3], 408
      %515 = vst.msk [vmem:[%s514] sm:$0xff] %vm509, 0.0
      %516 = vst.msk [vmem:[%s514 + $0x8] sm:$0xff] %vm509, 0.0
      %517 = vst.msk [vmem:[%s514 + $0x10] sm:$0x3] %vm512, 0.0
      %518 = vst [vmem:[#allocation4] sm:$0xff] 0.0
      %519 = vst [vmem:[#allocation4 + $0x8] sm:$0x3] 0.0
      %s520 = scalar_lea.vmem [#allocation4], 144
      %521 = vst [vmem:[%s520] sm:$0xff] 0.0
      %522 = vst [vmem:[%s520 + $0x8] sm:$0x3] 0.0
      %v523 = vld [vmem:[%s1] sm:$0xff]
      %v524 = vld [vmem:[%s1 + $0x8] sm:$0xff]
      %v525 = vld [vmem:[%s1 + $0x10] sm:$0xff]
      %v526 = vld [vmem:[%s1 + $0x18] sm:$0xff]
      %v527 = vld [vmem:[%s1 + $0x20] sm:$0x3]
      %v528 = vld [vmem:[%s2] sm:$0xff]
      %v529 = vld [vmem:[%s2 + $0x8] sm:$0xff]
      %v530 = vld [vmem:[%s2 + $0x10] sm:$0xff]
      %v531 = vld [vmem:[%s2 + $0x18] sm:$0xff]
      %v532 = vld [vmem:[%s2 + $0x20] sm:$0x3]
      %v533 = vld [vmem:[%s4] sm:$0x1]
      %v534 = vld [vmem:[%s5] sm:$0x1]
      loop: start=0, step=1, limit=32
      $region81: #{_lambda_.2} parent=79 // loop_pre_header
        _
      $region82: #{_lambda_.2} parent=79 // loop_header
        %s536 = sphi 0, %s540
        %p537 = scmp.ge.s32.totalorder %s536, 32
      $region83: #{_lambda_.2} parent=79 // loop_header_branch
        %539 = sbr.rel (%p537) target = $region87
      $region84: #{_lambda_.2} parent=79 // loop_body
        %s541 = smul.u32 %s536, 2
        %s542 = smul.u32 %s541, 72
        %s543 = scalar_lea.vmem %s489, %s542
        %v544 = vld [vmem:[%s543] sm:$0xff]
        %v545 = vld [vmem:[%s543 + $0x8] sm:$0xff]
        %v546 = vld [vmem:[%s543 + $0x10] sm:$0xff]
        %v547 = vld [vmem:[%s543 + $0x18] sm:$0xff]
        %v548 = vld [vmem:[%s543 + $0x20] sm:$0xff]
        %v549 = vld [vmem:[%s543 + $0x28] sm:$0xff]
        %v550 = vld [vmem:[%s543 + $0x30] sm:$0xff]
        %v551 = vld [vmem:[%s543 + $0x38] sm:$0xff]
        %v552 = vld [vmem:[%s543 + $0x48] sm:$0xff]
        %v553 = vld [vmem:[%s543 + $0x50] sm:$0xff]
        %v554 = vld [vmem:[%s543 + $0x58] sm:$0xff]
        %v555 = vld [vmem:[%s543 + $0x60] sm:$0xff]
        %v556 = vld [vmem:[%s543 + $0x68] sm:$0xff]
        %v557 = vld [vmem:[%s543 + $0x70] sm:$0xff]
        %v558 = vld [vmem:[%s543 + $0x78] sm:$0xff]
        %v559 = vld [vmem:[%s543 + $0x80] sm:$0xff]
        %v560 = vpack.c.bf16 %v545, %v544
        %v561 = vpack.c.bf16 %v547, %v546
        %v562 = vpack.c.bf16 %v549, %v548
        %v563 = vpack.c.bf16 %v551, %v550
        %v564 = vpack.c.bf16 %v553, %v552
        %v565 = vpack.c.bf16 %v555, %v554
        %v566 = vpack.c.bf16 %v557, %v556
        %v567 = vpack.c.bf16 %v559, %v558
        %v568 = vld [vmem:[%s3] sm:$0x3]
        %v569 = vld [vmem:[%s543 + $0x1] sm:$0xff]
        %v570 = vld [vmem:[%s543 + $0x9] sm:$0xff]
        %v571 = vld [vmem:[%s543 + $0x11] sm:$0xff]
        %v572 = vld [vmem:[%s543 + $0x19] sm:$0xff]
        %v573 = vld [vmem:[%s543 + $0x21] sm:$0xff]
        %v574 = vld [vmem:[%s543 + $0x29] sm:$0xff]
        %v575 = vld [vmem:[%s543 + $0x31] sm:$0xff]
        %v576 = vld [vmem:[%s543 + $0x39] sm:$0xff]
        %v577 = vld [vmem:[%s543 + $0x49] sm:$0xff]
        %v578 = vld [vmem:[%s543 + $0x51] sm:$0xff]
        %v579 = vld [vmem:[%s543 + $0x59] sm:$0xff]
        %v580 = vld [vmem:[%s543 + $0x61] sm:$0xff]
        %v581 = vld [vmem:[%s543 + $0x69] sm:$0xff]
        %v582 = vld [vmem:[%s543 + $0x71] sm:$0xff]
        %v583 = vld [vmem:[%s543 + $0x79] sm:$0xff]
        %v584 = vld [vmem:[%s543 + $0x81] sm:$0xff]
        %v585 = vpack.c.bf16 %v570, %v569
        %v586 = vpack.c.bf16 %v572, %v571
        %v587 = vpack.c.bf16 %v574, %v573
        %v588 = vpack.c.bf16 %v576, %v575
        %v589 = vpack.c.bf16 %v578, %v577
        %v590 = vpack.c.bf16 %v580, %v579
        %v591 = vpack.c.bf16 %v582, %v581
        %v592 = vpack.c.bf16 %v584, %v583
        %s593 = scalar_lea.vmem %s3, 2
        %v594 = vld [vmem:[%s593] sm:$0x3]
        %vm595 = vcmask 23552
        %v597 = vsel %vm595, %v585, 0
        %v600 = vsel %vm595, %v586, 0
        %v603 = vsel %vm595, %v587, 0
        %v606 = vsel %vm595, %v588, 0
        %v609 = vsel %vm595, %v589, 0
        %v612 = vsel %vm595, %v590, 0
        %v615 = vsel %vm595, %v591, 0
        %v618 = vsel %vm595, %v592, 0
        %vm620 = vcmask 1040384
        %vm621 = vcmask 1041408
        %v622 = vsel %vm620, 4294967295, 65535
        %v623 = vsel %vm621, %v622, 0
        %v625 = vand.u32 %v594, %v623
        %627 = vmatprep.subr.bf16.mxu0 0
        %628 = vmatpush1.bf16.msra.mxu0 %v625
        %629 = vmatprep.subr.bf16.mxu0 0
        %630 = vmatpush1.bf16.msra.mxu0 0
        %631 = vmatprep.subr.bf16.mxu0 0
        %632 = vmatpush1.bf16.msra.mxu0 0
        %633 = vmatprep.subr.bf16.mxu0 0
        %634 = vmatpush1.bf16.msra.mxu0 0
        %635 = vmatprep.subr.bf16.mxu0 0
        %636 = vmatpush1.bf16.msra.mxu0 0
        %637 = vmatprep.subr.bf16.mxu0 0
        %638 = vmatpush1.bf16.msra.mxu0 0
        %639 = vmatprep.subr.bf16.mxu0 0
        %640 = vmatpush1.bf16.msra.mxu0 0
        %641 = vmatprep.subr.bf16.mxu0 0
        %642 = vmatpush1.bf16.msra.mxu0 0
        %643 = vmatprep.subr.bf16.mxu0 0
        %644 = vmatpush1.bf16.msra.mxu0 0
        %645 = vmatprep.subr.bf16.mxu0 0
        %646 = vmatpush1.bf16.msra.mxu0 0
        %647 = vmatprep.subr.bf16.mxu0 0
        %648 = vmatpush1.bf16.msra.mxu0 0
        %649 = vmatprep.subr.bf16.mxu0 0
        %650 = vmatpush1.bf16.msra.mxu0 0
        %651 = vmatprep.subr.bf16.mxu0 0
        %652 = vmatpush1.bf16.msra.mxu0 0
        %653 = vmatprep.subr.bf16.mxu0 0
        %654 = vmatpush1.bf16.msra.mxu0 0
        %655 = vmatprep.subr.bf16.mxu0 0
        %656 = vmatpush1.bf16.msra.mxu0 0
        %657 = vmatprep.subr.bf16.mxu0 0
        %658 = vmatpush1.bf16.msra.mxu0 0
        %659 = vmatprep.mubr.bf16.mxu0 0
        %660 = vmatmul.mubr.bf16.gmra.mrb[0].mxu0 %v597
        %v661 = vpop.f32.mrb[0].mxu0
        %v662 = vadd.f32 0.0, %v661
        %v663 = vpop.f32.mrb[0].mxu0
        %v664 = vpop.f32.mrb[0].mxu0
        %v665 = vadd.f32 0.0, %v664
        %v666 = vpop.f32.mrb[0].mxu0
        %667 = vmatprep.mubr.bf16.mxu0 0
        %668 = vmatmul.mubr.bf16.gmra.mrb[0].mxu0 %v600
        %v669 = vpop.f32.mrb[0].mxu0
        %v670 = vadd.f32 0.0, %v669
        %v671 = vpop.f32.mrb[0].mxu0
        %v672 = vpop.f32.mrb[0].mxu0
        %v673 = vadd.f32 0.0, %v672
        %v674 = vpop.f32.mrb[0].mxu0
        %675 = vmatprep.mubr.bf16.mxu0 0
        %676 = vmatmul.mubr.bf16.gmra.mrb[0].mxu0 %v603
        %v677 = vpop.f32.mrb[0].mxu0
        %v678 = vadd.f32 0.0, %v677
        %v679 = vpop.f32.mrb[0].mxu0
        %v680 = vpop.f32.mrb[0].mxu0
        %v681 = vadd.f32 0.0, %v680
        %v682 = vpop.f32.mrb[0].mxu0
        %683 = vmatprep.mubr.bf16.mxu0 0
        %684 = vmatmul.mubr.bf16.gmra.mrb[0].mxu0 %v606
        %v685 = vpop.f32.mrb[0].mxu0
        %v686 = vadd.f32 0.0, %v685
        %v687 = vpop.f32.mrb[0].mxu0
        %v688 = vpop.f32.mrb[0].mxu0
        %v689 = vadd.f32 0.0, %v688
        %v690 = vpop.f32.mrb[0].mxu0
        %691 = vmatprep.mubr.bf16.mxu0 0
        %692 = vmatmul.mubr.bf16.gmra.mrb[0].mxu0 %v609
        %v693 = vpop.f32.mrb[0].mxu0
        %v694 = vadd.f32 0.0, %v693
        %v695 = vpop.f32.mrb[0].mxu0
        %v696 = vpop.f32.mrb[0].mxu0
        %v697 = vadd.f32 0.0, %v696
        %v698 = vpop.f32.mrb[0].mxu0
        %699 = vmatprep.mubr.bf16.mxu0 0
        %700 = vmatmul.mubr.bf16.gmra.mrb[0].mxu0 %v612
        %v701 = vpop.f32.mrb[0].mxu0
        %v702 = vadd.f32 0.0, %v701
        %v703 = vpop.f32.mrb[0].mxu0
        %v704 = vpop.f32.mrb[0].mxu0
        %v705 = vadd.f32 0.0, %v704
        %v706 = vpop.f32.mrb[0].mxu0
        %707 = vmatprep.mubr.bf16.mxu0 0
        %708 = vmatmul.mubr.bf16.gmra.mrb[0].mxu0 %v615
        %v709 = vpop.f32.mrb[0].mxu0
        %v710 = vadd.f32 0.0, %v709
        %v711 = vpop.f32.mrb[0].mxu0
        %v712 = vpop.f32.mrb[0].mxu0
        %v713 = vadd.f32 0.0, %v712
        %v714 = vpop.f32.mrb[0].mxu0
        %715 = vmatprep.mubr.bf16.mxu0 0
        %716 = vmatmul.mubr.bf16.gmra.mrb[0].mxu0 %v618
        %v717 = vpop.f32.mrb[0].mxu0
        %v718 = vadd.f32 0.0, %v717
        %v719 = vpop.f32.mrb[0].mxu0
        %v720 = vpop.f32.mrb[0].mxu0
        %v721 = vadd.f32 0.0, %v720
        %v722 = vpop.f32.mrb[0].mxu0
        %723 = vdwg.mxu0
        %v725 = vsel %vm595, %v560, 0
        %v728 = vsel %vm595, %v561, 0
        %v731 = vsel %vm595, %v562, 0
        %v734 = vsel %vm595, %v563, 0
        %v737 = vsel %vm595, %v564, 0
        %v740 = vsel %vm595, %v565, 0
        %v743 = vsel %vm595, %v566, 0
        %v746 = vsel %vm595, %v567, 0
        %v749 = vand.u32 %v568, %v623
        %751 = vmatprep.subr.bf16.mxu0 0
        %752 = vmatpush1.bf16.msra.mxu0 %v749
        %753 = vmatprep.subr.bf16.mxu0 0
        %754 = vmatpush1.bf16.msra.mxu0 0
        %755 = vmatprep.subr.bf16.mxu0 0
        %756 = vmatpush1.bf16.msra.mxu0 0
        %757 = vmatprep.subr.bf16.mxu0 0
        %758 = vmatpush1.bf16.msra.mxu0 0
        %759 = vmatprep.subr.bf16.mxu0 0
        %760 = vmatpush1.bf16.msra.mxu0 0
        %761 = vmatprep.subr.bf16.mxu0 0
        %762 = vmatpush1.bf16.msra.mxu0 0
        %763 = vmatprep.subr.bf16.mxu0 0
        %764 = vmatpush1.bf16.msra.mxu0 0
        %765 = vmatprep.subr.bf16.mxu0 0
        %766 = vmatpush1.bf16.msra.mxu0 0
        %767 = vmatprep.subr.bf16.mxu0 0
        %768 = vmatpush1.bf16.msra.mxu0 0
        %769 = vmatprep.subr.bf16.mxu0 0
        %770 = vmatpush1.bf16.msra.mxu0 0
        %771 = vmatprep.subr.bf16.mxu0 0
        %772 = vmatpush1.bf16.msra.mxu0 0
        %773 = vmatprep.subr.bf16.mxu0 0
        %774 = vmatpush1.bf16.msra.mxu0 0
        %775 = vmatprep.subr.bf16.mxu0 0
        %776 = vmatpush1.bf16.msra.mxu0 0
        %777 = vmatprep.subr.bf16.mxu0 0
        %778 = vmatpush1.bf16.msra.mxu0 0
        %779 = vmatprep.subr.bf16.mxu0 0
        %780 = vmatpush1.bf16.msra.mxu0 0
        %781 = vmatprep.subr.bf16.mxu0 0
        %782 = vmatpush1.bf16.msra.mxu0 0
        %783 = vmatprep.mubr.bf16.mxu0 0
        %784 = vmatmul.mubr.bf16.gmra.mrb[0].mxu0 %v725
        %v785 = vpop.f32.mrb[0].mxu0
        %v786 = vadd.f32 %v662, %v785
        %v787 = vpop.f32.mrb[0].mxu0
        %v788 = vpop.f32.mrb[0].mxu0
        %v789 = vadd.f32 %v665, %v788
        %v790 = vpop.f32.mrb[0].mxu0
        %791 = vmatprep.mubr.bf16.mxu0 0
        %792 = vmatmul.mubr.bf16.gmra.mrb[0].mxu0 %v728
        %v793 = vpop.f32.mrb[0].mxu0
        %v794 = vadd.f32 %v670, %v793
        %v795 = vpop.f32.mrb[0].mxu0
        %v796 = vpop.f32.mrb[0].mxu0
        %v797 = vadd.f32 %v673, %v796
        %v798 = vpop.f32.mrb[0].mxu0
        %799 = vmatprep.mubr.bf16.mxu0 0
        %800 = vmatmul.mubr.bf16.gmra.mrb[0].mxu0 %v731
        %v801 = vpop.f32.mrb[0].mxu0
        %v802 = vadd.f32 %v678, %v801
        %v803 = vpop.f32.mrb[0].mxu0
        %v804 = vpop.f32.mrb[0].mxu0
        %v805 = vadd.f32 %v681, %v804
        %v806 = vpop.f32.mrb[0].mxu0
        %807 = vmatprep.mubr.bf16.mxu0 0
        %808 = vmatmul.mubr.bf16.gmra.mrb[0].mxu0 %v734
        %v809 = vpop.f32.mrb[0].mxu0
        %v810 = vadd.f32 %v686, %v809
        %v811 = vpop.f32.mrb[0].mxu0
        %v812 = vpop.f32.mrb[0].mxu0
        %v813 = vadd.f32 %v689, %v812
        %v814 = vpop.f32.mrb[0].mxu0
        %815 = vmatprep.mubr.bf16.mxu0 0
        %816 = vmatmul.mubr.bf16.gmra.mrb[0].mxu0 %v737
        %v817 = vpop.f32.mrb[0].mxu0
        %v818 = vadd.f32 %v694, %v817
        %v819 = vpop.f32.mrb[0].mxu0
        %v820 = vpop.f32.mrb[0].mxu0
        %v821 = vadd.f32 %v697, %v820
        %v822 = vpop.f32.mrb[0].mxu0
        %823 = vmatprep.mubr.bf16.mxu0 0
        %824 = vmatmul.mubr.bf16.gmra.mrb[0].mxu0 %v740
        %v825 = vpop.f32.mrb[0].mxu0
        %v826 = vadd.f32 %v702, %v825
        %v827 = vpop.f32.mrb[0].mxu0
        %v828 = vpop.f32.mrb[0].mxu0
        %v829 = vadd.f32 %v705, %v828
        %v830 = vpop.f32.mrb[0].mxu0
        %831 = vmatprep.mubr.bf16.mxu0 0
        %832 = vmatmul.mubr.bf16.gmra.mrb[0].mxu0 %v743
        %v833 = vpop.f32.mrb[0].mxu0
        %v834 = vadd.f32 %v710, %v833
        %v835 = vpop.f32.mrb[0].mxu0
        %v836 = vpop.f32.mrb[0].mxu0
        %v837 = vadd.f32 %v713, %v836
        %v838 = vpop.f32.mrb[0].mxu0
        %839 = vmatprep.mubr.bf16.mxu0 0
        %840 = vmatmul.mubr.bf16.gmra.mrb[0].mxu0 %v746
        %v841 = vpop.f32.mrb[0].mxu0
        %v842 = vadd.f32 %v718, %v841
        %v843 = vpop.f32.mrb[0].mxu0
        %v844 = vpop.f32.mrb[0].mxu0
        %v845 = vadd.f32 %v721, %v844
        %v846 = vpop.f32.mrb[0].mxu0
        %847 = vdwg.mxu0
        %v848 = vld [vmem:[%s543 + $0x2] sm:$0xff]
        %v849 = vld [vmem:[%s543 + $0xa] sm:$0xff]
        %v850 = vld [vmem:[%s543 + $0x12] sm:$0xff]
        %v851 = vld [vmem:[%s543 + $0x1a] sm:$0xff]
        %v852 = vld [vmem:[%s543 + $0x22] sm:$0xff]
        %v853 = vld [vmem:[%s543 + $0x2a] sm:$0xff]
        %v854 = vld [vmem:[%s543 + $0x32] sm:$0xff]
        %v855 = vld [vmem:[%s543 + $0x3a] sm:$0xff]
        %v856 = vld [vmem:[%s543 + $0x4a] sm:$0xff]
        %v857 = vld [vmem:[%s543 + $0x52] sm:$0xff]
        %v858 = vld [vmem:[%s543 + $0x5a] sm:$0xff]
        %v859 = vld [vmem:[%s543 + $0x62] sm:$0xff]
        %v860 = vld [vmem:[%s543 + $0x6a] sm:$0xff]
        %v861 = vld [vmem:[%s543 + $0x72] sm:$0xff]
        %v862 = vld [vmem:[%s543 + $0x7a] sm:$0xff]
        %v863 = vld [vmem:[%s543 + $0x82] sm:$0xff]
        %v864 = vpack.c.bf16 %v849, %v848
        %v865 = vpack.c.bf16 %v851, %v850
        %v866 = vpack.c.bf16 %v853, %v852
        %v867 = vpack.c.bf16 %v855, %v854
        %v868 = vpack.c.bf16 %v857, %v856
        %v869 = vpack.c.bf16 %v859, %v858
        %v870 = vpack.c.bf16 %v861, %v860
        %v871 = vpack.c.bf16 %v863, %v862
        %s872 = scalar_lea.vmem %s3, 4
        %v873 = vld [vmem:[%s872] sm:$0x3]
        %v875 = vsel %vm595, %v864, 0
        %v878 = vsel %vm595, %v865, 0
        %v881 = vsel %vm595, %v866, 0
        %v884 = vsel %vm595, %v867, 0
        %v887 = vsel %vm595, %v868, 0
        %v890 = vsel %vm595, %v869, 0
        %v893 = vsel %vm595, %v870, 0
        %v896 = vsel %vm595, %v871, 0
        %v899 = vand.u32 %v873, %v623
        %901 = vmatprep.subr.bf16.mxu0 0
        %902 = vmatpush1.bf16.msra.mxu0 %v899
        %903 = vmatprep.subr.bf16.mxu0 0
        %904 = vmatpush1.bf16.msra.mxu0 0
        %905 = vmatprep.subr.bf16.mxu0 0
        %906 = vmatpush1.bf16.msra.mxu0 0
        %907 = vmatprep.subr.bf16.mxu0 0
        %908 = vmatpush1.bf16.msra.mxu0 0
        %909 = vmatprep.subr.bf16.mxu0 0
        %910 = vmatpush1.bf16.msra.mxu0 0
        %911 = vmatprep.subr.bf16.mxu0 0
        %912 = vmatpush1.bf16.msra.mxu0 0
        %913 = vmatprep.subr.bf16.mxu0 0
        %914 = vmatpush1.bf16.msra.mxu0 0
        %915 = vmatprep.subr.bf16.mxu0 0
        %916 = vmatpush1.bf16.msra.mxu0 0
        %917 = vmatprep.subr.bf16.mxu0 0
        %918 = vmatpush1.bf16.msra.mxu0 0
        %919 = vmatprep.subr.bf16.mxu0 0
        %920 = vmatpush1.bf16.msra.mxu0 0
        %921 = vmatprep.subr.bf16.mxu0 0
        %922 = vmatpush1.bf16.msra.mxu0 0
        %923 = vmatprep.subr.bf16.mxu0 0
        %924 = vmatpush1.bf16.msra.mxu0 0
        %925 = vmatprep.subr.bf16.mxu0 0
        %926 = vmatpush1.bf16.msra.mxu0 0
        %927 = vmatprep.subr.bf16.mxu0 0
        %928 = vmatpush1.bf16.msra.mxu0 0
        %929 = vmatprep.subr.bf16.mxu0 0
        %930 = vmatpush1.bf16.msra.mxu0 0
        %931 = vmatprep.subr.bf16.mxu0 0
        %932 = vmatpush1.bf16.msra.mxu0 0
        %933 = vmatprep.mubr.bf16.mxu0 0
        %934 = vmatmul.mubr.bf16.gmra.mrb[0].mxu0 %v875
        %v935 = vpop.f32.mrb[0].mxu0
        %v936 = vadd.f32 0.0, %v935
        %v937 = vpop.f32.mrb[0].mxu0
        %v938 = vpop.f32.mrb[0].mxu0
        %v939 = vadd.f32 0.0, %v938
        %v940 = vpop.f32.mrb[0].mxu0
        %941 = vmatprep.mubr.bf16.mxu0 0
        %942 = vmatmul.mubr.bf16.gmra.mrb[0].mxu0 %v878
        %v943 = vpop.f32.mrb[0].mxu0
        %v944 = vadd.f32 0.0, %v943
        %v945 = vpop.f32.mrb[0].mxu0
        %v946 = vpop.f32.mrb[0].mxu0
        %v947 = vadd.f32 0.0, %v946
        %v948 = vpop.f32.mrb[0].mxu0
        %949 = vmatprep.mubr.bf16.mxu0 0
        %950 = vmatmul.mubr.bf16.gmra.mrb[0].mxu0 %v881
        %v951 = vpop.f32.mrb[0].mxu0
        %v952 = vadd.f32 0.0, %v951
        %v953 = vpop.f32.mrb[0].mxu0
        %v954 = vpop.f32.mrb[0].mxu0
        %v955 = vadd.f32 0.0, %v954
        %v956 = vpop.f32.mrb[0].mxu0
        %957 = vmatprep.mubr.bf16.mxu0 0
        %958 = vmatmul.mubr.bf16.gmra.mrb[0].mxu0 %v884
        %v959 = vpop.f32.mrb[0].mxu0
        %v960 = vadd.f32 0.0, %v959
        %v961 = vpop.f32.mrb[0].mxu0
        %v962 = vpop.f32.mrb[0].mxu0
        %v963 = vadd.f32 0.0, %v962
        %v964 = vpop.f32.mrb[0].mxu0
        %965 = vmatprep.mubr.bf16.mxu0 0
        %966 = vmatmul.mubr.bf16.gmra.mrb[0].mxu0 %v887
        %v967 = vpop.f32.mrb[0].mxu0
        %v968 = vadd.f32 0.0, %v967
        %v969 = vpop.f32.mrb[0].mxu0
        %v970 = vpop.f32.mrb[0].mxu0
        %v971 = vadd.f32 0.0, %v970
        %v972 = vpop.f32.mrb[0].mxu0
        %973 = vmatprep.mubr.bf16.mxu0 0
        %974 = vmatmul.mubr.bf16.gmra.mrb[0].mxu0 %v890
        %v975 = vpop.f32.mrb[0].mxu0
        %v976 = vadd.f32 0.0, %v975
        %v977 = vpop.f32.mrb[0].mxu0
        %v978 = vpop.f32.mrb[0].mxu0
        %v979 = vadd.f32 0.0, %v978
        %v980 = vpop.f32.mrb[0].mxu0
        %981 = vmatprep.mubr.bf16.mxu0 0
        %982 = vmatmul.mubr.bf16.gmra.mrb[0].mxu0 %v893
        %v983 = vpop.f32.mrb[0].mxu0
        %v984 = vadd.f32 0.0, %v983
        %v985 = vpop.f32.mrb[0].mxu0
        %v986 = vpop.f32.mrb[0].mxu0
        %v987 = vadd.f32 0.0, %v986
        %v988 = vpop.f32.mrb[0].mxu0
        %989 = vmatprep.mubr.bf16.mxu0 0
        %990 = vmatmul.mubr.bf16.gmra.mrb[0].mxu0 %v896
        %v991 = vpop.f32.mrb[0].mxu0
        %v992 = vadd.f32 0.0, %v991
        %v993 = vpop.f32.mrb[0].mxu0
        %v994 = vpop.f32.mrb[0].mxu0
        %v995 = vadd.f32 0.0, %v994
        %v996 = vpop.f32.mrb[0].mxu0
        %997 = vdwg.mxu0
        %v998 = vadd.f32 %v786, %v936
        %v999 = vadd.f32 %v789, %v939
        %v1000 = vadd.f32 %v794, %v944
        %v1001 = vadd.f32 %v797, %v947
        %v1002 = vadd.f32 %v802, %v952
        %v1003 = vadd.f32 %v805, %v955
        %v1004 = vadd.f32 %v810, %v960
        %v1005 = vadd.f32 %v813, %v963
        %v1006 = vadd.f32 %v818, %v968
        %v1007 = vadd.f32 %v821, %v971
        %v1008 = vadd.f32 %v826, %v976
        %v1009 = vadd.f32 %v829, %v979
        %v1010 = vadd.f32 %v834, %v984
        %v1011 = vadd.f32 %v837, %v987
        %v1012 = vadd.f32 %v842, %v992
        %v1013 = vadd.f32 %v845, %v995
        %s1014 = sadd.s32 %s541, 1
        %s1015 = smul.u32 %s1014, 72
        %s1016 = scalar_lea.vmem %s489, %s1015
        %v1017 = vld [vmem:[%s1016] sm:$0xff]
        %v1018 = vld [vmem:[%s1016 + $0x8] sm:$0xff]
        %v1019 = vld [vmem:[%s1016 + $0x10] sm:$0xff]
        %v1020 = vld [vmem:[%s1016 + $0x18] sm:$0xff]
        %v1021 = vld [vmem:[%s1016 + $0x20] sm:$0xff]
        %v1022 = vld [vmem:[%s1016 + $0x28] sm:$0xff]
        %v1023 = vld [vmem:[%s1016 + $0x30] sm:$0xff]
        %v1024 = vld [vmem:[%s1016 + $0x38] sm:$0xff]
        %v1025 = vld [vmem:[%s1016 + $0x48] sm:$0xff]
        %v1026 = vld [vmem:[%s1016 + $0x50] sm:$0xff]
        %v1027 = vld [vmem:[%s1016 + $0x58] sm:$0xff]
        %v1028 = vld [vmem:[%s1016 + $0x60] sm:$0xff]
        %v1029 = vld [vmem:[%s1016 + $0x68] sm:$0xff]
        %v1030 = vld [vmem:[%s1016 + $0x70] sm:$0xff]
        %v1031 = vld [vmem:[%s1016 + $0x78] sm:$0xff]
        %v1032 = vld [vmem:[%s1016 + $0x80] sm:$0xff]
        %v1033 = vpack.c.bf16 %v1018, %v1017
        %v1034 = vpack.c.bf16 %v1020, %v1019
        %v1035 = vpack.c.bf16 %v1022, %v1021
        %v1036 = vpack.c.bf16 %v1024, %v1023
        %v1037 = vpack.c.bf16 %v1026, %v1025
        %v1038 = vpack.c.bf16 %v1028, %v1027
        %v1039 = vpack.c.bf16 %v1030, %v1029
        %v1040 = vpack.c.bf16 %v1032, %v1031
        %s1041 = scalar_lea.vmem %s3, 6
        %v1042 = vld [vmem:[%s1041] sm:$0x3]
        %v1044 = vsel %vm595, %v1033, 0
        %v1047 = vsel %vm595, %v1034, 0
        %v1050 = vsel %vm595, %v1035, 0
        %v1053 = vsel %vm595, %v1036, 0
        %v1056 = vsel %vm595, %v1037, 0
        %v1059 = vsel %vm595, %v1038, 0
        %v1062 = vsel %vm595, %v1039, 0
        %v1065 = vsel %vm595, %v1040, 0
        %v1068 = vand.u32 %v1042, %v623
        %1070 = vmatprep.subr.bf16.mxu0 0
        %1071 = vmatpush1.bf16.msra.mxu0 %v1068
        %1072 = vmatprep.subr.bf16.mxu0 0
        %1073 = vmatpush1.bf16.msra.mxu0 0
        %1074 = vmatprep.subr.bf16.mxu0 0
        %1075 = vmatpush1.bf16.msra.mxu0 0
        %1076 = vmatprep.subr.bf16.mxu0 0
        %1077 = vmatpush1.bf16.msra.mxu0 0
        %1078 = vmatprep.subr.bf16.mxu0 0
        %1079 = vmatpush1.bf16.msra.mxu0 0
        %1080 = vmatprep.subr.bf16.mxu0 0
        %1081 = vmatpush1.bf16.msra.mxu0 0
        %1082 = vmatprep.subr.bf16.mxu0 0
        %1083 = vmatpush1.bf16.msra.mxu0 0
        %1084 = vmatprep.subr.bf16.mxu0 0
        %1085 = vmatpush1.bf16.msra.mxu0 0
        %1086 = vmatprep.subr.bf16.mxu0 0
        %1087 = vmatpush1.bf16.msra.mxu0 0
        %1088 = vmatprep.subr.bf16.mxu0 0
        %1089 = vmatpush1.bf16.msra.mxu0 0
        %1090 = vmatprep.subr.bf16.mxu0 0
        %1091 = vmatpush1.bf16.msra.mxu0 0
        %1092 = vmatprep.subr.bf16.mxu0 0
        %1093 = vmatpush1.bf16.msra.mxu0 0
        %1094 = vmatprep.subr.bf16.mxu0 0
        %1095 = vmatpush1.bf16.msra.mxu0 0
        %1096 = vmatprep.subr.bf16.mxu0 0
        %1097 = vmatpush1.bf16.msra.mxu0 0
        %1098 = vmatprep.subr.bf16.mxu0 0
        %1099 = vmatpush1.bf16.msra.mxu0 0
        %1100 = vmatprep.subr.bf16.mxu0 0
        %1101 = vmatpush1.bf16.msra.mxu0 0
        %1102 = vmatprep.mubr.bf16.mxu0 0
        %1103 = vmatmul.mubr.bf16.gmra.mrb[0].mxu0 %v1044
        %v1104 = vpop.f32.mrb[0].mxu0
        %v1105 = vadd.f32 0.0, %v1104
        %v1106 = vpop.f32.mrb[0].mxu0
        %v1107 = vpop.f32.mrb[0].mxu0
        %v1108 = vadd.f32 0.0, %v1107
        %v1109 = vpop.f32.mrb[0].mxu0
        %1110 = vmatprep.mubr.bf16.mxu0 0
        %1111 = vmatmul.mubr.bf16.gmra.mrb[0].mxu0 %v1047
        %v1112 = vpop.f32.mrb[0].mxu0
        %v1113 = vadd.f32 0.0, %v1112
        %v1114 = vpop.f32.mrb[0].mxu0
        %v1115 = vpop.f32.mrb[0].mxu0
        %v1116 = vadd.f32 0.0, %v1115
        %v1117 = vpop.f32.mrb[0].mxu0
        %1118 = vmatprep.mubr.bf16.mxu0 0
        %1119 = vmatmul.mubr.bf16.gmra.mrb[0].mxu0 %v1050
        %v1120 = vpop.f32.mrb[0].mxu0
        %v1121 = vadd.f32 0.0, %v1120
        %v1122 = vpop.f32.mrb[0].mxu0
        %v1123 = vpop.f32.mrb[0].mxu0
        %v1124 = vadd.f32 0.0, %v1123
        %v1125 = vpop.f32.mrb[0].mxu0
        %1126 = vmatprep.mubr.bf16.mxu0 0
        %1127 = vmatmul.mubr.bf16.gmra.mrb[0].mxu0 %v1053
        %v1128 = vpop.f32.mrb[0].mxu0
        %v1129 = vadd.f32 0.0, %v1128
        %v1130 = vpop.f32.mrb[0].mxu0
        %v1131 = vpop.f32.mrb[0].mxu0
        %v1132 = vadd.f32 0.0, %v1131
        %v1133 = vpop.f32.mrb[0].mxu0
        %1134 = vmatprep.mubr.bf16.mxu0 0
        %1135 = vmatmul.mubr.bf16.gmra.mrb[0].mxu0 %v1056
        %v1136 = vpop.f32.mrb[0].mxu0
        %v1137 = vadd.f32 0.0, %v1136
        %v1138 = vpop.f32.mrb[0].mxu0
        %v1139 = vpop.f32.mrb[0].mxu0
        %v1140 = vadd.f32 0.0, %v1139
        %v1141 = vpop.f32.mrb[0].mxu0
        %1142 = vmatprep.mubr.bf16.mxu0 0
        %1143 = vmatmul.mubr.bf16.gmra.mrb[0].mxu0 %v1059
        %v1144 = vpop.f32.mrb[0].mxu0
        %v1145 = vadd.f32 0.0, %v1144
        %v1146 = vpop.f32.mrb[0].mxu0
        %v1147 = vpop.f32.mrb[0].mxu0
        %v1148 = vadd.f32 0.0, %v1147
        %v1149 = vpop.f32.mrb[0].mxu0
        %1150 = vmatprep.mubr.bf16.mxu0 0
        %1151 = vmatmul.mubr.bf16.gmra.mrb[0].mxu0 %v1062
        %v1152 = vpop.f32.mrb[0].mxu0
        %v1153 = vadd.f32 0.0, %v1152
        %v1154 = vpop.f32.mrb[0].mxu0
        %v1155 = vpop.f32.mrb[0].mxu0
        %v1156 = vadd.f32 0.0, %v1155
        %v1157 = vpop.f32.mrb[0].mxu0
        %1158 = vmatprep.mubr.bf16.mxu0 0
        %1159 = vmatmul.mubr.bf16.gmra.mrb[0].mxu0 %v1065
        %v1160 = vpop.f32.mrb[0].mxu0
        %v1161 = vadd.f32 0.0, %v1160
        %v1162 = vpop.f32.mrb[0].mxu0
        %v1163 = vpop.f32.mrb[0].mxu0
        %v1164 = vadd.f32 0.0, %v1163
        %v1165 = vpop.f32.mrb[0].mxu0
        %1166 = vdwg.mxu0
        %v1167 = vadd.f32 %v998, %v1105
        %v1168 = vadd.f32 %v999, %v1108
        %v1169 = vadd.f32 %v1000, %v1113
        %v1170 = vadd.f32 %v1001, %v1116
        %v1171 = vadd.f32 %v1002, %v1121
        %v1172 = vadd.f32 %v1003, %v1124
        %v1173 = vadd.f32 %v1004, %v1129
        %v1174 = vadd.f32 %v1005, %v1132
        %v1175 = vadd.f32 %v1006, %v1137
        %v1176 = vadd.f32 %v1007, %v1140
        %v1177 = vadd.f32 %v1008, %v1145
        %v1178 = vadd.f32 %v1009, %v1148
        %v1179 = vadd.f32 %v1010, %v1153
        %v1180 = vadd.f32 %v1011, %v1156
        %v1181 = vadd.f32 %v1012, %v1161
        %v1182 = vadd.f32 %v1013, %v1164
        %v1183 = vld [vmem:[%s1016 + $0x1] sm:$0xff]
        %v1184 = vld [vmem:[%s1016 + $0x9] sm:$0xff]
        %v1185 = vld [vmem:[%s1016 + $0x11] sm:$0xff]
        %v1186 = vld [vmem:[%s1016 + $0x19] sm:$0xff]
        %v1187 = vld [vmem:[%s1016 + $0x21] sm:$0xff]
        %v1188 = vld [vmem:[%s1016 + $0x29] sm:$0xff]
        %v1189 = vld [vmem:[%s1016 + $0x31] sm:$0xff]
        %v1190 = vld [vmem:[%s1016 + $0x39] sm:$0xff]
        %v1191 = vld [vmem:[%s1016 + $0x49] sm:$0xff]
        %v1192 = vld [vmem:[%s1016 + $0x51] sm:$0xff]
        %v1193 = vld [vmem:[%s1016 + $0x59] sm:$0xff]
        %v1194 = vld [vmem:[%s1016 + $0x61] sm:$0xff]
        %v1195 = vld [vmem:[%s1016 + $0x69] sm:$0xff]
        %v1196 = vld [vmem:[%s1016 + $0x71] sm:$0xff]
        %v1197 = vld [vmem:[%s1016 + $0x79] sm:$0xff]
        %v1198 = vld [vmem:[%s1016 + $0x81] sm:$0xff]
        %v1199 = vpack.c.bf16 %v1184, %v1183
        %v1200 = vpack.c.bf16 %v1186, %v1185
        %v1201 = vpack.c.bf16 %v1188, %v1187
        %v1202 = vpack.c.bf16 %v1190, %v1189
        %v1203 = vpack.c.bf16 %v1192, %v1191
        %v1204 = vpack.c.bf16 %v1194, %v1193
        %v1205 = vpack.c.bf16 %v1196, %v1195
        %v1206 = vpack.c.bf16 %v1198, %v1197
        %s1207 = scalar_lea.vmem %s3, 8
        %v1208 = vld [vmem:[%s1207] sm:$0x3]
        %v1210 = vsel %vm595, %v1199, 0
        %v1213 = vsel %vm595, %v1200, 0
        %v1216 = vsel %vm595, %v1201, 0
        %v1219 = vsel %vm595, %v1202, 0
        %v1222 = vsel %vm595, %v1203, 0
        %v1225 = vsel %vm595, %v1204, 0
        %v1228 = vsel %vm595, %v1205, 0
        %v1231 = vsel %vm595, %v1206, 0
        %v1234 = vand.u32 %v1208, %v623
        %1236 = vmatprep.subr.bf16.mxu0 0
        %1237 = vmatpush1.bf16.msra.mxu0 %v1234
        %1238 = vmatprep.subr.bf16.mxu0 0
        %1239 = vmatpush1.bf16.msra.mxu0 0
        %1240 = vmatprep.subr.bf16.mxu0 0
        %1241 = vmatpush1.bf16.msra.mxu0 0
        %1242 = vmatprep.subr.bf16.mxu0 0
        %1243 = vmatpush1.bf16.msra.mxu0 0
        %1244 = vmatprep.subr.bf16.mxu0 0
        %1245 = vmatpush1.bf16.msra.mxu0 0
        %1246 = vmatprep.subr.bf16.mxu0 0
        %1247 = vmatpush1.bf16.msra.mxu0 0
        %1248 = vmatprep.subr.bf16.mxu0 0
        %1249 = vmatpush1.bf16.msra.mxu0 0
        %1250 = vmatprep.subr.bf16.mxu0 0
        %1251 = vmatpush1.bf16.msra.mxu0 0
        %1252 = vmatprep.subr.bf16.mxu0 0
        %1253 = vmatpush1.bf16.msra.mxu0 0
        %1254 = vmatprep.subr.bf16.mxu0 0
        %1255 = vmatpush1.bf16.msra.mxu0 0
        %1256 = vmatprep.subr.bf16.mxu0 0
        %1257 = vmatpush1.bf16.msra.mxu0 0
        %1258 = vmatprep.subr.bf16.mxu0 0
        %1259 = vmatpush1.bf16.msra.mxu0 0
        %1260 = vmatprep.subr.bf16.mxu0 0
        %1261 = vmatpush1.bf16.msra.mxu0 0
        %1262 = vmatprep.subr.bf16.mxu0 0
        %1263 = vmatpush1.bf16.msra.mxu0 0
        %1264 = vmatprep.subr.bf16.mxu0 0
        %1265 = vmatpush1.bf16.msra.mxu0 0
        %1266 = vmatprep.subr.bf16.mxu0 0
        %1267 = vmatpush1.bf16.msra.mxu0 0
        %1268 = vmatprep.mubr.bf16.mxu0 0
        %1269 = vmatmul.mubr.bf16.gmra.mrb[0].mxu0 %v1210
        %v1270 = vpop.f32.mrb[0].mxu0
        %v1271 = vadd.f32 0.0, %v1270
        %v1272 = vpop.f32.mrb[0].mxu0
        %v1273 = vpop.f32.mrb[0].mxu0
        %v1274 = vadd.f32 0.0, %v1273
        %v1275 = vpop.f32.mrb[0].mxu0
        %1276 = vmatprep.mubr.bf16.mxu0 0
        %1277 = vmatmul.mubr.bf16.gmra.mrb[0].mxu0 %v1213
        %v1278 = vpop.f32.mrb[0].mxu0
        %v1279 = vadd.f32 0.0, %v1278
        %v1280 = vpop.f32.mrb[0].mxu0
        %v1281 = vpop.f32.mrb[0].mxu0
        %v1282 = vadd.f32 0.0, %v1281
        %v1283 = vpop.f32.mrb[0].mxu0
        %1284 = vmatprep.mubr.bf16.mxu0 0
        %1285 = vmatmul.mubr.bf16.gmra.mrb[0].mxu0 %v1216
        %v1286 = vpop.f32.mrb[0].mxu0
        %v1287 = vadd.f32 0.0, %v1286
        %v1288 = vpop.f32.mrb[0].mxu0
        %v1289 = vpop.f32.mrb[0].mxu0
        %v1290 = vadd.f32 0.0, %v1289
        %v1291 = vpop.f32.mrb[0].mxu0
        %1292 = vmatprep.mubr.bf16.mxu0 0
        %1293 = vmatmul.mubr.bf16.gmra.mrb[0].mxu0 %v1219
        %v1294 = vpop.f32.mrb[0].mxu0
        %v1295 = vadd.f32 0.0, %v1294
        %v1296 = vpop.f32.mrb[0].mxu0
        %v1297 = vpop.f32.mrb[0].mxu0
        %v1298 = vadd.f32 0.0, %v1297
        %v1299 = vpop.f32.mrb[0].mxu0
        %1300 = vmatprep.mubr.bf16.mxu0 0
        %1301 = vmatmul.mubr.bf16.gmra.mrb[0].mxu0 %v1222
        %v1302 = vpop.f32.mrb[0].mxu0
        %v1303 = vadd.f32 0.0, %v1302
        %v1304 = vpop.f32.mrb[0].mxu0
        %v1305 = vpop.f32.mrb[0].mxu0
        %v1306 = vadd.f32 0.0, %v1305
        %v1307 = vpop.f32.mrb[0].mxu0
        %1308 = vmatprep.mubr.bf16.mxu0 0
        %1309 = vmatmul.mubr.bf16.gmra.mrb[0].mxu0 %v1225
        %v1310 = vpop.f32.mrb[0].mxu0
        %v1311 = vadd.f32 0.0, %v1310
        %v1312 = vpop.f32.mrb[0].mxu0
        %v1313 = vpop.f32.mrb[0].mxu0
        %v1314 = vadd.f32 0.0, %v1313
        %v1315 = vpop.f32.mrb[0].mxu0
        %1316 = vmatprep.mubr.bf16.mxu0 0
        %1317 = vmatmul.mubr.bf16.gmra.mrb[0].mxu0 %v1228
        %v1318 = vpop.f32.mrb[0].mxu0
        %v1319 = vadd.f32 0.0, %v1318
        %v1320 = vpop.f32.mrb[0].mxu0
        %v1321 = vpop.f32.mrb[0].mxu0
        %v1322 = vadd.f32 0.0, %v1321
        %v1323 = vpop.f32.mrb[0].mxu0
        %1324 = vmatprep.mubr.bf16.mxu0 0
        %1325 = vmatmul.mubr.bf16.gmra.mrb[0].mxu0 %v1231
        %v1326 = vpop.f32.mrb[0].mxu0
        %v1327 = vadd.f32 0.0, %v1326
        %v1328 = vpop.f32.mrb[0].mxu0
        %v1329 = vpop.f32.mrb[0].mxu0
        %v1330 = vadd.f32 0.0, %v1329
        %v1331 = vpop.f32.mrb[0].mxu0
        %1332 = vdwg.mxu0
        %v1333 = vadd.f32 %v1167, %v1271
        %v1334 = vadd.f32 %v1168, %v1274
        %v1335 = vadd.f32 %v1169, %v1279
        %v1336 = vadd.f32 %v1170, %v1282
        %v1337 = vadd.f32 %v1171, %v1287
        %v1338 = vadd.f32 %v1172, %v1290
        %v1339 = vadd.f32 %v1173, %v1295
        %v1340 = vadd.f32 %v1174, %v1298
        %v1341 = vadd.f32 %v1175, %v1303
        %v1342 = vadd.f32 %v1176, %v1306
        %v1343 = vadd.f32 %v1177, %v1311
        %v1344 = vadd.f32 %v1178, %v1314
        %v1345 = vadd.f32 %v1179, %v1319
        %v1346 = vadd.f32 %v1180, %v1322
        %v1347 = vadd.f32 %v1181, %v1327
        %v1348 = vadd.f32 %v1182, %v1330
        %v1349 = vld [vmem:[%s1016 + $0x2] sm:$0xff]
        %v1350 = vld [vmem:[%s1016 + $0xa] sm:$0xff]
        %v1351 = vld [vmem:[%s1016 + $0x12] sm:$0xff]
        %v1352 = vld [vmem:[%s1016 + $0x1a] sm:$0xff]
        %v1353 = vld [vmem:[%s1016 + $0x22] sm:$0xff]
        %v1354 = vld [vmem:[%s1016 + $0x2a] sm:$0xff]
        %v1355 = vld [vmem:[%s1016 + $0x32] sm:$0xff]
        %v1356 = vld [vmem:[%s1016 + $0x3a] sm:$0xff]
        %v1357 = vld [vmem:[%s1016 + $0x4a] sm:$0xff]
        %v1358 = vld [vmem:[%s1016 + $0x52] sm:$0xff]
        %v1359 = vld [vmem:[%s1016 + $0x5a] sm:$0xff]
        %v1360 = vld [vmem:[%s1016 + $0x62] sm:$0xff]
        %v1361 = vld [vmem:[%s1016 + $0x6a] sm:$0xff]
        %v1362 = vld [vmem:[%s1016 + $0x72] sm:$0xff]
        %v1363 = vld [vmem:[%s1016 + $0x7a] sm:$0xff]
        %v1364 = vld [vmem:[%s1016 + $0x82] sm:$0xff]
        %v1365 = vpack.c.bf16 %v1350, %v1349
        %v1366 = vpack.c.bf16 %v1352, %v1351
        %v1367 = vpack.c.bf16 %v1354, %v1353
        %v1368 = vpack.c.bf16 %v1356, %v1355
        %v1369 = vpack.c.bf16 %v1358, %v1357
        %v1370 = vpack.c.bf16 %v1360, %v1359
        %v1371 = vpack.c.bf16 %v1362, %v1361
        %v1372 = vpack.c.bf16 %v1364, %v1363
        %s1373 = scalar_lea.vmem %s3, 10
        %v1374 = vld [vmem:[%s1373] sm:$0x3]
        %v1376 = vsel %vm595, %v1365, 0
        %v1379 = vsel %vm595, %v1366, 0
        %v1382 = vsel %vm595, %v1367, 0
        %v1385 = vsel %vm595, %v1368, 0
        %v1388 = vsel %vm595, %v1369, 0
        %v1391 = vsel %vm595, %v1370, 0
        %v1394 = vsel %vm595, %v1371, 0
        %v1397 = vsel %vm595, %v1372, 0
        %v1400 = vand.u32 %v1374, %v623
        %1402 = vmatprep.subr.bf16.mxu0 0
        %1403 = vmatpush1.bf16.msra.mxu0 %v1400
        %1404 = vmatprep.subr.bf16.mxu0 0
        %1405 = vmatpush1.bf16.msra.mxu0 0
        %1406 = vmatprep.subr.bf16.mxu0 0
        %1407 = vmatpush1.bf16.msra.mxu0 0
        %1408 = vmatprep.subr.bf16.mxu0 0
        %1409 = vmatpush1.bf16.msra.mxu0 0
        %1410 = vmatprep.subr.bf16.mxu0 0
        %1411 = vmatpush1.bf16.msra.mxu0 0
        %1412 = vmatprep.subr.bf16.mxu0 0
        %1413 = vmatpush1.bf16.msra.mxu0 0
        %1414 = vmatprep.subr.bf16.mxu0 0
        %1415 = vmatpush1.bf16.msra.mxu0 0
        %1416 = vmatprep.subr.bf16.mxu0 0
        %1417 = vmatpush1.bf16.msra.mxu0 0
        %1418 = vmatprep.subr.bf16.mxu0 0
        %1419 = vmatpush1.bf16.msra.mxu0 0
        %1420 = vmatprep.subr.bf16.mxu0 0
        %1421 = vmatpush1.bf16.msra.mxu0 0
        %1422 = vmatprep.subr.bf16.mxu0 0
        %1423 = vmatpush1.bf16.msra.mxu0 0
        %1424 = vmatprep.subr.bf16.mxu0 0
        %1425 = vmatpush1.bf16.msra.mxu0 0
        %1426 = vmatprep.subr.bf16.mxu0 0
        %1427 = vmatpush1.bf16.msra.mxu0 0
        %1428 = vmatprep.subr.bf16.mxu0 0
        %1429 = vmatpush1.bf16.msra.mxu0 0
        %1430 = vmatprep.subr.bf16.mxu0 0
        %1431 = vmatpush1.bf16.msra.mxu0 0
        %1432 = vmatprep.subr.bf16.mxu0 0
        %1433 = vmatpush1.bf16.msra.mxu0 0
        %1434 = vmatprep.mubr.bf16.mxu0 0
        %1435 = vmatmul.mubr.bf16.gmra.mrb[0].mxu0 %v1376
        %v1436 = vpop.f32.mrb[0].mxu0
        %v1437 = vadd.f32 0.0, %v1436
        %v1438 = vpop.f32.mrb[0].mxu0
        %v1439 = vpop.f32.mrb[0].mxu0
        %v1440 = vadd.f32 0.0, %v1439
        %v1441 = vpop.f32.mrb[0].mxu0
        %1442 = vmatprep.mubr.bf16.mxu0 0
        %1443 = vmatmul.mubr.bf16.gmra.mrb[0].mxu0 %v1379
        %v1444 = vpop.f32.mrb[0].mxu0
        %v1445 = vadd.f32 0.0, %v1444
        %v1446 = vpop.f32.mrb[0].mxu0
        %v1447 = vpop.f32.mrb[0].mxu0
        %v1448 = vadd.f32 0.0, %v1447
        %v1449 = vpop.f32.mrb[0].mxu0
        %1450 = vmatprep.mubr.bf16.mxu0 0
        %1451 = vmatmul.mubr.bf16.gmra.mrb[0].mxu0 %v1382
        %v1452 = vpop.f32.mrb[0].mxu0
        %v1453 = vadd.f32 0.0, %v1452
        %v1454 = vpop.f32.mrb[0].mxu0
        %v1455 = vpop.f32.mrb[0].mxu0
        %v1456 = vadd.f32 0.0, %v1455
        %v1457 = vpop.f32.mrb[0].mxu0
        %1458 = vmatprep.mubr.bf16.mxu0 0
        %1459 = vmatmul.mubr.bf16.gmra.mrb[0].mxu0 %v1385
        %v1460 = vpop.f32.mrb[0].mxu0
        %v1461 = vadd.f32 0.0, %v1460
        %v1462 = vpop.f32.mrb[0].mxu0
        %v1463 = vpop.f32.mrb[0].mxu0
        %v1464 = vadd.f32 0.0, %v1463
        %v1465 = vpop.f32.mrb[0].mxu0
        %1466 = vmatprep.mubr.bf16.mxu0 0
        %1467 = vmatmul.mubr.bf16.gmra.mrb[0].mxu0 %v1388
        %v1468 = vpop.f32.mrb[0].mxu0
        %v1469 = vadd.f32 0.0, %v1468
        %v1470 = vpop.f32.mrb[0].mxu0
        %v1471 = vpop.f32.mrb[0].mxu0
        %v1472 = vadd.f32 0.0, %v1471
        %v1473 = vpop.f32.mrb[0].mxu0
        %1474 = vmatprep.mubr.bf16.mxu0 0
        %1475 = vmatmul.mubr.bf16.gmra.mrb[0].mxu0 %v1391
        %v1476 = vpop.f32.mrb[0].mxu0
        %v1477 = vadd.f32 0.0, %v1476
        %v1478 = vpop.f32.mrb[0].mxu0
        %v1479 = vpop.f32.mrb[0].mxu0
        %v1480 = vadd.f32 0.0, %v1479
        %v1481 = vpop.f32.mrb[0].mxu0
        %1482 = vmatprep.mubr.bf16.mxu0 0
        %1483 = vmatmul.mubr.bf16.gmra.mrb[0].mxu0 %v1394
        %v1484 = vpop.f32.mrb[0].mxu0
        %v1485 = vadd.f32 0.0, %v1484
        %v1486 = vpop.f32.mrb[0].mxu0
        %v1487 = vpop.f32.mrb[0].mxu0
        %v1488 = vadd.f32 0.0, %v1487
        %v1489 = vpop.f32.mrb[0].mxu0
        %1490 = vmatprep.mubr.bf16.mxu0 0
        %1491 = vmatmul.mubr.bf16.gmra.mrb[0].mxu0 %v1397
        %v1492 = vpop.f32.mrb[0].mxu0
        %v1493 = vadd.f32 0.0, %v1492
        %v1494 = vpop.f32.mrb[0].mxu0
        %v1495 = vpop.f32.mrb[0].mxu0
        %v1496 = vadd.f32 0.0, %v1495
        %v1497 = vpop.f32.mrb[0].mxu0
        %1498 = vdwg.mxu0
        %v1499 = vadd.f32 %v1333, %v1437
        %v1500 = vadd.f32 %v1334, %v1440
        %v1501 = vadd.f32 %v1335, %v1445
        %v1502 = vadd.f32 %v1336, %v1448
        %v1503 = vadd.f32 %v1337, %v1453
        %v1504 = vadd.f32 %v1338, %v1456
        %v1505 = vadd.f32 %v1339, %v1461
        %v1506 = vadd.f32 %v1340, %v1464
        %v1507 = vadd.f32 %v1341, %v1469
        %v1508 = vadd.f32 %v1342, %v1472
        %v1509 = vadd.f32 %v1343, %v1477
        %v1510 = vadd.f32 %v1344, %v1480
        %v1511 = vadd.f32 %v1345, %v1485
        %v1512 = vadd.f32 %v1346, %v1488
        %v1513 = vadd.f32 %v1347, %v1493
        %v1514 = vadd.f32 %v1348, %v1496
        %s1515 = sadd.s32 %s541, 2
        %s1516 = smul.u32 %s1515, 72
        %s1517 = scalar_lea.vmem %s489, %s1516
        %v1518 = vld [vmem:[%s1517] sm:$0xff]
        %v1519 = vld [vmem:[%s1517 + $0x8] sm:$0xff]
        %v1520 = vld [vmem:[%s1517 + $0x10] sm:$0xff]
        %v1521 = vld [vmem:[%s1517 + $0x18] sm:$0xff]
        %v1522 = vld [vmem:[%s1517 + $0x20] sm:$0xff]
        %v1523 = vld [vmem:[%s1517 + $0x28] sm:$0xff]
        %v1524 = vld [vmem:[%s1517 + $0x30] sm:$0xff]
        %v1525 = vld [vmem:[%s1517 + $0x38] sm:$0xff]
        %v1526 = vld [vmem:[%s1517 + $0x48] sm:$0xff]
        %v1527 = vld [vmem:[%s1517 + $0x50] sm:$0xff]
        %v1528 = vld [vmem:[%s1517 + $0x58] sm:$0xff]
        %v1529 = vld [vmem:[%s1517 + $0x60] sm:$0xff]
        %v1530 = vld [vmem:[%s1517 + $0x68] sm:$0xff]
        %v1531 = vld [vmem:[%s1517 + $0x70] sm:$0xff]
        %v1532 = vld [vmem:[%s1517 + $0x78] sm:$0xff]
        %v1533 = vld [vmem:[%s1517 + $0x80] sm:$0xff]
        %v1534 = vpack.c.bf16 %v1519, %v1518
        %v1535 = vpack.c.bf16 %v1521, %v1520
        %v1536 = vpack.c.bf16 %v1523, %v1522
        %v1537 = vpack.c.bf16 %v1525, %v1524
        %v1538 = vpack.c.bf16 %v1527, %v1526
        %v1539 = vpack.c.bf16 %v1529, %v1528
        %v1540 = vpack.c.bf16 %v1531, %v1530
        %v1541 = vpack.c.bf16 %v1533, %v1532
        %s1542 = scalar_lea.vmem %s3, 12
        %v1543 = vld [vmem:[%s1542] sm:$0x3]
        %v1545 = vsel %vm595, %v1534, 0
        %v1548 = vsel %vm595, %v1535, 0
        %v1551 = vsel %vm595, %v1536, 0
        %v1554 = vsel %vm595, %v1537, 0
        %v1557 = vsel %vm595, %v1538, 0
        %v1560 = vsel %vm595, %v1539, 0
        %v1563 = vsel %vm595, %v1540, 0
        %v1566 = vsel %vm595, %v1541, 0
        %v1569 = vand.u32 %v1543, %v623
        %1571 = vmatprep.subr.bf16.mxu0 0
        %1572 = vmatpush1.bf16.msra.mxu0 %v1569
        %1573 = vmatprep.subr.bf16.mxu0 0
        %1574 = vmatpush1.bf16.msra.mxu0 0
        %1575 = vmatprep.subr.bf16.mxu0 0
        %1576 = vmatpush1.bf16.msra.mxu0 0
        %1577 = vmatprep.subr.bf16.mxu0 0
        %1578 = vmatpush1.bf16.msra.mxu0 0
        %1579 = vmatprep.subr.bf16.mxu0 0
        %1580 = vmatpush1.bf16.msra.mxu0 0
        %1581 = vmatprep.subr.bf16.mxu0 0
        %1582 = vmatpush1.bf16.msra.mxu0 0
        %1583 = vmatprep.subr.bf16.mxu0 0
        %1584 = vmatpush1.bf16.msra.mxu0 0
        %1585 = vmatprep.subr.bf16.mxu0 0
        %1586 = vmatpush1.bf16.msra.mxu0 0
        %1587 = vmatprep.subr.bf16.mxu0 0
        %1588 = vmatpush1.bf16.msra.mxu0 0
        %1589 = vmatprep.subr.bf16.mxu0 0
        %1590 = vmatpush1.bf16.msra.mxu0 0
        %1591 = vmatprep.subr.bf16.mxu0 0
        %1592 = vmatpush1.bf16.msra.mxu0 0
        %1593 = vmatprep.subr.bf16.mxu0 0
        %1594 = vmatpush1.bf16.msra.mxu0 0
        %1595 = vmatprep.subr.bf16.mxu0 0
        %1596 = vmatpush1.bf16.msra.mxu0 0
        %1597 = vmatprep.subr.bf16.mxu0 0
        %1598 = vmatpush1.bf16.msra.mxu0 0
        %1599 = vmatprep.subr.bf16.mxu0 0
        %1600 = vmatpush1.bf16.msra.mxu0 0
        %1601 = vmatprep.subr.bf16.mxu0 0
        %1602 = vmatpush1.bf16.msra.mxu0 0
        %1603 = vmatprep.mubr.bf16.mxu0 0
        %1604 = vmatmul.mubr.bf16.gmra.mrb[0].mxu0 %v1545
        %v1605 = vpop.f32.mrb[0].mxu0
        %v1606 = vadd.f32 0.0, %v1605
        %v1607 = vpop.f32.mrb[0].mxu0
        %v1608 = vpop.f32.mrb[0].mxu0
        %v1609 = vadd.f32 0.0, %v1608
        %v1610 = vpop.f32.mrb[0].mxu0
        %1611 = vmatprep.mubr.bf16.mxu0 0
        %1612 = vmatmul.mubr.bf16.gmra.mrb[0].mxu0 %v1548
        %v1613 = vpop.f32.mrb[0].mxu0
        %v1614 = vadd.f32 0.0, %v1613
        %v1615 = vpop.f32.mrb[0].mxu0
        %v1616 = vpop.f32.mrb[0].mxu0
        %v1617 = vadd.f32 0.0, %v1616
        %v1618 = vpop.f32.mrb[0].mxu0
        %1619 = vmatprep.mubr.bf16.mxu0 0
        %1620 = vmatmul.mubr.bf16.gmra.mrb[0].mxu0 %v1551
        %v1621 = vpop.f32.mrb[0].mxu0
        %v1622 = vadd.f32 0.0, %v1621
        %v1623 = vpop.f32.mrb[0].mxu0
        %v1624 = vpop.f32.mrb[0].mxu0
        %v1625 = vadd.f32 0.0, %v1624
        %v1626 = vpop.f32.mrb[0].mxu0
        %1627 = vmatprep.mubr.bf16.mxu0 0
        %1628 = vmatmul.mubr.bf16.gmra.mrb[0].mxu0 %v1554
        %v1629 = vpop.f32.mrb[0].mxu0
        %v1630 = vadd.f32 0.0, %v1629
        %v1631 = vpop.f32.mrb[0].mxu0
        %v1632 = vpop.f32.mrb[0].mxu0
        %v1633 = vadd.f32 0.0, %v1632
        %v1634 = vpop.f32.mrb[0].mxu0
        %1635 = vmatprep.mubr.bf16.mxu0 0
        %1636 = vmatmul.mubr.bf16.gmra.mrb[0].mxu0 %v1557
        %v1637 = vpop.f32.mrb[0].mxu0
        %v1638 = vadd.f32 0.0, %v1637
        %v1639 = vpop.f32.mrb[0].mxu0
        %v1640 = vpop.f32.mrb[0].mxu0
        %v1641 = vadd.f32 0.0, %v1640
        %v1642 = vpop.f32.mrb[0].mxu0
        %1643 = vmatprep.mubr.bf16.mxu0 0
        %1644 = vmatmul.mubr.bf16.gmra.mrb[0].mxu0 %v1560
        %v1645 = vpop.f32.mrb[0].mxu0
        %v1646 = vadd.f32 0.0, %v1645
        %v1647 = vpop.f32.mrb[0].mxu0
        %v1648 = vpop.f32.mrb[0].mxu0
        %v1649 = vadd.f32 0.0, %v1648
        %v1650 = vpop.f32.mrb[0].mxu0
        %1651 = vmatprep.mubr.bf16.mxu0 0
        %1652 = vmatmul.mubr.bf16.gmra.mrb[0].mxu0 %v1563
        %v1653 = vpop.f32.mrb[0].mxu0
        %v1654 = vadd.f32 0.0, %v1653
        %v1655 = vpop.f32.mrb[0].mxu0
        %v1656 = vpop.f32.mrb[0].mxu0
        %v1657 = vadd.f32 0.0, %v1656
        %v1658 = vpop.f32.mrb[0].mxu0
        %1659 = vmatprep.mubr.bf16.mxu0 0
        %1660 = vmatmul.mubr.bf16.gmra.mrb[0].mxu0 %v1566
        %v1661 = vpop.f32.mrb[0].mxu0
        %v1662 = vadd.f32 0.0, %v1661
        %v1663 = vpop.f32.mrb[0].mxu0
        %v1664 = vpop.f32.mrb[0].mxu0
        %v1665 = vadd.f32 0.0, %v1664
        %v1666 = vpop.f32.mrb[0].mxu0
        %1667 = vdwg.mxu0
        %v1668 = vadd.f32 %v1499, %v1606
        %v1669 = vadd.f32 %v1500, %v1609
        %v1670 = vadd.f32 %v1501, %v1614
        %v1671 = vadd.f32 %v1502, %v1617
        %v1672 = vadd.f32 %v1503, %v1622
        %v1673 = vadd.f32 %v1504, %v1625
        %v1674 = vadd.f32 %v1505, %v1630
        %v1675 = vadd.f32 %v1506, %v1633
        %v1676 = vadd.f32 %v1507, %v1638
        %v1677 = vadd.f32 %v1508, %v1641
        %v1678 = vadd.f32 %v1509, %v1646
        %v1679 = vadd.f32 %v1510, %v1649
        %v1680 = vadd.f32 %v1511, %v1654
        %v1681 = vadd.f32 %v1512, %v1657
        %v1682 = vadd.f32 %v1513, %v1662
        %v1683 = vadd.f32 %v1514, %v1665
        %v1684 = vld [vmem:[%s1517 + $0x1] sm:$0xff]
        %v1685 = vld [vmem:[%s1517 + $0x9] sm:$0xff]
        %v1686 = vld [vmem:[%s1517 + $0x11] sm:$0xff]
        %v1687 = vld [vmem:[%s1517 + $0x19] sm:$0xff]
        %v1688 = vld [vmem:[%s1517 + $0x21] sm:$0xff]
        %v1689 = vld [vmem:[%s1517 + $0x29] sm:$0xff]
        %v1690 = vld [vmem:[%s1517 + $0x31] sm:$0xff]
        %v1691 = vld [vmem:[%s1517 + $0x39] sm:$0xff]
        %v1692 = vld [vmem:[%s1517 + $0x49] sm:$0xff]
        %v1693 = vld [vmem:[%s1517 + $0x51] sm:$0xff]
        %v1694 = vld [vmem:[%s1517 + $0x59] sm:$0xff]
        %v1695 = vld [vmem:[%s1517 + $0x61] sm:$0xff]
        %v1696 = vld [vmem:[%s1517 + $0x69] sm:$0xff]
        %v1697 = vld [vmem:[%s1517 + $0x71] sm:$0xff]
        %v1698 = vld [vmem:[%s1517 + $0x79] sm:$0xff]
        %v1699 = vld [vmem:[%s1517 + $0x81] sm:$0xff]
        %v1700 = vpack.c.bf16 %v1685, %v1684
        %v1701 = vpack.c.bf16 %v1687, %v1686
        %v1702 = vpack.c.bf16 %v1689, %v1688
        %v1703 = vpack.c.bf16 %v1691, %v1690
        %v1704 = vpack.c.bf16 %v1693, %v1692
        %v1705 = vpack.c.bf16 %v1695, %v1694
        %v1706 = vpack.c.bf16 %v1697, %v1696
        %v1707 = vpack.c.bf16 %v1699, %v1698
        %s1708 = scalar_lea.vmem %s3, 14
        %v1709 = vld [vmem:[%s1708] sm:$0x3]
        %v1711 = vsel %vm595, %v1700, 0
        %v1714 = vsel %vm595, %v1701, 0
        %v1717 = vsel %vm595, %v1702, 0
        %v1720 = vsel %vm595, %v1703, 0
        %v1723 = vsel %vm595, %v1704, 0
        %v1726 = vsel %vm595, %v1705, 0
        %v1729 = vsel %vm595, %v1706, 0
        %v1732 = vsel %vm595, %v1707, 0
        %v1735 = vand.u32 %v1709, %v623
        %1737 = vmatprep.subr.bf16.mxu0 0
        %1738 = vmatpush1.bf16.msra.mxu0 %v1735
        %1739 = vmatprep.subr.bf16.mxu0 0
        %1740 = vmatpush1.bf16.msra.mxu0 0
        %1741 = vmatprep.subr.bf16.mxu0 0
        %1742 = vmatpush1.bf16.msra.mxu0 0
        %1743 = vmatprep.subr.bf16.mxu0 0
        %1744 = vmatpush1.bf16.msra.mxu0 0
        %1745 = vmatprep.subr.bf16.mxu0 0
        %1746 = vmatpush1.bf16.msra.mxu0 0
        %1747 = vmatprep.subr.bf16.mxu0 0
        %1748 = vmatpush1.bf16.msra.mxu0 0
        %1749 = vmatprep.subr.bf16.mxu0 0
        %1750 = vmatpush1.bf16.msra.mxu0 0
        %1751 = vmatprep.subr.bf16.mxu0 0
        %1752 = vmatpush1.bf16.msra.mxu0 0
        %1753 = vmatprep.subr.bf16.mxu0 0
        %1754 = vmatpush1.bf16.msra.mxu0 0
        %1755 = vmatprep.subr.bf16.mxu0 0
        %1756 = vmatpush1.bf16.msra.mxu0 0
        %1757 = vmatprep.subr.bf16.mxu0 0
        %1758 = vmatpush1.bf16.msra.mxu0 0
        %1759 = vmatprep.subr.bf16.mxu0 0
        %1760 = vmatpush1.bf16.msra.mxu0 0
        %1761 = vmatprep.subr.bf16.mxu0 0
        %1762 = vmatpush1.bf16.msra.mxu0 0
        %1763 = vmatprep.subr.bf16.mxu0 0
        %1764 = vmatpush1.bf16.msra.mxu0 0
        %1765 = vmatprep.subr.bf16.mxu0 0
        %1766 = vmatpush1.bf16.msra.mxu0 0
        %1767 = vmatprep.subr.bf16.mxu0 0
        %1768 = vmatpush1.bf16.msra.mxu0 0
        %1769 = vmatprep.mubr.bf16.mxu0 0
        %1770 = vmatmul.mubr.bf16.gmra.mrb[0].mxu0 %v1711
        %v1771 = vpop.f32.mrb[0].mxu0
        %v1772 = vadd.f32 0.0, %v1771
        %v1773 = vpop.f32.mrb[0].mxu0
        %v1774 = vpop.f32.mrb[0].mxu0
        %v1775 = vadd.f32 0.0, %v1774
        %v1776 = vpop.f32.mrb[0].mxu0
        %1777 = vmatprep.mubr.bf16.mxu0 0
        %1778 = vmatmul.mubr.bf16.gmra.mrb[0].mxu0 %v1714
        %v1779 = vpop.f32.mrb[0].mxu0
        %v1780 = vadd.f32 0.0, %v1779
        %v1781 = vpop.f32.mrb[0].mxu0
        %v1782 = vpop.f32.mrb[0].mxu0
        %v1783 = vadd.f32 0.0, %v1782
        %v1784 = vpop.f32.mrb[0].mxu0
        %1785 = vmatprep.mubr.bf16.mxu0 0
        %1786 = vmatmul.mubr.bf16.gmra.mrb[0].mxu0 %v1717
        %v1787 = vpop.f32.mrb[0].mxu0
        %v1788 = vadd.f32 0.0, %v1787
        %v1789 = vpop.f32.mrb[0].mxu0
        %v1790 = vpop.f32.mrb[0].mxu0
        %v1791 = vadd.f32 0.0, %v1790
        %v1792 = vpop.f32.mrb[0].mxu0
        %1793 = vmatprep.mubr.bf16.mxu0 0
        %1794 = vmatmul.mubr.bf16.gmra.mrb[0].mxu0 %v1720
        %v1795 = vpop.f32.mrb[0].mxu0
        %v1796 = vadd.f32 0.0, %v1795
        %v1797 = vpop.f32.mrb[0].mxu0
        %v1798 = vpop.f32.mrb[0].mxu0
        %v1799 = vadd.f32 0.0, %v1798
        %v1800 = vpop.f32.mrb[0].mxu0
        %1801 = vmatprep.mubr.bf16.mxu0 0
        %1802 = vmatmul.mubr.bf16.gmra.mrb[0].mxu0 %v1723
        %v1803 = vpop.f32.mrb[0].mxu0
        %v1804 = vadd.f32 0.0, %v1803
        %v1805 = vpop.f32.mrb[0].mxu0
        %v1806 = vpop.f32.mrb[0].mxu0
        %v1807 = vadd.f32 0.0, %v1806
        %v1808 = vpop.f32.mrb[0].mxu0
        %1809 = vmatprep.mubr.bf16.mxu0 0
        %1810 = vmatmul.mubr.bf16.gmra.mrb[0].mxu0 %v1726
        %v1811 = vpop.f32.mrb[0].mxu0
        %v1812 = vadd.f32 0.0, %v1811
        %v1813 = vpop.f32.mrb[0].mxu0
        %v1814 = vpop.f32.mrb[0].mxu0
        %v1815 = vadd.f32 0.0, %v1814
        %v1816 = vpop.f32.mrb[0].mxu0
        %1817 = vmatprep.mubr.bf16.mxu0 0
        %1818 = vmatmul.mubr.bf16.gmra.mrb[0].mxu0 %v1729
        %v1819 = vpop.f32.mrb[0].mxu0
        %v1820 = vadd.f32 0.0, %v1819
        %v1821 = vpop.f32.mrb[0].mxu0
        %v1822 = vpop.f32.mrb[0].mxu0
        %v1823 = vadd.f32 0.0, %v1822
        %v1824 = vpop.f32.mrb[0].mxu0
        %1825 = vmatprep.mubr.bf16.mxu0 0
        %1826 = vmatmul.mubr.bf16.gmra.mrb[0].mxu0 %v1732
        %v1827 = vpop.f32.mrb[0].mxu0
        %v1828 = vadd.f32 0.0, %v1827
        %v1829 = vpop.f32.mrb[0].mxu0
        %v1830 = vpop.f32.mrb[0].mxu0
        %v1831 = vadd.f32 0.0, %v1830
        %v1832 = vpop.f32.mrb[0].mxu0
        %1833 = vdwg.mxu0
        %v1834 = vadd.f32 %v1668, %v1772
        %v1835 = vadd.f32 %v1669, %v1775
        %v1836 = vadd.f32 %v1670, %v1780
        %v1837 = vadd.f32 %v1671, %v1783
        %v1838 = vadd.f32 %v1672, %v1788
        %v1839 = vadd.f32 %v1673, %v1791
        %v1840 = vadd.f32 %v1674, %v1796
        %v1841 = vadd.f32 %v1675, %v1799
        %v1842 = vadd.f32 %v1676, %v1804
        %v1843 = vadd.f32 %v1677, %v1807
        %v1844 = vadd.f32 %v1678, %v1812
        %v1845 = vadd.f32 %v1679, %v1815
        %v1846 = vadd.f32 %v1680, %v1820
        %v1847 = vadd.f32 %v1681, %v1823
        %v1848 = vadd.f32 %v1682, %v1828
        %v1849 = vadd.f32 %v1683, %v1831
        %v1850 = vld [vmem:[%s1517 + $0x2] sm:$0xff]
        %v1851 = vld [vmem:[%s1517 + $0xa] sm:$0xff]
        %v1852 = vld [vmem:[%s1517 + $0x12] sm:$0xff]
        %v1853 = vld [vmem:[%s1517 + $0x1a] sm:$0xff]
        %v1854 = vld [vmem:[%s1517 + $0x22] sm:$0xff]
        %v1855 = vld [vmem:[%s1517 + $0x2a] sm:$0xff]
        %v1856 = vld [vmem:[%s1517 + $0x32] sm:$0xff]
        %v1857 = vld [vmem:[%s1517 + $0x3a] sm:$0xff]
        %v1858 = vld [vmem:[%s1517 + $0x4a] sm:$0xff]
        %v1859 = vld [vmem:[%s1517 + $0x52] sm:$0xff]
        %v1860 = vld [vmem:[%s1517 + $0x5a] sm:$0xff]
        %v1861 = vld [vmem:[%s1517 + $0x62] sm:$0xff]
        %v1862 = vld [vmem:[%s1517 + $0x6a] sm:$0xff]
        %v1863 = vld [vmem:[%s1517 + $0x72] sm:$0xff]
        %v1864 = vld [vmem:[%s1517 + $0x7a] sm:$0xff]
        %v1865 = vld [vmem:[%s1517 + $0x82] sm:$0xff]
        %v1866 = vpack.c.bf16 %v1851, %v1850
        %v1867 = vpack.c.bf16 %v1853, %v1852
        %v1868 = vpack.c.bf16 %v1855, %v1854
        %v1869 = vpack.c.bf16 %v1857, %v1856
        %v1870 = vpack.c.bf16 %v1859, %v1858
        %v1871 = vpack.c.bf16 %v1861, %v1860
        %v1872 = vpack.c.bf16 %v1863, %v1862
        %v1873 = vpack.c.bf16 %v1865, %v1864
        %s1874 = scalar_lea.vmem %s3, 16
        %v1875 = vld [vmem:[%s1874] sm:$0x3]
        %v1877 = vsel %vm595, %v1866, 0
        %v1880 = vsel %vm595, %v1867, 0
        %v1883 = vsel %vm595, %v1868, 0
        %v1886 = vsel %vm595, %v1869, 0
        %v1889 = vsel %vm595, %v1870, 0
        %v1892 = vsel %vm595, %v1871, 0
        %v1895 = vsel %vm595, %v1872, 0
        %v1898 = vsel %vm595, %v1873, 0
        %v1901 = vand.u32 %v1875, %v623
        %1903 = vmatprep.subr.bf16.mxu0 0
        %1904 = vmatpush1.bf16.msra.mxu0 %v1901
        %1905 = vmatprep.subr.bf16.mxu0 0
        %1906 = vmatpush1.bf16.msra.mxu0 0
        %1907 = vmatprep.subr.bf16.mxu0 0
        %1908 = vmatpush1.bf16.msra.mxu0 0
        %1909 = vmatprep.subr.bf16.mxu0 0
        %1910 = vmatpush1.bf16.msra.mxu0 0
        %1911 = vmatprep.subr.bf16.mxu0 0
        %1912 = vmatpush1.bf16.msra.mxu0 0
        %1913 = vmatprep.subr.bf16.mxu0 0
        %1914 = vmatpush1.bf16.msra.mxu0 0
        %1915 = vmatprep.subr.bf16.mxu0 0
        %1916 = vmatpush1.bf16.msra.mxu0 0
        %1917 = vmatprep.subr.bf16.mxu0 0
        %1918 = vmatpush1.bf16.msra.mxu0 0
        %1919 = vmatprep.subr.bf16.mxu0 0
        %1920 = vmatpush1.bf16.msra.mxu0 0
        %1921 = vmatprep.subr.bf16.mxu0 0
        %1922 = vmatpush1.bf16.msra.mxu0 0
        %1923 = vmatprep.subr.bf16.mxu0 0
        %1924 = vmatpush1.bf16.msra.mxu0 0
        %1925 = vmatprep.subr.bf16.mxu0 0
        %1926 = vmatpush1.bf16.msra.mxu0 0
        %1927 = vmatprep.subr.bf16.mxu0 0
        %1928 = vmatpush1.bf16.msra.mxu0 0
        %1929 = vmatprep.subr.bf16.mxu0 0
        %1930 = vmatpush1.bf16.msra.mxu0 0
        %1931 = vmatprep.subr.bf16.mxu0 0
        %1932 = vmatpush1.bf16.msra.mxu0 0
        %1933 = vmatprep.subr.bf16.mxu0 0
        %1934 = vmatpush1.bf16.msra.mxu0 0
        %1935 = vmatprep.mubr.bf16.mxu0 0
        %1936 = vmatmul.mubr.bf16.gmra.mrb[0].mxu0 %v1877
        %v1937 = vpop.f32.mrb[0].mxu0
        %v1938 = vadd.f32 0.0, %v1937
        %v1939 = vpop.f32.mrb[0].mxu0
        %v1940 = vpop.f32.mrb[0].mxu0
        %v1941 = vadd.f32 0.0, %v1940
        %v1942 = vpop.f32.mrb[0].mxu0
        %1943 = vmatprep.mubr.bf16.mxu0 0
        %1944 = vmatmul.mubr.bf16.gmra.mrb[0].mxu0 %v1880
        %v1945 = vpop.f32.mrb[0].mxu0
        %v1946 = vadd.f32 0.0, %v1945
        %v1947 = vpop.f32.mrb[0].mxu0
        %v1948 = vpop.f32.mrb[0].mxu0
        %v1949 = vadd.f32 0.0, %v1948
        %v1950 = vpop.f32.mrb[0].mxu0
        %1951 = vmatprep.mubr.bf16.mxu0 0
        %1952 = vmatmul.mubr.bf16.gmra.mrb[0].mxu0 %v1883
        %v1953 = vpop.f32.mrb[0].mxu0
        %v1954 = vadd.f32 0.0, %v1953
        %v1955 = vpop.f32.mrb[0].mxu0
        %v1956 = vpop.f32.mrb[0].mxu0
        %v1957 = vadd.f32 0.0, %v1956
        %v1958 = vpop.f32.mrb[0].mxu0
        %1959 = vmatprep.mubr.bf16.mxu0 0
        %1960 = vmatmul.mubr.bf16.gmra.mrb[0].mxu0 %v1886
        %v1961 = vpop.f32.mrb[0].mxu0
        %v1962 = vadd.f32 0.0, %v1961
        %v1963 = vpop.f32.mrb[0].mxu0
        %v1964 = vpop.f32.mrb[0].mxu0
        %v1965 = vadd.f32 0.0, %v1964
        %v1966 = vpop.f32.mrb[0].mxu0
        %1967 = vmatprep.mubr.bf16.mxu0 0
        %1968 = vmatmul.mubr.bf16.gmra.mrb[0].mxu0 %v1889
        %v1969 = vpop.f32.mrb[0].mxu0
        %v1970 = vadd.f32 0.0, %v1969
        %v1971 = vpop.f32.mrb[0].mxu0
        %v1972 = vpop.f32.mrb[0].mxu0
        %v1973 = vadd.f32 0.0, %v1972
        %v1974 = vpop.f32.mrb[0].mxu0
        %1975 = vmatprep.mubr.bf16.mxu0 0
        %1976 = vmatmul.mubr.bf16.gmra.mrb[0].mxu0 %v1892
        %v1977 = vpop.f32.mrb[0].mxu0
        %v1978 = vadd.f32 0.0, %v1977
        %v1979 = vpop.f32.mrb[0].mxu0
        %v1980 = vpop.f32.mrb[0].mxu0
        %v1981 = vadd.f32 0.0, %v1980
        %v1982 = vpop.f32.mrb[0].mxu0
        %1983 = vmatprep.mubr.bf16.mxu0 0
        %1984 = vmatmul.mubr.bf16.gmra.mrb[0].mxu0 %v1895
        %v1985 = vpop.f32.mrb[0].mxu0
        %v1986 = vadd.f32 0.0, %v1985
        %v1987 = vpop.f32.mrb[0].mxu0
        %v1988 = vpop.f32.mrb[0].mxu0
        %v1989 = vadd.f32 0.0, %v1988
        %v1990 = vpop.f32.mrb[0].mxu0
        %1991 = vmatprep.mubr.bf16.mxu0 0
        %1992 = vmatmul.mubr.bf16.gmra.mrb[0].mxu0 %v1898
        %v1993 = vpop.f32.mrb[0].mxu0
        %v1994 = vadd.f32 0.0, %v1993
        %v1995 = vpop.f32.mrb[0].mxu0
        %v1996 = vpop.f32.mrb[0].mxu0
        %v1997 = vadd.f32 0.0, %v1996
        %v1998 = vpop.f32.mrb[0].mxu0
        %1999 = vdwg.mxu0
        %v2000 = vadd.f32 %v1834, %v1938
        %v2001 = vadd.f32 %v1835, %v1941
        %v2002 = vadd.f32 %v1836, %v1946
        %v2003 = vadd.f32 %v1837, %v1949
        %v2004 = vadd.f32 %v1838, %v1954
        %v2005 = vadd.f32 %v1839, %v1957
        %v2006 = vadd.f32 %v1840, %v1962
        %v2007 = vadd.f32 %v1841, %v1965
        %v2008 = vadd.f32 %v1842, %v1970
        %v2009 = vadd.f32 %v1843, %v1973
        %v2010 = vadd.f32 %v1844, %v1978
        %v2011 = vadd.f32 %v1845, %v1981
        %v2012 = vadd.f32 %v1846, %v1986
        %v2013 = vadd.f32 %v1847, %v1989
        %v2014 = vadd.f32 %v1848, %v1994
        %v2015 = vadd.f32 %v1849, %v1997
        %v2017 = vlaneseq
        %v2018 = vshrl.u32 %v2017, 7
        %v2019 = vsub.s32 0, %v2018
        %v2020 = vrot.slane %v533, %v2019
        %v2022 = vmul.f32 %v2000, %v2020
        %v2023 = vmul.f32 %v2001, %v2020
        %v2024 = vmul.f32 %v2002, %v2020
        %v2025 = vmul.f32 %v2003, %v2020
        %v2026 = vmul.f32 %v2004, %v2020
        %v2027 = vmul.f32 %v2005, %v2020
        %v2028 = vmul.f32 %v2006, %v2020
        %v2029 = vmul.f32 %v2007, %v2020
        %v2030 = vmul.f32 %v2008, %v2020
        %v2031 = vmul.f32 %v2009, %v2020
        %v2032 = vmul.f32 %v2010, %v2020
        %v2033 = vmul.f32 %v2011, %v2020
        %v2034 = vmul.f32 %v2012, %v2020
        %v2035 = vmul.f32 %v2013, %v2020
        %v2036 = vmul.f32 %v2014, %v2020
        %v2037 = vmul.f32 %v2015, %v2020
        %v2039 = vlaneseq
        %v2040 = vshrl.u32 %v2039, 7
        %v2041 = vsub.s32 0, %v2040
        %v2042 = vrot.slane %v534, %v2041
        %v2044 = vadd.f32 %v2022, %v2042
        %v2045 = vadd.f32 %v2023, %v2042
        %v2046 = vadd.f32 %v2024, %v2042
        %v2047 = vadd.f32 %v2025, %v2042
        %v2048 = vadd.f32 %v2026, %v2042
        %v2049 = vadd.f32 %v2027, %v2042
        %v2050 = vadd.f32 %v2028, %v2042
        %v2051 = vadd.f32 %v2029, %v2042
        %v2052 = vadd.f32 %v2030, %v2042
        %v2053 = vadd.f32 %v2031, %v2042
        %v2054 = vadd.f32 %v2032, %v2042
        %v2055 = vadd.f32 %v2033, %v2042
        %v2056 = vadd.f32 %v2034, %v2042
        %v2057 = vadd.f32 %v2035, %v2042
        %v2058 = vadd.f32 %v2036, %v2042
        %v2059 = vadd.f32 %v2037, %v2042
        %v2060 = vmax.f32 %v2044, 0.0
        %v2061 = vmax.f32 %v2045, 0.0
        %v2062 = vmax.f32 %v2046, 0.0
        %v2063 = vmax.f32 %v2047, 0.0
        %v2064 = vmax.f32 %v2048, 0.0
        %v2065 = vmax.f32 %v2049, 0.0
        %v2066 = vmax.f32 %v2050, 0.0
        %v2067 = vmax.f32 %v2051, 0.0
        %v2068 = vmax.f32 %v2052, 0.0
        %v2069 = vmax.f32 %v2053, 0.0
        %v2070 = vmax.f32 %v2054, 0.0
        %v2071 = vmax.f32 %v2055, 0.0
        %v2072 = vmax.f32 %v2056, 0.0
        %v2073 = vmax.f32 %v2057, 0.0
        %v2074 = vmax.f32 %v2058, 0.0
        %v2075 = vmax.f32 %v2059, 0.0
        %v2076 = vmax.f32 %v2060, %v2068
        %v2077 = vmax.f32 %v2061, %v2069
        %v2078 = vmax.f32 %v2062, %v2070
        %v2079 = vmax.f32 %v2063, %v2071
        %v2080 = vmax.f32 %v2064, %v2072
        %v2081 = vmax.f32 %v2065, %v2073
        %v2082 = vmax.f32 %v2066, %v2074
        %v2083 = vmax.f32 %v2067, %v2075
        %v2085 = vsel %vm509, %v523, 0
        %v2088 = vsel %vm509, %v524, 0
        %v2091 = vsel %vm509, %v525, 0
        %v2094 = vsel %vm509, %v526, 0
        %v2097 = vsel %vm509, %v527, 0
        %2099 = vmatprep.subr.mxu0 0.0
        %2100 = vmatpush1.msra.mxu0 %v2076
        %2101 = vmatprep.subr.mxu0 0.0
        %2102 = vmatpush1.msra.mxu0 %v2077
        %2103 = vmatprep.subr.mxu0 0.0
        %2104 = vmatpush1.msra.mxu0 %v2078
        %2105 = vmatprep.subr.mxu0 0.0
        %2106 = vmatpush1.msra.mxu0 %v2079
        %2107 = vmatprep.subr.mxu0 0.0
        %2108 = vmatpush1.msra.mxu0 %v2080
        %2109 = vmatprep.subr.mxu0 0.0
        %2110 = vmatpush1.msra.mxu0 %v2081
        %2111 = vmatprep.subr.mxu0 0.0
        %2112 = vmatpush1.msra.mxu0 %v2082
        %2113 = vmatprep.subr.mxu0 0.0
        %2114 = vmatpush1.msra.mxu0 %v2083
        %2115 = vmatprep.subr.mxu0 0.0
        %2116 = vmatpush1.msra.mxu0 0.0
        %2117 = vmatprep.subr.mxu0 0.0
        %2118 = vmatpush1.msra.mxu0 0.0
        %2119 = vmatprep.subr.mxu0 0.0
        %2120 = vmatpush1.msra.mxu0 0.0
        %2121 = vmatprep.subr.mxu0 0.0
        %2122 = vmatpush1.msra.mxu0 0.0
        %2123 = vmatprep.subr.mxu0 0.0
        %2124 = vmatpush1.msra.mxu0 0.0
        %2125 = vmatprep.subr.mxu0 0.0
        %2126 = vmatpush1.msra.mxu0 0.0
        %2127 = vmatprep.subr.mxu0 0.0
        %2128 = vmatpush1.msra.mxu0 0.0
        %2129 = vmatprep.subr.mxu0 0.0
        %2130 = vmatpush1.msra.mxu0 0.0
        %2131 = vmatprep.subr.mxu0 0.0
        %2132 = vmatpush1.msra.mxu0 0.0
        %2133 = vmatprep.subr.mxu0 0.0
        %2134 = vmatpush1.msra.mxu0 0.0
        %2135 = vmatprep.subr.mxu0 0.0
        %2136 = vmatpush1.msra.mxu0 0.0
        %2137 = vmatprep.subr.mxu0 0.0
        %2138 = vmatpush1.msra.mxu0 0.0
        %2139 = vmatprep.subr.mxu0 0.0
        %2140 = vmatpush1.msra.mxu0 0.0
        %2141 = vmatprep.subr.mxu0 0.0
        %2142 = vmatpush1.msra.mxu0 0.0
        %2143 = vmatprep.subr.mxu0 0.0
        %2144 = vmatpush1.msra.mxu0 0.0
        %2145 = vmatprep.subr.mxu0 0.0
        %2146 = vmatpush1.msra.mxu0 0.0
        %2147 = vmatprep.subr.mxu0 0.0
        %2148 = vmatpush1.msra.mxu0 0.0
        %2149 = vmatprep.subr.mxu0 0.0
        %2150 = vmatpush1.msra.mxu0 0.0
        %2151 = vmatprep.subr.mxu0 0.0
        %2152 = vmatpush1.msra.mxu0 0.0
        %2153 = vmatprep.subr.mxu0 0.0
        %2154 = vmatpush1.msra.mxu0 0.0
        %2155 = vmatprep.subr.mxu0 0.0
        %2156 = vmatpush1.msra.mxu0 0.0
        %2157 = vmatprep.subr.mxu0 0.0
        %2158 = vmatpush1.msra.mxu0 0.0
        %2159 = vmatprep.subr.mxu0 0.0
        %2160 = vmatpush1.msra.mxu0 0.0
        %2161 = vmatprep.subr.mxu0 0.0
        %2162 = vmatpush1.msra.mxu0 0.0
        %2163 = vmatprep.mubr.f32.mxu0 0.0
        %2164 = vmatmul.mubr.f32.gmra.mrb[0].mxu0 %v2085
        %v2165 = vpop.f32.mrb[0].mxu0
        %v2166 = vadd.f32 0.0, %v2165
        %v2167 = vpop.f32.mrb[0].mxu0
        %2168 = vmatprep.mubr.f32.mxu0 0.0
        %2169 = vmatmul.mubr.f32.gmra.mrb[0].mxu0 %v2088
        %v2170 = vpop.f32.mrb[0].mxu0
        %v2171 = vadd.f32 0.0, %v2170
        %v2172 = vpop.f32.mrb[0].mxu0
        %2173 = vmatprep.mubr.f32.mxu0 0.0
        %2174 = vmatmul.mubr.f32.gmra.mrb[0].mxu0 %v2091
        %v2175 = vpop.f32.mrb[0].mxu0
        %v2176 = vadd.f32 0.0, %v2175
        %v2177 = vpop.f32.mrb[0].mxu0
        %2178 = vmatprep.mubr.f32.mxu0 0.0
        %2179 = vmatmul.mubr.f32.gmra.mrb[0].mxu0 %v2094
        %v2180 = vpop.f32.mrb[0].mxu0
        %v2181 = vadd.f32 0.0, %v2180
        %v2182 = vpop.f32.mrb[0].mxu0
        %2183 = vmatprep.mubr.f32.mxu0 0.0
        %2184 = vmatmul.mubr.f32.gmra.mrb[0].mxu0 %v2097
        %v2185 = vpop.f32.mrb[0].mxu0
        %v2186 = vadd.f32 0.0, %v2185
        %v2187 = vpop.f32.mrb[0].mxu0
        %2188 = vdwg.mxu0
        %v2190 = vsel %vm509, %v528, 0
        %v2193 = vsel %vm509, %v529, 0
        %v2196 = vsel %vm509, %v530, 0
        %v2199 = vsel %vm509, %v531, 0
        %v2202 = vsel %vm509, %v532, 0
        %2204 = vmatprep.subr.mxu0 0.0
        %2205 = vmatpush1.msra.mxu0 %v2076
        %2206 = vmatprep.subr.mxu0 0.0
        %2207 = vmatpush1.msra.mxu0 %v2077
        %2208 = vmatprep.subr.mxu0 0.0
        %2209 = vmatpush1.msra.mxu0 %v2078
        %2210 = vmatprep.subr.mxu0 0.0
        %2211 = vmatpush1.msra.mxu0 %v2079
        %2212 = vmatprep.subr.mxu0 0.0
        %2213 = vmatpush1.msra.mxu0 %v2080
        %2214 = vmatprep.subr.mxu0 0.0
        %2215 = vmatpush1.msra.mxu0 %v2081
        %2216 = vmatprep.subr.mxu0 0.0
        %2217 = vmatpush1.msra.mxu0 %v2082
        %2218 = vmatprep.subr.mxu0 0.0
        %2219 = vmatpush1.msra.mxu0 %v2083
        %2220 = vmatprep.subr.mxu0 0.0
        %2221 = vmatpush1.msra.mxu0 0.0
        %2222 = vmatprep.subr.mxu0 0.0
        %2223 = vmatpush1.msra.mxu0 0.0
        %2224 = vmatprep.subr.mxu0 0.0
        %2225 = vmatpush1.msra.mxu0 0.0
        %2226 = vmatprep.subr.mxu0 0.0
        %2227 = vmatpush1.msra.mxu0 0.0
        %2228 = vmatprep.subr.mxu0 0.0
        %2229 = vmatpush1.msra.mxu0 0.0
        %2230 = vmatprep.subr.mxu0 0.0
        %2231 = vmatpush1.msra.mxu0 0.0
        %2232 = vmatprep.subr.mxu0 0.0
        %2233 = vmatpush1.msra.mxu0 0.0
        %2234 = vmatprep.subr.mxu0 0.0
        %2235 = vmatpush1.msra.mxu0 0.0
        %2236 = vmatprep.subr.mxu0 0.0
        %2237 = vmatpush1.msra.mxu0 0.0
        %2238 = vmatprep.subr.mxu0 0.0
        %2239 = vmatpush1.msra.mxu0 0.0
        %2240 = vmatprep.subr.mxu0 0.0
        %2241 = vmatpush1.msra.mxu0 0.0
        %2242 = vmatprep.subr.mxu0 0.0
        %2243 = vmatpush1.msra.mxu0 0.0
        %2244 = vmatprep.subr.mxu0 0.0
        %2245 = vmatpush1.msra.mxu0 0.0
        %2246 = vmatprep.subr.mxu0 0.0
        %2247 = vmatpush1.msra.mxu0 0.0
        %2248 = vmatprep.subr.mxu0 0.0
        %2249 = vmatpush1.msra.mxu0 0.0
        %2250 = vmatprep.subr.mxu0 0.0
        %2251 = vmatpush1.msra.mxu0 0.0
        %2252 = vmatprep.subr.mxu0 0.0
        %2253 = vmatpush1.msra.mxu0 0.0
        %2254 = vmatprep.subr.mxu0 0.0
        %2255 = vmatpush1.msra.mxu0 0.0
        %2256 = vmatprep.subr.mxu0 0.0
        %2257 = vmatpush1.msra.mxu0 0.0
        %2258 = vmatprep.subr.mxu0 0.0
        %2259 = vmatpush1.msra.mxu0 0.0
        %2260 = vmatprep.subr.mxu0 0.0
        %2261 = vmatpush1.msra.mxu0 0.0
        %2262 = vmatprep.subr.mxu0 0.0
        %2263 = vmatpush1.msra.mxu0 0.0
        %2264 = vmatprep.subr.mxu0 0.0
        %2265 = vmatpush1.msra.mxu0 0.0
        %2266 = vmatprep.subr.mxu0 0.0
        %2267 = vmatpush1.msra.mxu0 0.0
        %2268 = vmatprep.mubr.f32.mxu0 0.0
        %2269 = vmatmul.mubr.f32.gmra.mrb[0].mxu0 %v2190
        %v2270 = vpop.f32.mrb[0].mxu0
        %v2271 = vadd.f32 0.0, %v2270
        %v2272 = vpop.f32.mrb[0].mxu0
        %2273 = vmatprep.mubr.f32.mxu0 0.0
        %2274 = vmatmul.mubr.f32.gmra.mrb[0].mxu0 %v2193
        %v2275 = vpop.f32.mrb[0].mxu0
        %v2276 = vadd.f32 0.0, %v2275
        %v2277 = vpop.f32.mrb[0].mxu0
        %2278 = vmatprep.mubr.f32.mxu0 0.0
        %2279 = vmatmul.mubr.f32.gmra.mrb[0].mxu0 %v2196
        %v2280 = vpop.f32.mrb[0].mxu0
        %v2281 = vadd.f32 0.0, %v2280
        %v2282 = vpop.f32.mrb[0].mxu0
        %2283 = vmatprep.mubr.f32.mxu0 0.0
        %2284 = vmatmul.mubr.f32.gmra.mrb[0].mxu0 %v2199
        %v2285 = vpop.f32.mrb[0].mxu0
        %v2286 = vadd.f32 0.0, %v2285
        %v2287 = vpop.f32.mrb[0].mxu0
        %2288 = vmatprep.mubr.f32.mxu0 0.0
        %2289 = vmatmul.mubr.f32.gmra.mrb[0].mxu0 %v2202
        %v2290 = vpop.f32.mrb[0].mxu0
        %v2291 = vadd.f32 0.0, %v2290
        %v2292 = vpop.f32.mrb[0].mxu0
        %2293 = vdwg.mxu0
        %v2294 = vmax.f32 %v2166, %v2271
        %v2295 = vmax.f32 %v2171, %v2276
        %v2296 = vmax.f32 %v2176, %v2281
        %v2297 = vmax.f32 %v2181, %v2286
        %v2298 = vmax.f32 %v2186, %v2291
        %s2299 = sadd.s32 %s536, 1
        %s2300 = smul.u32 %s2299, 40
        %s2301 = scalar_lea.vmem [#allocation2], %s2300
        %2302 = vst.msk [vmem:[%s2301] sm:$0xff] %vm496, %v2294
        %2303 = vst.msk [vmem:[%s2301 + $0x8] sm:$0xff] %vm496, %v2295
        %2304 = vst.msk [vmem:[%s2301 + $0x10] sm:$0xff] %vm496, %v2296
        %2305 = vst.msk [vmem:[%s2301 + $0x18] sm:$0xff] %vm496, %v2297
        %2306 = vst.msk [vmem:[%s2301 + $0x20] sm:$0x3] %vm501, %v2298
      $region85: #{_lambda_.2} parent=79 // loop_footer
        %s540 = sadd.s32 1, %s536
      $region86: #{_lambda_.2} parent=79 // loop_footer_branch
        %535 = sbr.rel target = $region82
      $region87: #{_lambda_.2} parent=79 // loop_exit
        _
      %v2307 = vld [vmem:[%s1] sm:$0xff]
      %v2308 = vld [vmem:[%s1 + $0x8] sm:$0xff]
      %v2309 = vld [vmem:[%s1 + $0x10] sm:$0x3]
      %v2310 = vld [vmem:[%s2] sm:$0xff]
      %v2311 = vld [vmem:[%s2 + $0x8] sm:$0xff]
      %v2312 = vld [vmem:[%s2 + $0x10] sm:$0x3]
      %v2313 = vld [vmem:[%s7] sm:$0x1]
      %v2314 = vld [vmem:[%s8] sm:$0x1]
      loop: start=0, step=1, limit=16
      $region88: #{_lambda_.2} parent=79 // loop_pre_header
        _
      $region89: #{_lambda_.2} parent=79 // loop_header
        %s2316 = sphi 0, %s2320
        %p2317 = scmp.ge.s32.totalorder %s2316, 16
      $region90: #{_lambda_.2} parent=79 // loop_header_branch
        %2319 = sbr.rel (%p2317) target = $region94
      $region91: #{_lambda_.2} parent=79 // loop_body
        %s2321 = smul.u32 %s2316, 2
        %s2322 = smul.u32 %s2321, 40
        %s2323 = scalar_lea.vmem [#allocation2], %s2322
        %v2324 = vld [vmem:[%s2323] sm:$0xff]
        %v2325 = vld [vmem:[%s2323 + $0x8] sm:$0xff]
        %v2326 = vld [vmem:[%s2323 + $0x10] sm:$0xff]
        %v2327 = vld [vmem:[%s2323 + $0x18] sm:$0xff]
        %v2328 = vld [vmem:[%s2323 + $0x28] sm:$0xff]
        %v2329 = vld [vmem:[%s2323 + $0x30] sm:$0xff]
        %v2330 = vld [vmem:[%s2323 + $0x38] sm:$0xff]
        %v2331 = vld [vmem:[%s2323 + $0x40] sm:$0xff]
        %v2332 = vpack.c.bf16 %v2325, %v2324
        %v2333 = vpack.c.bf16 %v2327, %v2326
        %v2334 = vpack.c.bf16 %v2329, %v2328
        %v2335 = vpack.c.bf16 %v2331, %v2330
        %v2336 = vld [vmem:[%s6] sm:$0xf]
        %v2337 = vld [vmem:[%s6 + $0x4] sm:$0xf]
        %v2338 = vld [vmem:[%s6 + $0x8] sm:$0xf]
        %v2339 = vld [vmem:[%s6 + $0xc] sm:$0xf]
        %v2340 = vld [vmem:[%s2323 + $0x1] sm:$0xff]
        %v2341 = vld [vmem:[%s2323 + $0x9] sm:$0xff]
        %v2342 = vld [vmem:[%s2323 + $0x11] sm:$0xff]
        %v2343 = vld [vmem:[%s2323 + $0x19] sm:$0xff]
        %v2344 = vld [vmem:[%s2323 + $0x29] sm:$0xff]
        %v2345 = vld [vmem:[%s2323 + $0x31] sm:$0xff]
        %v2346 = vld [vmem:[%s2323 + $0x39] sm:$0xff]
        %v2347 = vld [vmem:[%s2323 + $0x41] sm:$0xff]
        %v2348 = vpack.c.bf16 %v2341, %v2340
        %v2349 = vpack.c.bf16 %v2343, %v2342
        %v2350 = vpack.c.bf16 %v2345, %v2344
        %v2351 = vpack.c.bf16 %v2347, %v2346
        %s2352 = scalar_lea.vmem %s6, 16
        %v2353 = vld [vmem:[%s2352] sm:$0xf]
        %v2354 = vld [vmem:[%s2352 + $0x4] sm:$0xf]
        %v2355 = vld [vmem:[%s2352 + $0x8] sm:$0xf]
        %v2356 = vld [vmem:[%s2352 + $0xc] sm:$0xf]
        %v2361 = vunpack.c.l.b16 %v2353
        %v2362 = vunpack.c.l.b16 %v2354
        %v2363 = vunpack.c.l.b16 %v2355
        %v2364 = vunpack.c.l.b16 %v2356
        %v2365 = vpack.c.b16 %v2362, %v2361
        %v2366 = vpack.c.b16 %v2364, %v2363
        %v2370 = vsel %vm496, %v2348, 0
        %v2373 = vsel %vm496, %v2349, 0
        %v2376 = vsel %vm496, %v2350, 0
        %v2379 = vsel %vm496, %v2351, 0
        %2381 = vmatprep.subr.bf16.mxu0 0
        %2382 = vmatpush1.bf16.msra.mxu0 %v2365
        %2383 = vmatprep.subr.bf16.mxu0 0
        %2384 = vmatpush1.bf16.msra.mxu0 %v2366
        %2385 = vmatprep.subr.bf16.mxu0 0
        %2386 = vmatpush1.bf16.msra.mxu0 0
        %2387 = vmatprep.subr.bf16.mxu0 0
        %2388 = vmatpush1.bf16.msra.mxu0 0
        %2389 = vmatprep.subr.bf16.mxu0 0
        %2390 = vmatpush1.bf16.msra.mxu0 0
        %2391 = vmatprep.subr.bf16.mxu0 0
        %2392 = vmatpush1.bf16.msra.mxu0 0
        %2393 = vmatprep.subr.bf16.mxu0 0
        %2394 = vmatpush1.bf16.msra.mxu0 0
        %2395 = vmatprep.subr.bf16.mxu0 0
        %2396 = vmatpush1.bf16.msra.mxu0 0
        %2397 = vmatprep.subr.bf16.mxu0 0
        %2398 = vmatpush1.bf16.msra.mxu0 0
        %2399 = vmatprep.subr.bf16.mxu0 0
        %2400 = vmatpush1.bf16.msra.mxu0 0
        %2401 = vmatprep.subr.bf16.mxu0 0
        %2402 = vmatpush1.bf16.msra.mxu0 0
        %2403 = vmatprep.subr.bf16.mxu0 0
        %2404 = vmatpush1.bf16.msra.mxu0 0
        %2405 = vmatprep.subr.bf16.mxu0 0
        %2406 = vmatpush1.bf16.msra.mxu0 0
        %2407 = vmatprep.subr.bf16.mxu0 0
        %2408 = vmatpush1.bf16.msra.mxu0 0
        %2409 = vmatprep.subr.bf16.mxu0 0
        %2410 = vmatpush1.bf16.msra.mxu0 0
        %2411 = vmatprep.subr.bf16.mxu0 0
        %2412 = vmatpush1.bf16.msra.mxu0 0
        %2413 = vmatprep.mubr.bf16.mxu0 0
        %2414 = vmatmul.mubr.bf16.gmra.mrb[0].mxu0 %v2370
        %v2415 = vpop.f32.mrb[0].mxu0
        %v2416 = vadd.f32 0.0, %v2415
        %v2417 = vpop.f32.mrb[0].mxu0
        %v2418 = vpop.f32.mrb[0].mxu0
        %v2419 = vadd.f32 0.0, %v2418
        %v2420 = vpop.f32.mrb[0].mxu0
        %2421 = vmatprep.mubr.bf16.mxu0 0
        %2422 = vmatmul.mubr.bf16.gmra.mrb[0].mxu0 %v2373
        %v2423 = vpop.f32.mrb[0].mxu0
        %v2424 = vadd.f32 0.0, %v2423
        %v2425 = vpop.f32.mrb[0].mxu0
        %v2426 = vpop.f32.mrb[0].mxu0
        %v2427 = vadd.f32 0.0, %v2426
        %v2428 = vpop.f32.mrb[0].mxu0
        %2429 = vmatprep.mubr.bf16.mxu0 0
        %2430 = vmatmul.mubr.bf16.gmra.mrb[0].mxu0 %v2376
        %v2431 = vpop.f32.mrb[0].mxu0
        %v2432 = vadd.f32 0.0, %v2431
        %v2433 = vpop.f32.mrb[0].mxu0
        %v2434 = vpop.f32.mrb[0].mxu0
        %v2435 = vadd.f32 0.0, %v2434
        %v2436 = vpop.f32.mrb[0].mxu0
        %2437 = vmatprep.mubr.bf16.mxu0 0
        %2438 = vmatmul.mubr.bf16.gmra.mrb[0].mxu0 %v2379
        %v2439 = vpop.f32.mrb[0].mxu0
        %v2440 = vadd.f32 0.0, %v2439
        %v2441 = vpop.f32.mrb[0].mxu0
        %v2442 = vpop.f32.mrb[0].mxu0
        %v2443 = vadd.f32 0.0, %v2442
        %v2444 = vpop.f32.mrb[0].mxu0
        %2445 = vdwg.mxu0
        %v2450 = vunpack.c.l.b16 %v2336
        %v2451 = vunpack.c.l.b16 %v2337
        %v2452 = vunpack.c.l.b16 %v2338
        %v2453 = vunpack.c.l.b16 %v2339
        %v2454 = vpack.c.b16 %v2451, %v2450
        %v2455 = vpack.c.b16 %v2453, %v2452
        %v2459 = vsel %vm496, %v2332, 0
        %v2462 = vsel %vm496, %v2333, 0
        %v2465 = vsel %vm496, %v2334, 0
        %v2468 = vsel %vm496, %v2335, 0
        %2470 = vmatprep.subr.bf16.mxu0 0
        %2471 = vmatpush1.bf16.msra.mxu0 %v2454
        %2472 = vmatprep.subr.bf16.mxu0 0
        %2473 = vmatpush1.bf16.msra.mxu0 %v2455
        %2474 = vmatprep.subr.bf16.mxu0 0
        %2475 = vmatpush1.bf16.msra.mxu0 0
        %2476 = vmatprep.subr.bf16.mxu0 0
        %2477 = vmatpush1.bf16.msra.mxu0 0
        %2478 = vmatprep.subr.bf16.mxu0 0
        %2479 = vmatpush1.bf16.msra.mxu0 0
        %2480 = vmatprep.subr.bf16.mxu0 0
        %2481 = vmatpush1.bf16.msra.mxu0 0
        %2482 = vmatprep.subr.bf16.mxu0 0
        %2483 = vmatpush1.bf16.msra.mxu0 0
        %2484 = vmatprep.subr.bf16.mxu0 0
        %2485 = vmatpush1.bf16.msra.mxu0 0
        %2486 = vmatprep.subr.bf16.mxu0 0
        %2487 = vmatpush1.bf16.msra.mxu0 0
        %2488 = vmatprep.subr.bf16.mxu0 0
        %2489 = vmatpush1.bf16.msra.mxu0 0
        %2490 = vmatprep.subr.bf16.mxu0 0
        %2491 = vmatpush1.bf16.msra.mxu0 0
        %2492 = vmatprep.subr.bf16.mxu0 0
        %2493 = vmatpush1.bf16.msra.mxu0 0
        %2494 = vmatprep.subr.bf16.mxu0 0
        %2495 = vmatpush1.bf16.msra.mxu0 0
        %2496 = vmatprep.subr.bf16.mxu0 0
        %2497 = vmatpush1.bf16.msra.mxu0 0
        %2498 = vmatprep.subr.bf16.mxu0 0
        %2499 = vmatpush1.bf16.msra.mxu0 0
        %2500 = vmatprep.subr.bf16.mxu0 0
        %2501 = vmatpush1.bf16.msra.mxu0 0
        %2502 = vmatprep.mubr.bf16.mxu0 0
        %2503 = vmatmul.mubr.bf16.gmra.mrb[0].mxu0 %v2459
        %v2504 = vpop.f32.mrb[0].mxu0
        %v2505 = vadd.f32 %v2416, %v2504
        %v2506 = vpop.f32.mrb[0].mxu0
        %v2507 = vpop.f32.mrb[0].mxu0
        %v2508 = vadd.f32 %v2419, %v2507
        %v2509 = vpop.f32.mrb[0].mxu0
        %2510 = vmatprep.mubr.bf16.mxu0 0
        %2511 = vmatmul.mubr.bf16.gmra.mrb[0].mxu0 %v2462
        %v2512 = vpop.f32.mrb[0].mxu0
        %v2513 = vadd.f32 %v2424, %v2512
        %v2514 = vpop.f32.mrb[0].mxu0
        %v2515 = vpop.f32.mrb[0].mxu0
        %v2516 = vadd.f32 %v2427, %v2515
        %v2517 = vpop.f32.mrb[0].mxu0
        %2518 = vmatprep.mubr.bf16.mxu0 0
        %2519 = vmatmul.mubr.bf16.gmra.mrb[0].mxu0 %v2465
        %v2520 = vpop.f32.mrb[0].mxu0
        %v2521 = vadd.f32 %v2432, %v2520
        %v2522 = vpop.f32.mrb[0].mxu0
        %v2523 = vpop.f32.mrb[0].mxu0
        %v2524 = vadd.f32 %v2435, %v2523
        %v2525 = vpop.f32.mrb[0].mxu0
        %2526 = vmatprep.mubr.bf16.mxu0 0
        %2527 = vmatmul.mubr.bf16.gmra.mrb[0].mxu0 %v2468
        %v2528 = vpop.f32.mrb[0].mxu0
        %v2529 = vadd.f32 %v2440, %v2528
        %v2530 = vpop.f32.mrb[0].mxu0
        %v2531 = vpop.f32.mrb[0].mxu0
        %v2532 = vadd.f32 %v2443, %v2531
        %v2533 = vpop.f32.mrb[0].mxu0
        %2534 = vdwg.mxu0
        %v2535 = vld [vmem:[%s2323 + $0x2] sm:$0xff]
        %v2536 = vld [vmem:[%s2323 + $0xa] sm:$0xff]
        %v2537 = vld [vmem:[%s2323 + $0x12] sm:$0xff]
        %v2538 = vld [vmem:[%s2323 + $0x1a] sm:$0xff]
        %v2539 = vld [vmem:[%s2323 + $0x2a] sm:$0xff]
        %v2540 = vld [vmem:[%s2323 + $0x32] sm:$0xff]
        %v2541 = vld [vmem:[%s2323 + $0x3a] sm:$0xff]
        %v2542 = vld [vmem:[%s2323 + $0x42] sm:$0xff]
        %v2543 = vpack.c.bf16 %v2536, %v2535
        %v2544 = vpack.c.bf16 %v2538, %v2537
        %v2545 = vpack.c.bf16 %v2540, %v2539
        %v2546 = vpack.c.bf16 %v2542, %v2541
        %s2547 = scalar_lea.vmem %s6, 32
        %v2548 = vld [vmem:[%s2547] sm:$0xf]
        %v2549 = vld [vmem:[%s2547 + $0x4] sm:$0xf]
        %v2550 = vld [vmem:[%s2547 + $0x8] sm:$0xf]
        %v2551 = vld [vmem:[%s2547 + $0xc] sm:$0xf]
        %v2556 = vunpack.c.l.b16 %v2548
        %v2557 = vunpack.c.l.b16 %v2549
        %v2558 = vunpack.c.l.b16 %v2550
        %v2559 = vunpack.c.l.b16 %v2551
        %v2560 = vpack.c.b16 %v2557, %v2556
        %v2561 = vpack.c.b16 %v2559, %v2558
        %v2565 = vsel %vm496, %v2543, 0
        %v2568 = vsel %vm496, %v2544, 0
        %v2571 = vsel %vm496, %v2545, 0
        %v2574 = vsel %vm496, %v2546, 0
        %2576 = vmatprep.subr.bf16.mxu0 0
        %2577 = vmatpush1.bf16.msra.mxu0 %v2560
        %2578 = vmatprep.subr.bf16.mxu0 0
        %2579 = vmatpush1.bf16.msra.mxu0 %v2561
        %2580 = vmatprep.subr.bf16.mxu0 0
        %2581 = vmatpush1.bf16.msra.mxu0 0
        %2582 = vmatprep.subr.bf16.mxu0 0
        %2583 = vmatpush1.bf16.msra.mxu0 0
        %2584 = vmatprep.subr.bf16.mxu0 0
        %2585 = vmatpush1.bf16.msra.mxu0 0
        %2586 = vmatprep.subr.bf16.mxu0 0
        %2587 = vmatpush1.bf16.msra.mxu0 0
        %2588 = vmatprep.subr.bf16.mxu0 0
        %2589 = vmatpush1.bf16.msra.mxu0 0
        %2590 = vmatprep.subr.bf16.mxu0 0
        %2591 = vmatpush1.bf16.msra.mxu0 0
        %2592 = vmatprep.subr.bf16.mxu0 0
        %2593 = vmatpush1.bf16.msra.mxu0 0
        %2594 = vmatprep.subr.bf16.mxu0 0
        %2595 = vmatpush1.bf16.msra.mxu0 0
        %2596 = vmatprep.subr.bf16.mxu0 0
        %2597 = vmatpush1.bf16.msra.mxu0 0
        %2598 = vmatprep.subr.bf16.mxu0 0
        %2599 = vmatpush1.bf16.msra.mxu0 0
        %2600 = vmatprep.subr.bf16.mxu0 0
        %2601 = vmatpush1.bf16.msra.mxu0 0
        %2602 = vmatprep.subr.bf16.mxu0 0
        %2603 = vmatpush1.bf16.msra.mxu0 0
        %2604 = vmatprep.subr.bf16.mxu0 0
        %2605 = vmatpush1.bf16.msra.mxu0 0
        %2606 = vmatprep.subr.bf16.mxu0 0
        %2607 = vmatpush1.bf16.msra.mxu0 0
        %2608 = vmatprep.mubr.bf16.mxu0 0
        %2609 = vmatmul.mubr.bf16.gmra.mrb[0].mxu0 %v2565
        %v2610 = vpop.f32.mrb[0].mxu0
        %v2611 = vadd.f32 0.0, %v2610
        %v2612 = vpop.f32.mrb[0].mxu0
        %v2613 = vpop.f32.mrb[0].mxu0
        %v2614 = vadd.f32 0.0, %v2613
        %v2615 = vpop.f32.mrb[0].mxu0
        %2616 = vmatprep.mubr.bf16.mxu0 0
        %2617 = vmatmul.mubr.bf16.gmra.mrb[0].mxu0 %v2568
        %v2618 = vpop.f32.mrb[0].mxu0
        %v2619 = vadd.f32 0.0, %v2618
        %v2620 = vpop.f32.mrb[0].mxu0
        %v2621 = vpop.f32.mrb[0].mxu0
        %v2622 = vadd.f32 0.0, %v2621
        %v2623 = vpop.f32.mrb[0].mxu0
        %2624 = vmatprep.mubr.bf16.mxu0 0
        %2625 = vmatmul.mubr.bf16.gmra.mrb[0].mxu0 %v2571
        %v2626 = vpop.f32.mrb[0].mxu0
        %v2627 = vadd.f32 0.0, %v2626
        %v2628 = vpop.f32.mrb[0].mxu0
        %v2629 = vpop.f32.mrb[0].mxu0
        %v2630 = vadd.f32 0.0, %v2629
        %v2631 = vpop.f32.mrb[0].mxu0
        %2632 = vmatprep.mubr.bf16.mxu0 0
        %2633 = vmatmul.mubr.bf16.gmra.mrb[0].mxu0 %v2574
        %v2634 = vpop.f32.mrb[0].mxu0
        %v2635 = vadd.f32 0.0, %v2634
        %v2636 = vpop.f32.mrb[0].mxu0
        %v2637 = vpop.f32.mrb[0].mxu0
        %v2638 = vadd.f32 0.0, %v2637
        %v2639 = vpop.f32.mrb[0].mxu0
        %2640 = vdwg.mxu0
        %v2641 = vadd.f32 %v2505, %v2611
        %v2642 = vadd.f32 %v2508, %v2614
        %v2643 = vadd.f32 %v2513, %v2619
        %v2644 = vadd.f32 %v2516, %v2622
        %v2645 = vadd.f32 %v2521, %v2627
        %v2646 = vadd.f32 %v2524, %v2630
        %v2647 = vadd.f32 %v2529, %v2635
        %v2648 = vadd.f32 %v2532, %v2638
        %s2649 = sadd.s32 %s2321, 1
        %s2650 = smul.u32 %s2649, 40
        %s2651 = scalar_lea.vmem [#allocation2], %s2650
        %v2652 = vld [vmem:[%s2651] sm:$0xff]
        %v2653 = vld [vmem:[%s2651 + $0x8] sm:$0xff]
        %v2654 = vld [vmem:[%s2651 + $0x10] sm:$0xff]
        %v2655 = vld [vmem:[%s2651 + $0x18] sm:$0xff]
        %v2656 = vld [vmem:[%s2651 + $0x28] sm:$0xff]
        %v2657 = vld [vmem:[%s2651 + $0x30] sm:$0xff]
        %v2658 = vld [vmem:[%s2651 + $0x38] sm:$0xff]
        %v2659 = vld [vmem:[%s2651 + $0x40] sm:$0xff]
        %v2660 = vpack.c.bf16 %v2653, %v2652
        %v2661 = vpack.c.bf16 %v2655, %v2654
        %v2662 = vpack.c.bf16 %v2657, %v2656
        %v2663 = vpack.c.bf16 %v2659, %v2658
        %s2664 = scalar_lea.vmem %s6, 48
        %v2665 = vld [vmem:[%s2664] sm:$0xf]
        %v2666 = vld [vmem:[%s2664 + $0x4] sm:$0xf]
        %v2667 = vld [vmem:[%s2664 + $0x8] sm:$0xf]
        %v2668 = vld [vmem:[%s2664 + $0xc] sm:$0xf]
        %v2673 = vunpack.c.l.b16 %v2665
        %v2674 = vunpack.c.l.b16 %v2666
        %v2675 = vunpack.c.l.b16 %v2667
        %v2676 = vunpack.c.l.b16 %v2668
        %v2677 = vpack.c.b16 %v2674, %v2673
        %v2678 = vpack.c.b16 %v2676, %v2675
        %v2682 = vsel %vm496, %v2660, 0
        %v2685 = vsel %vm496, %v2661, 0
        %v2688 = vsel %vm496, %v2662, 0
        %v2691 = vsel %vm496, %v2663, 0
        %2693 = vmatprep.subr.bf16.mxu0 0
        %2694 = vmatpush1.bf16.msra.mxu0 %v2677
        %2695 = vmatprep.subr.bf16.mxu0 0
        %2696 = vmatpush1.bf16.msra.mxu0 %v2678
        %2697 = vmatprep.subr.bf16.mxu0 0
        %2698 = vmatpush1.bf16.msra.mxu0 0
        %2699 = vmatprep.subr.bf16.mxu0 0
        %2700 = vmatpush1.bf16.msra.mxu0 0
        %2701 = vmatprep.subr.bf16.mxu0 0
        %2702 = vmatpush1.bf16.msra.mxu0 0
        %2703 = vmatprep.subr.bf16.mxu0 0
        %2704 = vmatpush1.bf16.msra.mxu0 0
        %2705 = vmatprep.subr.bf16.mxu0 0
        %2706 = vmatpush1.bf16.msra.mxu0 0
        %2707 = vmatprep.subr.bf16.mxu0 0
        %2708 = vmatpush1.bf16.msra.mxu0 0
        %2709 = vmatprep.subr.bf16.mxu0 0
        %2710 = vmatpush1.bf16.msra.mxu0 0
        %2711 = vmatprep.subr.bf16.mxu0 0
        %2712 = vmatpush1.bf16.msra.mxu0 0
        %2713 = vmatprep.subr.bf16.mxu0 0
        %2714 = vmatpush1.bf16.msra.mxu0 0
        %2715 = vmatprep.subr.bf16.mxu0 0
        %2716 = vmatpush1.bf16.msra.mxu0 0
        %2717 = vmatprep.subr.bf16.mxu0 0
        %2718 = vmatpush1.bf16.msra.mxu0 0
        %2719 = vmatprep.subr.bf16.mxu0 0
        %2720 = vmatpush1.bf16.msra.mxu0 0
        %2721 = vmatprep.subr.bf16.mxu0 0
        %2722 = vmatpush1.bf16.msra.mxu0 0
        %2723 = vmatprep.subr.bf16.mxu0 0
        %2724 = vmatpush1.bf16.msra.mxu0 0
        %2725 = vmatprep.mubr.bf16.mxu0 0
        %2726 = vmatmul.mubr.bf16.gmra.mrb[0].mxu0 %v2682
        %v2727 = vpop.f32.mrb[0].mxu0
        %v2728 = vadd.f32 0.0, %v2727
        %v2729 = vpop.f32.mrb[0].mxu0
        %v2730 = vpop.f32.mrb[0].mxu0
        %v2731 = vadd.f32 0.0, %v2730
        %v2732 = vpop.f32.mrb[0].mxu0
        %2733 = vmatprep.mubr.bf16.mxu0 0
        %2734 = vmatmul.mubr.bf16.gmra.mrb[0].mxu0 %v2685
        %v2735 = vpop.f32.mrb[0].mxu0
        %v2736 = vadd.f32 0.0, %v2735
        %v2737 = vpop.f32.mrb[0].mxu0
        %v2738 = vpop.f32.mrb[0].mxu0
        %v2739 = vadd.f32 0.0, %v2738
        %v2740 = vpop.f32.mrb[0].mxu0
        %2741 = vmatprep.mubr.bf16.mxu0 0
        %2742 = vmatmul.mubr.bf16.gmra.mrb[0].mxu0 %v2688
        %v2743 = vpop.f32.mrb[0].mxu0
        %v2744 = vadd.f32 0.0, %v2743
        %v2745 = vpop.f32.mrb[0].mxu0
        %v2746 = vpop.f32.mrb[0].mxu0
        %v2747 = vadd.f32 0.0, %v2746
        %v2748 = vpop.f32.mrb[0].mxu0
        %2749 = vmatprep.mubr.bf16.mxu0 0
        %2750 = vmatmul.mubr.bf16.gmra.mrb[0].mxu0 %v2691
        %v2751 = vpop.f32.mrb[0].mxu0
        %v2752 = vadd.f32 0.0, %v2751
        %v2753 = vpop.f32.mrb[0].mxu0
        %v2754 = vpop.f32.mrb[0].mxu0
        %v2755 = vadd.f32 0.0, %v2754
        %v2756 = vpop.f32.mrb[0].mxu0
        %2757 = vdwg.mxu0
        %v2758 = vadd.f32 %v2641, %v2728
        %v2759 = vadd.f32 %v2642, %v2731
        %v2760 = vadd.f32 %v2643, %v2736
        %v2761 = vadd.f32 %v2644, %v2739
        %v2762 = vadd.f32 %v2645, %v2744
        %v2763 = vadd.f32 %v2646, %v2747
        %v2764 = vadd.f32 %v2647, %v2752
        %v2765 = vadd.f32 %v2648, %v2755
        %v2766 = vld [vmem:[%s2651 + $0x1] sm:$0xff]
        %v2767 = vld [vmem:[%s2651 + $0x9] sm:$0xff]
        %v2768 = vld [vmem:[%s2651 + $0x11] sm:$0xff]
        %v2769 = vld [vmem:[%s2651 + $0x19] sm:$0xff]
        %v2770 = vld [vmem:[%s2651 + $0x29] sm:$0xff]
        %v2771 = vld [vmem:[%s2651 + $0x31] sm:$0xff]
        %v2772 = vld [vmem:[%s2651 + $0x39] sm:$0xff]
        %v2773 = vld [vmem:[%s2651 + $0x41] sm:$0xff]
        %v2774 = vpack.c.bf16 %v2767, %v2766
        %v2775 = vpack.c.bf16 %v2769, %v2768
        %v2776 = vpack.c.bf16 %v2771, %v2770
        %v2777 = vpack.c.bf16 %v2773, %v2772
        %s2778 = scalar_lea.vmem %s6, 64
        %v2779 = vld [vmem:[%s2778] sm:$0xf]
        %v2780 = vld [vmem:[%s2778 + $0x4] sm:$0xf]
        %v2781 = vld [vmem:[%s2778 + $0x8] sm:$0xf]
        %v2782 = vld [vmem:[%s2778 + $0xc] sm:$0xf]
        %v2787 = vunpack.c.l.b16 %v2779
        %v2788 = vunpack.c.l.b16 %v2780
        %v2789 = vunpack.c.l.b16 %v2781
        %v2790 = vunpack.c.l.b16 %v2782
        %v2791 = vpack.c.b16 %v2788, %v2787
        %v2792 = vpack.c.b16 %v2790, %v2789
        %v2796 = vsel %vm496, %v2774, 0
        %v2799 = vsel %vm496, %v2775, 0
        %v2802 = vsel %vm496, %v2776, 0
        %v2805 = vsel %vm496, %v2777, 0
        %2807 = vmatprep.subr.bf16.mxu0 0
        %2808 = vmatpush1.bf16.msra.mxu0 %v2791
        %2809 = vmatprep.subr.bf16.mxu0 0
        %2810 = vmatpush1.bf16.msra.mxu0 %v2792
        %2811 = vmatprep.subr.bf16.mxu0 0
        %2812 = vmatpush1.bf16.msra.mxu0 0
        %2813 = vmatprep.subr.bf16.mxu0 0
        %2814 = vmatpush1.bf16.msra.mxu0 0
        %2815 = vmatprep.subr.bf16.mxu0 0
        %2816 = vmatpush1.bf16.msra.mxu0 0
        %2817 = vmatprep.subr.bf16.mxu0 0
        %2818 = vmatpush1.bf16.msra.mxu0 0
        %2819 = vmatprep.subr.bf16.mxu0 0
        %2820 = vmatpush1.bf16.msra.mxu0 0
        %2821 = vmatprep.subr.bf16.mxu0 0
        %2822 = vmatpush1.bf16.msra.mxu0 0
        %2823 = vmatprep.subr.bf16.mxu0 0
        %2824 = vmatpush1.bf16.msra.mxu0 0
        %2825 = vmatprep.subr.bf16.mxu0 0
        %2826 = vmatpush1.bf16.msra.mxu0 0
        %2827 = vmatprep.subr.bf16.mxu0 0
        %2828 = vmatpush1.bf16.msra.mxu0 0
        %2829 = vmatprep.subr.bf16.mxu0 0
        %2830 = vmatpush1.bf16.msra.mxu0 0
        %2831 = vmatprep.subr.bf16.mxu0 0
        %2832 = vmatpush1.bf16.msra.mxu0 0
        %2833 = vmatprep.subr.bf16.mxu0 0
        %2834 = vmatpush1.bf16.msra.mxu0 0
        %2835 = vmatprep.subr.bf16.mxu0 0
        %2836 = vmatpush1.bf16.msra.mxu0 0
        %2837 = vmatprep.subr.bf16.mxu0 0
        %2838 = vmatpush1.bf16.msra.mxu0 0
        %2839 = vmatprep.mubr.bf16.mxu0 0
        %2840 = vmatmul.mubr.bf16.gmra.mrb[0].mxu0 %v2796
        %v2841 = vpop.f32.mrb[0].mxu0
        %v2842 = vadd.f32 0.0, %v2841
        %v2843 = vpop.f32.mrb[0].mxu0
        %v2844 = vpop.f32.mrb[0].mxu0
        %v2845 = vadd.f32 0.0, %v2844
        %v2846 = vpop.f32.mrb[0].mxu0
        %2847 = vmatprep.mubr.bf16.mxu0 0
        %2848 = vmatmul.mubr.bf16.gmra.mrb[0].mxu0 %v2799
        %v2849 = vpop.f32.mrb[0].mxu0
        %v2850 = vadd.f32 0.0, %v2849
        %v2851 = vpop.f32.mrb[0].mxu0
        %v2852 = vpop.f32.mrb[0].mxu0
        %v2853 = vadd.f32 0.0, %v2852
        %v2854 = vpop.f32.mrb[0].mxu0
        %2855 = vmatprep.mubr.bf16.mxu0 0
        %2856 = vmatmul.mubr.bf16.gmra.mrb[0].mxu0 %v2802
        %v2857 = vpop.f32.mrb[0].mxu0
        %v2858 = vadd.f32 0.0, %v2857
        %v2859 = vpop.f32.mrb[0].mxu0
        %v2860 = vpop.f32.mrb[0].mxu0
        %v2861 = vadd.f32 0.0, %v2860
        %v2862 = vpop.f32.mrb[0].mxu0
        %2863 = vmatprep.mubr.bf16.mxu0 0
        %2864 = vmatmul.mubr.bf16.gmra.mrb[0].mxu0 %v2805
        %v2865 = vpop.f32.mrb[0].mxu0
        %v2866 = vadd.f32 0.0, %v2865
        %v2867 = vpop.f32.mrb[0].mxu0
        %v2868 = vpop.f32.mrb[0].mxu0
        %v2869 = vadd.f32 0.0, %v2868
        %v2870 = vpop.f32.mrb[0].mxu0
        %2871 = vdwg.mxu0
        %v2872 = vadd.f32 %v2758, %v2842
        %v2873 = vadd.f32 %v2759, %v2845
        %v2874 = vadd.f32 %v2760, %v2850
        %v2875 = vadd.f32 %v2761, %v2853
        %v2876 = vadd.f32 %v2762, %v2858
        %v2877 = vadd.f32 %v2763, %v2861
        %v2878 = vadd.f32 %v2764, %v2866
        %v2879 = vadd.f32 %v2765, %v2869
        %v2880 = vld [vmem:[%s2651 + $0x2] sm:$0xff]
        %v2881 = vld [vmem:[%s2651 + $0xa] sm:$0xff]
        %v2882 = vld [vmem:[%s2651 + $0x12] sm:$0xff]
        %v2883 = vld [vmem:[%s2651 + $0x1a] sm:$0xff]
        %v2884 = vld [vmem:[%s2651 + $0x2a] sm:$0xff]
        %v2885 = vld [vmem:[%s2651 + $0x32] sm:$0xff]
        %v2886 = vld [vmem:[%s2651 + $0x3a] sm:$0xff]
        %v2887 = vld [vmem:[%s2651 + $0x42] sm:$0xff]
        %v2888 = vpack.c.bf16 %v2881, %v2880
        %v2889 = vpack.c.bf16 %v2883, %v2882
        %v2890 = vpack.c.bf16 %v2885, %v2884
        %v2891 = vpack.c.bf16 %v2887, %v2886
        %s2892 = scalar_lea.vmem %s6, 80
        %v2893 = vld [vmem:[%s2892] sm:$0xf]
        %v2894 = vld [vmem:[%s2892 + $0x4] sm:$0xf]
        %v2895 = vld [vmem:[%s2892 + $0x8] sm:$0xf]
        %v2896 = vld [vmem:[%s2892 + $0xc] sm:$0xf]
        %v2901 = vunpack.c.l.b16 %v2893
        %v2902 = vunpack.c.l.b16 %v2894
        %v2903 = vunpack.c.l.b16 %v2895
        %v2904 = vunpack.c.l.b16 %v2896
        %v2905 = vpack.c.b16 %v2902, %v2901
        %v2906 = vpack.c.b16 %v2904, %v2903
        %v2910 = vsel %vm496, %v2888, 0
        %v2913 = vsel %vm496, %v2889, 0
        %v2916 = vsel %vm496, %v2890, 0
        %v2919 = vsel %vm496, %v2891, 0
        %2921 = vmatprep.subr.bf16.mxu0 0
        %2922 = vmatpush1.bf16.msra.mxu0 %v2905
        %2923 = vmatprep.subr.bf16.mxu0 0
        %2924 = vmatpush1.bf16.msra.mxu0 %v2906
        %2925 = vmatprep.subr.bf16.mxu0 0
        %2926 = vmatpush1.bf16.msra.mxu0 0
        %2927 = vmatprep.subr.bf16.mxu0 0
        %2928 = vmatpush1.bf16.msra.mxu0 0
        %2929 = vmatprep.subr.bf16.mxu0 0
        %2930 = vmatpush1.bf16.msra.mxu0 0
        %2931 = vmatprep.subr.bf16.mxu0 0
        %2932 = vmatpush1.bf16.msra.mxu0 0
        %2933 = vmatprep.subr.bf16.mxu0 0
        %2934 = vmatpush1.bf16.msra.mxu0 0
        %2935 = vmatprep.subr.bf16.mxu0 0
        %2936 = vmatpush1.bf16.msra.mxu0 0
        %2937 = vmatprep.subr.bf16.mxu0 0
        %2938 = vmatpush1.bf16.msra.mxu0 0
        %2939 = vmatprep.subr.bf16.mxu0 0
        %2940 = vmatpush1.bf16.msra.mxu0 0
        %2941 = vmatprep.subr.bf16.mxu0 0
        %2942 = vmatpush1.bf16.msra.mxu0 0
        %2943 = vmatprep.subr.bf16.mxu0 0
        %2944 = vmatpush1.bf16.msra.mxu0 0
        %2945 = vmatprep.subr.bf16.mxu0 0
        %2946 = vmatpush1.bf16.msra.mxu0 0
        %2947 = vmatprep.subr.bf16.mxu0 0
        %2948 = vmatpush1.bf16.msra.mxu0 0
        %2949 = vmatprep.subr.bf16.mxu0 0
        %2950 = vmatpush1.bf16.msra.mxu0 0
        %2951 = vmatprep.subr.bf16.mxu0 0
        %2952 = vmatpush1.bf16.msra.mxu0 0
        %2953 = vmatprep.mubr.bf16.mxu0 0
        %2954 = vmatmul.mubr.bf16.gmra.mrb[0].mxu0 %v2910
        %v2955 = vpop.f32.mrb[0].mxu0
        %v2956 = vadd.f32 0.0, %v2955
        %v2957 = vpop.f32.mrb[0].mxu0
        %v2958 = vpop.f32.mrb[0].mxu0
        %v2959 = vadd.f32 0.0, %v2958
        %v2960 = vpop.f32.mrb[0].mxu0
        %2961 = vmatprep.mubr.bf16.mxu0 0
        %2962 = vmatmul.mubr.bf16.gmra.mrb[0].mxu0 %v2913
        %v2963 = vpop.f32.mrb[0].mxu0
        %v2964 = vadd.f32 0.0, %v2963
        %v2965 = vpop.f32.mrb[0].mxu0
        %v2966 = vpop.f32.mrb[0].mxu0
        %v2967 = vadd.f32 0.0, %v2966
        %v2968 = vpop.f32.mrb[0].mxu0
        %2969 = vmatprep.mubr.bf16.mxu0 0
        %2970 = vmatmul.mubr.bf16.gmra.mrb[0].mxu0 %v2916
        %v2971 = vpop.f32.mrb[0].mxu0
        %v2972 = vadd.f32 0.0, %v2971
        %v2973 = vpop.f32.mrb[0].mxu0
        %v2974 = vpop.f32.mrb[0].mxu0
        %v2975 = vadd.f32 0.0, %v2974
        %v2976 = vpop.f32.mrb[0].mxu0
        %2977 = vmatprep.mubr.bf16.mxu0 0
        %2978 = vmatmul.mubr.bf16.gmra.mrb[0].mxu0 %v2919
        %v2979 = vpop.f32.mrb[0].mxu0
        %v2980 = vadd.f32 0.0, %v2979
        %v2981 = vpop.f32.mrb[0].mxu0
        %v2982 = vpop.f32.mrb[0].mxu0
        %v2983 = vadd.f32 0.0, %v2982
        %v2984 = vpop.f32.mrb[0].mxu0
        %2985 = vdwg.mxu0
        %v2986 = vadd.f32 %v2872, %v2956
        %v2987 = vadd.f32 %v2873, %v2959
        %v2988 = vadd.f32 %v2874, %v2964
        %v2989 = vadd.f32 %v2875, %v2967
        %v2990 = vadd.f32 %v2876, %v2972
        %v2991 = vadd.f32 %v2877, %v2975
        %v2992 = vadd.f32 %v2878, %v2980
        %v2993 = vadd.f32 %v2879, %v2983
        %s2994 = sadd.s32 %s2321, 2
        %s2995 = smul.u32 %s2994, 40
        %s2996 = scalar_lea.vmem [#allocation2], %s2995
        %v2997 = vld [vmem:[%s2996] sm:$0xff]
        %v2998 = vld [vmem:[%s2996 + $0x8] sm:$0xff]
        %v2999 = vld [vmem:[%s2996 + $0x10] sm:$0xff]
        %v3000 = vld [vmem:[%s2996 + $0x18] sm:$0xff]
        %v3001 = vld [vmem:[%s2996 + $0x28] sm:$0xff]
        %v3002 = vld [vmem:[%s2996 + $0x30] sm:$0xff]
        %v3003 = vld [vmem:[%s2996 + $0x38] sm:$0xff]
        %v3004 = vld [vmem:[%s2996 + $0x40] sm:$0xff]
        %v3005 = vpack.c.bf16 %v2998, %v2997
        %v3006 = vpack.c.bf16 %v3000, %v2999
        %v3007 = vpack.c.bf16 %v3002, %v3001
        %v3008 = vpack.c.bf16 %v3004, %v3003
        %s3009 = scalar_lea.vmem %s6, 96
        %v3010 = vld [vmem:[%s3009] sm:$0xf]
        %v3011 = vld [vmem:[%s3009 + $0x4] sm:$0xf]
        %v3012 = vld [vmem:[%s3009 + $0x8] sm:$0xf]
        %v3013 = vld [vmem:[%s3009 + $0xc] sm:$0xf]
        %v3018 = vunpack.c.l.b16 %v3010
        %v3019 = vunpack.c.l.b16 %v3011
        %v3020 = vunpack.c.l.b16 %v3012
        %v3021 = vunpack.c.l.b16 %v3013
        %v3022 = vpack.c.b16 %v3019, %v3018
        %v3023 = vpack.c.b16 %v3021, %v3020
        %v3027 = vsel %vm496, %v3005, 0
        %v3030 = vsel %vm496, %v3006, 0
        %v3033 = vsel %vm496, %v3007, 0
        %v3036 = vsel %vm496, %v3008, 0
        %3038 = vmatprep.subr.bf16.mxu0 0
        %3039 = vmatpush1.bf16.msra.mxu0 %v3022
        %3040 = vmatprep.subr.bf16.mxu0 0
        %3041 = vmatpush1.bf16.msra.mxu0 %v3023
        %3042 = vmatprep.subr.bf16.mxu0 0
        %3043 = vmatpush1.bf16.msra.mxu0 0
        %3044 = vmatprep.subr.bf16.mxu0 0
        %3045 = vmatpush1.bf16.msra.mxu0 0
        %3046 = vmatprep.subr.bf16.mxu0 0
        %3047 = vmatpush1.bf16.msra.mxu0 0
        %3048 = vmatprep.subr.bf16.mxu0 0
        %3049 = vmatpush1.bf16.msra.mxu0 0
        %3050 = vmatprep.subr.bf16.mxu0 0
        %3051 = vmatpush1.bf16.msra.mxu0 0
        %3052 = vmatprep.subr.bf16.mxu0 0
        %3053 = vmatpush1.bf16.msra.mxu0 0
        %3054 = vmatprep.subr.bf16.mxu0 0
        %3055 = vmatpush1.bf16.msra.mxu0 0
        %3056 = vmatprep.subr.bf16.mxu0 0
        %3057 = vmatpush1.bf16.msra.mxu0 0
        %3058 = vmatprep.subr.bf16.mxu0 0
        %3059 = vmatpush1.bf16.msra.mxu0 0
        %3060 = vmatprep.subr.bf16.mxu0 0
        %3061 = vmatpush1.bf16.msra.mxu0 0
        %3062 = vmatprep.subr.bf16.mxu0 0
        %3063 = vmatpush1.bf16.msra.mxu0 0
        %3064 = vmatprep.subr.bf16.mxu0 0
        %3065 = vmatpush1.bf16.msra.mxu0 0
        %3066 = vmatprep.subr.bf16.mxu0 0
        %3067 = vmatpush1.bf16.msra.mxu0 0
        %3068 = vmatprep.subr.bf16.mxu0 0
        %3069 = vmatpush1.bf16.msra.mxu0 0
        %3070 = vmatprep.mubr.bf16.mxu0 0
        %3071 = vmatmul.mubr.bf16.gmra.mrb[0].mxu0 %v3027
        %v3072 = vpop.f32.mrb[0].mxu0
        %v3073 = vadd.f32 0.0, %v3072
        %v3074 = vpop.f32.mrb[0].mxu0
        %v3075 = vpop.f32.mrb[0].mxu0
        %v3076 = vadd.f32 0.0, %v3075
        %v3077 = vpop.f32.mrb[0].mxu0
        %3078 = vmatprep.mubr.bf16.mxu0 0
        %3079 = vmatmul.mubr.bf16.gmra.mrb[0].mxu0 %v3030
        %v3080 = vpop.f32.mrb[0].mxu0
        %v3081 = vadd.f32 0.0, %v3080
        %v3082 = vpop.f32.mrb[0].mxu0
        %v3083 = vpop.f32.mrb[0].mxu0
        %v3084 = vadd.f32 0.0, %v3083
        %v3085 = vpop.f32.mrb[0].mxu0
        %3086 = vmatprep.mubr.bf16.mxu0 0
        %3087 = vmatmul.mubr.bf16.gmra.mrb[0].mxu0 %v3033
        %v3088 = vpop.f32.mrb[0].mxu0
        %v3089 = vadd.f32 0.0, %v3088
        %v3090 = vpop.f32.mrb[0].mxu0
        %v3091 = vpop.f32.mrb[0].mxu0
        %v3092 = vadd.f32 0.0, %v3091
        %v3093 = vpop.f32.mrb[0].mxu0
        %3094 = vmatprep.mubr.bf16.mxu0 0
        %3095 = vmatmul.mubr.bf16.gmra.mrb[0].mxu0 %v3036
        %v3096 = vpop.f32.mrb[0].mxu0
        %v3097 = vadd.f32 0.0, %v3096
        %v3098 = vpop.f32.mrb[0].mxu0
        %v3099 = vpop.f32.mrb[0].mxu0
        %v3100 = vadd.f32 0.0, %v3099
        %v3101 = vpop.f32.mrb[0].mxu0
        %3102 = vdwg.mxu0
        %v3103 = vadd.f32 %v2986, %v3073
        %v3104 = vadd.f32 %v2987, %v3076
        %v3105 = vadd.f32 %v2988, %v3081
        %v3106 = vadd.f32 %v2989, %v3084
        %v3107 = vadd.f32 %v2990, %v3089
        %v3108 = vadd.f32 %v2991, %v3092
        %v3109 = vadd.f32 %v2992, %v3097
        %v3110 = vadd.f32 %v2993, %v3100
        %v3111 = vld [vmem:[%s2996 + $0x1] sm:$0xff]
        %v3112 = vld [vmem:[%s2996 + $0x9] sm:$0xff]
        %v3113 = vld [vmem:[%s2996 + $0x11] sm:$0xff]
        %v3114 = vld [vmem:[%s2996 + $0x19] sm:$0xff]
        %v3115 = vld [vmem:[%s2996 + $0x29] sm:$0xff]
        %v3116 = vld [vmem:[%s2996 + $0x31] sm:$0xff]
        %v3117 = vld [vmem:[%s2996 + $0x39] sm:$0xff]
        %v3118 = vld [vmem:[%s2996 + $0x41] sm:$0xff]
        %v3119 = vpack.c.bf16 %v3112, %v3111
        %v3120 = vpack.c.bf16 %v3114, %v3113
        %v3121 = vpack.c.bf16 %v3116, %v3115
        %v3122 = vpack.c.bf16 %v3118, %v3117
        %s3123 = scalar_lea.vmem %s6, 112
        %v3124 = vld [vmem:[%s3123] sm:$0xf]
        %v3125 = vld [vmem:[%s3123 + $0x4] sm:$0xf]
        %v3126 = vld [vmem:[%s3123 + $0x8] sm:$0xf]
        %v3127 = vld [vmem:[%s3123 + $0xc] sm:$0xf]
        %v3132 = vunpack.c.l.b16 %v3124
        %v3133 = vunpack.c.l.b16 %v3125
        %v3134 = vunpack.c.l.b16 %v3126
        %v3135 = vunpack.c.l.b16 %v3127
        %v3136 = vpack.c.b16 %v3133, %v3132
        %v3137 = vpack.c.b16 %v3135, %v3134
        %v3141 = vsel %vm496, %v3119, 0
        %v3144 = vsel %vm496, %v3120, 0
        %v3147 = vsel %vm496, %v3121, 0
        %v3150 = vsel %vm496, %v3122, 0
        %3152 = vmatprep.subr.bf16.mxu0 0
        %3153 = vmatpush1.bf16.msra.mxu0 %v3136
        %3154 = vmatprep.subr.bf16.mxu0 0
        %3155 = vmatpush1.bf16.msra.mxu0 %v3137
        %3156 = vmatprep.subr.bf16.mxu0 0
        %3157 = vmatpush1.bf16.msra.mxu0 0
        %3158 = vmatprep.subr.bf16.mxu0 0
        %3159 = vmatpush1.bf16.msra.mxu0 0
        %3160 = vmatprep.subr.bf16.mxu0 0
        %3161 = vmatpush1.bf16.msra.mxu0 0
        %3162 = vmatprep.subr.bf16.mxu0 0
        %3163 = vmatpush1.bf16.msra.mxu0 0
        %3164 = vmatprep.subr.bf16.mxu0 0
        %3165 = vmatpush1.bf16.msra.mxu0 0
        %3166 = vmatprep.subr.bf16.mxu0 0
        %3167 = vmatpush1.bf16.msra.mxu0 0
        %3168 = vmatprep.subr.bf16.mxu0 0
        %3169 = vmatpush1.bf16.msra.mxu0 0
        %3170 = vmatprep.subr.bf16.mxu0 0
        %3171 = vmatpush1.bf16.msra.mxu0 0
        %3172 = vmatprep.subr.bf16.mxu0 0
        %3173 = vmatpush1.bf16.msra.mxu0 0
        %3174 = vmatprep.subr.bf16.mxu0 0
        %3175 = vmatpush1.bf16.msra.mxu0 0
        %3176 = vmatprep.subr.bf16.mxu0 0
        %3177 = vmatpush1.bf16.msra.mxu0 0
        %3178 = vmatprep.subr.bf16.mxu0 0
        %3179 = vmatpush1.bf16.msra.mxu0 0
        %3180 = vmatprep.subr.bf16.mxu0 0
        %3181 = vmatpush1.bf16.msra.mxu0 0
        %3182 = vmatprep.subr.bf16.mxu0 0
        %3183 = vmatpush1.bf16.msra.mxu0 0
        %3184 = vmatprep.mubr.bf16.mxu0 0
        %3185 = vmatmul.mubr.bf16.gmra.mrb[0].mxu0 %v3141
        %v3186 = vpop.f32.mrb[0].mxu0
        %v3187 = vadd.f32 0.0, %v3186
        %v3188 = vpop.f32.mrb[0].mxu0
        %v3189 = vpop.f32.mrb[0].mxu0
        %v3190 = vadd.f32 0.0, %v3189
        %v3191 = vpop.f32.mrb[0].mxu0
        %3192 = vmatprep.mubr.bf16.mxu0 0
        %3193 = vmatmul.mubr.bf16.gmra.mrb[0].mxu0 %v3144
        %v3194 = vpop.f32.mrb[0].mxu0
        %v3195 = vadd.f32 0.0, %v3194
        %v3196 = vpop.f32.mrb[0].mxu0
        %v3197 = vpop.f32.mrb[0].mxu0
        %v3198 = vadd.f32 0.0, %v3197
        %v3199 = vpop.f32.mrb[0].mxu0
        %3200 = vmatprep.mubr.bf16.mxu0 0
        %3201 = vmatmul.mubr.bf16.gmra.mrb[0].mxu0 %v3147
        %v3202 = vpop.f32.mrb[0].mxu0
        %v3203 = vadd.f32 0.0, %v3202
        %v3204 = vpop.f32.mrb[0].mxu0
        %v3205 = vpop.f32.mrb[0].mxu0
        %v3206 = vadd.f32 0.0, %v3205
        %v3207 = vpop.f32.mrb[0].mxu0
        %3208 = vmatprep.mubr.bf16.mxu0 0
        %3209 = vmatmul.mubr.bf16.gmra.mrb[0].mxu0 %v3150
        %v3210 = vpop.f32.mrb[0].mxu0
        %v3211 = vadd.f32 0.0, %v3210
        %v3212 = vpop.f32.mrb[0].mxu0
        %v3213 = vpop.f32.mrb[0].mxu0
        %v3214 = vadd.f32 0.0, %v3213
        %v3215 = vpop.f32.mrb[0].mxu0
        %3216 = vdwg.mxu0
        %v3217 = vadd.f32 %v3103, %v3187
        %v3218 = vadd.f32 %v3104, %v3190
        %v3219 = vadd.f32 %v3105, %v3195
        %v3220 = vadd.f32 %v3106, %v3198
        %v3221 = vadd.f32 %v3107, %v3203
        %v3222 = vadd.f32 %v3108, %v3206
        %v3223 = vadd.f32 %v3109, %v3211
        %v3224 = vadd.f32 %v3110, %v3214
        %v3225 = vld [vmem:[%s2996 + $0x2] sm:$0xff]
        %v3226 = vld [vmem:[%s2996 + $0xa] sm:$0xff]
        %v3227 = vld [vmem:[%s2996 + $0x12] sm:$0xff]
        %v3228 = vld [vmem:[%s2996 + $0x1a] sm:$0xff]
        %v3229 = vld [vmem:[%s2996 + $0x2a] sm:$0xff]
        %v3230 = vld [vmem:[%s2996 + $0x32] sm:$0xff]
        %v3231 = vld [vmem:[%s2996 + $0x3a] sm:$0xff]
        %v3232 = vld [vmem:[%s2996 + $0x42] sm:$0xff]
        %v3233 = vpack.c.bf16 %v3226, %v3225
        %v3234 = vpack.c.bf16 %v3228, %v3227
        %v3235 = vpack.c.bf16 %v3230, %v3229
        %v3236 = vpack.c.bf16 %v3232, %v3231
        %s3237 = scalar_lea.vmem %s6, 128
        %v3238 = vld [vmem:[%s3237] sm:$0xf]
        %v3239 = vld [vmem:[%s3237 + $0x4] sm:$0xf]
        %v3240 = vld [vmem:[%s3237 + $0x8] sm:$0xf]
        %v3241 = vld [vmem:[%s3237 + $0xc] sm:$0xf]
        %v3246 = vunpack.c.l.b16 %v3238
        %v3247 = vunpack.c.l.b16 %v3239
        %v3248 = vunpack.c.l.b16 %v3240
        %v3249 = vunpack.c.l.b16 %v3241
        %v3250 = vpack.c.b16 %v3247, %v3246
        %v3251 = vpack.c.b16 %v3249, %v3248
        %v3255 = vsel %vm496, %v3233, 0
        %v3258 = vsel %vm496, %v3234, 0
        %v3261 = vsel %vm496, %v3235, 0
        %v3264 = vsel %vm496, %v3236, 0
        %3266 = vmatprep.subr.bf16.mxu0 0
        %3267 = vmatpush1.bf16.msra.mxu0 %v3250
        %3268 = vmatprep.subr.bf16.mxu0 0
        %3269 = vmatpush1.bf16.msra.mxu0 %v3251
        %3270 = vmatprep.subr.bf16.mxu0 0
        %3271 = vmatpush1.bf16.msra.mxu0 0
        %3272 = vmatprep.subr.bf16.mxu0 0
        %3273 = vmatpush1.bf16.msra.mxu0 0
        %3274 = vmatprep.subr.bf16.mxu0 0
        %3275 = vmatpush1.bf16.msra.mxu0 0
        %3276 = vmatprep.subr.bf16.mxu0 0
        %3277 = vmatpush1.bf16.msra.mxu0 0
        %3278 = vmatprep.subr.bf16.mxu0 0
        %3279 = vmatpush1.bf16.msra.mxu0 0
        %3280 = vmatprep.subr.bf16.mxu0 0
        %3281 = vmatpush1.bf16.msra.mxu0 0
        %3282 = vmatprep.subr.bf16.mxu0 0
        %3283 = vmatpush1.bf16.msra.mxu0 0
        %3284 = vmatprep.subr.bf16.mxu0 0
        %3285 = vmatpush1.bf16.msra.mxu0 0
        %3286 = vmatprep.subr.bf16.mxu0 0
        %3287 = vmatpush1.bf16.msra.mxu0 0
        %3288 = vmatprep.subr.bf16.mxu0 0
        %3289 = vmatpush1.bf16.msra.mxu0 0
        %3290 = vmatprep.subr.bf16.mxu0 0
        %3291 = vmatpush1.bf16.msra.mxu0 0
        %3292 = vmatprep.subr.bf16.mxu0 0
        %3293 = vmatpush1.bf16.msra.mxu0 0
        %3294 = vmatprep.subr.bf16.mxu0 0
        %3295 = vmatpush1.bf16.msra.mxu0 0
        %3296 = vmatprep.subr.bf16.mxu0 0
        %3297 = vmatpush1.bf16.msra.mxu0 0
        %3298 = vmatprep.mubr.bf16.mxu0 0
        %3299 = vmatmul.mubr.bf16.gmra.mrb[0].mxu0 %v3255
        %v3300 = vpop.f32.mrb[0].mxu0
        %v3301 = vadd.f32 0.0, %v3300
        %v3302 = vpop.f32.mrb[0].mxu0
        %v3303 = vpop.f32.mrb[0].mxu0
        %v3304 = vadd.f32 0.0, %v3303
        %v3305 = vpop.f32.mrb[0].mxu0
        %3306 = vmatprep.mubr.bf16.mxu0 0
        %3307 = vmatmul.mubr.bf16.gmra.mrb[0].mxu0 %v3258
        %v3308 = vpop.f32.mrb[0].mxu0
        %v3309 = vadd.f32 0.0, %v3308
        %v3310 = vpop.f32.mrb[0].mxu0
        %v3311 = vpop.f32.mrb[0].mxu0
        %v3312 = vadd.f32 0.0, %v3311
        %v3313 = vpop.f32.mrb[0].mxu0
        %3314 = vmatprep.mubr.bf16.mxu0 0
        %3315 = vmatmul.mubr.bf16.gmra.mrb[0].mxu0 %v3261
        %v3316 = vpop.f32.mrb[0].mxu0
        %v3317 = vadd.f32 0.0, %v3316
        %v3318 = vpop.f32.mrb[0].mxu0
        %v3319 = vpop.f32.mrb[0].mxu0
        %v3320 = vadd.f32 0.0, %v3319
        %v3321 = vpop.f32.mrb[0].mxu0
        %3322 = vmatprep.mubr.bf16.mxu0 0
        %3323 = vmatmul.mubr.bf16.gmra.mrb[0].mxu0 %v3264
        %v3324 = vpop.f32.mrb[0].mxu0
        %v3325 = vadd.f32 0.0, %v3324
        %v3326 = vpop.f32.mrb[0].mxu0
        %v3327 = vpop.f32.mrb[0].mxu0
        %v3328 = vadd.f32 0.0, %v3327
        %v3329 = vpop.f32.mrb[0].mxu0
        %3330 = vdwg.mxu0
        %v3331 = vadd.f32 %v3217, %v3301
        %v3332 = vadd.f32 %v3218, %v3304
        %v3333 = vadd.f32 %v3219, %v3309
        %v3334 = vadd.f32 %v3220, %v3312
        %v3335 = vadd.f32 %v3221, %v3317
        %v3336 = vadd.f32 %v3222, %v3320
        %v3337 = vadd.f32 %v3223, %v3325
        %v3338 = vadd.f32 %v3224, %v3328
        %v3340 = vlaneseq
        %v3341 = vshrl.u32 %v3340, 7
        %v3342 = vsub.s32 0, %v3341
        %v3343 = vrot.slane %v2313, %v3342
        %v3345 = vmul.f32 %v3331, %v3343
        %v3346 = vmul.f32 %v3332, %v3343
        %v3347 = vmul.f32 %v3333, %v3343
        %v3348 = vmul.f32 %v3334, %v3343
        %v3349 = vmul.f32 %v3335, %v3343
        %v3350 = vmul.f32 %v3336, %v3343
        %v3351 = vmul.f32 %v3337, %v3343
        %v3352 = vmul.f32 %v3338, %v3343
        %v3354 = vlaneseq
        %v3355 = vshrl.u32 %v3354, 7
        %v3356 = vsub.s32 0, %v3355
        %v3357 = vrot.slane %v2314, %v3356
        %v3359 = vadd.f32 %v3345, %v3357
        %v3360 = vadd.f32 %v3346, %v3357
        %v3361 = vadd.f32 %v3347, %v3357
        %v3362 = vadd.f32 %v3348, %v3357
        %v3363 = vadd.f32 %v3349, %v3357
        %v3364 = vadd.f32 %v3350, %v3357
        %v3365 = vadd.f32 %v3351, %v3357
        %v3366 = vadd.f32 %v3352, %v3357
        %v3367 = vmax.f32 %v3359, 0.0
        %v3368 = vmax.f32 %v3360, 0.0
        %v3369 = vmax.f32 %v3361, 0.0
        %v3370 = vmax.f32 %v3362, 0.0
        %v3371 = vmax.f32 %v3363, 0.0
        %v3372 = vmax.f32 %v3364, 0.0
        %v3373 = vmax.f32 %v3365, 0.0
        %v3374 = vmax.f32 %v3366, 0.0
        %v3375 = vmax.f32 %v3367, %v3371
        %v3376 = vmax.f32 %v3368, %v3372
        %v3377 = vmax.f32 %v3369, %v3373
        %v3378 = vmax.f32 %v3370, %v3374
        %v3380 = vsel %vm496, %v2307, 0
        %v3383 = vsel %vm496, %v2308, 0
        %v3386 = vsel %vm496, %v2309, 0
        %3388 = vmatprep.subr.mxu0 0.0
        %3389 = vmatpush1.msra.mxu0 %v3375
        %3390 = vmatprep.subr.mxu0 0.0
        %3391 = vmatpush1.msra.mxu0 %v3376
        %3392 = vmatprep.subr.mxu0 0.0
        %3393 = vmatpush1.msra.mxu0 %v3377
        %3394 = vmatprep.subr.mxu0 0.0
        %3395 = vmatpush1.msra.mxu0 %v3378
        %3396 = vmatprep.subr.mxu0 0.0
        %3397 = vmatpush1.msra.mxu0 0.0
        %3398 = vmatprep.subr.mxu0 0.0
        %3399 = vmatpush1.msra.mxu0 0.0
        %3400 = vmatprep.subr.mxu0 0.0
        %3401 = vmatpush1.msra.mxu0 0.0
        %3402 = vmatprep.subr.mxu0 0.0
        %3403 = vmatpush1.msra.mxu0 0.0
        %3404 = vmatprep.subr.mxu0 0.0
        %3405 = vmatpush1.msra.mxu0 0.0
        %3406 = vmatprep.subr.mxu0 0.0
        %3407 = vmatpush1.msra.mxu0 0.0
        %3408 = vmatprep.subr.mxu0 0.0
        %3409 = vmatpush1.msra.mxu0 0.0
        %3410 = vmatprep.subr.mxu0 0.0
        %3411 = vmatpush1.msra.mxu0 0.0
        %3412 = vmatprep.subr.mxu0 0.0
        %3413 = vmatpush1.msra.mxu0 0.0
        %3414 = vmatprep.subr.mxu0 0.0
        %3415 = vmatpush1.msra.mxu0 0.0
        %3416 = vmatprep.subr.mxu0 0.0
        %3417 = vmatpush1.msra.mxu0 0.0
        %3418 = vmatprep.subr.mxu0 0.0
        %3419 = vmatpush1.msra.mxu0 0.0
        %3420 = vmatprep.subr.mxu0 0.0
        %3421 = vmatpush1.msra.mxu0 0.0
        %3422 = vmatprep.subr.mxu0 0.0
        %3423 = vmatpush1.msra.mxu0 0.0
        %3424 = vmatprep.subr.mxu0 0.0
        %3425 = vmatpush1.msra.mxu0 0.0
        %3426 = vmatprep.subr.mxu0 0.0
        %3427 = vmatpush1.msra.mxu0 0.0
        %3428 = vmatprep.subr.mxu0 0.0
        %3429 = vmatpush1.msra.mxu0 0.0
        %3430 = vmatprep.subr.mxu0 0.0
        %3431 = vmatpush1.msra.mxu0 0.0
        %3432 = vmatprep.subr.mxu0 0.0
        %3433 = vmatpush1.msra.mxu0 0.0
        %3434 = vmatprep.subr.mxu0 0.0
        %3435 = vmatpush1.msra.mxu0 0.0
        %3436 = vmatprep.subr.mxu0 0.0
        %3437 = vmatpush1.msra.mxu0 0.0
        %3438 = vmatprep.subr.mxu0 0.0
        %3439 = vmatpush1.msra.mxu0 0.0
        %3440 = vmatprep.subr.mxu0 0.0
        %3441 = vmatpush1.msra.mxu0 0.0
        %3442 = vmatprep.subr.mxu0 0.0
        %3443 = vmatpush1.msra.mxu0 0.0
        %3444 = vmatprep.subr.mxu0 0.0
        %3445 = vmatpush1.msra.mxu0 0.0
        %3446 = vmatprep.subr.mxu0 0.0
        %3447 = vmatpush1.msra.mxu0 0.0
        %3448 = vmatprep.subr.mxu0 0.0
        %3449 = vmatpush1.msra.mxu0 0.0
        %3450 = vmatprep.subr.mxu0 0.0
        %3451 = vmatpush1.msra.mxu0 0.0
        %3452 = vmatprep.mubr.f32.mxu0 0.0
        %3453 = vmatmul.mubr.f32.gmra.mrb[0].mxu0 %v3380
        %v3454 = vpop.f32.mrb[0].mxu0
        %v3455 = vadd.f32 0.0, %v3454
        %v3456 = vpop.f32.mrb[0].mxu0
        %3457 = vmatprep.mubr.f32.mxu0 0.0
        %3458 = vmatmul.mubr.f32.gmra.mrb[0].mxu0 %v3383
        %v3459 = vpop.f32.mrb[0].mxu0
        %v3460 = vadd.f32 0.0, %v3459
        %v3461 = vpop.f32.mrb[0].mxu0
        %3462 = vmatprep.mubr.f32.mxu0 0.0
        %3463 = vmatmul.mubr.f32.gmra.mrb[0].mxu0 %v3386
        %v3464 = vpop.f32.mrb[0].mxu0
        %v3465 = vadd.f32 0.0, %v3464
        %v3466 = vpop.f32.mrb[0].mxu0
        %3467 = vdwg.mxu0
        %v3469 = vsel %vm496, %v2310, 0
        %v3472 = vsel %vm496, %v2311, 0
        %v3475 = vsel %vm496, %v2312, 0
        %3477 = vmatprep.subr.mxu0 0.0
        %3478 = vmatpush1.msra.mxu0 %v3375
        %3479 = vmatprep.subr.mxu0 0.0
        %3480 = vmatpush1.msra.mxu0 %v3376
        %3481 = vmatprep.subr.mxu0 0.0
        %3482 = vmatpush1.msra.mxu0 %v3377
        %3483 = vmatprep.subr.mxu0 0.0
        %3484 = vmatpush1.msra.mxu0 %v3378
        %3485 = vmatprep.subr.mxu0 0.0
        %3486 = vmatpush1.msra.mxu0 0.0
        %3487 = vmatprep.subr.mxu0 0.0
        %3488 = vmatpush1.msra.mxu0 0.0
        %3489 = vmatprep.subr.mxu0 0.0
        %3490 = vmatpush1.msra.mxu0 0.0
        %3491 = vmatprep.subr.mxu0 0.0
        %3492 = vmatpush1.msra.mxu0 0.0
        %3493 = vmatprep.subr.mxu0 0.0
        %3494 = vmatpush1.msra.mxu0 0.0
        %3495 = vmatprep.subr.mxu0 0.0
        %3496 = vmatpush1.msra.mxu0 0.0
        %3497 = vmatprep.subr.mxu0 0.0
        %3498 = vmatpush1.msra.mxu0 0.0
        %3499 = vmatprep.subr.mxu0 0.0
        %3500 = vmatpush1.msra.mxu0 0.0
        %3501 = vmatprep.subr.mxu0 0.0
        %3502 = vmatpush1.msra.mxu0 0.0
        %3503 = vmatprep.subr.mxu0 0.0
        %3504 = vmatpush1.msra.mxu0 0.0
        %3505 = vmatprep.subr.mxu0 0.0
        %3506 = vmatpush1.msra.mxu0 0.0
        %3507 = vmatprep.subr.mxu0 0.0
        %3508 = vmatpush1.msra.mxu0 0.0
        %3509 = vmatprep.subr.mxu0 0.0
        %3510 = vmatpush1.msra.mxu0 0.0
        %3511 = vmatprep.subr.mxu0 0.0
        %3512 = vmatpush1.msra.mxu0 0.0
        %3513 = vmatprep.subr.mxu0 0.0
        %3514 = vmatpush1.msra.mxu0 0.0
        %3515 = vmatprep.subr.mxu0 0.0
        %3516 = vmatpush1.msra.mxu0 0.0
        %3517 = vmatprep.subr.mxu0 0.0
        %3518 = vmatpush1.msra.mxu0 0.0
        %3519 = vmatprep.subr.mxu0 0.0
        %3520 = vmatpush1.msra.mxu0 0.0
        %3521 = vmatprep.subr.mxu0 0.0
        %3522 = vmatpush1.msra.mxu0 0.0
        %3523 = vmatprep.subr.mxu0 0.0
        %3524 = vmatpush1.msra.mxu0 0.0
        %3525 = vmatprep.subr.mxu0 0.0
        %3526 = vmatpush1.msra.mxu0 0.0
        %3527 = vmatprep.subr.mxu0 0.0
        %3528 = vmatpush1.msra.mxu0 0.0
        %3529 = vmatprep.subr.mxu0 0.0
        %3530 = vmatpush1.msra.mxu0 0.0
        %3531 = vmatprep.subr.mxu0 0.0
        %3532 = vmatpush1.msra.mxu0 0.0
        %3533 = vmatprep.subr.mxu0 0.0
        %3534 = vmatpush1.msra.mxu0 0.0
        %3535 = vmatprep.subr.mxu0 0.0
        %3536 = vmatpush1.msra.mxu0 0.0
        %3537 = vmatprep.subr.mxu0 0.0
        %3538 = vmatpush1.msra.mxu0 0.0
        %3539 = vmatprep.subr.mxu0 0.0
        %3540 = vmatpush1.msra.mxu0 0.0
        %3541 = vmatprep.mubr.f32.mxu0 0.0
        %3542 = vmatmul.mubr.f32.gmra.mrb[0].mxu0 %v3469
        %v3543 = vpop.f32.mrb[0].mxu0
        %v3544 = vadd.f32 0.0, %v3543
        %v3545 = vpop.f32.mrb[0].mxu0
        %3546 = vmatprep.mubr.f32.mxu0 0.0
        %3547 = vmatmul.mubr.f32.gmra.mrb[0].mxu0 %v3472
        %v3548 = vpop.f32.mrb[0].mxu0
        %v3549 = vadd.f32 0.0, %v3548
        %v3550 = vpop.f32.mrb[0].mxu0
        %3551 = vmatprep.mubr.f32.mxu0 0.0
        %3552 = vmatmul.mubr.f32.gmra.mrb[0].mxu0 %v3475
        %v3553 = vpop.f32.mrb[0].mxu0
        %v3554 = vadd.f32 0.0, %v3553
        %v3555 = vpop.f32.mrb[0].mxu0
        %3556 = vdwg.mxu0
        %v3557 = vmax.f32 %v3455, %v3544
        %v3558 = vmax.f32 %v3460, %v3549
        %v3559 = vmax.f32 %v3465, %v3554
        %s3560 = sadd.s32 %s2316, 1
        %s3561 = smul.u32 %s3560, 24
        %s3562 = scalar_lea.vmem [#allocation3], %s3561
        %3563 = vst.msk [vmem:[%s3562] sm:$0xff] %vm509, %v3557
        %3564 = vst.msk [vmem:[%s3562 + $0x8] sm:$0xff] %vm509, %v3558
        %3565 = vst.msk [vmem:[%s3562 + $0x10] sm:$0x3] %vm512, %v3559
      $region92: #{_lambda_.2} parent=79 // loop_footer
        %s2320 = sadd.s32 1, %s2316
      $region93: #{_lambda_.2} parent=79 // loop_footer_branch
        %2315 = sbr.rel target = $region89
      $region94: #{_lambda_.2} parent=79 // loop_exit
        _
      %v3566 = vld [vmem:[%s1] sm:$0xff]
      %v3567 = vld [vmem:[%s1 + $0x8] sm:$0x3]
      %v3568 = vld [vmem:[%s2] sm:$0xff]
      %v3569 = vld [vmem:[%s2 + $0x8] sm:$0x3]
      %v3570 = vld [vmem:[%s10] sm:$0x1]
      %v3571 = vld [vmem:[%s11] sm:$0x1]
      loop: start=0, step=1, limit=8
      $region95: #{_lambda_.2} parent=79 // loop_pre_header
        _
      $region96: #{_lambda_.2} parent=79 // loop_header
        %s3573 = sphi 0, %s3577
        %p3574 = scmp.ge.s32.totalorder %s3573, 8
      $region97: #{_lambda_.2} parent=79 // loop_header_branch
        %3576 = sbr.rel (%p3574) target = $region101
      $region98: #{_lambda_.2} parent=79 // loop_body
        %s3578 = smul.u32 %s3573, 2
        %s3579 = smul.u32 %s3578, 24
        %s3580 = scalar_lea.vmem [#allocation3], %s3579
        %v3581 = vld [vmem:[%s3580] sm:$0xff]
        %v3582 = vld [vmem:[%s3580 + $0x8] sm:$0xff]
        %v3583 = vld [vmem:[%s3580 + $0x18] sm:$0xff]
        %v3584 = vld [vmem:[%s3580 + $0x20] sm:$0xff]
        %v3585 = vpack.c.bf16 %v3582, %v3581
        %v3586 = vpack.c.bf16 %v3584, %v3583
        %v3587 = vld [vmem:[%s9] sm:$0xf]
        %v3588 = vld [vmem:[%s9 + $0x4] sm:$0xf]
        %v3589 = vld [vmem:[%s9 + $0x8] sm:$0xf]
        %v3590 = vld [vmem:[%s9 + $0xc] sm:$0xf]
        %v3591 = vld [vmem:[%s9 + $0x10] sm:$0xf]
        %v3592 = vld [vmem:[%s9 + $0x14] sm:$0xf]
        %v3593 = vld [vmem:[%s9 + $0x18] sm:$0xf]
        %v3594 = vld [vmem:[%s9 + $0x1c] sm:$0xf]
        %v3595 = vld [vmem:[%s3580 + $0x1] sm:$0xff]
        %v3596 = vld [vmem:[%s3580 + $0x9] sm:$0xff]
        %v3597 = vld [vmem:[%s3580 + $0x19] sm:$0xff]
        %v3598 = vld [vmem:[%s3580 + $0x21] sm:$0xff]
        %v3599 = vpack.c.bf16 %v3596, %v3595
        %v3600 = vpack.c.bf16 %v3598, %v3597
        %s3601 = scalar_lea.vmem %s9, 32
        %v3602 = vld [vmem:[%s3601] sm:$0xf]
        %v3603 = vld [vmem:[%s3601 + $0x4] sm:$0xf]
        %v3604 = vld [vmem:[%s3601 + $0x8] sm:$0xf]
        %v3605 = vld [vmem:[%s3601 + $0xc] sm:$0xf]
        %v3606 = vld [vmem:[%s3601 + $0x10] sm:$0xf]
        %v3607 = vld [vmem:[%s3601 + $0x14] sm:$0xf]
        %v3608 = vld [vmem:[%s3601 + $0x18] sm:$0xf]
        %v3609 = vld [vmem:[%s3601 + $0x1c] sm:$0xf]
        %v3618 = vunpack.c.l.b16 %v3602
        %v3619 = vunpack.c.l.b16 %v3603
        %v3620 = vunpack.c.l.b16 %v3604
        %v3621 = vunpack.c.l.b16 %v3605
        %v3622 = vunpack.c.l.b16 %v3606
        %v3623 = vunpack.c.l.b16 %v3607
        %v3624 = vunpack.c.l.b16 %v3608
        %v3625 = vunpack.c.l.b16 %v3609
        %v3626 = vpack.c.b16 %v3619, %v3618
        %v3627 = vpack.c.b16 %v3621, %v3620
        %v3628 = vpack.c.b16 %v3623, %v3622
        %v3629 = vpack.c.b16 %v3625, %v3624
        %v3635 = vsel %vm509, %v3599, 0
        %v3638 = vsel %vm509, %v3600, 0
        %3640 = vmatprep.subr.bf16.mxu0 0
        %3641 = vmatpush1.bf16.msra.mxu0 %v3626
        %3642 = vmatprep.subr.bf16.mxu0 0
        %3643 = vmatpush1.bf16.msra.mxu0 %v3627
        %3644 = vmatprep.subr.bf16.mxu0 0
        %3645 = vmatpush1.bf16.msra.mxu0 %v3628
        %3646 = vmatprep.subr.bf16.mxu0 0
        %3647 = vmatpush1.bf16.msra.mxu0 %v3629
        %3648 = vmatprep.subr.bf16.mxu0 0
        %3649 = vmatpush1.bf16.msra.mxu0 0
        %3650 = vmatprep.subr.bf16.mxu0 0
        %3651 = vmatpush1.bf16.msra.mxu0 0
        %3652 = vmatprep.subr.bf16.mxu0 0
        %3653 = vmatpush1.bf16.msra.mxu0 0
        %3654 = vmatprep.subr.bf16.mxu0 0
        %3655 = vmatpush1.bf16.msra.mxu0 0
        %3656 = vmatprep.subr.bf16.mxu0 0
        %3657 = vmatpush1.bf16.msra.mxu0 0
        %3658 = vmatprep.subr.bf16.mxu0 0
        %3659 = vmatpush1.bf16.msra.mxu0 0
        %3660 = vmatprep.subr.bf16.mxu0 0
        %3661 = vmatpush1.bf16.msra.mxu0 0
        %3662 = vmatprep.subr.bf16.mxu0 0
        %3663 = vmatpush1.bf16.msra.mxu0 0
        %3664 = vmatprep.subr.bf16.mxu0 0
        %3665 = vmatpush1.bf16.msra.mxu0 0
        %3666 = vmatprep.subr.bf16.mxu0 0
        %3667 = vmatpush1.bf16.msra.mxu0 0
        %3668 = vmatprep.subr.bf16.mxu0 0
        %3669 = vmatpush1.bf16.msra.mxu0 0
        %3670 = vmatprep.subr.bf16.mxu0 0
        %3671 = vmatpush1.bf16.msra.mxu0 0
        %3672 = vmatprep.mubr.bf16.mxu0 0
        %3673 = vmatmul.mubr.bf16.gmra.mrb[0].mxu0 %v3635
        %v3674 = vpop.f32.mrb[0].mxu0
        %v3675 = vadd.f32 0.0, %v3674
        %v3676 = vpop.f32.mrb[0].mxu0
        %v3677 = vpop.f32.mrb[0].mxu0
        %v3678 = vadd.f32 0.0, %v3677
        %v3679 = vpop.f32.mrb[0].mxu0
        %3680 = vmatprep.mubr.bf16.mxu0 0
        %3681 = vmatmul.mubr.bf16.gmra.mrb[0].mxu0 %v3638
        %v3682 = vpop.f32.mrb[0].mxu0
        %v3683 = vadd.f32 0.0, %v3682
        %v3684 = vpop.f32.mrb[0].mxu0
        %v3685 = vpop.f32.mrb[0].mxu0
        %v3686 = vadd.f32 0.0, %v3685
        %v3687 = vpop.f32.mrb[0].mxu0
        %3688 = vdwg.mxu0
        %v3697 = vunpack.c.l.b16 %v3587
        %v3698 = vunpack.c.l.b16 %v3588
        %v3699 = vunpack.c.l.b16 %v3589
        %v3700 = vunpack.c.l.b16 %v3590
        %v3701 = vunpack.c.l.b16 %v3591
        %v3702 = vunpack.c.l.b16 %v3592
        %v3703 = vunpack.c.l.b16 %v3593
        %v3704 = vunpack.c.l.b16 %v3594
        %v3705 = vpack.c.b16 %v3698, %v3697
        %v3706 = vpack.c.b16 %v3700, %v3699
        %v3707 = vpack.c.b16 %v3702, %v3701
        %v3708 = vpack.c.b16 %v3704, %v3703
        %v3714 = vsel %vm509, %v3585, 0
        %v3717 = vsel %vm509, %v3586, 0
        %3719 = vmatprep.subr.bf16.mxu0 0
        %3720 = vmatpush1.bf16.msra.mxu0 %v3705
        %3721 = vmatprep.subr.bf16.mxu0 0
        %3722 = vmatpush1.bf16.msra.mxu0 %v3706
        %3723 = vmatprep.subr.bf16.mxu0 0
        %3724 = vmatpush1.bf16.msra.mxu0 %v3707
        %3725 = vmatprep.subr.bf16.mxu0 0
        %3726 = vmatpush1.bf16.msra.mxu0 %v3708
        %3727 = vmatprep.subr.bf16.mxu0 0
        %3728 = vmatpush1.bf16.msra.mxu0 0
        %3729 = vmatprep.subr.bf16.mxu0 0
        %3730 = vmatpush1.bf16.msra.mxu0 0
        %3731 = vmatprep.subr.bf16.mxu0 0
        %3732 = vmatpush1.bf16.msra.mxu0 0
        %3733 = vmatprep.subr.bf16.mxu0 0
        %3734 = vmatpush1.bf16.msra.mxu0 0
        %3735 = vmatprep.subr.bf16.mxu0 0
        %3736 = vmatpush1.bf16.msra.mxu0 0
        %3737 = vmatprep.subr.bf16.mxu0 0
        %3738 = vmatpush1.bf16.msra.mxu0 0
        %3739 = vmatprep.subr.bf16.mxu0 0
        %3740 = vmatpush1.bf16.msra.mxu0 0
        %3741 = vmatprep.subr.bf16.mxu0 0
        %3742 = vmatpush1.bf16.msra.mxu0 0
        %3743 = vmatprep.subr.bf16.mxu0 0
        %3744 = vmatpush1.bf16.msra.mxu0 0
        %3745 = vmatprep.subr.bf16.mxu0 0
        %3746 = vmatpush1.bf16.msra.mxu0 0
        %3747 = vmatprep.subr.bf16.mxu0 0
        %3748 = vmatpush1.bf16.msra.mxu0 0
        %3749 = vmatprep.subr.bf16.mxu0 0
        %3750 = vmatpush1.bf16.msra.mxu0 0
        %3751 = vmatprep.mubr.bf16.mxu0 0
        %3752 = vmatmul.mubr.bf16.gmra.mrb[0].mxu0 %v3714
        %v3753 = vpop.f32.mrb[0].mxu0
        %v3754 = vadd.f32 %v3675, %v3753
        %v3755 = vpop.f32.mrb[0].mxu0
        %v3756 = vpop.f32.mrb[0].mxu0
        %v3757 = vadd.f32 %v3678, %v3756
        %v3758 = vpop.f32.mrb[0].mxu0
        %3759 = vmatprep.mubr.bf16.mxu0 0
        %3760 = vmatmul.mubr.bf16.gmra.mrb[0].mxu0 %v3717
        %v3761 = vpop.f32.mrb[0].mxu0
        %v3762 = vadd.f32 %v3683, %v3761
        %v3763 = vpop.f32.mrb[0].mxu0
        %v3764 = vpop.f32.mrb[0].mxu0
        %v3765 = vadd.f32 %v3686, %v3764
        %v3766 = vpop.f32.mrb[0].mxu0
        %3767 = vdwg.mxu0
        %v3768 = vld [vmem:[%s3580 + $0x2] sm:$0xff]
        %v3769 = vld [vmem:[%s3580 + $0xa] sm:$0xff]
        %v3770 = vld [vmem:[%s3580 + $0x1a] sm:$0xff]
        %v3771 = vld [vmem:[%s3580 + $0x22] sm:$0xff]
        %v3772 = vpack.c.bf16 %v3769, %v3768
        %v3773 = vpack.c.bf16 %v3771, %v3770
        %s3774 = scalar_lea.vmem %s9, 64
        %v3775 = vld [vmem:[%s3774] sm:$0xf]
        %v3776 = vld [vmem:[%s3774 + $0x4] sm:$0xf]
        %v3777 = vld [vmem:[%s3774 + $0x8] sm:$0xf]
        %v3778 = vld [vmem:[%s3774 + $0xc] sm:$0xf]
        %v3779 = vld [vmem:[%s3774 + $0x10] sm:$0xf]
        %v3780 = vld [vmem:[%s3774 + $0x14] sm:$0xf]
        %v3781 = vld [vmem:[%s3774 + $0x18] sm:$0xf]
        %v3782 = vld [vmem:[%s3774 + $0x1c] sm:$0xf]
        %v3791 = vunpack.c.l.b16 %v3775
        %v3792 = vunpack.c.l.b16 %v3776
        %v3793 = vunpack.c.l.b16 %v3777
        %v3794 = vunpack.c.l.b16 %v3778
        %v3795 = vunpack.c.l.b16 %v3779
        %v3796 = vunpack.c.l.b16 %v3780
        %v3797 = vunpack.c.l.b16 %v3781
        %v3798 = vunpack.c.l.b16 %v3782
        %v3799 = vpack.c.b16 %v3792, %v3791
        %v3800 = vpack.c.b16 %v3794, %v3793
        %v3801 = vpack.c.b16 %v3796, %v3795
        %v3802 = vpack.c.b16 %v3798, %v3797
        %v3808 = vsel %vm509, %v3772, 0
        %v3811 = vsel %vm509, %v3773, 0
        %3813 = vmatprep.subr.bf16.mxu0 0
        %3814 = vmatpush1.bf16.msra.mxu0 %v3799
        %3815 = vmatprep.subr.bf16.mxu0 0
        %3816 = vmatpush1.bf16.msra.mxu0 %v3800
        %3817 = vmatprep.subr.bf16.mxu0 0
        %3818 = vmatpush1.bf16.msra.mxu0 %v3801
        %3819 = vmatprep.subr.bf16.mxu0 0
        %3820 = vmatpush1.bf16.msra.mxu0 %v3802
        %3821 = vmatprep.subr.bf16.mxu0 0
        %3822 = vmatpush1.bf16.msra.mxu0 0
        %3823 = vmatprep.subr.bf16.mxu0 0
        %3824 = vmatpush1.bf16.msra.mxu0 0
        %3825 = vmatprep.subr.bf16.mxu0 0
        %3826 = vmatpush1.bf16.msra.mxu0 0
        %3827 = vmatprep.subr.bf16.mxu0 0
        %3828 = vmatpush1.bf16.msra.mxu0 0
        %3829 = vmatprep.subr.bf16.mxu0 0
        %3830 = vmatpush1.bf16.msra.mxu0 0
        %3831 = vmatprep.subr.bf16.mxu0 0
        %3832 = vmatpush1.bf16.msra.mxu0 0
        %3833 = vmatprep.subr.bf16.mxu0 0
        %3834 = vmatpush1.bf16.msra.mxu0 0
        %3835 = vmatprep.subr.bf16.mxu0 0
        %3836 = vmatpush1.bf16.msra.mxu0 0
        %3837 = vmatprep.subr.bf16.mxu0 0
        %3838 = vmatpush1.bf16.msra.mxu0 0
        %3839 = vmatprep.subr.bf16.mxu0 0
        %3840 = vmatpush1.bf16.msra.mxu0 0
        %3841 = vmatprep.subr.bf16.mxu0 0
        %3842 = vmatpush1.bf16.msra.mxu0 0
        %3843 = vmatprep.subr.bf16.mxu0 0
        %3844 = vmatpush1.bf16.msra.mxu0 0
        %3845 = vmatprep.mubr.bf16.mxu0 0
        %3846 = vmatmul.mubr.bf16.gmra.mrb[0].mxu0 %v3808
        %v3847 = vpop.f32.mrb[0].mxu0
        %v3848 = vadd.f32 0.0, %v3847
        %v3849 = vpop.f32.mrb[0].mxu0
        %v3850 = vpop.f32.mrb[0].mxu0
        %v3851 = vadd.f32 0.0, %v3850
        %v3852 = vpop.f32.mrb[0].mxu0
        %3853 = vmatprep.mubr.bf16.mxu0 0
        %3854 = vmatmul.mubr.bf16.gmra.mrb[0].mxu0 %v3811
        %v3855 = vpop.f32.mrb[0].mxu0
        %v3856 = vadd.f32 0.0, %v3855
        %v3857 = vpop.f32.mrb[0].mxu0
        %v3858 = vpop.f32.mrb[0].mxu0
        %v3859 = vadd.f32 0.0, %v3858
        %v3860 = vpop.f32.mrb[0].mxu0
        %3861 = vdwg.mxu0
        %v3862 = vadd.f32 %v3754, %v3848
        %v3863 = vadd.f32 %v3757, %v3851
        %v3864 = vadd.f32 %v3762, %v3856
        %v3865 = vadd.f32 %v3765, %v3859
        %s3866 = sadd.s32 %s3578, 1
        %s3867 = smul.u32 %s3866, 24
        %s3868 = scalar_lea.vmem [#allocation3], %s3867
        %v3869 = vld [vmem:[%s3868] sm:$0xff]
        %v3870 = vld [vmem:[%s3868 + $0x8] sm:$0xff]
        %v3871 = vld [vmem:[%s3868 + $0x18] sm:$0xff]
        %v3872 = vld [vmem:[%s3868 + $0x20] sm:$0xff]
        %v3873 = vpack.c.bf16 %v3870, %v3869
        %v3874 = vpack.c.bf16 %v3872, %v3871
        %s3875 = scalar_lea.vmem %s9, 96
        %v3876 = vld [vmem:[%s3875] sm:$0xf]
        %v3877 = vld [vmem:[%s3875 + $0x4] sm:$0xf]
        %v3878 = vld [vmem:[%s3875 + $0x8] sm:$0xf]
        %v3879 = vld [vmem:[%s3875 + $0xc] sm:$0xf]
        %v3880 = vld [vmem:[%s3875 + $0x10] sm:$0xf]
        %v3881 = vld [vmem:[%s3875 + $0x14] sm:$0xf]
        %v3882 = vld [vmem:[%s3875 + $0x18] sm:$0xf]
        %v3883 = vld [vmem:[%s3875 + $0x1c] sm:$0xf]
        %v3892 = vunpack.c.l.b16 %v3876
        %v3893 = vunpack.c.l.b16 %v3877
        %v3894 = vunpack.c.l.b16 %v3878
        %v3895 = vunpack.c.l.b16 %v3879
        %v3896 = vunpack.c.l.b16 %v3880
        %v3897 = vunpack.c.l.b16 %v3881
        %v3898 = vunpack.c.l.b16 %v3882
        %v3899 = vunpack.c.l.b16 %v3883
        %v3900 = vpack.c.b16 %v3893, %v3892
        %v3901 = vpack.c.b16 %v3895, %v3894
        %v3902 = vpack.c.b16 %v3897, %v3896
        %v3903 = vpack.c.b16 %v3899, %v3898
        %v3909 = vsel %vm509, %v3873, 0
        %v3912 = vsel %vm509, %v3874, 0
        %3914 = vmatprep.subr.bf16.mxu0 0
        %3915 = vmatpush1.bf16.msra.mxu0 %v3900
        %3916 = vmatprep.subr.bf16.mxu0 0
        %3917 = vmatpush1.bf16.msra.mxu0 %v3901
        %3918 = vmatprep.subr.bf16.mxu0 0
        %3919 = vmatpush1.bf16.msra.mxu0 %v3902
        %3920 = vmatprep.subr.bf16.mxu0 0
        %3921 = vmatpush1.bf16.msra.mxu0 %v3903
        %3922 = vmatprep.subr.bf16.mxu0 0
        %3923 = vmatpush1.bf16.msra.mxu0 0
        %3924 = vmatprep.subr.bf16.mxu0 0
        %3925 = vmatpush1.bf16.msra.mxu0 0
        %3926 = vmatprep.subr.bf16.mxu0 0
        %3927 = vmatpush1.bf16.msra.mxu0 0
        %3928 = vmatprep.subr.bf16.mxu0 0
        %3929 = vmatpush1.bf16.msra.mxu0 0
        %3930 = vmatprep.subr.bf16.mxu0 0
        %3931 = vmatpush1.bf16.msra.mxu0 0
        %3932 = vmatprep.subr.bf16.mxu0 0
        %3933 = vmatpush1.bf16.msra.mxu0 0
        %3934 = vmatprep.subr.bf16.mxu0 0
        %3935 = vmatpush1.bf16.msra.mxu0 0
        %3936 = vmatprep.subr.bf16.mxu0 0
        %3937 = vmatpush1.bf16.msra.mxu0 0
        %3938 = vmatprep.subr.bf16.mxu0 0
        %3939 = vmatpush1.bf16.msra.mxu0 0
        %3940 = vmatprep.subr.bf16.mxu0 0
        %3941 = vmatpush1.bf16.msra.mxu0 0
        %3942 = vmatprep.subr.bf16.mxu0 0
        %3943 = vmatpush1.bf16.msra.mxu0 0
        %3944 = vmatprep.subr.bf16.mxu0 0
        %3945 = vmatpush1.bf16.msra.mxu0 0
        %3946 = vmatprep.mubr.bf16.mxu0 0
        %3947 = vmatmul.mubr.bf16.gmra.mrb[0].mxu0 %v3909
        %v3948 = vpop.f32.mrb[0].mxu0
        %v3949 = vadd.f32 0.0, %v3948
        %v3950 = vpop.f32.mrb[0].mxu0
        %v3951 = vpop.f32.mrb[0].mxu0
        %v3952 = vadd.f32 0.0, %v3951
        %v3953 = vpop.f32.mrb[0].mxu0
        %3954 = vmatprep.mubr.bf16.mxu0 0
        %3955 = vmatmul.mubr.bf16.gmra.mrb[0].mxu0 %v3912
        %v3956 = vpop.f32.mrb[0].mxu0
        %v3957 = vadd.f32 0.0, %v3956
        %v3958 = vpop.f32.mrb[0].mxu0
        %v3959 = vpop.f32.mrb[0].mxu0
        %v3960 = vadd.f32 0.0, %v3959
        %v3961 = vpop.f32.mrb[0].mxu0
        %3962 = vdwg.mxu0
        %v3963 = vadd.f32 %v3862, %v3949
        %v3964 = vadd.f32 %v3863, %v3952
        %v3965 = vadd.f32 %v3864, %v3957
        %v3966 = vadd.f32 %v3865, %v3960
        %v3967 = vld [vmem:[%s3868 + $0x1] sm:$0xff]
        %v3968 = vld [vmem:[%s3868 + $0x9] sm:$0xff]
        %v3969 = vld [vmem:[%s3868 + $0x19] sm:$0xff]
        %v3970 = vld [vmem:[%s3868 + $0x21] sm:$0xff]
        %v3971 = vpack.c.bf16 %v3968, %v3967
        %v3972 = vpack.c.bf16 %v3970, %v3969
        %s3973 = scalar_lea.vmem %s9, 128
        %v3974 = vld [vmem:[%s3973] sm:$0xf]
        %v3975 = vld [vmem:[%s3973 + $0x4] sm:$0xf]
        %v3976 = vld [vmem:[%s3973 + $0x8] sm:$0xf]
        %v3977 = vld [vmem:[%s3973 + $0xc] sm:$0xf]
        %v3978 = vld [vmem:[%s3973 + $0x10] sm:$0xf]
        %v3979 = vld [vmem:[%s3973 + $0x14] sm:$0xf]
        %v3980 = vld [vmem:[%s3973 + $0x18] sm:$0xf]
        %v3981 = vld [vmem:[%s3973 + $0x1c] sm:$0xf]
        %v3990 = vunpack.c.l.b16 %v3974
        %v3991 = vunpack.c.l.b16 %v3975
        %v3992 = vunpack.c.l.b16 %v3976
        %v3993 = vunpack.c.l.b16 %v3977
        %v3994 = vunpack.c.l.b16 %v3978
        %v3995 = vunpack.c.l.b16 %v3979
        %v3996 = vunpack.c.l.b16 %v3980
        %v3997 = vunpack.c.l.b16 %v3981
        %v3998 = vpack.c.b16 %v3991, %v3990
        %v3999 = vpack.c.b16 %v3993, %v3992
        %v4000 = vpack.c.b16 %v3995, %v3994
        %v4001 = vpack.c.b16 %v3997, %v3996
        %v4007 = vsel %vm509, %v3971, 0
        %v4010 = vsel %vm509, %v3972, 0
        %4012 = vmatprep.subr.bf16.mxu0 0
        %4013 = vmatpush1.bf16.msra.mxu0 %v3998
        %4014 = vmatprep.subr.bf16.mxu0 0
        %4015 = vmatpush1.bf16.msra.mxu0 %v3999
        %4016 = vmatprep.subr.bf16.mxu0 0
        %4017 = vmatpush1.bf16.msra.mxu0 %v4000
        %4018 = vmatprep.subr.bf16.mxu0 0
        %4019 = vmatpush1.bf16.msra.mxu0 %v4001
        %4020 = vmatprep.subr.bf16.mxu0 0
        %4021 = vmatpush1.bf16.msra.mxu0 0
        %4022 = vmatprep.subr.bf16.mxu0 0
        %4023 = vmatpush1.bf16.msra.mxu0 0
        %4024 = vmatprep.subr.bf16.mxu0 0
        %4025 = vmatpush1.bf16.msra.mxu0 0
        %4026 = vmatprep.subr.bf16.mxu0 0
        %4027 = vmatpush1.bf16.msra.mxu0 0
        %4028 = vmatprep.subr.bf16.mxu0 0
        %4029 = vmatpush1.bf16.msra.mxu0 0
        %4030 = vmatprep.subr.bf16.mxu0 0
        %4031 = vmatpush1.bf16.msra.mxu0 0
        %4032 = vmatprep.subr.bf16.mxu0 0
        %4033 = vmatpush1.bf16.msra.mxu0 0
        %4034 = vmatprep.subr.bf16.mxu0 0
        %4035 = vmatpush1.bf16.msra.mxu0 0
        %4036 = vmatprep.subr.bf16.mxu0 0
        %4037 = vmatpush1.bf16.msra.mxu0 0
        %4038 = vmatprep.subr.bf16.mxu0 0
        %4039 = vmatpush1.bf16.msra.mxu0 0
        %4040 = vmatprep.subr.bf16.mxu0 0
        %4041 = vmatpush1.bf16.msra.mxu0 0
        %4042 = vmatprep.subr.bf16.mxu0 0
        %4043 = vmatpush1.bf16.msra.mxu0 0
        %4044 = vmatprep.mubr.bf16.mxu0 0
        %4045 = vmatmul.mubr.bf16.gmra.mrb[0].mxu0 %v4007
        %v4046 = vpop.f32.mrb[0].mxu0
        %v4047 = vadd.f32 0.0, %v4046
        %v4048 = vpop.f32.mrb[0].mxu0
        %v4049 = vpop.f32.mrb[0].mxu0
        %v4050 = vadd.f32 0.0, %v4049
        %v4051 = vpop.f32.mrb[0].mxu0
        %4052 = vmatprep.mubr.bf16.mxu0 0
        %4053 = vmatmul.mubr.bf16.gmra.mrb[0].mxu0 %v4010
        %v4054 = vpop.f32.mrb[0].mxu0
        %v4055 = vadd.f32 0.0, %v4054
        %v4056 = vpop.f32.mrb[0].mxu0
        %v4057 = vpop.f32.mrb[0].mxu0
        %v4058 = vadd.f32 0.0, %v4057
        %v4059 = vpop.f32.mrb[0].mxu0
        %4060 = vdwg.mxu0
        %v4061 = vadd.f32 %v3963, %v4047
        %v4062 = vadd.f32 %v3964, %v4050
        %v4063 = vadd.f32 %v3965, %v4055
        %v4064 = vadd.f32 %v3966, %v4058
        %v4065 = vld [vmem:[%s3868 + $0x2] sm:$0xff]
        %v4066 = vld [vmem:[%s3868 + $0xa] sm:$0xff]
        %v4067 = vld [vmem:[%s3868 + $0x1a] sm:$0xff]
        %v4068 = vld [vmem:[%s3868 + $0x22] sm:$0xff]
        %v4069 = vpack.c.bf16 %v4066, %v4065
        %v4070 = vpack.c.bf16 %v4068, %v4067
        %s4071 = scalar_lea.vmem %s9, 160
        %v4072 = vld [vmem:[%s4071] sm:$0xf]
        %v4073 = vld [vmem:[%s4071 + $0x4] sm:$0xf]
        %v4074 = vld [vmem:[%s4071 + $0x8] sm:$0xf]
        %v4075 = vld [vmem:[%s4071 + $0xc] sm:$0xf]
        %v4076 = vld [vmem:[%s4071 + $0x10] sm:$0xf]
        %v4077 = vld [vmem:[%s4071 + $0x14] sm:$0xf]
        %v4078 = vld [vmem:[%s4071 + $0x18] sm:$0xf]
        %v4079 = vld [vmem:[%s4071 + $0x1c] sm:$0xf]
        %v4088 = vunpack.c.l.b16 %v4072
        %v4089 = vunpack.c.l.b16 %v4073
        %v4090 = vunpack.c.l.b16 %v4074
        %v4091 = vunpack.c.l.b16 %v4075
        %v4092 = vunpack.c.l.b16 %v4076
        %v4093 = vunpack.c.l.b16 %v4077
        %v4094 = vunpack.c.l.b16 %v4078
        %v4095 = vunpack.c.l.b16 %v4079
        %v4096 = vpack.c.b16 %v4089, %v4088
        %v4097 = vpack.c.b16 %v4091, %v4090
        %v4098 = vpack.c.b16 %v4093, %v4092
        %v4099 = vpack.c.b16 %v4095, %v4094
        %v4105 = vsel %vm509, %v4069, 0
        %v4108 = vsel %vm509, %v4070, 0
        %4110 = vmatprep.subr.bf16.mxu0 0
        %4111 = vmatpush1.bf16.msra.mxu0 %v4096
        %4112 = vmatprep.subr.bf16.mxu0 0
        %4113 = vmatpush1.bf16.msra.mxu0 %v4097
        %4114 = vmatprep.subr.bf16.mxu0 0
        %4115 = vmatpush1.bf16.msra.mxu0 %v4098
        %4116 = vmatprep.subr.bf16.mxu0 0
        %4117 = vmatpush1.bf16.msra.mxu0 %v4099
        %4118 = vmatprep.subr.bf16.mxu0 0
        %4119 = vmatpush1.bf16.msra.mxu0 0
        %4120 = vmatprep.subr.bf16.mxu0 0
        %4121 = vmatpush1.bf16.msra.mxu0 0
        %4122 = vmatprep.subr.bf16.mxu0 0
        %4123 = vmatpush1.bf16.msra.mxu0 0
        %4124 = vmatprep.subr.bf16.mxu0 0
        %4125 = vmatpush1.bf16.msra.mxu0 0
        %4126 = vmatprep.subr.bf16.mxu0 0
        %4127 = vmatpush1.bf16.msra.mxu0 0
        %4128 = vmatprep.subr.bf16.mxu0 0
        %4129 = vmatpush1.bf16.msra.mxu0 0
        %4130 = vmatprep.subr.bf16.mxu0 0
        %4131 = vmatpush1.bf16.msra.mxu0 0
        %4132 = vmatprep.subr.bf16.mxu0 0
        %4133 = vmatpush1.bf16.msra.mxu0 0
        %4134 = vmatprep.subr.bf16.mxu0 0
        %4135 = vmatpush1.bf16.msra.mxu0 0
        %4136 = vmatprep.subr.bf16.mxu0 0
        %4137 = vmatpush1.bf16.msra.mxu0 0
        %4138 = vmatprep.subr.bf16.mxu0 0
        %4139 = vmatpush1.bf16.msra.mxu0 0
        %4140 = vmatprep.subr.bf16.mxu0 0
        %4141 = vmatpush1.bf16.msra.mxu0 0
        %4142 = vmatprep.mubr.bf16.mxu0 0
        %4143 = vmatmul.mubr.bf16.gmra.mrb[0].mxu0 %v4105
        %v4144 = vpop.f32.mrb[0].mxu0
        %v4145 = vadd.f32 0.0, %v4144
        %v4146 = vpop.f32.mrb[0].mxu0
        %v4147 = vpop.f32.mrb[0].mxu0
        %v4148 = vadd.f32 0.0, %v4147
        %v4149 = vpop.f32.mrb[0].mxu0
        %4150 = vmatprep.mubr.bf16.mxu0 0
        %4151 = vmatmul.mubr.bf16.gmra.mrb[0].mxu0 %v4108
        %v4152 = vpop.f32.mrb[0].mxu0
        %v4153 = vadd.f32 0.0, %v4152
        %v4154 = vpop.f32.mrb[0].mxu0
        %v4155 = vpop.f32.mrb[0].mxu0
        %v4156 = vadd.f32 0.0, %v4155
        %v4157 = vpop.f32.mrb[0].mxu0
        %4158 = vdwg.mxu0
        %v4159 = vadd.f32 %v4061, %v4145
        %v4160 = vadd.f32 %v4062, %v4148
        %v4161 = vadd.f32 %v4063, %v4153
        %v4162 = vadd.f32 %v4064, %v4156
        %s4163 = sadd.s32 %s3578, 2
        %s4164 = smul.u32 %s4163, 24
        %s4165 = scalar_lea.vmem [#allocation3], %s4164
        %v4166 = vld [vmem:[%s4165] sm:$0xff]
        %v4167 = vld [vmem:[%s4165 + $0x8] sm:$0xff]
        %v4168 = vld [vmem:[%s4165 + $0x18] sm:$0xff]
        %v4169 = vld [vmem:[%s4165 + $0x20] sm:$0xff]
        %v4170 = vpack.c.bf16 %v4167, %v4166
        %v4171 = vpack.c.bf16 %v4169, %v4168
        %s4172 = scalar_lea.vmem %s9, 192
        %v4173 = vld [vmem:[%s4172] sm:$0xf]
        %v4174 = vld [vmem:[%s4172 + $0x4] sm:$0xf]
        %v4175 = vld [vmem:[%s4172 + $0x8] sm:$0xf]
        %v4176 = vld [vmem:[%s4172 + $0xc] sm:$0xf]
        %v4177 = vld [vmem:[%s4172 + $0x10] sm:$0xf]
        %v4178 = vld [vmem:[%s4172 + $0x14] sm:$0xf]
        %v4179 = vld [vmem:[%s4172 + $0x18] sm:$0xf]
        %v4180 = vld [vmem:[%s4172 + $0x1c] sm:$0xf]
        %v4189 = vunpack.c.l.b16 %v4173
        %v4190 = vunpack.c.l.b16 %v4174
        %v4191 = vunpack.c.l.b16 %v4175
        %v4192 = vunpack.c.l.b16 %v4176
        %v4193 = vunpack.c.l.b16 %v4177
        %v4194 = vunpack.c.l.b16 %v4178
        %v4195 = vunpack.c.l.b16 %v4179
        %v4196 = vunpack.c.l.b16 %v4180
        %v4197 = vpack.c.b16 %v4190, %v4189
        %v4198 = vpack.c.b16 %v4192, %v4191
        %v4199 = vpack.c.b16 %v4194, %v4193
        %v4200 = vpack.c.b16 %v4196, %v4195
        %v4206 = vsel %vm509, %v4170, 0
        %v4209 = vsel %vm509, %v4171, 0
        %4211 = vmatprep.subr.bf16.mxu0 0
        %4212 = vmatpush1.bf16.msra.mxu0 %v4197
        %4213 = vmatprep.subr.bf16.mxu0 0
        %4214 = vmatpush1.bf16.msra.mxu0 %v4198
        %4215 = vmatprep.subr.bf16.mxu0 0
        %4216 = vmatpush1.bf16.msra.mxu0 %v4199
        %4217 = vmatprep.subr.bf16.mxu0 0
        %4218 = vmatpush1.bf16.msra.mxu0 %v4200
        %4219 = vmatprep.subr.bf16.mxu0 0
        %4220 = vmatpush1.bf16.msra.mxu0 0
        %4221 = vmatprep.subr.bf16.mxu0 0
        %4222 = vmatpush1.bf16.msra.mxu0 0
        %4223 = vmatprep.subr.bf16.mxu0 0
        %4224 = vmatpush1.bf16.msra.mxu0 0
        %4225 = vmatprep.subr.bf16.mxu0 0
        %4226 = vmatpush1.bf16.msra.mxu0 0
        %4227 = vmatprep.subr.bf16.mxu0 0
        %4228 = vmatpush1.bf16.msra.mxu0 0
        %4229 = vmatprep.subr.bf16.mxu0 0
        %4230 = vmatpush1.bf16.msra.mxu0 0
        %4231 = vmatprep.subr.bf16.mxu0 0
        %4232 = vmatpush1.bf16.msra.mxu0 0
        %4233 = vmatprep.subr.bf16.mxu0 0
        %4234 = vmatpush1.bf16.msra.mxu0 0
        %4235 = vmatprep.subr.bf16.mxu0 0
        %4236 = vmatpush1.bf16.msra.mxu0 0
        %4237 = vmatprep.subr.bf16.mxu0 0
        %4238 = vmatpush1.bf16.msra.mxu0 0
        %4239 = vmatprep.subr.bf16.mxu0 0
        %4240 = vmatpush1.bf16.msra.mxu0 0
        %4241 = vmatprep.subr.bf16.mxu0 0
        %4242 = vmatpush1.bf16.msra.mxu0 0
        %4243 = vmatprep.mubr.bf16.mxu0 0
        %4244 = vmatmul.mubr.bf16.gmra.mrb[0].mxu0 %v4206
        %v4245 = vpop.f32.mrb[0].mxu0
        %v4246 = vadd.f32 0.0, %v4245
        %v4247 = vpop.f32.mrb[0].mxu0
        %v4248 = vpop.f32.mrb[0].mxu0
        %v4249 = vadd.f32 0.0, %v4248
        %v4250 = vpop.f32.mrb[0].mxu0
        %4251 = vmatprep.mubr.bf16.mxu0 0
        %4252 = vmatmul.mubr.bf16.gmra.mrb[0].mxu0 %v4209
        %v4253 = vpop.f32.mrb[0].mxu0
        %v4254 = vadd.f32 0.0, %v4253
        %v4255 = vpop.f32.mrb[0].mxu0
        %v4256 = vpop.f32.mrb[0].mxu0
        %v4257 = vadd.f32 0.0, %v4256
        %v4258 = vpop.f32.mrb[0].mxu0
        %4259 = vdwg.mxu0
        %v4260 = vadd.f32 %v4159, %v4246
        %v4261 = vadd.f32 %v4160, %v4249
        %v4262 = vadd.f32 %v4161, %v4254
        %v4263 = vadd.f32 %v4162, %v4257
        %v4264 = vld [vmem:[%s4165 + $0x1] sm:$0xff]
        %v4265 = vld [vmem:[%s4165 + $0x9] sm:$0xff]
        %v4266 = vld [vmem:[%s4165 + $0x19] sm:$0xff]
        %v4267 = vld [vmem:[%s4165 + $0x21] sm:$0xff]
        %v4268 = vpack.c.bf16 %v4265, %v4264
        %v4269 = vpack.c.bf16 %v4267, %v4266
        %s4270 = scalar_lea.vmem %s9, 224
        %v4271 = vld [vmem:[%s4270] sm:$0xf]
        %v4272 = vld [vmem:[%s4270 + $0x4] sm:$0xf]
        %v4273 = vld [vmem:[%s4270 + $0x8] sm:$0xf]
        %v4274 = vld [vmem:[%s4270 + $0xc] sm:$0xf]
        %v4275 = vld [vmem:[%s4270 + $0x10] sm:$0xf]
        %v4276 = vld [vmem:[%s4270 + $0x14] sm:$0xf]
        %v4277 = vld [vmem:[%s4270 + $0x18] sm:$0xf]
        %v4278 = vld [vmem:[%s4270 + $0x1c] sm:$0xf]
        %v4287 = vunpack.c.l.b16 %v4271
        %v4288 = vunpack.c.l.b16 %v4272
        %v4289 = vunpack.c.l.b16 %v4273
        %v4290 = vunpack.c.l.b16 %v4274
        %v4291 = vunpack.c.l.b16 %v4275
        %v4292 = vunpack.c.l.b16 %v4276
        %v4293 = vunpack.c.l.b16 %v4277
        %v4294 = vunpack.c.l.b16 %v4278
        %v4295 = vpack.c.b16 %v4288, %v4287
        %v4296 = vpack.c.b16 %v4290, %v4289
        %v4297 = vpack.c.b16 %v4292, %v4291
        %v4298 = vpack.c.b16 %v4294, %v4293
        %v4304 = vsel %vm509, %v4268, 0
        %v4307 = vsel %vm509, %v4269, 0
        %4309 = vmatprep.subr.bf16.mxu0 0
        %4310 = vmatpush1.bf16.msra.mxu0 %v4295
        %4311 = vmatprep.subr.bf16.mxu0 0
        %4312 = vmatpush1.bf16.msra.mxu0 %v4296
        %4313 = vmatprep.subr.bf16.mxu0 0
        %4314 = vmatpush1.bf16.msra.mxu0 %v4297
        %4315 = vmatprep.subr.bf16.mxu0 0
        %4316 = vmatpush1.bf16.msra.mxu0 %v4298
        %4317 = vmatprep.subr.bf16.mxu0 0
        %4318 = vmatpush1.bf16.msra.mxu0 0
        %4319 = vmatprep.subr.bf16.mxu0 0
        %4320 = vmatpush1.bf16.msra.mxu0 0
        %4321 = vmatprep.subr.bf16.mxu0 0
        %4322 = vmatpush1.bf16.msra.mxu0 0
        %4323 = vmatprep.subr.bf16.mxu0 0
        %4324 = vmatpush1.bf16.msra.mxu0 0
        %4325 = vmatprep.subr.bf16.mxu0 0
        %4326 = vmatpush1.bf16.msra.mxu0 0
        %4327 = vmatprep.subr.bf16.mxu0 0
        %4328 = vmatpush1.bf16.msra.mxu0 0
        %4329 = vmatprep.subr.bf16.mxu0 0
        %4330 = vmatpush1.bf16.msra.mxu0 0
        %4331 = vmatprep.subr.bf16.mxu0 0
        %4332 = vmatpush1.bf16.msra.mxu0 0
        %4333 = vmatprep.subr.bf16.mxu0 0
        %4334 = vmatpush1.bf16.msra.mxu0 0
        %4335 = vmatprep.subr.bf16.mxu0 0
        %4336 = vmatpush1.bf16.msra.mxu0 0
        %4337 = vmatprep.subr.bf16.mxu0 0
        %4338 = vmatpush1.bf16.msra.mxu0 0
        %4339 = vmatprep.subr.bf16.mxu0 0
        %4340 = vmatpush1.bf16.msra.mxu0 0
        %4341 = vmatprep.mubr.bf16.mxu0 0
        %4342 = vmatmul.mubr.bf16.gmra.mrb[0].mxu0 %v4304
        %v4343 = vpop.f32.mrb[0].mxu0
        %v4344 = vadd.f32 0.0, %v4343
        %v4345 = vpop.f32.mrb[0].mxu0
        %v4346 = vpop.f32.mrb[0].mxu0
        %v4347 = vadd.f32 0.0, %v4346
        %v4348 = vpop.f32.mrb[0].mxu0
        %4349 = vmatprep.mubr.bf16.mxu0 0
        %4350 = vmatmul.mubr.bf16.gmra.mrb[0].mxu0 %v4307
        %v4351 = vpop.f32.mrb[0].mxu0
        %v4352 = vadd.f32 0.0, %v4351
        %v4353 = vpop.f32.mrb[0].mxu0
        %v4354 = vpop.f32.mrb[0].mxu0
        %v4355 = vadd.f32 0.0, %v4354
        %v4356 = vpop.f32.mrb[0].mxu0
        %4357 = vdwg.mxu0
        %v4358 = vadd.f32 %v4260, %v4344
        %v4359 = vadd.f32 %v4261, %v4347
        %v4360 = vadd.f32 %v4262, %v4352
        %v4361 = vadd.f32 %v4263, %v4355
        %v4362 = vld [vmem:[%s4165 + $0x2] sm:$0xff]
        %v4363 = vld [vmem:[%s4165 + $0xa] sm:$0xff]
        %v4364 = vld [vmem:[%s4165 + $0x1a] sm:$0xff]
        %v4365 = vld [vmem:[%s4165 + $0x22] sm:$0xff]
        %v4366 = vpack.c.bf16 %v4363, %v4362
        %v4367 = vpack.c.bf16 %v4365, %v4364
        %s4368 = scalar_lea.vmem %s9, 256
        %v4369 = vld [vmem:[%s4368] sm:$0xf]
        %v4370 = vld [vmem:[%s4368 + $0x4] sm:$0xf]
        %v4371 = vld [vmem:[%s4368 + $0x8] sm:$0xf]
        %v4372 = vld [vmem:[%s4368 + $0xc] sm:$0xf]
        %v4373 = vld [vmem:[%s4368 + $0x10] sm:$0xf]
        %v4374 = vld [vmem:[%s4368 + $0x14] sm:$0xf]
        %v4375 = vld [vmem:[%s4368 + $0x18] sm:$0xf]
        %v4376 = vld [vmem:[%s4368 + $0x1c] sm:$0xf]
        %v4385 = vunpack.c.l.b16 %v4369
        %v4386 = vunpack.c.l.b16 %v4370
        %v4387 = vunpack.c.l.b16 %v4371
        %v4388 = vunpack.c.l.b16 %v4372
        %v4389 = vunpack.c.l.b16 %v4373
        %v4390 = vunpack.c.l.b16 %v4374
        %v4391 = vunpack.c.l.b16 %v4375
        %v4392 = vunpack.c.l.b16 %v4376
        %v4393 = vpack.c.b16 %v4386, %v4385
        %v4394 = vpack.c.b16 %v4388, %v4387
        %v4395 = vpack.c.b16 %v4390, %v4389
        %v4396 = vpack.c.b16 %v4392, %v4391
        %v4402 = vsel %vm509, %v4366, 0
        %v4405 = vsel %vm509, %v4367, 0
        %4407 = vmatprep.subr.bf16.mxu0 0
        %4408 = vmatpush1.bf16.msra.mxu0 %v4393
        %4409 = vmatprep.subr.bf16.mxu0 0
        %4410 = vmatpush1.bf16.msra.mxu0 %v4394
        %4411 = vmatprep.subr.bf16.mxu0 0
        %4412 = vmatpush1.bf16.msra.mxu0 %v4395
        %4413 = vmatprep.subr.bf16.mxu0 0
        %4414 = vmatpush1.bf16.msra.mxu0 %v4396
        %4415 = vmatprep.subr.bf16.mxu0 0
        %4416 = vmatpush1.bf16.msra.mxu0 0
        %4417 = vmatprep.subr.bf16.mxu0 0
        %4418 = vmatpush1.bf16.msra.mxu0 0
        %4419 = vmatprep.subr.bf16.mxu0 0
        %4420 = vmatpush1.bf16.msra.mxu0 0
        %4421 = vmatprep.subr.bf16.mxu0 0
        %4422 = vmatpush1.bf16.msra.mxu0 0
        %4423 = vmatprep.subr.bf16.mxu0 0
        %4424 = vmatpush1.bf16.msra.mxu0 0
        %4425 = vmatprep.subr.bf16.mxu0 0
        %4426 = vmatpush1.bf16.msra.mxu0 0
        %4427 = vmatprep.subr.bf16.mxu0 0
        %4428 = vmatpush1.bf16.msra.mxu0 0
        %4429 = vmatprep.subr.bf16.mxu0 0
        %4430 = vmatpush1.bf16.msra.mxu0 0
        %4431 = vmatprep.subr.bf16.mxu0 0
        %4432 = vmatpush1.bf16.msra.mxu0 0
        %4433 = vmatprep.subr.bf16.mxu0 0
        %4434 = vmatpush1.bf16.msra.mxu0 0
        %4435 = vmatprep.subr.bf16.mxu0 0
        %4436 = vmatpush1.bf16.msra.mxu0 0
        %4437 = vmatprep.subr.bf16.mxu0 0
        %4438 = vmatpush1.bf16.msra.mxu0 0
        %4439 = vmatprep.mubr.bf16.mxu0 0
        %4440 = vmatmul.mubr.bf16.gmra.mrb[0].mxu0 %v4402
        %v4441 = vpop.f32.mrb[0].mxu0
        %v4442 = vadd.f32 0.0, %v4441
        %v4443 = vpop.f32.mrb[0].mxu0
        %v4444 = vpop.f32.mrb[0].mxu0
        %v4445 = vadd.f32 0.0, %v4444
        %v4446 = vpop.f32.mrb[0].mxu0
        %4447 = vmatprep.mubr.bf16.mxu0 0
        %4448 = vmatmul.mubr.bf16.gmra.mrb[0].mxu0 %v4405
        %v4449 = vpop.f32.mrb[0].mxu0
        %v4450 = vadd.f32 0.0, %v4449
        %v4451 = vpop.f32.mrb[0].mxu0
        %v4452 = vpop.f32.mrb[0].mxu0
        %v4453 = vadd.f32 0.0, %v4452
        %v4454 = vpop.f32.mrb[0].mxu0
        %4455 = vdwg.mxu0
        %v4456 = vadd.f32 %v4358, %v4442
        %v4457 = vadd.f32 %v4359, %v4445
        %v4458 = vadd.f32 %v4360, %v4450
        %v4459 = vadd.f32 %v4361, %v4453
        %v4461 = vlaneseq
        %v4462 = vshrl.u32 %v4461, 7
        %v4463 = vsub.s32 0, %v4462
        %v4464 = vrot.slane %v3570, %v4463
        %v4466 = vmul.f32 %v4456, %v4464
        %v4467 = vmul.f32 %v4457, %v4464
        %v4468 = vmul.f32 %v4458, %v4464
        %v4469 = vmul.f32 %v4459, %v4464
        %v4471 = vlaneseq
        %v4472 = vshrl.u32 %v4471, 7
        %v4473 = vsub.s32 0, %v4472
        %v4474 = vrot.slane %v3571, %v4473
        %v4476 = vadd.f32 %v4466, %v4474
        %v4477 = vadd.f32 %v4467, %v4474
        %v4478 = vadd.f32 %v4468, %v4474
        %v4479 = vadd.f32 %v4469, %v4474
        %v4480 = vmax.f32 %v4476, 0.0
        %v4481 = vmax.f32 %v4477, 0.0
        %v4482 = vmax.f32 %v4478, 0.0
        %v4483 = vmax.f32 %v4479, 0.0
        %v4484 = vmax.f32 %v4480, %v4482
        %v4485 = vmax.f32 %v4481, %v4483
        %vm4486 = vcmask 130048
        %v4488 = vsel %vm4486, %v3566, 0
        %v4491 = vsel %vm4486, %v3567, 0
        %4493 = vmatprep.subr.mxu0 0.0
        %4494 = vmatpush1.msra.mxu0 %v4484
        %4495 = vmatprep.subr.mxu0 0.0
        %4496 = vmatpush1.msra.mxu0 %v4485
        %4497 = vmatprep.subr.mxu0 0.0
        %4498 = vmatpush1.msra.mxu0 0.0
        %4499 = vmatprep.subr.mxu0 0.0
        %4500 = vmatpush1.msra.mxu0 0.0
        %4501 = vmatprep.subr.mxu0 0.0
        %4502 = vmatpush1.msra.mxu0 0.0
        %4503 = vmatprep.subr.mxu0 0.0
        %4504 = vmatpush1.msra.mxu0 0.0
        %4505 = vmatprep.subr.mxu0 0.0
        %4506 = vmatpush1.msra.mxu0 0.0
        %4507 = vmatprep.subr.mxu0 0.0
        %4508 = vmatpush1.msra.mxu0 0.0
        %4509 = vmatprep.subr.mxu0 0.0
        %4510 = vmatpush1.msra.mxu0 0.0
        %4511 = vmatprep.subr.mxu0 0.0
        %4512 = vmatpush1.msra.mxu0 0.0
        %4513 = vmatprep.subr.mxu0 0.0
        %4514 = vmatpush1.msra.mxu0 0.0
        %4515 = vmatprep.subr.mxu0 0.0
        %4516 = vmatpush1.msra.mxu0 0.0
        %4517 = vmatprep.subr.mxu0 0.0
        %4518 = vmatpush1.msra.mxu0 0.0
        %4519 = vmatprep.subr.mxu0 0.0
        %4520 = vmatpush1.msra.mxu0 0.0
        %4521 = vmatprep.subr.mxu0 0.0
        %4522 = vmatpush1.msra.mxu0 0.0
        %4523 = vmatprep.subr.mxu0 0.0
        %4524 = vmatpush1.msra.mxu0 0.0
        %4525 = vmatprep.subr.mxu0 0.0
        %4526 = vmatpush1.msra.mxu0 0.0
        %4527 = vmatprep.subr.mxu0 0.0
        %4528 = vmatpush1.msra.mxu0 0.0
        %4529 = vmatprep.subr.mxu0 0.0
        %4530 = vmatpush1.msra.mxu0 0.0
        %4531 = vmatprep.subr.mxu0 0.0
        %4532 = vmatpush1.msra.mxu0 0.0
        %4533 = vmatprep.subr.mxu0 0.0
        %4534 = vmatpush1.msra.mxu0 0.0
        %4535 = vmatprep.subr.mxu0 0.0
        %4536 = vmatpush1.msra.mxu0 0.0
        %4537 = vmatprep.subr.mxu0 0.0
        %4538 = vmatpush1.msra.mxu0 0.0
        %4539 = vmatprep.subr.mxu0 0.0
        %4540 = vmatpush1.msra.mxu0 0.0
        %4541 = vmatprep.subr.mxu0 0.0
        %4542 = vmatpush1.msra.mxu0 0.0
        %4543 = vmatprep.subr.mxu0 0.0
        %4544 = vmatpush1.msra.mxu0 0.0
        %4545 = vmatprep.subr.mxu0 0.0
        %4546 = vmatpush1.msra.mxu0 0.0
        %4547 = vmatprep.subr.mxu0 0.0
        %4548 = vmatpush1.msra.mxu0 0.0
        %4549 = vmatprep.subr.mxu0 0.0
        %4550 = vmatpush1.msra.mxu0 0.0
        %4551 = vmatprep.subr.mxu0 0.0
        %4552 = vmatpush1.msra.mxu0 0.0
        %4553 = vmatprep.subr.mxu0 0.0
        %4554 = vmatpush1.msra.mxu0 0.0
        %4555 = vmatprep.subr.mxu0 0.0
        %4556 = vmatpush1.msra.mxu0 0.0
        %4557 = vmatprep.mubr.f32.mxu0 0.0
        %4558 = vmatmul.mubr.f32.gmra.mrb[0].mxu0 %v4488
        %v4559 = vpop.f32.mrb[0].mxu0
        %v4560 = vadd.f32 0.0, %v4559
        %v4561 = vpop.f32.mrb[0].mxu0
        %4562 = vmatprep.mubr.f32.mxu0 0.0
        %4563 = vmatmul.mubr.f32.gmra.mrb[0].mxu0 %v4491
        %v4564 = vpop.f32.mrb[0].mxu0
        %v4565 = vadd.f32 0.0, %v4564
        %v4566 = vpop.f32.mrb[0].mxu0
        %4567 = vdwg.mxu0
        %v4569 = vsel %vm4486, %v3568, 0
        %v4572 = vsel %vm4486, %v3569, 0
        %4574 = vmatprep.subr.mxu0 0.0
        %4575 = vmatpush1.msra.mxu0 %v4484
        %4576 = vmatprep.subr.mxu0 0.0
        %4577 = vmatpush1.msra.mxu0 %v4485
        %4578 = vmatprep.subr.mxu0 0.0
        %4579 = vmatpush1.msra.mxu0 0.0
        %4580 = vmatprep.subr.mxu0 0.0
        %4581 = vmatpush1.msra.mxu0 0.0
        %4582 = vmatprep.subr.mxu0 0.0
        %4583 = vmatpush1.msra.mxu0 0.0
        %4584 = vmatprep.subr.mxu0 0.0
        %4585 = vmatpush1.msra.mxu0 0.0
        %4586 = vmatprep.subr.mxu0 0.0
        %4587 = vmatpush1.msra.mxu0 0.0
        %4588 = vmatprep.subr.mxu0 0.0
        %4589 = vmatpush1.msra.mxu0 0.0
        %4590 = vmatprep.subr.mxu0 0.0
        %4591 = vmatpush1.msra.mxu0 0.0
        %4592 = vmatprep.subr.mxu0 0.0
        %4593 = vmatpush1.msra.mxu0 0.0
        %4594 = vmatprep.subr.mxu0 0.0
        %4595 = vmatpush1.msra.mxu0 0.0
        %4596 = vmatprep.subr.mxu0 0.0
        %4597 = vmatpush1.msra.mxu0 0.0
        %4598 = vmatprep.subr.mxu0 0.0
        %4599 = vmatpush1.msra.mxu0 0.0
        %4600 = vmatprep.subr.mxu0 0.0
        %4601 = vmatpush1.msra.mxu0 0.0
        %4602 = vmatprep.subr.mxu0 0.0
        %4603 = vmatpush1.msra.mxu0 0.0
        %4604 = vmatprep.subr.mxu0 0.0
        %4605 = vmatpush1.msra.mxu0 0.0
        %4606 = vmatprep.subr.mxu0 0.0
        %4607 = vmatpush1.msra.mxu0 0.0
        %4608 = vmatprep.subr.mxu0 0.0
        %4609 = vmatpush1.msra.mxu0 0.0
        %4610 = vmatprep.subr.mxu0 0.0
        %4611 = vmatpush1.msra.mxu0 0.0
        %4612 = vmatprep.subr.mxu0 0.0
        %4613 = vmatpush1.msra.mxu0 0.0
        %4614 = vmatprep.subr.mxu0 0.0
        %4615 = vmatpush1.msra.mxu0 0.0
        %4616 = vmatprep.subr.mxu0 0.0
        %4617 = vmatpush1.msra.mxu0 0.0
        %4618 = vmatprep.subr.mxu0 0.0
        %4619 = vmatpush1.msra.mxu0 0.0
        %4620 = vmatprep.subr.mxu0 0.0
        %4621 = vmatpush1.msra.mxu0 0.0
        %4622 = vmatprep.subr.mxu0 0.0
        %4623 = vmatpush1.msra.mxu0 0.0
        %4624 = vmatprep.subr.mxu0 0.0
        %4625 = vmatpush1.msra.mxu0 0.0
        %4626 = vmatprep.subr.mxu0 0.0
        %4627 = vmatpush1.msra.mxu0 0.0
        %4628 = vmatprep.subr.mxu0 0.0
        %4629 = vmatpush1.msra.mxu0 0.0
        %4630 = vmatprep.subr.mxu0 0.0
        %4631 = vmatpush1.msra.mxu0 0.0
        %4632 = vmatprep.subr.mxu0 0.0
        %4633 = vmatpush1.msra.mxu0 0.0
        %4634 = vmatprep.subr.mxu0 0.0
        %4635 = vmatpush1.msra.mxu0 0.0
        %4636 = vmatprep.subr.mxu0 0.0
        %4637 = vmatpush1.msra.mxu0 0.0
        %4638 = vmatprep.mubr.f32.mxu0 0.0
        %4639 = vmatmul.mubr.f32.gmra.mrb[0].mxu0 %v4569
        %v4640 = vpop.f32.mrb[0].mxu0
        %v4641 = vadd.f32 0.0, %v4640
        %v4642 = vpop.f32.mrb[0].mxu0
        %4643 = vmatprep.mubr.f32.mxu0 0.0
        %4644 = vmatmul.mubr.f32.gmra.mrb[0].mxu0 %v4572
        %v4645 = vpop.f32.mrb[0].mxu0
        %v4646 = vadd.f32 0.0, %v4645
        %v4647 = vpop.f32.mrb[0].mxu0
        %4648 = vdwg.mxu0
        %v4649 = vmax.f32 %v4560, %v4641
        %v4650 = vmax.f32 %v4565, %v4646
        %s4651 = sadd.s32 %s3573, 1
        %s4652 = smul.u32 %s4651, 16
        %s4653 = scalar_lea.vmem [#allocation4], %s4652
        %4654 = vst [vmem:[%s4653] sm:$0xff] %v4649
        %4655 = vst [vmem:[%s4653 + $0x8] sm:$0x3] %v4650
      $region99: #{_lambda_.2} parent=79 // loop_footer
        %s3577 = sadd.s32 1, %s3573
      $region100: #{_lambda_.2} parent=79 // loop_footer_branch
        %3572 = sbr.rel target = $region96
      $region101: #{_lambda_.2} parent=79 // loop_exit
        _
      %v4656 = vld [vmem:[%s1 + $0x1] sm:$0xf]
      %v4657 = vld [vmem:[%s2 + $0x1] sm:$0xf]
      %v4658 = vld [vmem:[%s13] sm:$0x3]
      %v4659 = vld [vmem:[%s14] sm:$0x3]
      loop: start=0, step=1, limit=4
      $region102: #{_lambda_.2} parent=79 // loop_pre_header
        _
      $region103: #{_lambda_.2} parent=79 // loop_header
        %s4661 = sphi 0, %s4665
        %p4662 = scmp.ge.s32.totalorder %s4661, 4
      $region104: #{_lambda_.2} parent=79 // loop_header_branch
        %4664 = sbr.rel (%p4662) target = $region108
      $region105: #{_lambda_.2} parent=79 // loop_body
        %s4666 = smul.u32 %s4661, 2
        %s4667 = smul.u32 %s4666, 16
        %s4668 = scalar_lea.vmem [#allocation4], %s4667
        %v4669 = vld [vmem:[%s4668] sm:$0xff]
        %v4670 = vld [vmem:[%s4668 + $0x10] sm:$0xff]
        %v4671 = vpack.c.bf16 %v4670, %v4669
        %v4672 = vld [vmem:[%s12] sm:$0xff]
        %v4673 = vld [vmem:[%s12 + $0x8] sm:$0xff]
        %v4674 = vld [vmem:[%s12 + $0x10] sm:$0xff]
        %v4675 = vld [vmem:[%s12 + $0x18] sm:$0xff]
        %v4676 = vld [vmem:[%s12 + $0x20] sm:$0xff]
        %v4677 = vld [vmem:[%s12 + $0x28] sm:$0xff]
        %v4678 = vld [vmem:[%s12 + $0x30] sm:$0xff]
        %v4679 = vld [vmem:[%s12 + $0x38] sm:$0xff]
        %v4680 = vld [vmem:[%s12 + $0x40] sm:$0xff]
        %v4681 = vld [vmem:[%s12 + $0x48] sm:$0xff]
        %v4682 = vld [vmem:[%s12 + $0x50] sm:$0xff]
        %v4683 = vld [vmem:[%s12 + $0x58] sm:$0xff]
        %v4684 = vld [vmem:[%s12 + $0x60] sm:$0xff]
        %v4685 = vld [vmem:[%s12 + $0x68] sm:$0xff]
        %v4686 = vld [vmem:[%s12 + $0x70] sm:$0xff]
        %v4687 = vld [vmem:[%s12 + $0x78] sm:$0xff]
        %v4688 = vld [vmem:[%s4668 + $0x1] sm:$0xff]
        %v4689 = vld [vmem:[%s4668 + $0x11] sm:$0xff]
        %v4690 = vpack.c.bf16 %v4689, %v4688
        %s4691 = scalar_lea.vmem %s12, 128
        %v4692 = vld [vmem:[%s4691] sm:$0xff]
        %v4693 = vld [vmem:[%s4691 + $0x8] sm:$0xff]
        %v4694 = vld [vmem:[%s4691 + $0x10] sm:$0xff]
        %v4695 = vld [vmem:[%s4691 + $0x18] sm:$0xff]
        %v4696 = vld [vmem:[%s4691 + $0x20] sm:$0xff]
        %v4697 = vld [vmem:[%s4691 + $0x28] sm:$0xff]
        %v4698 = vld [vmem:[%s4691 + $0x30] sm:$0xff]
        %v4699 = vld [vmem:[%s4691 + $0x38] sm:$0xff]
        %v4700 = vld [vmem:[%s4691 + $0x40] sm:$0xff]
        %v4701 = vld [vmem:[%s4691 + $0x48] sm:$0xff]
        %v4702 = vld [vmem:[%s4691 + $0x50] sm:$0xff]
        %v4703 = vld [vmem:[%s4691 + $0x58] sm:$0xff]
        %v4704 = vld [vmem:[%s4691 + $0x60] sm:$0xff]
        %v4705 = vld [vmem:[%s4691 + $0x68] sm:$0xff]
        %v4706 = vld [vmem:[%s4691 + $0x70] sm:$0xff]
        %v4707 = vld [vmem:[%s4691 + $0x78] sm:$0xff]
        %v4724 = vunpack.c.l.b16 %v4692
        %v4725 = vunpack.c.h.b16 %v4692
        %v4726 = vunpack.c.l.b16 %v4693
        %v4727 = vunpack.c.h.b16 %v4693
        %v4728 = vunpack.c.l.b16 %v4694
        %v4729 = vunpack.c.h.b16 %v4694
        %v4730 = vunpack.c.l.b16 %v4695
        %v4731 = vunpack.c.h.b16 %v4695
        %v4732 = vunpack.c.l.b16 %v4696
        %v4733 = vunpack.c.h.b16 %v4696
        %v4734 = vunpack.c.l.b16 %v4697
        %v4735 = vunpack.c.h.b16 %v4697
        %v4736 = vunpack.c.l.b16 %v4698
        %v4737 = vunpack.c.h.b16 %v4698
        %v4738 = vunpack.c.l.b16 %v4699
        %v4739 = vunpack.c.h.b16 %v4699
        %v4740 = vunpack.c.l.b16 %v4700
        %v4741 = vunpack.c.h.b16 %v4700
        %v4742 = vunpack.c.l.b16 %v4701
        %v4743 = vunpack.c.h.b16 %v4701
        %v4744 = vunpack.c.l.b16 %v4702
        %v4745 = vunpack.c.h.b16 %v4702
        %v4746 = vunpack.c.l.b16 %v4703
        %v4747 = vunpack.c.h.b16 %v4703
        %v4748 = vunpack.c.l.b16 %v4704
        %v4749 = vunpack.c.h.b16 %v4704
        %v4750 = vunpack.c.l.b16 %v4705
        %v4751 = vunpack.c.h.b16 %v4705
        %v4752 = vunpack.c.l.b16 %v4706
        %v4753 = vunpack.c.h.b16 %v4706
        %v4754 = vunpack.c.l.b16 %v4707
        %v4755 = vunpack.c.h.b16 %v4707
        %v4756 = vpack.c.b16 %v4726, %v4724
        %v4757 = vpack.c.b16 %v4727, %v4725
        %v4758 = vpack.c.b16 %v4730, %v4728
        %v4759 = vpack.c.b16 %v4731, %v4729
        %v4760 = vpack.c.b16 %v4734, %v4732
        %v4761 = vpack.c.b16 %v4735, %v4733
        %v4762 = vpack.c.b16 %v4738, %v4736
        %v4763 = vpack.c.b16 %v4739, %v4737
        %v4764 = vpack.c.b16 %v4742, %v4740
        %v4765 = vpack.c.b16 %v4743, %v4741
        %v4766 = vpack.c.b16 %v4746, %v4744
        %v4767 = vpack.c.b16 %v4747, %v4745
        %v4768 = vpack.c.b16 %v4750, %v4748
        %v4769 = vpack.c.b16 %v4751, %v4749
        %v4770 = vpack.c.b16 %v4754, %v4752
        %v4771 = vpack.c.b16 %v4755, %v4753
        %4788 = vmatprep.subr.bf16.mxu0 %v4757
        %4789 = vmatpush1.bf16.msra.mxu0 %v4756
        %4790 = vmatprep.subr.bf16.mxu0 %v4759
        %4791 = vmatpush1.bf16.msra.mxu0 %v4758
        %4792 = vmatprep.subr.bf16.mxu0 %v4761
        %4793 = vmatpush1.bf16.msra.mxu0 %v4760
        %4794 = vmatprep.subr.bf16.mxu0 %v4763
        %4795 = vmatpush1.bf16.msra.mxu0 %v4762
        %4796 = vmatprep.subr.bf16.mxu0 %v4765
        %4797 = vmatpush1.bf16.msra.mxu0 %v4764
        %4798 = vmatprep.subr.bf16.mxu0 %v4767
        %4799 = vmatpush1.bf16.msra.mxu0 %v4766
        %4800 = vmatprep.subr.bf16.mxu0 %v4769
        %4801 = vmatpush1.bf16.msra.mxu0 %v4768
        %4802 = vmatprep.subr.bf16.mxu0 %v4771
        %4803 = vmatpush1.bf16.msra.mxu0 %v4770
        %4804 = vmatprep.subr.bf16.mxu0 0
        %4805 = vmatpush1.bf16.msra.mxu0 0
        %4806 = vmatprep.subr.bf16.mxu0 0
        %4807 = vmatpush1.bf16.msra.mxu0 0
        %4808 = vmatprep.subr.bf16.mxu0 0
        %4809 = vmatpush1.bf16.msra.mxu0 0
        %4810 = vmatprep.subr.bf16.mxu0 0
        %4811 = vmatpush1.bf16.msra.mxu0 0
        %4812 = vmatprep.subr.bf16.mxu0 0
        %4813 = vmatpush1.bf16.msra.mxu0 0
        %4814 = vmatprep.subr.bf16.mxu0 0
        %4815 = vmatpush1.bf16.msra.mxu0 0
        %4816 = vmatprep.subr.bf16.mxu0 0
        %4817 = vmatpush1.bf16.msra.mxu0 0
        %4818 = vmatprep.subr.bf16.mxu0 0
        %4819 = vmatpush1.bf16.msra.mxu0 0
        %4820 = vmatprep.mubr.bf16.mxu0 0
        %4821 = vmatmul.mubr.bf16.gmra.mrb[0].mxu0 %v4690
        %v4822 = vpop.f32.mrb[0].mxu0
        %v4823 = vadd.f32 0.0, %v4822
        %v4824 = vpop.f32.mrb[0].mxu0
        %v4825 = vadd.f32 0.0, %v4824
        %v4826 = vpop.f32.mrb[0].mxu0
        %v4827 = vadd.f32 0.0, %v4826
        %v4828 = vpop.f32.mrb[0].mxu0
        %v4829 = vadd.f32 0.0, %v4828
        %4830 = vdwg.mxu0
        %v4847 = vunpack.c.l.b16 %v4672
        %v4848 = vunpack.c.h.b16 %v4672
        %v4849 = vunpack.c.l.b16 %v4673
        %v4850 = vunpack.c.h.b16 %v4673
        %v4851 = vunpack.c.l.b16 %v4674
        %v4852 = vunpack.c.h.b16 %v4674
        %v4853 = vunpack.c.l.b16 %v4675
        %v4854 = vunpack.c.h.b16 %v4675
        %v4855 = vunpack.c.l.b16 %v4676
        %v4856 = vunpack.c.h.b16 %v4676
        %v4857 = vunpack.c.l.b16 %v4677
        %v4858 = vunpack.c.h.b16 %v4677
        %v4859 = vunpack.c.l.b16 %v4678
        %v4860 = vunpack.c.h.b16 %v4678
        %v4861 = vunpack.c.l.b16 %v4679
        %v4862 = vunpack.c.h.b16 %v4679
        %v4863 = vunpack.c.l.b16 %v4680
        %v4864 = vunpack.c.h.b16 %v4680
        %v4865 = vunpack.c.l.b16 %v4681
        %v4866 = vunpack.c.h.b16 %v4681
        %v4867 = vunpack.c.l.b16 %v4682
        %v4868 = vunpack.c.h.b16 %v4682
        %v4869 = vunpack.c.l.b16 %v4683
        %v4870 = vunpack.c.h.b16 %v4683
        %v4871 = vunpack.c.l.b16 %v4684
        %v4872 = vunpack.c.h.b16 %v4684
        %v4873 = vunpack.c.l.b16 %v4685
        %v4874 = vunpack.c.h.b16 %v4685
        %v4875 = vunpack.c.l.b16 %v4686
        %v4876 = vunpack.c.h.b16 %v4686
        %v4877 = vunpack.c.l.b16 %v4687
        %v4878 = vunpack.c.h.b16 %v4687
        %v4879 = vpack.c.b16 %v4849, %v4847
        %v4880 = vpack.c.b16 %v4850, %v4848
        %v4881 = vpack.c.b16 %v4853, %v4851
        %v4882 = vpack.c.b16 %v4854, %v4852
        %v4883 = vpack.c.b16 %v4857, %v4855
        %v4884 = vpack.c.b16 %v4858, %v4856
        %v4885 = vpack.c.b16 %v4861, %v4859
        %v4886 = vpack.c.b16 %v4862, %v4860
        %v4887 = vpack.c.b16 %v4865, %v4863
        %v4888 = vpack.c.b16 %v4866, %v4864
        %v4889 = vpack.c.b16 %v4869, %v4867
        %v4890 = vpack.c.b16 %v4870, %v4868
        %v4891 = vpack.c.b16 %v4873, %v4871
        %v4892 = vpack.c.b16 %v4874, %v4872
        %v4893 = vpack.c.b16 %v4877, %v4875
        %v4894 = vpack.c.b16 %v4878, %v4876
        %4911 = vmatprep.subr.bf16.mxu0 %v4880
        %4912 = vmatpush1.bf16.msra.mxu0 %v4879
        %4913 = vmatprep.subr.bf16.mxu0 %v4882
        %4914 = vmatpush1.bf16.msra.mxu0 %v4881
        %4915 = vmatprep.subr.bf16.mxu0 %v4884
        %4916 = vmatpush1.bf16.msra.mxu0 %v4883
        %4917 = vmatprep.subr.bf16.mxu0 %v4886
        %4918 = vmatpush1.bf16.msra.mxu0 %v4885
        %4919 = vmatprep.subr.bf16.mxu0 %v4888
        %4920 = vmatpush1.bf16.msra.mxu0 %v4887
        %4921 = vmatprep.subr.bf16.mxu0 %v4890
        %4922 = vmatpush1.bf16.msra.mxu0 %v4889
        %4923 = vmatprep.subr.bf16.mxu0 %v4892
        %4924 = vmatpush1.bf16.msra.mxu0 %v4891
        %4925 = vmatprep.subr.bf16.mxu0 %v4894
        %4926 = vmatpush1.bf16.msra.mxu0 %v4893
        %4927 = vmatprep.subr.bf16.mxu0 0
        %4928 = vmatpush1.bf16.msra.mxu0 0
        %4929 = vmatprep.subr.bf16.mxu0 0
        %4930 = vmatpush1.bf16.msra.mxu0 0
        %4931 = vmatprep.subr.bf16.mxu0 0
        %4932 = vmatpush1.bf16.msra.mxu0 0
        %4933 = vmatprep.subr.bf16.mxu0 0
        %4934 = vmatpush1.bf16.msra.mxu0 0
        %4935 = vmatprep.subr.bf16.mxu0 0
        %4936 = vmatpush1.bf16.msra.mxu0 0
        %4937 = vmatprep.subr.bf16.mxu0 0
        %4938 = vmatpush1.bf16.msra.mxu0 0
        %4939 = vmatprep.subr.bf16.mxu0 0
        %4940 = vmatpush1.bf16.msra.mxu0 0
        %4941 = vmatprep.subr.bf16.mxu0 0
        %4942 = vmatpush1.bf16.msra.mxu0 0
        %4943 = vmatprep.mubr.bf16.mxu0 0
        %4944 = vmatmul.mubr.bf16.gmra.mrb[0].mxu0 %v4671
        %v4945 = vpop.f32.mrb[0].mxu0
        %v4946 = vadd.f32 %v4823, %v4945
        %v4947 = vpop.f32.mrb[0].mxu0
        %v4948 = vadd.f32 %v4825, %v4947
        %v4949 = vpop.f32.mrb[0].mxu0
        %v4950 = vadd.f32 %v4827, %v4949
        %v4951 = vpop.f32.mrb[0].mxu0
        %v4952 = vadd.f32 %v4829, %v4951
        %4953 = vdwg.mxu0
        %v4954 = vld [vmem:[%s4668 + $0x2] sm:$0xff]
        %v4955 = vld [vmem:[%s4668 + $0x12] sm:$0xff]
        %v4956 = vpack.c.bf16 %v4955, %v4954
        %s4957 = scalar_lea.vmem %s12, 256
        %v4958 = vld [vmem:[%s4957] sm:$0xff]
        %v4959 = vld [vmem:[%s4957 + $0x8] sm:$0xff]
        %v4960 = vld [vmem:[%s4957 + $0x10] sm:$0xff]
        %v4961 = vld [vmem:[%s4957 + $0x18] sm:$0xff]
        %v4962 = vld [vmem:[%s4957 + $0x20] sm:$0xff]
        %v4963 = vld [vmem:[%s4957 + $0x28] sm:$0xff]
        %v4964 = vld [vmem:[%s4957 + $0x30] sm:$0xff]
        %v4965 = vld [vmem:[%s4957 + $0x38] sm:$0xff]
        %v4966 = vld [vmem:[%s4957 + $0x40] sm:$0xff]
        %v4967 = vld [vmem:[%s4957 + $0x48] sm:$0xff]
        %v4968 = vld [vmem:[%s4957 + $0x50] sm:$0xff]
        %v4969 = vld [vmem:[%s4957 + $0x58] sm:$0xff]
        %v4970 = vld [vmem:[%s4957 + $0x60] sm:$0xff]
        %v4971 = vld [vmem:[%s4957 + $0x68] sm:$0xff]
        %v4972 = vld [vmem:[%s4957 + $0x70] sm:$0xff]
        %v4973 = vld [vmem:[%s4957 + $0x78] sm:$0xff]
        %v4990 = vunpack.c.l.b16 %v4958
        %v4991 = vunpack.c.h.b16 %v4958
        %v4992 = vunpack.c.l.b16 %v4959
        %v4993 = vunpack.c.h.b16 %v4959
        %v4994 = vunpack.c.l.b16 %v4960
        %v4995 = vunpack.c.h.b16 %v4960
        %v4996 = vunpack.c.l.b16 %v4961
        %v4997 = vunpack.c.h.b16 %v4961
        %v4998 = vunpack.c.l.b16 %v4962
        %v4999 = vunpack.c.h.b16 %v4962
        %v5000 = vunpack.c.l.b16 %v4963
        %v5001 = vunpack.c.h.b16 %v4963
        %v5002 = vunpack.c.l.b16 %v4964
        %v5003 = vunpack.c.h.b16 %v4964
        %v5004 = vunpack.c.l.b16 %v4965
        %v5005 = vunpack.c.h.b16 %v4965
        %v5006 = vunpack.c.l.b16 %v4966
        %v5007 = vunpack.c.h.b16 %v4966
        %v5008 = vunpack.c.l.b16 %v4967
        %v5009 = vunpack.c.h.b16 %v4967
        %v5010 = vunpack.c.l.b16 %v4968
        %v5011 = vunpack.c.h.b16 %v4968
        %v5012 = vunpack.c.l.b16 %v4969
        %v5013 = vunpack.c.h.b16 %v4969
        %v5014 = vunpack.c.l.b16 %v4970
        %v5015 = vunpack.c.h.b16 %v4970
        %v5016 = vunpack.c.l.b16 %v4971
        %v5017 = vunpack.c.h.b16 %v4971
        %v5018 = vunpack.c.l.b16 %v4972
        %v5019 = vunpack.c.h.b16 %v4972
        %v5020 = vunpack.c.l.b16 %v4973
        %v5021 = vunpack.c.h.b16 %v4973
        %v5022 = vpack.c.b16 %v4992, %v4990
        %v5023 = vpack.c.b16 %v4993, %v4991
        %v5024 = vpack.c.b16 %v4996, %v4994
        %v5025 = vpack.c.b16 %v4997, %v4995
        %v5026 = vpack.c.b16 %v5000, %v4998
        %v5027 = vpack.c.b16 %v5001, %v4999
        %v5028 = vpack.c.b16 %v5004, %v5002
        %v5029 = vpack.c.b16 %v5005, %v5003
        %v5030 = vpack.c.b16 %v5008, %v5006
        %v5031 = vpack.c.b16 %v5009, %v5007
        %v5032 = vpack.c.b16 %v5012, %v5010
        %v5033 = vpack.c.b16 %v5013, %v5011
        %v5034 = vpack.c.b16 %v5016, %v5014
        %v5035 = vpack.c.b16 %v5017, %v5015
        %v5036 = vpack.c.b16 %v5020, %v5018
        %v5037 = vpack.c.b16 %v5021, %v5019
        %5054 = vmatprep.subr.bf16.mxu0 %v5023
        %5055 = vmatpush1.bf16.msra.mxu0 %v5022
        %5056 = vmatprep.subr.bf16.mxu0 %v5025
        %5057 = vmatpush1.bf16.msra.mxu0 %v5024
        %5058 = vmatprep.subr.bf16.mxu0 %v5027
        %5059 = vmatpush1.bf16.msra.mxu0 %v5026
        %5060 = vmatprep.subr.bf16.mxu0 %v5029
        %5061 = vmatpush1.bf16.msra.mxu0 %v5028
        %5062 = vmatprep.subr.bf16.mxu0 %v5031
        %5063 = vmatpush1.bf16.msra.mxu0 %v5030
        %5064 = vmatprep.subr.bf16.mxu0 %v5033
        %5065 = vmatpush1.bf16.msra.mxu0 %v5032
        %5066 = vmatprep.subr.bf16.mxu0 %v5035
        %5067 = vmatpush1.bf16.msra.mxu0 %v5034
        %5068 = vmatprep.subr.bf16.mxu0 %v5037
        %5069 = vmatpush1.bf16.msra.mxu0 %v5036
        %5070 = vmatprep.subr.bf16.mxu0 0
        %5071 = vmatpush1.bf16.msra.mxu0 0
        %5072 = vmatprep.subr.bf16.mxu0 0
        %5073 = vmatpush1.bf16.msra.mxu0 0
        %5074 = vmatprep.subr.bf16.mxu0 0
        %5075 = vmatpush1.bf16.msra.mxu0 0
        %5076 = vmatprep.subr.bf16.mxu0 0
        %5077 = vmatpush1.bf16.msra.mxu0 0
        %5078 = vmatprep.subr.bf16.mxu0 0
        %5079 = vmatpush1.bf16.msra.mxu0 0
        %5080 = vmatprep.subr.bf16.mxu0 0
        %5081 = vmatpush1.bf16.msra.mxu0 0
        %5082 = vmatprep.subr.bf16.mxu0 0
        %5083 = vmatpush1.bf16.msra.mxu0 0
        %5084 = vmatprep.subr.bf16.mxu0 0
        %5085 = vmatpush1.bf16.msra.mxu0 0
        %5086 = vmatprep.mubr.bf16.mxu0 0
        %5087 = vmatmul.mubr.bf16.gmra.mrb[0].mxu0 %v4956
        %v5088 = vpop.f32.mrb[0].mxu0
        %v5089 = vadd.f32 0.0, %v5088
        %v5090 = vpop.f32.mrb[0].mxu0
        %v5091 = vadd.f32 0.0, %v5090
        %v5092 = vpop.f32.mrb[0].mxu0
        %v5093 = vadd.f32 0.0, %v5092
        %v5094 = vpop.f32.mrb[0].mxu0
        %v5095 = vadd.f32 0.0, %v5094
        %5096 = vdwg.mxu0
        %v5097 = vadd.f32 %v4946, %v5089
        %v5098 = vadd.f32 %v4948, %v5091
        %v5099 = vadd.f32 %v4950, %v5093
        %v5100 = vadd.f32 %v4952, %v5095
        %s5101 = sadd.s32 %s4666, 1
        %s5102 = smul.u32 %s5101, 16
        %s5103 = scalar_lea.vmem [#allocation4], %s5102
        %v5104 = vld [vmem:[%s5103] sm:$0xff]
        %v5105 = vld [vmem:[%s5103 + $0x10] sm:$0xff]
        %v5106 = vpack.c.bf16 %v5105, %v5104
        %s5107 = scalar_lea.vmem %s12, 384
        %v5108 = vld [vmem:[%s5107] sm:$0xff]
        %v5109 = vld [vmem:[%s5107 + $0x8] sm:$0xff]
        %v5110 = vld [vmem:[%s5107 + $0x10] sm:$0xff]
        %v5111 = vld [vmem:[%s5107 + $0x18] sm:$0xff]
        %v5112 = vld [vmem:[%s5107 + $0x20] sm:$0xff]
        %v5113 = vld [vmem:[%s5107 + $0x28] sm:$0xff]
        %v5114 = vld [vmem:[%s5107 + $0x30] sm:$0xff]
        %v5115 = vld [vmem:[%s5107 + $0x38] sm:$0xff]
        %v5116 = vld [vmem:[%s5107 + $0x40] sm:$0xff]
        %v5117 = vld [vmem:[%s5107 + $0x48] sm:$0xff]
        %v5118 = vld [vmem:[%s5107 + $0x50] sm:$0xff]
        %v5119 = vld [vmem:[%s5107 + $0x58] sm:$0xff]
        %v5120 = vld [vmem:[%s5107 + $0x60] sm:$0xff]
        %v5121 = vld [vmem:[%s5107 + $0x68] sm:$0xff]
        %v5122 = vld [vmem:[%s5107 + $0x70] sm:$0xff]
        %v5123 = vld [vmem:[%s5107 + $0x78] sm:$0xff]
        %v5140 = vunpack.c.l.b16 %v5108
        %v5141 = vunpack.c.h.b16 %v5108
        %v5142 = vunpack.c.l.b16 %v5109
        %v5143 = vunpack.c.h.b16 %v5109
        %v5144 = vunpack.c.l.b16 %v5110
        %v5145 = vunpack.c.h.b16 %v5110
        %v5146 = vunpack.c.l.b16 %v5111
        %v5147 = vunpack.c.h.b16 %v5111
        %v5148 = vunpack.c.l.b16 %v5112
        %v5149 = vunpack.c.h.b16 %v5112
        %v5150 = vunpack.c.l.b16 %v5113
        %v5151 = vunpack.c.h.b16 %v5113
        %v5152 = vunpack.c.l.b16 %v5114
        %v5153 = vunpack.c.h.b16 %v5114
        %v5154 = vunpack.c.l.b16 %v5115
        %v5155 = vunpack.c.h.b16 %v5115
        %v5156 = vunpack.c.l.b16 %v5116
        %v5157 = vunpack.c.h.b16 %v5116
        %v5158 = vunpack.c.l.b16 %v5117
        %v5159 = vunpack.c.h.b16 %v5117
        %v5160 = vunpack.c.l.b16 %v5118
        %v5161 = vunpack.c.h.b16 %v5118
        %v5162 = vunpack.c.l.b16 %v5119
        %v5163 = vunpack.c.h.b16 %v5119
        %v5164 = vunpack.c.l.b16 %v5120
        %v5165 = vunpack.c.h.b16 %v5120
        %v5166 = vunpack.c.l.b16 %v5121
        %v5167 = vunpack.c.h.b16 %v5121
        %v5168 = vunpack.c.l.b16 %v5122
        %v5169 = vunpack.c.h.b16 %v5122
        %v5170 = vunpack.c.l.b16 %v5123
        %v5171 = vunpack.c.h.b16 %v5123
        %v5172 = vpack.c.b16 %v5142, %v5140
        %v5173 = vpack.c.b16 %v5143, %v5141
        %v5174 = vpack.c.b16 %v5146, %v5144
        %v5175 = vpack.c.b16 %v5147, %v5145
        %v5176 = vpack.c.b16 %v5150, %v5148
        %v5177 = vpack.c.b16 %v5151, %v5149
        %v5178 = vpack.c.b16 %v5154, %v5152
        %v5179 = vpack.c.b16 %v5155, %v5153
        %v5180 = vpack.c.b16 %v5158, %v5156
        %v5181 = vpack.c.b16 %v5159, %v5157
        %v5182 = vpack.c.b16 %v5162, %v5160
        %v5183 = vpack.c.b16 %v5163, %v5161
        %v5184 = vpack.c.b16 %v5166, %v5164
        %v5185 = vpack.c.b16 %v5167, %v5165
        %v5186 = vpack.c.b16 %v5170, %v5168
        %v5187 = vpack.c.b16 %v5171, %v5169
        %5204 = vmatprep.subr.bf16.mxu0 %v5173
        %5205 = vmatpush1.bf16.msra.mxu0 %v5172
        %5206 = vmatprep.subr.bf16.mxu0 %v5175
        %5207 = vmatpush1.bf16.msra.mxu0 %v5174
        %5208 = vmatprep.subr.bf16.mxu0 %v5177
        %5209 = vmatpush1.bf16.msra.mxu0 %v5176
        %5210 = vmatprep.subr.bf16.mxu0 %v5179
        %5211 = vmatpush1.bf16.msra.mxu0 %v5178
        %5212 = vmatprep.subr.bf16.mxu0 %v5181
        %5213 = vmatpush1.bf16.msra.mxu0 %v5180
        %5214 = vmatprep.subr.bf16.mxu0 %v5183
        %5215 = vmatpush1.bf16.msra.mxu0 %v5182
        %5216 = vmatprep.subr.bf16.mxu0 %v5185
        %5217 = vmatpush1.bf16.msra.mxu0 %v5184
        %5218 = vmatprep.subr.bf16.mxu0 %v5187
        %5219 = vmatpush1.bf16.msra.mxu0 %v5186
        %5220 = vmatprep.subr.bf16.mxu0 0
        %5221 = vmatpush1.bf16.msra.mxu0 0
        %5222 = vmatprep.subr.bf16.mxu0 0
        %5223 = vmatpush1.bf16.msra.mxu0 0
        %5224 = vmatprep.subr.bf16.mxu0 0
        %5225 = vmatpush1.bf16.msra.mxu0 0
        %5226 = vmatprep.subr.bf16.mxu0 0
        %5227 = vmatpush1.bf16.msra.mxu0 0
        %5228 = vmatprep.subr.bf16.mxu0 0
        %5229 = vmatpush1.bf16.msra.mxu0 0
        %5230 = vmatprep.subr.bf16.mxu0 0
        %5231 = vmatpush1.bf16.msra.mxu0 0
        %5232 = vmatprep.subr.bf16.mxu0 0
        %5233 = vmatpush1.bf16.msra.mxu0 0
        %5234 = vmatprep.subr.bf16.mxu0 0
        %5235 = vmatpush1.bf16.msra.mxu0 0
        %5236 = vmatprep.mubr.bf16.mxu0 0
        %5237 = vmatmul.mubr.bf16.gmra.mrb[0].mxu0 %v5106
        %v5238 = vpop.f32.mrb[0].mxu0
        %v5239 = vadd.f32 0.0, %v5238
        %v5240 = vpop.f32.mrb[0].mxu0
        %v5241 = vadd.f32 0.0, %v5240
        %v5242 = vpop.f32.mrb[0].mxu0
        %v5243 = vadd.f32 0.0, %v5242
        %v5244 = vpop.f32.mrb[0].mxu0
        %v5245 = vadd.f32 0.0, %v5244
        %5246 = vdwg.mxu0
        %v5247 = vadd.f32 %v5097, %v5239
        %v5248 = vadd.f32 %v5098, %v5241
        %v5249 = vadd.f32 %v5099, %v5243
        %v5250 = vadd.f32 %v5100, %v5245
        %v5251 = vld [vmem:[%s5103 + $0x1] sm:$0xff]
        %v5252 = vld [vmem:[%s5103 + $0x11] sm:$0xff]
        %v5253 = vpack.c.bf16 %v5252, %v5251
        %s5254 = scalar_lea.vmem %s12, 512
        %v5255 = vld [vmem:[%s5254] sm:$0xff]
        %v5256 = vld [vmem:[%s5254 + $0x8] sm:$0xff]
        %v5257 = vld [vmem:[%s5254 + $0x10] sm:$0xff]
        %v5258 = vld [vmem:[%s5254 + $0x18] sm:$0xff]
        %v5259 = vld [vmem:[%s5254 + $0x20] sm:$0xff]
        %v5260 = vld [vmem:[%s5254 + $0x28] sm:$0xff]
        %v5261 = vld [vmem:[%s5254 + $0x30] sm:$0xff]
        %v5262 = vld [vmem:[%s5254 + $0x38] sm:$0xff]
        %v5263 = vld [vmem:[%s5254 + $0x40] sm:$0xff]
        %v5264 = vld [vmem:[%s5254 + $0x48] sm:$0xff]
        %v5265 = vld [vmem:[%s5254 + $0x50] sm:$0xff]
        %v5266 = vld [vmem:[%s5254 + $0x58] sm:$0xff]
        %v5267 = vld [vmem:[%s5254 + $0x60] sm:$0xff]
        %v5268 = vld [vmem:[%s5254 + $0x68] sm:$0xff]
        %v5269 = vld [vmem:[%s5254 + $0x70] sm:$0xff]
        %v5270 = vld [vmem:[%s5254 + $0x78] sm:$0xff]
        %v5287 = vunpack.c.l.b16 %v5255
        %v5288 = vunpack.c.h.b16 %v5255
        %v5289 = vunpack.c.l.b16 %v5256
        %v5290 = vunpack.c.h.b16 %v5256
        %v5291 = vunpack.c.l.b16 %v5257
        %v5292 = vunpack.c.h.b16 %v5257
        %v5293 = vunpack.c.l.b16 %v5258
        %v5294 = vunpack.c.h.b16 %v5258
        %v5295 = vunpack.c.l.b16 %v5259
        %v5296 = vunpack.c.h.b16 %v5259
        %v5297 = vunpack.c.l.b16 %v5260
        %v5298 = vunpack.c.h.b16 %v5260
        %v5299 = vunpack.c.l.b16 %v5261
        %v5300 = vunpack.c.h.b16 %v5261
        %v5301 = vunpack.c.l.b16 %v5262
        %v5302 = vunpack.c.h.b16 %v5262
        %v5303 = vunpack.c.l.b16 %v5263
        %v5304 = vunpack.c.h.b16 %v5263
        %v5305 = vunpack.c.l.b16 %v5264
        %v5306 = vunpack.c.h.b16 %v5264
        %v5307 = vunpack.c.l.b16 %v5265
        %v5308 = vunpack.c.h.b16 %v5265
        %v5309 = vunpack.c.l.b16 %v5266
        %v5310 = vunpack.c.h.b16 %v5266
        %v5311 = vunpack.c.l.b16 %v5267
        %v5312 = vunpack.c.h.b16 %v5267
        %v5313 = vunpack.c.l.b16 %v5268
        %v5314 = vunpack.c.h.b16 %v5268
        %v5315 = vunpack.c.l.b16 %v5269
        %v5316 = vunpack.c.h.b16 %v5269
        %v5317 = vunpack.c.l.b16 %v5270
        %v5318 = vunpack.c.h.b16 %v5270
        %v5319 = vpack.c.b16 %v5289, %v5287
        %v5320 = vpack.c.b16 %v5290, %v5288
        %v5321 = vpack.c.b16 %v5293, %v5291
        %v5322 = vpack.c.b16 %v5294, %v5292
        %v5323 = vpack.c.b16 %v5297, %v5295
        %v5324 = vpack.c.b16 %v5298, %v5296
        %v5325 = vpack.c.b16 %v5301, %v5299
        %v5326 = vpack.c.b16 %v5302, %v5300
        %v5327 = vpack.c.b16 %v5305, %v5303
        %v5328 = vpack.c.b16 %v5306, %v5304
        %v5329 = vpack.c.b16 %v5309, %v5307
        %v5330 = vpack.c.b16 %v5310, %v5308
        %v5331 = vpack.c.b16 %v5313, %v5311
        %v5332 = vpack.c.b16 %v5314, %v5312
        %v5333 = vpack.c.b16 %v5317, %v5315
        %v5334 = vpack.c.b16 %v5318, %v5316
        %5351 = vmatprep.subr.bf16.mxu0 %v5320
        %5352 = vmatpush1.bf16.msra.mxu0 %v5319
        %5353 = vmatprep.subr.bf16.mxu0 %v5322
        %5354 = vmatpush1.bf16.msra.mxu0 %v5321
        %5355 = vmatprep.subr.bf16.mxu0 %v5324
        %5356 = vmatpush1.bf16.msra.mxu0 %v5323
        %5357 = vmatprep.subr.bf16.mxu0 %v5326
        %5358 = vmatpush1.bf16.msra.mxu0 %v5325
        %5359 = vmatprep.subr.bf16.mxu0 %v5328
        %5360 = vmatpush1.bf16.msra.mxu0 %v5327
        %5361 = vmatprep.subr.bf16.mxu0 %v5330
        %5362 = vmatpush1.bf16.msra.mxu0 %v5329
        %5363 = vmatprep.subr.bf16.mxu0 %v5332
        %5364 = vmatpush1.bf16.msra.mxu0 %v5331
        %5365 = vmatprep.subr.bf16.mxu0 %v5334
        %5366 = vmatpush1.bf16.msra.mxu0 %v5333
        %5367 = vmatprep.subr.bf16.mxu0 0
        %5368 = vmatpush1.bf16.msra.mxu0 0
        %5369 = vmatprep.subr.bf16.mxu0 0
        %5370 = vmatpush1.bf16.msra.mxu0 0
        %5371 = vmatprep.subr.bf16.mxu0 0
        %5372 = vmatpush1.bf16.msra.mxu0 0
        %5373 = vmatprep.subr.bf16.mxu0 0
        %5374 = vmatpush1.bf16.msra.mxu0 0
        %5375 = vmatprep.subr.bf16.mxu0 0
        %5376 = vmatpush1.bf16.msra.mxu0 0
        %5377 = vmatprep.subr.bf16.mxu0 0
        %5378 = vmatpush1.bf16.msra.mxu0 0
        %5379 = vmatprep.subr.bf16.mxu0 0
        %5380 = vmatpush1.bf16.msra.mxu0 0
        %5381 = vmatprep.subr.bf16.mxu0 0
        %5382 = vmatpush1.bf16.msra.mxu0 0
        %5383 = vmatprep.mubr.bf16.mxu0 0
        %5384 = vmatmul.mubr.bf16.gmra.mrb[0].mxu0 %v5253
        %v5385 = vpop.f32.mrb[0].mxu0
        %v5386 = vadd.f32 0.0, %v5385
        %v5387 = vpop.f32.mrb[0].mxu0
        %v5388 = vadd.f32 0.0, %v5387
        %v5389 = vpop.f32.mrb[0].mxu0
        %v5390 = vadd.f32 0.0, %v5389
        %v5391 = vpop.f32.mrb[0].mxu0
        %v5392 = vadd.f32 0.0, %v5391
        %5393 = vdwg.mxu0
        %v5394 = vadd.f32 %v5247, %v5386
        %v5395 = vadd.f32 %v5248, %v5388
        %v5396 = vadd.f32 %v5249, %v5390
        %v5397 = vadd.f32 %v5250, %v5392
        %v5398 = vld [vmem:[%s5103 + $0x2] sm:$0xff]
        %v5399 = vld [vmem:[%s5103 + $0x12] sm:$0xff]
        %v5400 = vpack.c.bf16 %v5399, %v5398
        %s5401 = scalar_lea.vmem %s12, 640
        %v5402 = vld [vmem:[%s5401] sm:$0xff]
        %v5403 = vld [vmem:[%s5401 + $0x8] sm:$0xff]
        %v5404 = vld [vmem:[%s5401 + $0x10] sm:$0xff]
        %v5405 = vld [vmem:[%s5401 + $0x18] sm:$0xff]
        %v5406 = vld [vmem:[%s5401 + $0x20] sm:$0xff]
        %v5407 = vld [vmem:[%s5401 + $0x28] sm:$0xff]
        %v5408 = vld [vmem:[%s5401 + $0x30] sm:$0xff]
        %v5409 = vld [vmem:[%s5401 + $0x38] sm:$0xff]
        %v5410 = vld [vmem:[%s5401 + $0x40] sm:$0xff]
        %v5411 = vld [vmem:[%s5401 + $0x48] sm:$0xff]
        %v5412 = vld [vmem:[%s5401 + $0x50] sm:$0xff]
        %v5413 = vld [vmem:[%s5401 + $0x58] sm:$0xff]
        %v5414 = vld [vmem:[%s5401 + $0x60] sm:$0xff]
        %v5415 = vld [vmem:[%s5401 + $0x68] sm:$0xff]
        %v5416 = vld [vmem:[%s5401 + $0x70] sm:$0xff]
        %v5417 = vld [vmem:[%s5401 + $0x78] sm:$0xff]
        %v5434 = vunpack.c.l.b16 %v5402
        %v5435 = vunpack.c.h.b16 %v5402
        %v5436 = vunpack.c.l.b16 %v5403
        %v5437 = vunpack.c.h.b16 %v5403
        %v5438 = vunpack.c.l.b16 %v5404
        %v5439 = vunpack.c.h.b16 %v5404
        %v5440 = vunpack.c.l.b16 %v5405
        %v5441 = vunpack.c.h.b16 %v5405
        %v5442 = vunpack.c.l.b16 %v5406
        %v5443 = vunpack.c.h.b16 %v5406
        %v5444 = vunpack.c.l.b16 %v5407
        %v5445 = vunpack.c.h.b16 %v5407
        %v5446 = vunpack.c.l.b16 %v5408
        %v5447 = vunpack.c.h.b16 %v5408
        %v5448 = vunpack.c.l.b16 %v5409
        %v5449 = vunpack.c.h.b16 %v5409
        %v5450 = vunpack.c.l.b16 %v5410
        %v5451 = vunpack.c.h.b16 %v5410
        %v5452 = vunpack.c.l.b16 %v5411
        %v5453 = vunpack.c.h.b16 %v5411
        %v5454 = vunpack.c.l.b16 %v5412
        %v5455 = vunpack.c.h.b16 %v5412
        %v5456 = vunpack.c.l.b16 %v5413
        %v5457 = vunpack.c.h.b16 %v5413
        %v5458 = vunpack.c.l.b16 %v5414
        %v5459 = vunpack.c.h.b16 %v5414
        %v5460 = vunpack.c.l.b16 %v5415
        %v5461 = vunpack.c.h.b16 %v5415
        %v5462 = vunpack.c.l.b16 %v5416
        %v5463 = vunpack.c.h.b16 %v5416
        %v5464 = vunpack.c.l.b16 %v5417
        %v5465 = vunpack.c.h.b16 %v5417
        %v5466 = vpack.c.b16 %v5436, %v5434
        %v5467 = vpack.c.b16 %v5437, %v5435
        %v5468 = vpack.c.b16 %v5440, %v5438
        %v5469 = vpack.c.b16 %v5441, %v5439
        %v5470 = vpack.c.b16 %v5444, %v5442
        %v5471 = vpack.c.b16 %v5445, %v5443
        %v5472 = vpack.c.b16 %v5448, %v5446
        %v5473 = vpack.c.b16 %v5449, %v5447
        %v5474 = vpack.c.b16 %v5452, %v5450
        %v5475 = vpack.c.b16 %v5453, %v5451
        %v5476 = vpack.c.b16 %v5456, %v5454
        %v5477 = vpack.c.b16 %v5457, %v5455
        %v5478 = vpack.c.b16 %v5460, %v5458
        %v5479 = vpack.c.b16 %v5461, %v5459
        %v5480 = vpack.c.b16 %v5464, %v5462
        %v5481 = vpack.c.b16 %v5465, %v5463
        %5498 = vmatprep.subr.bf16.mxu0 %v5467
        %5499 = vmatpush1.bf16.msra.mxu0 %v5466
        %5500 = vmatprep.subr.bf16.mxu0 %v5469
        %5501 = vmatpush1.bf16.msra.mxu0 %v5468
        %5502 = vmatprep.subr.bf16.mxu0 %v5471
        %5503 = vmatpush1.bf16.msra.mxu0 %v5470
        %5504 = vmatprep.subr.bf16.mxu0 %v5473
        %5505 = vmatpush1.bf16.msra.mxu0 %v5472
        %5506 = vmatprep.subr.bf16.mxu0 %v5475
        %5507 = vmatpush1.bf16.msra.mxu0 %v5474
        %5508 = vmatprep.subr.bf16.mxu0 %v5477
        %5509 = vmatpush1.bf16.msra.mxu0 %v5476
        %5510 = vmatprep.subr.bf16.mxu0 %v5479
        %5511 = vmatpush1.bf16.msra.mxu0 %v5478
        %5512 = vmatprep.subr.bf16.mxu0 %v5481
        %5513 = vmatpush1.bf16.msra.mxu0 %v5480
        %5514 = vmatprep.subr.bf16.mxu0 0
        %5515 = vmatpush1.bf16.msra.mxu0 0
        %5516 = vmatprep.subr.bf16.mxu0 0
        %5517 = vmatpush1.bf16.msra.mxu0 0
        %5518 = vmatprep.subr.bf16.mxu0 0
        %5519 = vmatpush1.bf16.msra.mxu0 0
        %5520 = vmatprep.subr.bf16.mxu0 0
        %5521 = vmatpush1.bf16.msra.mxu0 0
        %5522 = vmatprep.subr.bf16.mxu0 0
        %5523 = vmatpush1.bf16.msra.mxu0 0
        %5524 = vmatprep.subr.bf16.mxu0 0
        %5525 = vmatpush1.bf16.msra.mxu0 0
        %5526 = vmatprep.subr.bf16.mxu0 0
        %5527 = vmatpush1.bf16.msra.mxu0 0
        %5528 = vmatprep.subr.bf16.mxu0 0
        %5529 = vmatpush1.bf16.msra.mxu0 0
        %5530 = vmatprep.mubr.bf16.mxu0 0
        %5531 = vmatmul.mubr.bf16.gmra.mrb[0].mxu0 %v5400
        %v5532 = vpop.f32.mrb[0].mxu0
        %v5533 = vadd.f32 0.0, %v5532
        %v5534 = vpop.f32.mrb[0].mxu0
        %v5535 = vadd.f32 0.0, %v5534
        %v5536 = vpop.f32.mrb[0].mxu0
        %v5537 = vadd.f32 0.0, %v5536
        %v5538 = vpop.f32.mrb[0].mxu0
        %v5539 = vadd.f32 0.0, %v5538
        %5540 = vdwg.mxu0
        %v5541 = vadd.f32 %v5394, %v5533
        %v5542 = vadd.f32 %v5395, %v5535
        %v5543 = vadd.f32 %v5396, %v5537
        %v5544 = vadd.f32 %v5397, %v5539
        %s5545 = sadd.s32 %s4666, 2
        %s5546 = smul.u32 %s5545, 16
        %s5547 = scalar_lea.vmem [#allocation4], %s5546
        %v5548 = vld [vmem:[%s5547] sm:$0xff]
        %v5549 = vld [vmem:[%s5547 + $0x10] sm:$0xff]
        %v5550 = vpack.c.bf16 %v5549, %v5548
        %s5551 = scalar_lea.vmem %s12, 768
        %v5552 = vld [vmem:[%s5551] sm:$0xff]
        %v5553 = vld [vmem:[%s5551 + $0x8] sm:$0xff]
        %v5554 = vld [vmem:[%s5551 + $0x10] sm:$0xff]
        %v5555 = vld [vmem:[%s5551 + $0x18] sm:$0xff]
        %v5556 = vld [vmem:[%s5551 + $0x20] sm:$0xff]
        %v5557 = vld [vmem:[%s5551 + $0x28] sm:$0xff]
        %v5558 = vld [vmem:[%s5551 + $0x30] sm:$0xff]
        %v5559 = vld [vmem:[%s5551 + $0x38] sm:$0xff]
        %v5560 = vld [vmem:[%s5551 + $0x40] sm:$0xff]
        %v5561 = vld [vmem:[%s5551 + $0x48] sm:$0xff]
        %v5562 = vld [vmem:[%s5551 + $0x50] sm:$0xff]
        %v5563 = vld [vmem:[%s5551 + $0x58] sm:$0xff]
        %v5564 = vld [vmem:[%s5551 + $0x60] sm:$0xff]
        %v5565 = vld [vmem:[%s5551 + $0x68] sm:$0xff]
        %v5566 = vld [vmem:[%s5551 + $0x70] sm:$0xff]
        %v5567 = vld [vmem:[%s5551 + $0x78] sm:$0xff]
        %v5584 = vunpack.c.l.b16 %v5552
        %v5585 = vunpack.c.h.b16 %v5552
        %v5586 = vunpack.c.l.b16 %v5553
        %v5587 = vunpack.c.h.b16 %v5553
        %v5588 = vunpack.c.l.b16 %v5554
        %v5589 = vunpack.c.h.b16 %v5554
        %v5590 = vunpack.c.l.b16 %v5555
        %v5591 = vunpack.c.h.b16 %v5555
        %v5592 = vunpack.c.l.b16 %v5556
        %v5593 = vunpack.c.h.b16 %v5556
        %v5594 = vunpack.c.l.b16 %v5557
        %v5595 = vunpack.c.h.b16 %v5557
        %v5596 = vunpack.c.l.b16 %v5558
        %v5597 = vunpack.c.h.b16 %v5558
        %v5598 = vunpack.c.l.b16 %v5559
        %v5599 = vunpack.c.h.b16 %v5559
        %v5600 = vunpack.c.l.b16 %v5560
        %v5601 = vunpack.c.h.b16 %v5560
        %v5602 = vunpack.c.l.b16 %v5561
        %v5603 = vunpack.c.h.b16 %v5561
        %v5604 = vunpack.c.l.b16 %v5562
        %v5605 = vunpack.c.h.b16 %v5562
        %v5606 = vunpack.c.l.b16 %v5563
        %v5607 = vunpack.c.h.b16 %v5563
        %v5608 = vunpack.c.l.b16 %v5564
        %v5609 = vunpack.c.h.b16 %v5564
        %v5610 = vunpack.c.l.b16 %v5565
        %v5611 = vunpack.c.h.b16 %v5565
        %v5612 = vunpack.c.l.b16 %v5566
        %v5613 = vunpack.c.h.b16 %v5566
        %v5614 = vunpack.c.l.b16 %v5567
        %v5615 = vunpack.c.h.b16 %v5567
        %v5616 = vpack.c.b16 %v5586, %v5584
        %v5617 = vpack.c.b16 %v5587, %v5585
        %v5618 = vpack.c.b16 %v5590, %v5588
        %v5619 = vpack.c.b16 %v5591, %v5589
        %v5620 = vpack.c.b16 %v5594, %v5592
        %v5621 = vpack.c.b16 %v5595, %v5593
        %v5622 = vpack.c.b16 %v5598, %v5596
        %v5623 = vpack.c.b16 %v5599, %v5597
        %v5624 = vpack.c.b16 %v5602, %v5600
        %v5625 = vpack.c.b16 %v5603, %v5601
        %v5626 = vpack.c.b16 %v5606, %v5604
        %v5627 = vpack.c.b16 %v5607, %v5605
        %v5628 = vpack.c.b16 %v5610, %v5608
        %v5629 = vpack.c.b16 %v5611, %v5609
        %v5630 = vpack.c.b16 %v5614, %v5612
        %v5631 = vpack.c.b16 %v5615, %v5613
        %5648 = vmatprep.subr.bf16.mxu0 %v5617
        %5649 = vmatpush1.bf16.msra.mxu0 %v5616
        %5650 = vmatprep.subr.bf16.mxu0 %v5619
        %5651 = vmatpush1.bf16.msra.mxu0 %v5618
        %5652 = vmatprep.subr.bf16.mxu0 %v5621
        %5653 = vmatpush1.bf16.msra.mxu0 %v5620
        %5654 = vmatprep.subr.bf16.mxu0 %v5623
        %5655 = vmatpush1.bf16.msra.mxu0 %v5622
        %5656 = vmatprep.subr.bf16.mxu0 %v5625
        %5657 = vmatpush1.bf16.msra.mxu0 %v5624
        %5658 = vmatprep.subr.bf16.mxu0 %v5627
        %5659 = vmatpush1.bf16.msra.mxu0 %v5626
        %5660 = vmatprep.subr.bf16.mxu0 %v5629
        %5661 = vmatpush1.bf16.msra.mxu0 %v5628
        %5662 = vmatprep.subr.bf16.mxu0 %v5631
        %5663 = vmatpush1.bf16.msra.mxu0 %v5630
        %5664 = vmatprep.subr.bf16.mxu0 0
        %5665 = vmatpush1.bf16.msra.mxu0 0
        %5666 = vmatprep.subr.bf16.mxu0 0
        %5667 = vmatpush1.bf16.msra.mxu0 0
        %5668 = vmatprep.subr.bf16.mxu0 0
        %5669 = vmatpush1.bf16.msra.mxu0 0
        %5670 = vmatprep.subr.bf16.mxu0 0
        %5671 = vmatpush1.bf16.msra.mxu0 0
        %5672 = vmatprep.subr.bf16.mxu0 0
        %5673 = vmatpush1.bf16.msra.mxu0 0
        %5674 = vmatprep.subr.bf16.mxu0 0
        %5675 = vmatpush1.bf16.msra.mxu0 0
        %5676 = vmatprep.subr.bf16.mxu0 0
        %5677 = vmatpush1.bf16.msra.mxu0 0
        %5678 = vmatprep.subr.bf16.mxu0 0
        %5679 = vmatpush1.bf16.msra.mxu0 0
        %5680 = vmatprep.mubr.bf16.mxu0 0
        %5681 = vmatmul.mubr.bf16.gmra.mrb[0].mxu0 %v5550
        %v5682 = vpop.f32.mrb[0].mxu0
        %v5683 = vadd.f32 0.0, %v5682
        %v5684 = vpop.f32.mrb[0].mxu0
        %v5685 = vadd.f32 0.0, %v5684
        %v5686 = vpop.f32.mrb[0].mxu0
        %v5687 = vadd.f32 0.0, %v5686
        %v5688 = vpop.f32.mrb[0].mxu0
        %v5689 = vadd.f32 0.0, %v5688
        %5690 = vdwg.mxu0
        %v5691 = vadd.f32 %v5541, %v5683
        %v5692 = vadd.f32 %v5542, %v5685
        %v5693 = vadd.f32 %v5543, %v5687
        %v5694 = vadd.f32 %v5544, %v5689
        %v5695 = vld [vmem:[%s5547 + $0x1] sm:$0xff]
        %v5696 = vld [vmem:[%s5547 + $0x11] sm:$0xff]
        %v5697 = vpack.c.bf16 %v5696, %v5695
        %s5698 = scalar_lea.vmem %s12, 896
        %v5699 = vld [vmem:[%s5698] sm:$0xff]
        %v5700 = vld [vmem:[%s5698 + $0x8] sm:$0xff]
        %v5701 = vld [vmem:[%s5698 + $0x10] sm:$0xff]
        %v5702 = vld [vmem:[%s5698 + $0x18] sm:$0xff]
        %v5703 = vld [vmem:[%s5698 + $0x20] sm:$0xff]
        %v5704 = vld [vmem:[%s5698 + $0x28] sm:$0xff]
        %v5705 = vld [vmem:[%s5698 + $0x30] sm:$0xff]
        %v5706 = vld [vmem:[%s5698 + $0x38] sm:$0xff]
        %v5707 = vld [vmem:[%s5698 + $0x40] sm:$0xff]
        %v5708 = vld [vmem:[%s5698 + $0x48] sm:$0xff]
        %v5709 = vld [vmem:[%s5698 + $0x50] sm:$0xff]
        %v5710 = vld [vmem:[%s5698 + $0x58] sm:$0xff]
        %v5711 = vld [vmem:[%s5698 + $0x60] sm:$0xff]
        %v5712 = vld [vmem:[%s5698 + $0x68] sm:$0xff]
        %v5713 = vld [vmem:[%s5698 + $0x70] sm:$0xff]
        %v5714 = vld [vmem:[%s5698 + $0x78] sm:$0xff]
        %v5731 = vunpack.c.l.b16 %v5699
        %v5732 = vunpack.c.h.b16 %v5699
        %v5733 = vunpack.c.l.b16 %v5700
        %v5734 = vunpack.c.h.b16 %v5700
        %v5735 = vunpack.c.l.b16 %v5701
        %v5736 = vunpack.c.h.b16 %v5701
        %v5737 = vunpack.c.l.b16 %v5702
        %v5738 = vunpack.c.h.b16 %v5702
        %v5739 = vunpack.c.l.b16 %v5703
        %v5740 = vunpack.c.h.b16 %v5703
        %v5741 = vunpack.c.l.b16 %v5704
        %v5742 = vunpack.c.h.b16 %v5704
        %v5743 = vunpack.c.l.b16 %v5705
        %v5744 = vunpack.c.h.b16 %v5705
        %v5745 = vunpack.c.l.b16 %v5706
        %v5746 = vunpack.c.h.b16 %v5706
        %v5747 = vunpack.c.l.b16 %v5707
        %v5748 = vunpack.c.h.b16 %v5707
        %v5749 = vunpack.c.l.b16 %v5708
        %v5750 = vunpack.c.h.b16 %v5708
        %v5751 = vunpack.c.l.b16 %v5709
        %v5752 = vunpack.c.h.b16 %v5709
        %v5753 = vunpack.c.l.b16 %v5710
        %v5754 = vunpack.c.h.b16 %v5710
        %v5755 = vunpack.c.l.b16 %v5711
        %v5756 = vunpack.c.h.b16 %v5711
        %v5757 = vunpack.c.l.b16 %v5712
        %v5758 = vunpack.c.h.b16 %v5712
        %v5759 = vunpack.c.l.b16 %v5713
        %v5760 = vunpack.c.h.b16 %v5713
        %v5761 = vunpack.c.l.b16 %v5714
        %v5762 = vunpack.c.h.b16 %v5714
        %v5763 = vpack.c.b16 %v5733, %v5731
        %v5764 = vpack.c.b16 %v5734, %v5732
        %v5765 = vpack.c.b16 %v5737, %v5735
        %v5766 = vpack.c.b16 %v5738, %v5736
        %v5767 = vpack.c.b16 %v5741, %v5739
        %v5768 = vpack.c.b16 %v5742, %v5740
        %v5769 = vpack.c.b16 %v5745, %v5743
        %v5770 = vpack.c.b16 %v5746, %v5744
        %v5771 = vpack.c.b16 %v5749, %v5747
        %v5772 = vpack.c.b16 %v5750, %v5748
        %v5773 = vpack.c.b16 %v5753, %v5751
        %v5774 = vpack.c.b16 %v5754, %v5752
        %v5775 = vpack.c.b16 %v5757, %v5755
        %v5776 = vpack.c.b16 %v5758, %v5756
        %v5777 = vpack.c.b16 %v5761, %v5759
        %v5778 = vpack.c.b16 %v5762, %v5760
        %5795 = vmatprep.subr.bf16.mxu0 %v5764
        %5796 = vmatpush1.bf16.msra.mxu0 %v5763
        %5797 = vmatprep.subr.bf16.mxu0 %v5766
        %5798 = vmatpush1.bf16.msra.mxu0 %v5765
        %5799 = vmatprep.subr.bf16.mxu0 %v5768
        %5800 = vmatpush1.bf16.msra.mxu0 %v5767
        %5801 = vmatprep.subr.bf16.mxu0 %v5770
        %5802 = vmatpush1.bf16.msra.mxu0 %v5769
        %5803 = vmatprep.subr.bf16.mxu0 %v5772
        %5804 = vmatpush1.bf16.msra.mxu0 %v5771
        %5805 = vmatprep.subr.bf16.mxu0 %v5774
        %5806 = vmatpush1.bf16.msra.mxu0 %v5773
        %5807 = vmatprep.subr.bf16.mxu0 %v5776
        %5808 = vmatpush1.bf16.msra.mxu0 %v5775
        %5809 = vmatprep.subr.bf16.mxu0 %v5778
        %5810 = vmatpush1.bf16.msra.mxu0 %v5777
        %5811 = vmatprep.subr.bf16.mxu0 0
        %5812 = vmatpush1.bf16.msra.mxu0 0
        %5813 = vmatprep.subr.bf16.mxu0 0
        %5814 = vmatpush1.bf16.msra.mxu0 0
        %5815 = vmatprep.subr.bf16.mxu0 0
        %5816 = vmatpush1.bf16.msra.mxu0 0
        %5817 = vmatprep.subr.bf16.mxu0 0
        %5818 = vmatpush1.bf16.msra.mxu0 0
        %5819 = vmatprep.subr.bf16.mxu0 0
        %5820 = vmatpush1.bf16.msra.mxu0 0
        %5821 = vmatprep.subr.bf16.mxu0 0
        %5822 = vmatpush1.bf16.msra.mxu0 0
        %5823 = vmatprep.subr.bf16.mxu0 0
        %5824 = vmatpush1.bf16.msra.mxu0 0
        %5825 = vmatprep.subr.bf16.mxu0 0
        %5826 = vmatpush1.bf16.msra.mxu0 0
        %5827 = vmatprep.mubr.bf16.mxu0 0
        %5828 = vmatmul.mubr.bf16.gmra.mrb[0].mxu0 %v5697
        %v5829 = vpop.f32.mrb[0].mxu0
        %v5830 = vadd.f32 0.0, %v5829
        %v5831 = vpop.f32.mrb[0].mxu0
        %v5832 = vadd.f32 0.0, %v5831
        %v5833 = vpop.f32.mrb[0].mxu0
        %v5834 = vadd.f32 0.0, %v5833
        %v5835 = vpop.f32.mrb[0].mxu0
        %v5836 = vadd.f32 0.0, %v5835
        %5837 = vdwg.mxu0
        %v5838 = vadd.f32 %v5691, %v5830
        %v5839 = vadd.f32 %v5692, %v5832
        %v5840 = vadd.f32 %v5693, %v5834
        %v5841 = vadd.f32 %v5694, %v5836
        %v5842 = vld [vmem:[%s5547 + $0x2] sm:$0xff]
        %v5843 = vld [vmem:[%s5547 + $0x12] sm:$0xff]
        %v5844 = vpack.c.bf16 %v5843, %v5842
        %s5845 = scalar_lea.vmem %s12, 1024
        %v5846 = vld [vmem:[%s5845] sm:$0xff]
        %v5847 = vld [vmem:[%s5845 + $0x8] sm:$0xff]
        %v5848 = vld [vmem:[%s5845 + $0x10] sm:$0xff]
        %v5849 = vld [vmem:[%s5845 + $0x18] sm:$0xff]
        %v5850 = vld [vmem:[%s5845 + $0x20] sm:$0xff]
        %v5851 = vld [vmem:[%s5845 + $0x28] sm:$0xff]
        %v5852 = vld [vmem:[%s5845 + $0x30] sm:$0xff]
        %v5853 = vld [vmem:[%s5845 + $0x38] sm:$0xff]
        %v5854 = vld [vmem:[%s5845 + $0x40] sm:$0xff]
        %v5855 = vld [vmem:[%s5845 + $0x48] sm:$0xff]
        %v5856 = vld [vmem:[%s5845 + $0x50] sm:$0xff]
        %v5857 = vld [vmem:[%s5845 + $0x58] sm:$0xff]
        %v5858 = vld [vmem:[%s5845 + $0x60] sm:$0xff]
        %v5859 = vld [vmem:[%s5845 + $0x68] sm:$0xff]
        %v5860 = vld [vmem:[%s5845 + $0x70] sm:$0xff]
        %v5861 = vld [vmem:[%s5845 + $0x78] sm:$0xff]
        %v5878 = vunpack.c.l.b16 %v5846
        %v5879 = vunpack.c.h.b16 %v5846
        %v5880 = vunpack.c.l.b16 %v5847
        %v5881 = vunpack.c.h.b16 %v5847
        %v5882 = vunpack.c.l.b16 %v5848
        %v5883 = vunpack.c.h.b16 %v5848
        %v5884 = vunpack.c.l.b16 %v5849
        %v5885 = vunpack.c.h.b16 %v5849
        %v5886 = vunpack.c.l.b16 %v5850
        %v5887 = vunpack.c.h.b16 %v5850
        %v5888 = vunpack.c.l.b16 %v5851
        %v5889 = vunpack.c.h.b16 %v5851
        %v5890 = vunpack.c.l.b16 %v5852
        %v5891 = vunpack.c.h.b16 %v5852
        %v5892 = vunpack.c.l.b16 %v5853
        %v5893 = vunpack.c.h.b16 %v5853
        %v5894 = vunpack.c.l.b16 %v5854
        %v5895 = vunpack.c.h.b16 %v5854
        %v5896 = vunpack.c.l.b16 %v5855
        %v5897 = vunpack.c.h.b16 %v5855
        %v5898 = vunpack.c.l.b16 %v5856
        %v5899 = vunpack.c.h.b16 %v5856
        %v5900 = vunpack.c.l.b16 %v5857
        %v5901 = vunpack.c.h.b16 %v5857
        %v5902 = vunpack.c.l.b16 %v5858
        %v5903 = vunpack.c.h.b16 %v5858
        %v5904 = vunpack.c.l.b16 %v5859
        %v5905 = vunpack.c.h.b16 %v5859
        %v5906 = vunpack.c.l.b16 %v5860
        %v5907 = vunpack.c.h.b16 %v5860
        %v5908 = vunpack.c.l.b16 %v5861
        %v5909 = vunpack.c.h.b16 %v5861
        %v5910 = vpack.c.b16 %v5880, %v5878
        %v5911 = vpack.c.b16 %v5881, %v5879
        %v5912 = vpack.c.b16 %v5884, %v5882
        %v5913 = vpack.c.b16 %v5885, %v5883
        %v5914 = vpack.c.b16 %v5888, %v5886
        %v5915 = vpack.c.b16 %v5889, %v5887
        %v5916 = vpack.c.b16 %v5892, %v5890
        %v5917 = vpack.c.b16 %v5893, %v5891
        %v5918 = vpack.c.b16 %v5896, %v5894
        %v5919 = vpack.c.b16 %v5897, %v5895
        %v5920 = vpack.c.b16 %v5900, %v5898
        %v5921 = vpack.c.b16 %v5901, %v5899
        %v5922 = vpack.c.b16 %v5904, %v5902
        %v5923 = vpack.c.b16 %v5905, %v5903
        %v5924 = vpack.c.b16 %v5908, %v5906
        %v5925 = vpack.c.b16 %v5909, %v5907
        %5942 = vmatprep.subr.bf16.mxu0 %v5911
        %5943 = vmatpush1.bf16.msra.mxu0 %v5910
        %5944 = vmatprep.subr.bf16.mxu0 %v5913
        %5945 = vmatpush1.bf16.msra.mxu0 %v5912
        %5946 = vmatprep.subr.bf16.mxu0 %v5915
        %5947 = vmatpush1.bf16.msra.mxu0 %v5914
        %5948 = vmatprep.subr.bf16.mxu0 %v5917
        %5949 = vmatpush1.bf16.msra.mxu0 %v5916
        %5950 = vmatprep.subr.bf16.mxu0 %v5919
        %5951 = vmatpush1.bf16.msra.mxu0 %v5918
        %5952 = vmatprep.subr.bf16.mxu0 %v5921
        %5953 = vmatpush1.bf16.msra.mxu0 %v5920
        %5954 = vmatprep.subr.bf16.mxu0 %v5923
        %5955 = vmatpush1.bf16.msra.mxu0 %v5922
        %5956 = vmatprep.subr.bf16.mxu0 %v5925
        %5957 = vmatpush1.bf16.msra.mxu0 %v5924
        %5958 = vmatprep.subr.bf16.mxu0 0
        %5959 = vmatpush1.bf16.msra.mxu0 0
        %5960 = vmatprep.subr.bf16.mxu0 0
        %5961 = vmatpush1.bf16.msra.mxu0 0
        %5962 = vmatprep.subr.bf16.mxu0 0
        %5963 = vmatpush1.bf16.msra.mxu0 0
        %5964 = vmatprep.subr.bf16.mxu0 0
        %5965 = vmatpush1.bf16.msra.mxu0 0
        %5966 = vmatprep.subr.bf16.mxu0 0
        %5967 = vmatpush1.bf16.msra.mxu0 0
        %5968 = vmatprep.subr.bf16.mxu0 0
        %5969 = vmatpush1.bf16.msra.mxu0 0
        %5970 = vmatprep.subr.bf16.mxu0 0
        %5971 = vmatpush1.bf16.msra.mxu0 0
        %5972 = vmatprep.subr.bf16.mxu0 0
        %5973 = vmatpush1.bf16.msra.mxu0 0
        %5974 = vmatprep.mubr.bf16.mxu0 0
        %5975 = vmatmul.mubr.bf16.gmra.mrb[0].mxu0 %v5844
        %v5976 = vpop.f32.mrb[0].mxu0
        %v5977 = vadd.f32 0.0, %v5976
        %v5978 = vpop.f32.mrb[0].mxu0
        %v5979 = vadd.f32 0.0, %v5978
        %v5980 = vpop.f32.mrb[0].mxu0
        %v5981 = vadd.f32 0.0, %v5980
        %v5982 = vpop.f32.mrb[0].mxu0
        %v5983 = vadd.f32 0.0, %v5982
        %5984 = vdwg.mxu0
        %v5985 = vadd.f32 %v5838, %v5977
        %v5986 = vadd.f32 %v5839, %v5979
        %v5987 = vadd.f32 %v5840, %v5981
        %v5988 = vadd.f32 %v5841, %v5983
        %v5990 = vlaneseq
        %v5991 = vshrl.u32 %v5990, 7
        %v5992 = vsub.s32 0, %v5991
        %v5993 = vrot.slane %v4658, %v5992
        %v5994 = vlaneseq
        %v5995 = vshrl.u32 %v5994, 7
        %v5996 = vsub.s32 1, %v5995
        %v5997 = vrot.slane %v4658, %v5996
        %v6000 = vmul.f32 %v5985, %v5993
        %v6001 = vmul.f32 %v5986, %v5997
        %v6002 = vmul.f32 %v5987, %v5993
        %v6003 = vmul.f32 %v5988, %v5997
        %v6005 = vlaneseq
        %v6006 = vshrl.u32 %v6005, 7
        %v6007 = vsub.s32 0, %v6006
        %v6008 = vrot.slane %v4659, %v6007
        %v6009 = vlaneseq
        %v6010 = vshrl.u32 %v6009, 7
        %v6011 = vsub.s32 1, %v6010
        %v6012 = vrot.slane %v4659, %v6011
        %v6015 = vadd.f32 %v6000, %v6008
        %v6016 = vadd.f32 %v6001, %v6012
        %v6017 = vadd.f32 %v6002, %v6008
        %v6018 = vadd.f32 %v6003, %v6012
        %v6019 = vmax.f32 %v6015, 0.0
        %v6020 = vmax.f32 %v6016, 0.0
        %v6021 = vmax.f32 %v6017, 0.0
        %v6022 = vmax.f32 %v6018, 0.0
        %v6023 = vmax.f32 %v6019, %v6021
        %v6024 = vmax.f32 %v6020, %v6022
        %vm6025 = vcmask 64512
        %v6027 = vsel %vm6025, %v4656, 0
        %6029 = vmatprep.subr.mxu0 %v6024
        %6030 = vmatpush1.msra.mxu0 %v6023
        %6031 = vmatprep.subr.mxu0 0.0
        %6032 = vmatpush1.msra.mxu0 0.0
        %6033 = vmatprep.subr.mxu0 0.0
        %6034 = vmatpush1.msra.mxu0 0.0
        %6035 = vmatprep.subr.mxu0 0.0
        %6036 = vmatpush1.msra.mxu0 0.0
        %6037 = vmatprep.subr.mxu0 0.0
        %6038 = vmatpush1.msra.mxu0 0.0
        %6039 = vmatprep.subr.mxu0 0.0
        %6040 = vmatpush1.msra.mxu0 0.0
        %6041 = vmatprep.subr.mxu0 0.0
        %6042 = vmatpush1.msra.mxu0 0.0
        %6043 = vmatprep.subr.mxu0 0.0
        %6044 = vmatpush1.msra.mxu0 0.0
        %6045 = vmatprep.subr.mxu0 0.0
        %6046 = vmatpush1.msra.mxu0 0.0
        %6047 = vmatprep.subr.mxu0 0.0
        %6048 = vmatpush1.msra.mxu0 0.0
        %6049 = vmatprep.subr.mxu0 0.0
        %6050 = vmatpush1.msra.mxu0 0.0
        %6051 = vmatprep.subr.mxu0 0.0
        %6052 = vmatpush1.msra.mxu0 0.0
        %6053 = vmatprep.subr.mxu0 0.0
        %6054 = vmatpush1.msra.mxu0 0.0
        %6055 = vmatprep.subr.mxu0 0.0
        %6056 = vmatpush1.msra.mxu0 0.0
        %6057 = vmatprep.subr.mxu0 0.0
        %6058 = vmatpush1.msra.mxu0 0.0
        %6059 = vmatprep.subr.mxu0 0.0
        %6060 = vmatpush1.msra.mxu0 0.0
        %6061 = vmatprep.subr.mxu0 0.0
        %6062 = vmatpush1.msra.mxu0 0.0
        %6063 = vmatprep.subr.mxu0 0.0
        %6064 = vmatpush1.msra.mxu0 0.0
        %6065 = vmatprep.subr.mxu0 0.0
        %6066 = vmatpush1.msra.mxu0 0.0
        %6067 = vmatprep.subr.mxu0 0.0
        %6068 = vmatpush1.msra.mxu0 0.0
        %6069 = vmatprep.subr.mxu0 0.0
        %6070 = vmatpush1.msra.mxu0 0.0
        %6071 = vmatprep.subr.mxu0 0.0
        %6072 = vmatpush1.msra.mxu0 0.0
        %6073 = vmatprep.subr.mxu0 0.0
        %6074 = vmatpush1.msra.mxu0 0.0
        %6075 = vmatprep.subr.mxu0 0.0
        %6076 = vmatpush1.msra.mxu0 0.0
        %6077 = vmatprep.subr.mxu0 0.0
        %6078 = vmatpush1.msra.mxu0 0.0
        %6079 = vmatprep.subr.mxu0 0.0
        %6080 = vmatpush1.msra.mxu0 0.0
        %6081 = vmatprep.subr.mxu0 0.0
        %6082 = vmatpush1.msra.mxu0 0.0
        %6083 = vmatprep.subr.mxu0 0.0
        %6084 = vmatpush1.msra.mxu0 0.0
        %6085 = vmatprep.subr.mxu0 0.0
        %6086 = vmatpush1.msra.mxu0 0.0
        %6087 = vmatprep.subr.mxu0 0.0
        %6088 = vmatpush1.msra.mxu0 0.0
        %6089 = vmatprep.subr.mxu0 0.0
        %6090 = vmatpush1.msra.mxu0 0.0
        %6091 = vmatprep.subr.mxu0 0.0
        %6092 = vmatpush1.msra.mxu0 0.0
        %6093 = vmatprep.mubr.f32.mxu0 0.0
        %6094 = vmatmul.mubr.f32.gmra.mrb[0].mxu0 %v6027
        %v6095 = vpop.f32.mrb[0].mxu0
        %v6096 = vadd.f32 0.0, %v6095
        %v6097 = vpop.f32.mrb[0].mxu0
        %v6098 = vadd.f32 0.0, %v6097
        %6099 = vdwg.mxu0
        %v6101 = vsel %vm6025, %v4657, 0
        %6103 = vmatprep.subr.mxu0 %v6024
        %6104 = vmatpush1.msra.mxu0 %v6023
        %6105 = vmatprep.subr.mxu0 0.0
        %6106 = vmatpush1.msra.mxu0 0.0
        %6107 = vmatprep.subr.mxu0 0.0
        %6108 = vmatpush1.msra.mxu0 0.0
        %6109 = vmatprep.subr.mxu0 0.0
        %6110 = vmatpush1.msra.mxu0 0.0
        %6111 = vmatprep.subr.mxu0 0.0
        %6112 = vmatpush1.msra.mxu0 0.0
        %6113 = vmatprep.subr.mxu0 0.0
        %6114 = vmatpush1.msra.mxu0 0.0
        %6115 = vmatprep.subr.mxu0 0.0
        %6116 = vmatpush1.msra.mxu0 0.0
        %6117 = vmatprep.subr.mxu0 0.0
        %6118 = vmatpush1.msra.mxu0 0.0
        %6119 = vmatprep.subr.mxu0 0.0
        %6120 = vmatpush1.msra.mxu0 0.0
        %6121 = vmatprep.subr.mxu0 0.0
        %6122 = vmatpush1.msra.mxu0 0.0
        %6123 = vmatprep.subr.mxu0 0.0
        %6124 = vmatpush1.msra.mxu0 0.0
        %6125 = vmatprep.subr.mxu0 0.0
        %6126 = vmatpush1.msra.mxu0 0.0
        %6127 = vmatprep.subr.mxu0 0.0
        %6128 = vmatpush1.msra.mxu0 0.0
        %6129 = vmatprep.subr.mxu0 0.0
        %6130 = vmatpush1.msra.mxu0 0.0
        %6131 = vmatprep.subr.mxu0 0.0
        %6132 = vmatpush1.msra.mxu0 0.0
        %6133 = vmatprep.subr.mxu0 0.0
        %6134 = vmatpush1.msra.mxu0 0.0
        %6135 = vmatprep.subr.mxu0 0.0
        %6136 = vmatpush1.msra.mxu0 0.0
        %6137 = vmatprep.subr.mxu0 0.0
        %6138 = vmatpush1.msra.mxu0 0.0
        %6139 = vmatprep.subr.mxu0 0.0
        %6140 = vmatpush1.msra.mxu0 0.0
        %6141 = vmatprep.subr.mxu0 0.0
        %6142 = vmatpush1.msra.mxu0 0.0
        %6143 = vmatprep.subr.mxu0 0.0
        %6144 = vmatpush1.msra.mxu0 0.0
        %6145 = vmatprep.subr.mxu0 0.0
        %6146 = vmatpush1.msra.mxu0 0.0
        %6147 = vmatprep.subr.mxu0 0.0
        %6148 = vmatpush1.msra.mxu0 0.0
        %6149 = vmatprep.subr.mxu0 0.0
        %6150 = vmatpush1.msra.mxu0 0.0
        %6151 = vmatprep.subr.mxu0 0.0
        %6152 = vmatpush1.msra.mxu0 0.0
        %6153 = vmatprep.subr.mxu0 0.0
        %6154 = vmatpush1.msra.mxu0 0.0
        %6155 = vmatprep.subr.mxu0 0.0
        %6156 = vmatpush1.msra.mxu0 0.0
        %6157 = vmatprep.subr.mxu0 0.0
        %6158 = vmatpush1.msra.mxu0 0.0
        %6159 = vmatprep.subr.mxu0 0.0
        %6160 = vmatpush1.msra.mxu0 0.0
        %6161 = vmatprep.subr.mxu0 0.0
        %6162 = vmatpush1.msra.mxu0 0.0
        %6163 = vmatprep.subr.mxu0 0.0
        %6164 = vmatpush1.msra.mxu0 0.0
        %6165 = vmatprep.subr.mxu0 0.0
        %6166 = vmatpush1.msra.mxu0 0.0
        %6167 = vmatprep.mubr.f32.mxu0 0.0
        %6168 = vmatmul.mubr.f32.gmra.mrb[0].mxu0 %v6101
        %v6169 = vpop.f32.mrb[0].mxu0
        %v6170 = vadd.f32 0.0, %v6169
        %v6171 = vpop.f32.mrb[0].mxu0
        %v6172 = vadd.f32 0.0, %v6171
        %6173 = vdwg.mxu0
        %v6174 = vmax.f32 %v6096, %v6170
        %v6175 = vmax.f32 %v6098, %v6172
        %v6178 = vcombine.low %v6174, %v6175
        %s6180 = smul.addr %s4666, 4
        %s6181 = scalar_lea.vmem %s494, %s6180
        %6182 = vst [vmem:[%s6181] sm:$0xff] %v6178
      $region106: #{_lambda_.2} parent=79 // loop_footer
        %s4665 = sadd.s32 1, %s4661
      $region107: #{_lambda_.2} parent=79 // loop_footer_branch
        %4660 = sbr.rel target = $region103
      $region108: #{_lambda_.2} parent=79 // loop_exit
        _
      %p6183 = scmp.lt.s32.totalorder %s26, 1
      %s6184 = scalar_select %p6183, %s26, 1
      %s6185 = smul.addr %s6184, 8
      %s6186 = smul.addr %s6185, 4
      %s6187 = scalar_lea.vmem %s15, %s6186
      // Predicated region
      $region109: #{_lambda_.2} parent=79 // pred_check
        %p6188 = pneg %p364
      $region110: #{_lambda_.2} parent=79 // pred_check_branch
        %6190 = sbr.rel (%p6188) target = $region112
      $region111: #{_lambda_.2} parent=79 // pred_region
        _
      $region112: #{_lambda_.2} parent=79 // pred_fallthru
        _
    $region80: #{_lambda_.2} parent=5 // pred_fallthru
      _
    %p6191 = scmp.le.s32.totalorder 2, %s21
    // Predicated region
    $region113: #{_lambda_.2} parent=5 // pred_check
      %p6192 = pneg %p6191
    $region114: #{_lambda_.2} parent=5 // pred_check_branch
      %6194 = sbr.rel (%p6192) target = $region116
    $region115: #{_lambda_.2} parent=5 // pred_region
      %s6195 = ssub.s32 %s21, 2
      // Predicated region
      $region117: #{_lambda_.2} parent=115 // pred_check
        %p6196 = pneg %p370
      $region118: #{_lambda_.2} parent=115 // pred_check_branch
        %6198 = sbr.rel (%p6196) target = $region120
      $region119: #{_lambda_.2} parent=115 // pred_region
        %p6199 = scmp.lt.s32.totalorder %s27, 1
        %s6200 = scalar_select %p6199, %s27, 1
        %s6201 = smul.addr %s6200, 8
        %s6202 = smul.addr %s6201, 4
        %s6203 = scalar_lea.vmem %s15, %s6202
      $region120: #{_lambda_.2} parent=115 // pred_fallthru
        _
    $region116: #{_lambda_.2} parent=5 // pred_fallthru
      _
  $region6: #{_lambda_.2} parent=0 // loop_footer
    %s25 = sadd.s32 1, %s21
  $region7: #{_lambda_.2} parent=0 // loop_footer_branch
    %20 = sbr.rel target = $region3
  $region8: #{_lambda_.2} parent=0 // loop_exit
    _

</llo_original>
